<compile_context>
chip_gen: v5e
topology: v5e:2x2
jax: 0.10.0
libtpu: 0.0.40
codegen_flags: <defaults>
</compile_context>

<pallas_src>
import jax
import jax.numpy as jnp
import numpy as np
from jax import lax
from jax.experimental import pallas as pl
from jax.experimental.pallas import tpu as pltpu


_KTAP = 16   # conv1 im2col K: 9 taps + 1 bias column, zero-padded to 16
_RPP = 272   # 17*16 rows per parity block = zero-padded pool1 slab (h_pad, w_pad)
_RE = 224    # 14*16 extended conv2 output rows per image (2 junk cols per row)


# ----------------------------------------------------------------------------
# Kernel A: conv1 + ReLU + pool1 + conv2 + ReLU + pool2, G images / grid step
# ----------------------------------------------------------------------------
def _trunk_kernel(x_ref, w1_ref, w2_ref, b2_ref, o_ref):
    # x_ref : (G, 4, 272, 16)  conv1 im2col, parity-major, padded 17x16 grid
    # w1_ref: (16, 32)  rows 0..8 = conv1 taps, row 9 = bias, rest zero
    # w2_ref: (288, 64) conv2 weights, row = (dy*3+dx)*32 + cin
    # b2_ref: (1, 64)
    # o_ref : (G, 3136) lane-dense features, order f = h*448 + w*64 + c
    g = x_ref.shape[0]

    # conv1 (+ folded bias) as one MXU matmul over all parities / padded pixels
    x = x_ref[...].reshape(g * 4 * _RPP, _KTAP)
    y1 = jnp.dot(x, w1_ref[...], preferred_element_type=jnp.float32)
    y1 = jnp.maximum(y1, 0.0).reshape(g, 4, _RPP, 32)   # padding rows stay 0

    # 2x2/2 max-pool1 == max over the 4 parity slabs (contiguous, 8-aligned)
    p = jnp.maximum(jnp.maximum(y1[:, 0], y1[:, 1]),
                    jnp.maximum(y1[:, 2], y1[:, 3]))    # (G, 272, 32) padded pool1

    # conv2 im2col: 9 shifted contiguous row slices, concatenated along K
    taps = [p[:, dy * 16 + dx: dy * 16 + dx + _RE, :].reshape(g * _RE, 32)
            for dy in range(3) for dx in range(3)]
    t = jnp.concatenate(taps, axis=1)                   # (G*224, 288)

    # conv2 (32->64) as a single K=288 MXU matmul, f32 accumulation
    y2 = jnp.dot(t, w2_ref[...], preferred_element_type=jnp.float32)
    y2 = jnp.maximum(y2 + b2_ref[...], 0.0)             # (G*224, 64)

    # 2x2/2 max-pool2 on the 14x16 extended grid (even/odd slice maxima)
    y2 = y2.reshape(g, 14, 8, 2, 64)
    y2 = jnp.maximum(y2[:, :, :, 0, :], y2[:, :, :, 1, :])      # pool W -> (G,14,8,64)
    y2 = y2.reshape(g, 7, 2, 8, 64)
    y2 = jnp.maximum(y2[:, :, 0], y2[:, :, 1])                  # pool H -> (G,7,8,64)

    # lane-dense (h, w, c) flatten; w=7 junk column dropped here
    for h in range(7):
        for w in range(7):
            c0 = (h * 7 + w) * 64
            o_ref[:, c0:c0 + 64] = y2[:, h, w, :]


def _build_conv1_cols(x_nchw):
    """(B,1,28,28) -> (B, 4, 272, 16) conv1 im2col (wrapper-side layout prep).

    Row layout per image: parity p = 2*(h%2) + (w%2) of the 2x2 pool window,
    then a zero-padded 17x16 (h_pad, w_pad) grid of pooled positions, so the
    in-kernel parity max directly yields the padded pool1 slab conv2 slices.
    Column 9 is a ones column (bias fold); padding rows are all-zero.
    """
    B = x_nchw.shape[0]
    x = x_nchw.reshape(B, 28, 28).astype(jnp.float32)
    xpad = jnp.pad(x, ((0, 0), (1, 1), (1, 1)))                       # (B,30,30)
    taps = jnp.stack([xpad[:, dy:dy + 28, dx:dx + 28]
                      for dy in range(3) for dx in range(3)], axis=-1)  # (B,28,28,9)
    ones = jnp.ones((B, 28, 28, 1), jnp.float32)
    zeros = jnp.zeros((B, 28, 28, _KTAP - 10), jnp.float32)
    cols = jnp.concatenate([taps, ones, zeros], axis=-1)              # (B,28,28,16)
    cols = cols.reshape(B, 14, 2, 14, 2, _KTAP).transpose(0, 2, 4, 1, 3, 5)
    cols = jnp.pad(cols, ((0, 0), (0, 0), (0, 0), (1, 2), (1, 1), (0, 0)))
    return cols.reshape(B, 4, _RPP, _KTAP)                            # (B,4,272,16)


def conv_trunk(x_nchw, kp, *, block_b=8):
    """(B,1,28,28) -> (B, 3136) pooled conv features, (h, w, c) flatten order."""
    B = x_nchw.shape[0]
    G = min(block_b, B)
    Bp = ((B + G - 1) // G) * G
    cols = _build_conv1_cols(x_nchw)
    if Bp != B:
        cols = jnp.pad(cols, ((0, Bp - B), (0, 0), (0, 0), (0, 0)))
    feats = pl.pallas_call(
        _trunk_kernel,
        out_shape=jax.ShapeDtypeStruct((Bp, 3136), jnp.float32),
        grid=(Bp // G,),
        in_specs=[
            pl.BlockSpec((G, 4, _RPP, _KTAP), lambda i: (i, 0, 0, 0)),
            pl.BlockSpec((_KTAP, 32), lambda i: (0, 0)),
            pl.BlockSpec((288, 64), lambda i: (0, 0)),
            pl.BlockSpec((1, 64), lambda i: (0, 0)),
        ],
        out_specs=pl.BlockSpec((G, 3136), lambda i: (i, 0)),
        compiler_params=pltpu.CompilerParams(
            dimension_semantics=("parallel",),
            vmem_limit_bytes=32 * 1024 * 1024),
        cost_estimate=pl.CostEstimate(
            flops=Bp * (2 * 4 * _RPP * _KTAP * 32 + 2 * _RE * 288 * 64),
            transcendentals=0,
            bytes_accessed=Bp * 4 * (4 * _RPP * _KTAP + 3136)
            + 4 * (_KTAP * 32 + 288 * 64 + 64),
        ),
    )(cols, kp["w1k"], kp["w2k"], kp["b2k"])
    return feats[:B]


# ----------------------------------------------------------------------------
# Kernel B: fc1 + ReLU + fc2 fused, tiled over batch rows (lane-dense K/N)
# ----------------------------------------------------------------------------
def _fc_kernel(x_ref, w1_ref, b1_ref, w2_ref, b2_ref, o_ref):
    h = jnp.dot(x_ref[...], w1_ref[...], preferred_element_type=jnp.float32)
    h = jnp.maximum(h + b1_ref[...], 0.0)
    y = jnp.dot(h, w2_ref[...], preferred_element_type=jnp.float32) + b2_ref[...]
    o_ref[...] = y.astype(o_ref.dtype)


def fc_head(x, wf1, bf1, wf2, bf2, *, block_b=256):
    B, K = x.shape
    N1 = wf1.shape[1]
    N2 = wf2.shape[1]
    bm = B if B <= block_b else block_b
    pad = (-B) % bm
    if pad:
        x = jnp.pad(x, ((0, pad), (0, 0)))
    Bp = x.shape[0]
    out = pl.pallas_call(
        _fc_kernel,
        out_shape=jax.ShapeDtypeStruct((Bp, N2), jnp.float32),
        grid=(Bp // bm,),
        in_specs=[
            pl.BlockSpec((bm, K), lambda i: (i, 0)),
            pl.BlockSpec((K, N1), lambda i: (0, 0)),
            pl.BlockSpec((1, N1), lambda i: (0, 0)),
            pl.BlockSpec((N1, N2), lambda i: (0, 0)),
            pl.BlockSpec((1, N2), lambda i: (0, 0)),
        ],
        out_specs=pl.BlockSpec((bm, N2), lambda i: (i, 0)),
        compiler_params=pltpu.CompilerParams(
            dimension_semantics=("parallel",)),
        cost_estimate=pl.CostEstimate(
            flops=2 * Bp * (K * N1 + N1 * N2),
            transcendentals=0,
            bytes_accessed=4 * (Bp * K + K * N1 + N1 * N2 + Bp * N2)),
    )(x, wf1, bf1, wf2, bf2)
    return out[:B]


# ----------------------------------------------------------------------------
# Forward pass (Pallas), parameter prep, pure-JAX reference
# ----------------------------------------------------------------------------
def feature_extractor_pallas(x_nchw, kp):
    feats = conv_trunk(x_nchw, kp)                    # (B, 3136) lane-dense
    return fc_head(feats, kp["wf1"], kp["bf1"], kp["wf2"], kp["bf2"])


def prepare_params(p):
    """One-time re-layout of PyTorch-style parameters for the kernels."""
    w1k = jnp.zeros((_KTAP, 32), jnp.float32)
    w1k = w1k.at[:9].set(p["w1"].reshape(9, 32))      # (ky*3+kx, cout)
    w1k = w1k.at[9].set(p["b1"])                      # bias folded into matmul
    # fc1 consumes the (h, w, c) flatten order the conv kernel produces:
    # permute its rows once instead of transposing activations at runtime.
    idx = np.arange(7 * 7 * 64)
    h = idx // 448
    w = (idx // 64) % 7
    c = idx % 64
    perm = c * 49 + h * 7 + w                          # hwc row -> chw row of wf1
    return {
        "w1k": w1k,
        "w2k": p["w2"].reshape(9 * 32, 64),            # ((ky*3+kx)*32 + cin, cout)
        "b2k": p["b2"].reshape(1, 64),
        "wf1": p["wf1"][perm, :],                      # (3136, 128), hwc rows
        "bf1": p["bf1"].reshape(1, 128),
        "wf2": p["wf2"],
        "bf2": p["bf2"].reshape(1, 128),
    }


def feature_extractor_ref(x_nchw, p):
    dn = ("NCHW", "HWIO", "NCHW")
    y = lax.conv_general_dilated(x_nchw, p["w1"], (1, 1), "SAME",
                                 dimension_numbers=dn)
    y = jnp.maximum(y + p["b1"][None, :, None, None], 0.0)
    y = lax.reduce_window(y, -jnp.inf, lax.max, (1, 1, 2, 2), (1, 1, 2, 2), "VALID")
    y = lax.conv_general_dilated(y, p["w2"], (1, 1), "SAME",
                                 dimension_numbers=dn)
    y = jnp.maximum(y + p["b2"][None, :, None, None], 0.0)
    y = lax.reduce_window(y, -jnp.inf, lax.max, (1, 1, 2, 2), (1, 1, 2, 2), "VALID")
    y = y.reshape(x_nchw.shape[0], -1)
    y = jnp.maximum(y @ p["wf1"] + p["bf1"], 0.0)
    y = y @ p["wf2"] + p["bf2"]
    return y


def init_params(key):
    ks = jax.random.split(key, 8)

    def winit(k, shape, fan_in):
        return (jax.random.normal(k, shape, jnp.float32) /
                jnp.sqrt(fan_in)).astype(jnp.float32)

    return {
        # conv weights stored HWIO (kH,kW,Cin,Cout)
        "w1": winit(ks[0], (3, 3, 1, 32), 9.0),
        "b1": winit(ks[1], (32,), 9.0),
        "w2": winit(ks[2], (3, 3, 32, 64), 288.0),
        "b2": winit(ks[3], (64,), 288.0),
        # fc weights stored (in, out); fc1 rows in PyTorch (c,h,w) flatten order
        "wf1": winit(ks[4], (64 * 7 * 7, 128), 3136.0),
        "bf1": winit(ks[5], (128,), 3136.0),
        "wf2": winit(ks[6], (128, 128), 128.0),
        "bf2": winit(ks[7], (128,), 128.0),
    }


if __name__ == "__main__":
    key = jax.random.PRNGKey(0)
    k_x, k_p = jax.random.split(key)
    # Module requires 28x28 single-channel inputs (fc1 expects 64*7*7).
    x = jax.random.normal(k_x, (2, 1, 28, 28), jnp.float32)
    params = init_params(k_p)
    kparams = prepare_params(params)            # one-time layout prep, outside jit

    fwd = jax.jit(feature_extractor_pallas)
    out = jax.block_until_ready(fwd(x, kparams))

    ref = feature_extractor_ref(x, params)
    assert out.shape == (2, 128), out.shape
    err = float(jnp.max(jnp.abs(out - ref)))
    assert jnp.allclose(out, ref, atol=2e-3, rtol=2e-3), err

    print("KERNEL_OK")
</pallas_src>

<mosaic_0001>
module attributes {stable_mosaic.version = 11 : i64} {
  func.func @_trunk_kernel(%arg0: i32, %arg1: memref<2x4x272x16xf32, #tpu.memory_space<vmem>>, %arg2: memref<16x32xf32, #tpu.memory_space<vmem>>, %arg3: memref<288x64xf32, #tpu.memory_space<vmem>>, %arg4: memref<1x64xf32, #tpu.memory_space<vmem>>, %arg5: memref<2x3136xf32, #tpu.memory_space<vmem>>) attributes {dimension_semantics = [#tpu.dimension_semantics<parallel>], iteration_bounds = array<i64: 1>, scalar_prefetch = 0 : i64, scratch_operands = 0 : i64, tpu.core_type = #tpu.core_type<tc>, window_params = [{transform_indices = @transform_0, window_bounds = array<i64: 2, 4, 272, 16>}, {pipeline_mode = #tpu.pipeline_mode<synchronous>, transform_indices = @transform_1, window_bounds = array<i64: 16, 32>}, {pipeline_mode = #tpu.pipeline_mode<synchronous>, transform_indices = @transform_2, window_bounds = array<i64: 288, 64>}, {pipeline_mode = #tpu.pipeline_mode<synchronous>, transform_indices = @transform_3, window_bounds = array<i64: 1, 64>}, {transform_indices = @transform_4, window_bounds = array<i64: 2, 3136>}]} {
    %c0 = arith.constant 0 : index
    %c0_0 = arith.constant 0 : index
    %c0_1 = arith.constant 0 : index
    %c0_2 = arith.constant 0 : index
    %0 = vector.load %arg1[%c0, %c0_0, %c0_1, %c0_2] : memref<2x4x272x16xf32, #tpu.memory_space<vmem>>, vector<2x4x272x16xf32>
    %1 = vector.shape_cast %0 : vector<2x4x272x16xf32> to vector<2176x16xf32>
    %c0_3 = arith.constant 0 : index
    %c0_4 = arith.constant 0 : index
    %2 = vector.load %arg2[%c0_3, %c0_4] : memref<16x32xf32, #tpu.memory_space<vmem>>, vector<16x32xf32>
    %cst = arith.constant dense<0.000000e+00> : vector<2176x32xf32>
    %3 = tpu.matmul %1, %2, %cst {dimension_numbers = #tpu.dot_dimension_numbers<[1], [0], [0], [1], [0, 0, 1, 1], [], []>} : vector<2176x16xf32>, vector<16x32xf32>, vector<2176x32xf32> -> vector<2176x32xf32>
    %cst_5 = arith.constant 0.000000e+00 : f32
    %4 = vector.broadcast %cst_5 : f32 to vector<2176x32xf32>
    %5 = arith.maximumf %3, %4 : vector<2176x32xf32>
    %6 = vector.shape_cast %5 : vector<2176x32xf32> to vector<2x4x272x32xf32>
    %7 = vector.extract_strided_slice %6 {offsets = [0, 0, 0, 0], sizes = [2, 1, 272, 32], strides = [1, 1, 1, 1]} : vector<2x4x272x32xf32> to vector<2x1x272x32xf32>
    %8 = vector.shape_cast %7 : vector<2x1x272x32xf32> to vector<2x272x32xf32>
    %9 = vector.extract_strided_slice %6 {offsets = [0, 1, 0, 0], sizes = [2, 1, 272, 32], strides = [1, 1, 1, 1]} : vector<2x4x272x32xf32> to vector<2x1x272x32xf32>
    %10 = vector.shape_cast %9 : vector<2x1x272x32xf32> to vector<2x272x32xf32>
    %11 = arith.maximumf %8, %10 : vector<2x272x32xf32>
    %12 = vector.extract_strided_slice %6 {offsets = [0, 2, 0, 0], sizes = [2, 1, 272, 32], strides = [1, 1, 1, 1]} : vector<2x4x272x32xf32> to vector<2x1x272x32xf32>
    %13 = vector.shape_cast %12 : vector<2x1x272x32xf32> to vector<2x272x32xf32>
    %14 = vector.extract_strided_slice %6 {offsets = [0, 3, 0, 0], sizes = [2, 1, 272, 32], strides = [1, 1, 1, 1]} : vector<2x4x272x32xf32> to vector<2x1x272x32xf32>
    %15 = vector.shape_cast %14 : vector<2x1x272x32xf32> to vector<2x272x32xf32>
    %16 = arith.maximumf %13, %15 : vector<2x272x32xf32>
    %17 = arith.maximumf %11, %16 : vector<2x272x32xf32>
    %18 = vector.extract_strided_slice %17 {offsets = [0, 0, 0], sizes = [2, 224, 32], strides = [1, 1, 1]} : vector<2x272x32xf32> to vector<2x224x32xf32>
    %19 = vector.shape_cast %18 : vector<2x224x32xf32> to vector<448x32xf32>
    %20 = vector.extract_strided_slice %17 {offsets = [0, 1, 0], sizes = [2, 224, 32], strides = [1, 1, 1]} : vector<2x272x32xf32> to vector<2x224x32xf32>
    %21 = vector.shape_cast %20 : vector<2x224x32xf32> to vector<448x32xf32>
    %22 = vector.extract_strided_slice %17 {offsets = [0, 2, 0], sizes = [2, 224, 32], strides = [1, 1, 1]} : vector<2x272x32xf32> to vector<2x224x32xf32>
    %23 = vector.shape_cast %22 : vector<2x224x32xf32> to vector<448x32xf32>
    %24 = vector.extract_strided_slice %17 {offsets = [0, 16, 0], sizes = [2, 224, 32], strides = [1, 1, 1]} : vector<2x272x32xf32> to vector<2x224x32xf32>
    %25 = vector.shape_cast %24 : vector<2x224x32xf32> to vector<448x32xf32>
    %26 = vector.extract_strided_slice %17 {offsets = [0, 17, 0], sizes = [2, 224, 32], strides = [1, 1, 1]} : vector<2x272x32xf32> to vector<2x224x32xf32>
    %27 = vector.shape_cast %26 : vector<2x224x32xf32> to vector<448x32xf32>
    %28 = vector.extract_strided_slice %17 {offsets = [0, 18, 0], sizes = [2, 224, 32], strides = [1, 1, 1]} : vector<2x272x32xf32> to vector<2x224x32xf32>
    %29 = vector.shape_cast %28 : vector<2x224x32xf32> to vector<448x32xf32>
    %30 = vector.extract_strided_slice %17 {offsets = [0, 32, 0], sizes = [2, 224, 32], strides = [1, 1, 1]} : vector<2x272x32xf32> to vector<2x224x32xf32>
    %31 = vector.shape_cast %30 : vector<2x224x32xf32> to vector<448x32xf32>
    %32 = vector.extract_strided_slice %17 {offsets = [0, 33, 0], sizes = [2, 224, 32], strides = [1, 1, 1]} : vector<2x272x32xf32> to vector<2x224x32xf32>
    %33 = vector.shape_cast %32 : vector<2x224x32xf32> to vector<448x32xf32>
    %34 = vector.extract_strided_slice %17 {offsets = [0, 34, 0], sizes = [2, 224, 32], strides = [1, 1, 1]} : vector<2x272x32xf32> to vector<2x224x32xf32>
    %35 = vector.shape_cast %34 : vector<2x224x32xf32> to vector<448x32xf32>
    %36 = tpu.concatenate %19, %21, %23, %25, %27, %29, %31, %33, %35 in 1 : vector<448x32xf32>, vector<448x32xf32>, vector<448x32xf32>, vector<448x32xf32>, vector<448x32xf32>, vector<448x32xf32>, vector<448x32xf32>, vector<448x32xf32>, vector<448x32xf32> -> vector<448x288xf32>
    %c0_6 = arith.constant 0 : index
    %c0_7 = arith.constant 0 : index
    %37 = vector.load %arg3[%c0_6, %c0_7] : memref<288x64xf32, #tpu.memory_space<vmem>>, vector<288x64xf32>
    %cst_8 = arith.constant dense<0.000000e+00> : vector<448x64xf32>
    %38 = tpu.matmul %36, %37, %cst_8 {dimension_numbers = #tpu.dot_dimension_numbers<[1], [0], [0], [1], [0, 0, 1, 1], [], []>} : vector<448x288xf32>, vector<288x64xf32>, vector<448x64xf32> -> vector<448x64xf32>
    %c0_9 = arith.constant 0 : index
    %c0_10 = arith.constant 0 : index
    %39 = vector.load %arg4[%c0_9, %c0_10] : memref<1x64xf32, #tpu.memory_space<vmem>>, vector<1x64xf32>
    %40 = vector.broadcast %39 : vector<1x64xf32> to vector<448x64xf32>
    %41 = arith.addf %38, %40 : vector<448x64xf32>
    %cst_11 = arith.constant 0.000000e+00 : f32
    %42 = vector.broadcast %cst_11 : f32 to vector<448x64xf32>
    %43 = arith.maximumf %41, %42 : vector<448x64xf32>
    %44 = vector.shape_cast %43 : vector<448x64xf32> to vector<2x14x8x2x64xf32>
    %45 = vector.extract_strided_slice %44 {offsets = [0, 0, 0, 0, 0], sizes = [2, 14, 8, 1, 64], strides = [1, 1, 1, 1, 1]} : vector<2x14x8x2x64xf32> to vector<2x14x8x1x64xf32>
    %46 = vector.shape_cast %45 : vector<2x14x8x1x64xf32> to vector<2x14x8x64xf32>
    %47 = vector.extract_strided_slice %44 {offsets = [0, 0, 0, 1, 0], sizes = [2, 14, 8, 1, 64], strides = [1, 1, 1, 1, 1]} : vector<2x14x8x2x64xf32> to vector<2x14x8x1x64xf32>
    %48 = vector.shape_cast %47 : vector<2x14x8x1x64xf32> to vector<2x14x8x64xf32>
    %49 = arith.maximumf %46, %48 : vector<2x14x8x64xf32>
    %50 = vector.shape_cast %49 : vector<2x14x8x64xf32> to vector<2x7x2x8x64xf32>
    %51 = vector.extract_strided_slice %50 {offsets = [0, 0, 0, 0, 0], sizes = [2, 7, 1, 8, 64], strides = [1, 1, 1, 1, 1]} : vector<2x7x2x8x64xf32> to vector<2x7x1x8x64xf32>
    %52 = vector.shape_cast %51 : vector<2x7x1x8x64xf32> to vector<2x7x8x64xf32>
    %53 = vector.extract_strided_slice %50 {offsets = [0, 0, 1, 0, 0], sizes = [2, 7, 1, 8, 64], strides = [1, 1, 1, 1, 1]} : vector<2x7x2x8x64xf32> to vector<2x7x1x8x64xf32>
    %54 = vector.shape_cast %53 : vector<2x7x1x8x64xf32> to vector<2x7x8x64xf32>
    %55 = arith.maximumf %52, %54 : vector<2x7x8x64xf32>
    %56 = vector.extract_strided_slice %55 {offsets = [0, 0, 0, 0], sizes = [2, 1, 1, 64], strides = [1, 1, 1, 1]} : vector<2x7x8x64xf32> to vector<2x1x1x64xf32>
    %57 = vector.shape_cast %56 : vector<2x1x1x64xf32> to vector<2x64xf32>
    %c0_12 = arith.constant 0 : index
    %c0_13 = arith.constant 0 : index
    %58 = vector.load %arg5[%c0_12, %c0_13] : memref<2x3136xf32, #tpu.memory_space<vmem>>, vector<2x64xf32>
    tpu.vector_store %arg5[%c0_12, %c0_13], %57 {strides = array<i32>} : memref<2x3136xf32, #tpu.memory_space<vmem>>, vector<2x64xf32>,
    %59 = vector.extract_strided_slice %55 {offsets = [0, 0, 1, 0], sizes = [2, 1, 1, 64], strides = [1, 1, 1, 1]} : vector<2x7x8x64xf32> to vector<2x1x1x64xf32>
    %60 = vector.shape_cast %59 : vector<2x1x1x64xf32> to vector<2x64xf32>
    %c0_14 = arith.constant 0 : index
    %c64 = arith.constant 64 : index
    %61 = vector.load %arg5[%c0_14, %c64] : memref<2x3136xf32, #tpu.memory_space<vmem>>, vector<2x64xf32>
    tpu.vector_store %arg5[%c0_14, %c64], %60 {strides = array<i32>} : memref<2x3136xf32, #tpu.memory_space<vmem>>, vector<2x64xf32>,
    %62 = vector.extract_strided_slice %55 {offsets = [0, 0, 2, 0], sizes = [2, 1, 1, 64], strides = [1, 1, 1, 1]} : vector<2x7x8x64xf32> to vector<2x1x1x64xf32>
    %63 = vector.shape_cast %62 : vector<2x1x1x64xf32> to vector<2x64xf32>
    %c0_15 = arith.constant 0 : index
    %c128 = arith.constant 128 : index
    %64 = vector.load %arg5[%c0_15, %c128] : memref<2x3136xf32, #tpu.memory_space<vmem>>, vector<2x64xf32>
    tpu.vector_store %arg5[%c0_15, %c128], %63 {strides = array<i32>} : memref<2x3136xf32, #tpu.memory_space<vmem>>, vector<2x64xf32>,
    %65 = vector.extract_strided_slice %55 {offsets = [0, 0, 3, 0], sizes = [2, 1, 1, 64], strides = [1, 1, 1, 1]} : vector<2x7x8x64xf32> to vector<2x1x1x64xf32>
    %66 = vector.shape_cast %65 : vector<2x1x1x64xf32> to vector<2x64xf32>
    %c0_16 = arith.constant 0 : index
    %c192 = arith.constant 192 : index
    %67 = vector.load %arg5[%c0_16, %c192] : memref<2x3136xf32, #tpu.memory_space<vmem>>, vector<2x64xf32>
    tpu.vector_store %arg5[%c0_16, %c192], %66 {strides = array<i32>} : memref<2x3136xf32, #tpu.memory_space<vmem>>, vector<2x64xf32>,
    %68 = vector.extract_strided_slice %55 {offsets = [0, 0, 4, 0], sizes = [2, 1, 1, 64], strides = [1, 1, 1, 1]} : vector<2x7x8x64xf32> to vector<2x1x1x64xf32>
    %69 = vector.shape_cast %68 : vector<2x1x1x64xf32> to vector<2x64xf32>
    %c0_17 = arith.constant 0 : index
    %c256 = arith.constant 256 : index
    %70 = vector.load %arg5[%c0_17, %c256] : memref<2x3136xf32, #tpu.memory_space<vmem>>, vector<2x64xf32>
    tpu.vector_store %arg5[%c0_17, %c256], %69 {strides = array<i32>} : memref<2x3136xf32, #tpu.memory_space<vmem>>, vector<2x64xf32>,
    %71 = vector.extract_strided_slice %55 {offsets = [0, 0, 5, 0], sizes = [2, 1, 1, 64], strides = [1, 1, 1, 1]} : vector<2x7x8x64xf32> to vector<2x1x1x64xf32>
    %72 = vector.shape_cast %71 : vector<2x1x1x64xf32> to vector<2x64xf32>
    %c0_18 = arith.constant 0 : index
    %c320 = arith.constant 320 : index
    %73 = vector.load %arg5[%c0_18, %c320] : memref<2x3136xf32, #tpu.memory_space<vmem>>, vector<2x64xf32>
    tpu.vector_store %arg5[%c0_18, %c320], %72 {strides = array<i32>} : memref<2x3136xf32, #tpu.memory_space<vmem>>, vector<2x64xf32>,
    %74 = vector.extract_strided_slice %55 {offsets = [0, 0, 6, 0], sizes = [2, 1, 1, 64], strides = [1, 1, 1, 1]} : vector<2x7x8x64xf32> to vector<2x1x1x64xf32>
    %75 = vector.shape_cast %74 : vector<2x1x1x64xf32> to vector<2x64xf32>
    %c0_19 = arith.constant 0 : index
    %c384 = arith.constant 384 : index
    %76 = vector.load %arg5[%c0_19, %c384] : memref<2x3136xf32, #tpu.memory_space<vmem>>, vector<2x64xf32>
    tpu.vector_store %arg5[%c0_19, %c384], %75 {strides = array<i32>} : memref<2x3136xf32, #tpu.memory_space<vmem>>, vector<2x64xf32>,
    %77 = vector.extract_strided_slice %55 {offsets = [0, 1, 0, 0], sizes = [2, 1, 1, 64], strides = [1, 1, 1, 1]} : vector<2x7x8x64xf32> to vector<2x1x1x64xf32>
    %78 = vector.shape_cast %77 : vector<2x1x1x64xf32> to vector<2x64xf32>
    %c0_20 = arith.constant 0 : index
    %c448 = arith.constant 448 : index
    %79 = vector.load %arg5[%c0_20, %c448] : memref<2x3136xf32, #tpu.memory_space<vmem>>, vector<2x64xf32>
    tpu.vector_store %arg5[%c0_20, %c448], %78 {strides = array<i32>} : memref<2x3136xf32, #tpu.memory_space<vmem>>, vector<2x64xf32>,
    %80 = vector.extract_strided_slice %55 {offsets = [0, 1, 1, 0], sizes = [2, 1, 1, 64], strides = [1, 1, 1, 1]} : vector<2x7x8x64xf32> to vector<2x1x1x64xf32>
    %81 = vector.shape_cast %80 : vector<2x1x1x64xf32> to vector<2x64xf32>
    %c0_21 = arith.constant 0 : index
    %c512 = arith.constant 512 : index
    %82 = vector.load %arg5[%c0_21, %c512] : memref<2x3136xf32, #tpu.memory_space<vmem>>, vector<2x64xf32>
    tpu.vector_store %arg5[%c0_21, %c512], %81 {strides = array<i32>} : memref<2x3136xf32, #tpu.memory_space<vmem>>, vector<2x64xf32>,
    %83 = vector.extract_strided_slice %55 {offsets = [0, 1, 2, 0], sizes = [2, 1, 1, 64], strides = [1, 1, 1, 1]} : vector<2x7x8x64xf32> to vector<2x1x1x64xf32>
    %84 = vector.shape_cast %83 : vector<2x1x1x64xf32> to vector<2x64xf32>
    %c0_22 = arith.constant 0 : index
    %c576 = arith.constant 576 : index
    %85 = vector.load %arg5[%c0_22, %c576] : memref<2x3136xf32, #tpu.memory_space<vmem>>, vector<2x64xf32>
    tpu.vector_store %arg5[%c0_22, %c576], %84 {strides = array<i32>} : memref<2x3136xf32, #tpu.memory_space<vmem>>, vector<2x64xf32>,
    %86 = vector.extract_strided_slice %55 {offsets = [0, 1, 3, 0], sizes = [2, 1, 1, 64], strides = [1, 1, 1, 1]} : vector<2x7x8x64xf32> to vector<2x1x1x64xf32>
    %87 = vector.shape_cast %86 : vector<2x1x1x64xf32> to vector<2x64xf32>
    %c0_23 = arith.constant 0 : index
    %c640 = arith.constant 640 : index
    %88 = vector.load %arg5[%c0_23, %c640] : memref<2x3136xf32, #tpu.memory_space<vmem>>, vector<2x64xf32>
    tpu.vector_store %arg5[%c0_23, %c640], %87 {strides = array<i32>} : memref<2x3136xf32, #tpu.memory_space<vmem>>, vector<2x64xf32>,
    %89 = vector.extract_strided_slice %55 {offsets = [0, 1, 4, 0], sizes = [2, 1, 1, 64], strides = [1, 1, 1, 1]} : vector<2x7x8x64xf32> to vector<2x1x1x64xf32>
    %90 = vector.shape_cast %89 : vector<2x1x1x64xf32> to vector<2x64xf32>
    %c0_24 = arith.constant 0 : index
    %c704 = arith.constant 704 : index
    %91 = vector.load %arg5[%c0_24, %c704] : memref<2x3136xf32, #tpu.memory_space<vmem>>, vector<2x64xf32>
    tpu.vector_store %arg5[%c0_24, %c704], %90 {strides = array<i32>} : memref<2x3136xf32, #tpu.memory_space<vmem>>, vector<2x64xf32>,
    %92 = vector.extract_strided_slice %55 {offsets = [0, 1, 5, 0], sizes = [2, 1, 1, 64], strides = [1, 1, 1, 1]} : vector<2x7x8x64xf32> to vector<2x1x1x64xf32>
    %93 = vector.shape_cast %92 : vector<2x1x1x64xf32> to vector<2x64xf32>
    %c0_25 = arith.constant 0 : index
    %c768 = arith.constant 768 : index
    %94 = vector.load %arg5[%c0_25, %c768] : memref<2x3136xf32, #tpu.memory_space<vmem>>, vector<2x64xf32>
    tpu.vector_store %arg5[%c0_25, %c768], %93 {strides = array<i32>} : memref<2x3136xf32, #tpu.memory_space<vmem>>, vector<2x64xf32>,
    %95 = vector.extract_strided_slice %55 {offsets = [0, 1, 6, 0], sizes = [2, 1, 1, 64], strides = [1, 1, 1, 1]} : vector<2x7x8x64xf32> to vector<2x1x1x64xf32>
    %96 = vector.shape_cast %95 : vector<2x1x1x64xf32> to vector<2x64xf32>
    %c0_26 = arith.constant 0 : index
    %c832 = arith.constant 832 : index
    %97 = vector.load %arg5[%c0_26, %c832] : memref<2x3136xf32, #tpu.memory_space<vmem>>, vector<2x64xf32>
    tpu.vector_store %arg5[%c0_26, %c832], %96 {strides = array<i32>} : memref<2x3136xf32, #tpu.memory_space<vmem>>, vector<2x64xf32>,
    %98 = vector.extract_strided_slice %55 {offsets = [0, 2, 0, 0], sizes = [2, 1, 1, 64], strides = [1, 1, 1, 1]} : vector<2x7x8x64xf32> to vector<2x1x1x64xf32>
    %99 = vector.shape_cast %98 : vector<2x1x1x64xf32> to vector<2x64xf32>
    %c0_27 = arith.constant 0 : index
    %c896 = arith.constant 896 : index
    %100 = vector.load %arg5[%c0_27, %c896] : memref<2x3136xf32, #tpu.memory_space<vmem>>, vector<2x64xf32>
    tpu.vector_store %arg5[%c0_27, %c896], %99 {strides = array<i32>} : memref<2x3136xf32, #tpu.memory_space<vmem>>, vector<2x64xf32>,
    %101 = vector.extract_strided_slice %55 {offsets = [0, 2, 1, 0], sizes = [2, 1, 1, 64], strides = [1, 1, 1, 1]} : vector<2x7x8x64xf32> to vector<2x1x1x64xf32>
    %102 = vector.shape_cast %101 : vector<2x1x1x64xf32> to vector<2x64xf32>
    %c0_28 = arith.constant 0 : index
    %c960 = arith.constant 960 : index
    %103 = vector.load %arg5[%c0_28, %c960] : memref<2x3136xf32, #tpu.memory_space<vmem>>, vector<2x64xf32>
    tpu.vector_store %arg5[%c0_28, %c960], %102 {strides = array<i32>} : memref<2x3136xf32, #tpu.memory_space<vmem>>, vector<2x64xf32>,
    %104 = vector.extract_strided_slice %55 {offsets = [0, 2, 2, 0], sizes = [2, 1, 1, 64], strides = [1, 1, 1, 1]} : vector<2x7x8x64xf32> to vector<2x1x1x64xf32>
    %105 = vector.shape_cast %104 : vector<2x1x1x64xf32> to vector<2x64xf32>
    %c0_29 = arith.constant 0 : index
    %c1024 = arith.constant 1024 : index
    %106 = vector.load %arg5[%c0_29, %c1024] : memref<2x3136xf32, #tpu.memory_space<vmem>>, vector<2x64xf32>
    tpu.vector_store %arg5[%c0_29, %c1024], %105 {strides = array<i32>} : memref<2x3136xf32, #tpu.memory_space<vmem>>, vector<2x64xf32>,
    %107 = vector.extract_strided_slice %55 {offsets = [0, 2, 3, 0], sizes = [2, 1, 1, 64], strides = [1, 1, 1, 1]} : vector<2x7x8x64xf32> to vector<2x1x1x64xf32>
    %108 = vector.shape_cast %107 : vector<2x1x1x64xf32> to vector<2x64xf32>
    %c0_30 = arith.constant 0 : index
    %c1088 = arith.constant 1088 : index
    %109 = vector.load %arg5[%c0_30, %c1088] : memref<2x3136xf32, #tpu.memory_space<vmem>>, vector<2x64xf32>
    tpu.vector_store %arg5[%c0_30, %c1088], %108 {strides = array<i32>} : memref<2x3136xf32, #tpu.memory_space<vmem>>, vector<2x64xf32>,
    %110 = vector.extract_strided_slice %55 {offsets = [0, 2, 4, 0], sizes = [2, 1, 1, 64], strides = [1, 1, 1, 1]} : vector<2x7x8x64xf32> to vector<2x1x1x64xf32>
    %111 = vector.shape_cast %110 : vector<2x1x1x64xf32> to vector<2x64xf32>
    %c0_31 = arith.constant 0 : index
    %c1152 = arith.constant 1152 : index
    %112 = vector.load %arg5[%c0_31, %c1152] : memref<2x3136xf32, #tpu.memory_space<vmem>>, vector<2x64xf32>
    tpu.vector_store %arg5[%c0_31, %c1152], %111 {strides = array<i32>} : memref<2x3136xf32, #tpu.memory_space<vmem>>, vector<2x64xf32>,
    %113 = vector.extract_strided_slice %55 {offsets = [0, 2, 5, 0], sizes = [2, 1, 1, 64], strides = [1, 1, 1, 1]} : vector<2x7x8x64xf32> to vector<2x1x1x64xf32>
    %114 = vector.shape_cast %113 : vector<2x1x1x64xf32> to vector<2x64xf32>
    %c0_32 = arith.constant 0 : index
    %c1216 = arith.constant 1216 : index
    %115 = vector.load %arg5[%c0_32, %c1216] : memref<2x3136xf32, #tpu.memory_space<vmem>>, vector<2x64xf32>
    tpu.vector_store %arg5[%c0_32, %c1216], %114 {strides = array<i32>} : memref<2x3136xf32, #tpu.memory_space<vmem>>, vector<2x64xf32>,
    %116 = vector.extract_strided_slice %55 {offsets = [0, 2, 6, 0], sizes = [2, 1, 1, 64], strides = [1, 1, 1, 1]} : vector<2x7x8x64xf32> to vector<2x1x1x64xf32>
    %117 = vector.shape_cast %116 : vector<2x1x1x64xf32> to vector<2x64xf32>
    %c0_33 = arith.constant 0 : index
    %c1280 = arith.constant 1280 : index
    %118 = vector.load %arg5[%c0_33, %c1280] : memref<2x3136xf32, #tpu.memory_space<vmem>>, vector<2x64xf32>
    tpu.vector_store %arg5[%c0_33, %c1280], %117 {strides = array<i32>} : memref<2x3136xf32, #tpu.memory_space<vmem>>, vector<2x64xf32>,
    %119 = vector.extract_strided_slice %55 {offsets = [0, 3, 0, 0], sizes = [2, 1, 1, 64], strides = [1, 1, 1, 1]} : vector<2x7x8x64xf32> to vector<2x1x1x64xf32>
    %120 = vector.shape_cast %119 : vector<2x1x1x64xf32> to vector<2x64xf32>
    %c0_34 = arith.constant 0 : index
    %c1344 = arith.constant 1344 : index
    %121 = vector.load %arg5[%c0_34, %c1344] : memref<2x3136xf32, #tpu.memory_space<vmem>>, vector<2x64xf32>
    tpu.vector_store %arg5[%c0_34, %c1344], %120 {strides = array<i32>} : memref<2x3136xf32, #tpu.memory_space<vmem>>, vector<2x64xf32>,
    %122 = vector.extract_strided_slice %55 {offsets = [0, 3, 1, 0], sizes = [2, 1, 1, 64], strides = [1, 1, 1, 1]} : vector<2x7x8x64xf32> to vector<2x1x1x64xf32>
    %123 = vector.shape_cast %122 : vector<2x1x1x64xf32> to vector<2x64xf32>
    %c0_35 = arith.constant 0 : index
    %c1408 = arith.constant 1408 : index
    %124 = vector.load %arg5[%c0_35, %c1408] : memref<2x3136xf32, #tpu.memory_space<vmem>>, vector<2x64xf32>
    tpu.vector_store %arg5[%c0_35, %c1408], %123 {strides = array<i32>} : memref<2x3136xf32, #tpu.memory_space<vmem>>, vector<2x64xf32>,
    %125 = vector.extract_strided_slice %55 {offsets = [0, 3, 2, 0], sizes = [2, 1, 1, 64], strides = [1, 1, 1, 1]} : vector<2x7x8x64xf32> to vector<2x1x1x64xf32>
    %126 = vector.shape_cast %125 : vector<2x1x1x64xf32> to vector<2x64xf32>
    %c0_36 = arith.constant 0 : index
    %c1472 = arith.constant 1472 : index
    %127 = vector.load %arg5[%c0_36, %c1472] : memref<2x3136xf32, #tpu.memory_space<vmem>>, vector<2x64xf32>
    tpu.vector_store %arg5[%c0_36, %c1472], %126 {strides = array<i32>} : memref<2x3136xf32, #tpu.memory_space<vmem>>, vector<2x64xf32>,
    %128 = vector.extract_strided_slice %55 {offsets = [0, 3, 3, 0], sizes = [2, 1, 1, 64], strides = [1, 1, 1, 1]} : vector<2x7x8x64xf32> to vector<2x1x1x64xf32>
    %129 = vector.shape_cast %128 : vector<2x1x1x64xf32> to vector<2x64xf32>
    %c0_37 = arith.constant 0 : index
    %c1536 = arith.constant 1536 : index
    %130 = vector.load %arg5[%c0_37, %c1536] : memref<2x3136xf32, #tpu.memory_space<vmem>>, vector<2x64xf32>
    tpu.vector_store %arg5[%c0_37, %c1536], %129 {strides = array<i32>} : memref<2x3136xf32, #tpu.memory_space<vmem>>, vector<2x64xf32>,
    %131 = vector.extract_strided_slice %55 {offsets = [0, 3, 4, 0], sizes = [2, 1, 1, 64], strides = [1, 1, 1, 1]} : vector<2x7x8x64xf32> to vector<2x1x1x64xf32>
    %132 = vector.shape_cast %131 : vector<2x1x1x64xf32> to vector<2x64xf32>
    %c0_38 = arith.constant 0 : index
    %c1600 = arith.constant 1600 : index
    %133 = vector.load %arg5[%c0_38, %c1600] : memref<2x3136xf32, #tpu.memory_space<vmem>>, vector<2x64xf32>
    tpu.vector_store %arg5[%c0_38, %c1600], %132 {strides = array<i32>} : memref<2x3136xf32, #tpu.memory_space<vmem>>, vector<2x64xf32>,
    %134 = vector.extract_strided_slice %55 {offsets = [0, 3, 5, 0], sizes = [2, 1, 1, 64], strides = [1, 1, 1, 1]} : vector<2x7x8x64xf32> to vector<2x1x1x64xf32>
    %135 = vector.shape_cast %134 : vector<2x1x1x64xf32> to vector<2x64xf32>
    %c0_39 = arith.constant 0 : index
    %c1664 = arith.constant 1664 : index
    %136 = vector.load %arg5[%c0_39, %c1664] : memref<2x3136xf32, #tpu.memory_space<vmem>>, vector<2x64xf32>
    tpu.vector_store %arg5[%c0_39, %c1664], %135 {strides = array<i32>} : memref<2x3136xf32, #tpu.memory_space<vmem>>, vector<2x64xf32>,
    %137 = vector.extract_strided_slice %55 {offsets = [0, 3, 6, 0], sizes = [2, 1, 1, 64], strides = [1, 1, 1, 1]} : vector<2x7x8x64xf32> to vector<2x1x1x64xf32>
    %138 = vector.shape_cast %137 : vector<2x1x1x64xf32> to vector<2x64xf32>
    %c0_40 = arith.constant 0 : index
    %c1728 = arith.constant 1728 : index
    %139 = vector.load %arg5[%c0_40, %c1728] : memref<2x3136xf32, #tpu.memory_space<vmem>>, vector<2x64xf32>
    tpu.vector_store %arg5[%c0_40, %c1728], %138 {strides = array<i32>} : memref<2x3136xf32, #tpu.memory_space<vmem>>, vector<2x64xf32>,
    %140 = vector.extract_strided_slice %55 {offsets = [0, 4, 0, 0], sizes = [2, 1, 1, 64], strides = [1, 1, 1, 1]} : vector<2x7x8x64xf32> to vector<2x1x1x64xf32>
    %141 = vector.shape_cast %140 : vector<2x1x1x64xf32> to vector<2x64xf32>
    %c0_41 = arith.constant 0 : index
    %c1792 = arith.constant 1792 : index
    %142 = vector.load %arg5[%c0_41, %c1792] : memref<2x3136xf32, #tpu.memory_space<vmem>>, vector<2x64xf32>
    tpu.vector_store %arg5[%c0_41, %c1792], %141 {strides = array<i32>} : memref<2x3136xf32, #tpu.memory_space<vmem>>, vector<2x64xf32>,
    %143 = vector.extract_strided_slice %55 {offsets = [0, 4, 1, 0], sizes = [2, 1, 1, 64], strides = [1, 1, 1, 1]} : vector<2x7x8x64xf32> to vector<2x1x1x64xf32>
    %144 = vector.shape_cast %143 : vector<2x1x1x64xf32> to vector<2x64xf32>
    %c0_42 = arith.constant 0 : index
    %c1856 = arith.constant 1856 : index
    %145 = vector.load %arg5[%c0_42, %c1856] : memref<2x3136xf32, #tpu.memory_space<vmem>>, vector<2x64xf32>
    tpu.vector_store %arg5[%c0_42, %c1856], %144 {strides = array<i32>} : memref<2x3136xf32, #tpu.memory_space<vmem>>, vector<2x64xf32>,
    %146 = vector.extract_strided_slice %55 {offsets = [0, 4, 2, 0], sizes = [2, 1, 1, 64], strides = [1, 1, 1, 1]} : vector<2x7x8x64xf32> to vector<2x1x1x64xf32>
    %147 = vector.shape_cast %146 : vector<2x1x1x64xf32> to vector<2x64xf32>
    %c0_43 = arith.constant 0 : index
    %c1920 = arith.constant 1920 : index
    %148 = vector.load %arg5[%c0_43, %c1920] : memref<2x3136xf32, #tpu.memory_space<vmem>>, vector<2x64xf32>
    tpu.vector_store %arg5[%c0_43, %c1920], %147 {strides = array<i32>} : memref<2x3136xf32, #tpu.memory_space<vmem>>, vector<2x64xf32>,
    %149 = vector.extract_strided_slice %55 {offsets = [0, 4, 3, 0], sizes = [2, 1, 1, 64], strides = [1, 1, 1, 1]} : vector<2x7x8x64xf32> to vector<2x1x1x64xf32>
    %150 = vector.shape_cast %149 : vector<2x1x1x64xf32> to vector<2x64xf32>
    %c0_44 = arith.constant 0 : index
    %c1984 = arith.constant 1984 : index
    %151 = vector.load %arg5[%c0_44, %c1984] : memref<2x3136xf32, #tpu.memory_space<vmem>>, vector<2x64xf32>
    tpu.vector_store %arg5[%c0_44, %c1984], %150 {strides = array<i32>} : memref<2x3136xf32, #tpu.memory_space<vmem>>, vector<2x64xf32>,
    %152 = vector.extract_strided_slice %55 {offsets = [0, 4, 4, 0], sizes = [2, 1, 1, 64], strides = [1, 1, 1, 1]} : vector<2x7x8x64xf32> to vector<2x1x1x64xf32>
    %153 = vector.shape_cast %152 : vector<2x1x1x64xf32> to vector<2x64xf32>
    %c0_45 = arith.constant 0 : index
    %c2048 = arith.constant 2048 : index
    %154 = vector.load %arg5[%c0_45, %c2048] : memref<2x3136xf32, #tpu.memory_space<vmem>>, vector<2x64xf32>
    tpu.vector_store %arg5[%c0_45, %c2048], %153 {strides = array<i32>} : memref<2x3136xf32, #tpu.memory_space<vmem>>, vector<2x64xf32>,
    %155 = vector.extract_strided_slice %55 {offsets = [0, 4, 5, 0], sizes = [2, 1, 1, 64], strides = [1, 1, 1, 1]} : vector<2x7x8x64xf32> to vector<2x1x1x64xf32>
    %156 = vector.shape_cast %155 : vector<2x1x1x64xf32> to vector<2x64xf32>
    %c0_46 = arith.constant 0 : index
    %c2112 = arith.constant 2112 : index
    %157 = vector.load %arg5[%c0_46, %c2112] : memref<2x3136xf32, #tpu.memory_space<vmem>>, vector<2x64xf32>
    tpu.vector_store %arg5[%c0_46, %c2112], %156 {strides = array<i32>} : memref<2x3136xf32, #tpu.memory_space<vmem>>, vector<2x64xf32>,
    %158 = vector.extract_strided_slice %55 {offsets = [0, 4, 6, 0], sizes = [2, 1, 1, 64], strides = [1, 1, 1, 1]} : vector<2x7x8x64xf32> to vector<2x1x1x64xf32>
    %159 = vector.shape_cast %158 : vector<2x1x1x64xf32> to vector<2x64xf32>
    %c0_47 = arith.constant 0 : index
    %c2176 = arith.constant 2176 : index
    %160 = vector.load %arg5[%c0_47, %c2176] : memref<2x3136xf32, #tpu.memory_space<vmem>>, vector<2x64xf32>
    tpu.vector_store %arg5[%c0_47, %c2176], %159 {strides = array<i32>} : memref<2x3136xf32, #tpu.memory_space<vmem>>, vector<2x64xf32>,
    %161 = vector.extract_strided_slice %55 {offsets = [0, 5, 0, 0], sizes = [2, 1, 1, 64], strides = [1, 1, 1, 1]} : vector<2x7x8x64xf32> to vector<2x1x1x64xf32>
    %162 = vector.shape_cast %161 : vector<2x1x1x64xf32> to vector<2x64xf32>
    %c0_48 = arith.constant 0 : index
    %c2240 = arith.constant 2240 : index
    %163 = vector.load %arg5[%c0_48, %c2240] : memref<2x3136xf32, #tpu.memory_space<vmem>>, vector<2x64xf32>
    tpu.vector_store %arg5[%c0_48, %c2240], %162 {strides = array<i32>} : memref<2x3136xf32, #tpu.memory_space<vmem>>, vector<2x64xf32>,
    %164 = vector.extract_strided_slice %55 {offsets = [0, 5, 1, 0], sizes = [2, 1, 1, 64], strides = [1, 1, 1, 1]} : vector<2x7x8x64xf32> to vector<2x1x1x64xf32>
    %165 = vector.shape_cast %164 : vector<2x1x1x64xf32> to vector<2x64xf32>
    %c0_49 = arith.constant 0 : index
    %c2304 = arith.constant 2304 : index
    %166 = vector.load %arg5[%c0_49, %c2304] : memref<2x3136xf32, #tpu.memory_space<vmem>>, vector<2x64xf32>
    tpu.vector_store %arg5[%c0_49, %c2304], %165 {strides = array<i32>} : memref<2x3136xf32, #tpu.memory_space<vmem>>, vector<2x64xf32>,
    %167 = vector.extract_strided_slice %55 {offsets = [0, 5, 2, 0], sizes = [2, 1, 1, 64], strides = [1, 1, 1, 1]} : vector<2x7x8x64xf32> to vector<2x1x1x64xf32>
    %168 = vector.shape_cast %167 : vector<2x1x1x64xf32> to vector<2x64xf32>
    %c0_50 = arith.constant 0 : index
    %c2368 = arith.constant 2368 : index
    %169 = vector.load %arg5[%c0_50, %c2368] : memref<2x3136xf32, #tpu.memory_space<vmem>>, vector<2x64xf32>
    tpu.vector_store %arg5[%c0_50, %c2368], %168 {strides = array<i32>} : memref<2x3136xf32, #tpu.memory_space<vmem>>, vector<2x64xf32>,
    %170 = vector.extract_strided_slice %55 {offsets = [0, 5, 3, 0], sizes = [2, 1, 1, 64], strides = [1, 1, 1, 1]} : vector<2x7x8x64xf32> to vector<2x1x1x64xf32>
    %171 = vector.shape_cast %170 : vector<2x1x1x64xf32> to vector<2x64xf32>
    %c0_51 = arith.constant 0 : index
    %c2432 = arith.constant 2432 : index
    %172 = vector.load %arg5[%c0_51, %c2432] : memref<2x3136xf32, #tpu.memory_space<vmem>>, vector<2x64xf32>
    tpu.vector_store %arg5[%c0_51, %c2432], %171 {strides = array<i32>} : memref<2x3136xf32, #tpu.memory_space<vmem>>, vector<2x64xf32>,
    %173 = vector.extract_strided_slice %55 {offsets = [0, 5, 4, 0], sizes = [2, 1, 1, 64], strides = [1, 1, 1, 1]} : vector<2x7x8x64xf32> to vector<2x1x1x64xf32>
    %174 = vector.shape_cast %173 : vector<2x1x1x64xf32> to vector<2x64xf32>
    %c0_52 = arith.constant 0 : index
    %c2496 = arith.constant 2496 : index
    %175 = vector.load %arg5[%c0_52, %c2496] : memref<2x3136xf32, #tpu.memory_space<vmem>>, vector<2x64xf32>
    tpu.vector_store %arg5[%c0_52, %c2496], %174 {strides = array<i32>} : memref<2x3136xf32, #tpu.memory_space<vmem>>, vector<2x64xf32>,
    %176 = vector.extract_strided_slice %55 {offsets = [0, 5, 5, 0], sizes = [2, 1, 1, 64], strides = [1, 1, 1, 1]} : vector<2x7x8x64xf32> to vector<2x1x1x64xf32>
    %177 = vector.shape_cast %176 : vector<2x1x1x64xf32> to vector<2x64xf32>
    %c0_53 = arith.constant 0 : index
    %c2560 = arith.constant 2560 : index
    %178 = vector.load %arg5[%c0_53, %c2560] : memref<2x3136xf32, #tpu.memory_space<vmem>>, vector<2x64xf32>
    tpu.vector_store %arg5[%c0_53, %c2560], %177 {strides = array<i32>} : memref<2x3136xf32, #tpu.memory_space<vmem>>, vector<2x64xf32>,
    %179 = vector.extract_strided_slice %55 {offsets = [0, 5, 6, 0], sizes = [2, 1, 1, 64], strides = [1, 1, 1, 1]} : vector<2x7x8x64xf32> to vector<2x1x1x64xf32>
    %180 = vector.shape_cast %179 : vector<2x1x1x64xf32> to vector<2x64xf32>
    %c0_54 = arith.constant 0 : index
    %c2624 = arith.constant 2624 : index
    %181 = vector.load %arg5[%c0_54, %c2624] : memref<2x3136xf32, #tpu.memory_space<vmem>>, vector<2x64xf32>
    tpu.vector_store %arg5[%c0_54, %c2624], %180 {strides = array<i32>} : memref<2x3136xf32, #tpu.memory_space<vmem>>, vector<2x64xf32>,
    %182 = vector.extract_strided_slice %55 {offsets = [0, 6, 0, 0], sizes = [2, 1, 1, 64], strides = [1, 1, 1, 1]} : vector<2x7x8x64xf32> to vector<2x1x1x64xf32>
    %183 = vector.shape_cast %182 : vector<2x1x1x64xf32> to vector<2x64xf32>
    %c0_55 = arith.constant 0 : index
    %c2688 = arith.constant 2688 : index
    %184 = vector.load %arg5[%c0_55, %c2688] : memref<2x3136xf32, #tpu.memory_space<vmem>>, vector<2x64xf32>
    tpu.vector_store %arg5[%c0_55, %c2688], %183 {strides = array<i32>} : memref<2x3136xf32, #tpu.memory_space<vmem>>, vector<2x64xf32>,
    %185 = vector.extract_strided_slice %55 {offsets = [0, 6, 1, 0], sizes = [2, 1, 1, 64], strides = [1, 1, 1, 1]} : vector<2x7x8x64xf32> to vector<2x1x1x64xf32>
    %186 = vector.shape_cast %185 : vector<2x1x1x64xf32> to vector<2x64xf32>
    %c0_56 = arith.constant 0 : index
    %c2752 = arith.constant 2752 : index
    %187 = vector.load %arg5[%c0_56, %c2752] : memref<2x3136xf32, #tpu.memory_space<vmem>>, vector<2x64xf32>
    tpu.vector_store %arg5[%c0_56, %c2752], %186 {strides = array<i32>} : memref<2x3136xf32, #tpu.memory_space<vmem>>, vector<2x64xf32>,
    %188 = vector.extract_strided_slice %55 {offsets = [0, 6, 2, 0], sizes = [2, 1, 1, 64], strides = [1, 1, 1, 1]} : vector<2x7x8x64xf32> to vector<2x1x1x64xf32>
    %189 = vector.shape_cast %188 : vector<2x1x1x64xf32> to vector<2x64xf32>
    %c0_57 = arith.constant 0 : index
    %c2816 = arith.constant 2816 : index
    %190 = vector.load %arg5[%c0_57, %c2816] : memref<2x3136xf32, #tpu.memory_space<vmem>>, vector<2x64xf32>
    tpu.vector_store %arg5[%c0_57, %c2816], %189 {strides = array<i32>} : memref<2x3136xf32, #tpu.memory_space<vmem>>, vector<2x64xf32>,
    %191 = vector.extract_strided_slice %55 {offsets = [0, 6, 3, 0], sizes = [2, 1, 1, 64], strides = [1, 1, 1, 1]} : vector<2x7x8x64xf32> to vector<2x1x1x64xf32>
    %192 = vector.shape_cast %191 : vector<2x1x1x64xf32> to vector<2x64xf32>
    %c0_58 = arith.constant 0 : index
    %c2880 = arith.constant 2880 : index
    %193 = vector.load %arg5[%c0_58, %c2880] : memref<2x3136xf32, #tpu.memory_space<vmem>>, vector<2x64xf32>
    tpu.vector_store %arg5[%c0_58, %c2880], %192 {strides = array<i32>} : memref<2x3136xf32, #tpu.memory_space<vmem>>, vector<2x64xf32>,
    %194 = vector.extract_strided_slice %55 {offsets = [0, 6, 4, 0], sizes = [2, 1, 1, 64], strides = [1, 1, 1, 1]} : vector<2x7x8x64xf32> to vector<2x1x1x64xf32>
    %195 = vector.shape_cast %194 : vector<2x1x1x64xf32> to vector<2x64xf32>
    %c0_59 = arith.constant 0 : index
    %c2944 = arith.constant 2944 : index
    %196 = vector.load %arg5[%c0_59, %c2944] : memref<2x3136xf32, #tpu.memory_space<vmem>>, vector<2x64xf32>
    tpu.vector_store %arg5[%c0_59, %c2944], %195 {strides = array<i32>} : memref<2x3136xf32, #tpu.memory_space<vmem>>, vector<2x64xf32>,
    %197 = vector.extract_strided_slice %55 {offsets = [0, 6, 5, 0], sizes = [2, 1, 1, 64], strides = [1, 1, 1, 1]} : vector<2x7x8x64xf32> to vector<2x1x1x64xf32>
    %198 = vector.shape_cast %197 : vector<2x1x1x64xf32> to vector<2x64xf32>
    %c0_60 = arith.constant 0 : index
    %c3008 = arith.constant 3008 : index
    %199 = vector.load %arg5[%c0_60, %c3008] : memref<2x3136xf32, #tpu.memory_space<vmem>>, vector<2x64xf32>
    tpu.vector_store %arg5[%c0_60, %c3008], %198 {strides = array<i32>} : memref<2x3136xf32, #tpu.memory_space<vmem>>, vector<2x64xf32>,
    %200 = vector.extract_strided_slice %55 {offsets = [0, 6, 6, 0], sizes = [2, 1, 1, 64], strides = [1, 1, 1, 1]} : vector<2x7x8x64xf32> to vector<2x1x1x64xf32>
    %201 = vector.shape_cast %200 : vector<2x1x1x64xf32> to vector<2x64xf32>
    %c0_61 = arith.constant 0 : index
    %c3072 = arith.constant 3072 : index
    %202 = vector.load %arg5[%c0_61, %c3072] : memref<2x3136xf32, #tpu.memory_space<vmem>>, vector<2x64xf32>
    tpu.vector_store %arg5[%c0_61, %c3072], %201 {strides = array<i32>} : memref<2x3136xf32, #tpu.memory_space<vmem>>, vector<2x64xf32>,
    return
  }
  func.func @transform_0(%arg0: i32) -> (i32, i32, i32, i32) {
    %c0_i32 = arith.constant 0 : i32
    %c0_i32_0 = arith.constant 0 : i32
    %c0_i32_1 = arith.constant 0 : i32
    %c0_i32_2 = arith.constant 0 : i32
    return %arg0, %c0_i32, %c0_i32_0, %c0_i32_1 : i32, i32, i32, i32
  }
  func.func @transform_1(%arg0: i32) -> (i32, i32) {
    %c0_i32 = arith.constant 0 : i32
    %c0_i32_0 = arith.constant 0 : i32
    %c0_i32_1 = arith.constant 0 : i32
    return %c0_i32, %c0_i32_0 : i32, i32
  }
  func.func @transform_2(%arg0: i32) -> (i32, i32) {
    %c0_i32 = arith.constant 0 : i32
    %c0_i32_0 = arith.constant 0 : i32
    %c0_i32_1 = arith.constant 0 : i32
    return %c0_i32, %c0_i32_0 : i32, i32
  }
  func.func @transform_3(%arg0: i32) -> (i32, i32) {
    %c0_i32 = arith.constant 0 : i32
    %c0_i32_0 = arith.constant 0 : i32
    %c0_i32_1 = arith.constant 0 : i32
    return %c0_i32, %c0_i32_0 : i32, i32
  }
  func.func @transform_4(%arg0: i32) -> (i32, i32) {
    %c0_i32 = arith.constant 0 : i32
    %c0_i32_0 = arith.constant 0 : i32
    return %arg0, %c0_i32 : i32, i32
  }
}

module attributes {stable_mosaic.version = 11 : i64} {
  func.func @_fc_kernel(%arg0: i32, %arg1: memref<2x3136xf32, #tpu.memory_space<vmem>>, %arg2: memref<3136x128xf32, #tpu.memory_space<vmem>>, %arg3: memref<1x128xf32, #tpu.memory_space<vmem>>, %arg4: memref<128x128xf32, #tpu.memory_space<vmem>>, %arg5: memref<1x128xf32, #tpu.memory_space<vmem>>, %arg6: memref<2x128xf32, #tpu.memory_space<vmem>>) attributes {dimension_semantics = [#tpu.dimension_semantics<parallel>], iteration_bounds = array<i64: 1>, scalar_prefetch = 0 : i64, scratch_operands = 0 : i64, tpu.core_type = #tpu.core_type<tc>, window_params = [{transform_indices = @transform_0, window_bounds = array<i64: 2, 3136>}, {pipeline_mode = #tpu.pipeline_mode<synchronous>, transform_indices = @transform_1, window_bounds = array<i64: 3136, 128>}, {pipeline_mode = #tpu.pipeline_mode<synchronous>, transform_indices = @transform_2, window_bounds = array<i64: 1, 128>}, {pipeline_mode = #tpu.pipeline_mode<synchronous>, transform_indices = @transform_3, window_bounds = array<i64: 128, 128>}, {pipeline_mode = #tpu.pipeline_mode<synchronous>, transform_indices = @transform_4, window_bounds = array<i64: 1, 128>}, {transform_indices = @transform_5, window_bounds = array<i64: 2, 128>}]} {
    %c0 = arith.constant 0 : index
    %c0_0 = arith.constant 0 : index
    %0 = vector.load %arg1[%c0, %c0_0] : memref<2x3136xf32, #tpu.memory_space<vmem>>, vector<2x3136xf32>
    %c0_1 = arith.constant 0 : index
    %c0_2 = arith.constant 0 : index
    %1 = vector.load %arg2[%c0_1, %c0_2] : memref<3136x128xf32, #tpu.memory_space<vmem>>, vector<3136x128xf32>
    %cst = arith.constant dense<0.000000e+00> : vector<2x128xf32>
    %2 = tpu.matmul %0, %1, %cst {dimension_numbers = #tpu.dot_dimension_numbers<[1], [0], [0], [1], [0, 0, 1, 1], [], []>} : vector<2x3136xf32>, vector<3136x128xf32>, vector<2x128xf32> -> vector<2x128xf32>
    %c0_3 = arith.constant 0 : index
    %c0_4 = arith.constant 0 : index
    %3 = vector.load %arg3[%c0_3, %c0_4] : memref<1x128xf32, #tpu.memory_space<vmem>>, vector<1x128xf32>
    %4 = vector.broadcast %3 : vector<1x128xf32> to vector<2x128xf32>
    %5 = arith.addf %2, %4 : vector<2x128xf32>
    %cst_5 = arith.constant 0.000000e+00 : f32
    %6 = vector.broadcast %cst_5 : f32 to vector<2x128xf32>
    %7 = arith.maximumf %5, %6 : vector<2x128xf32>
    %c0_6 = arith.constant 0 : index
    %c0_7 = arith.constant 0 : index
    %8 = vector.load %arg4[%c0_6, %c0_7] : memref<128x128xf32, #tpu.memory_space<vmem>>, vector<128x128xf32>
    %cst_8 = arith.constant dense<0.000000e+00> : vector<2x128xf32>
    %9 = tpu.matmul %7, %8, %cst_8 {dimension_numbers = #tpu.dot_dimension_numbers<[1], [0], [0], [1], [0, 0, 1, 1], [], []>} : vector<2x128xf32>, vector<128x128xf32>, vector<2x128xf32> -> vector<2x128xf32>
    %c0_9 = arith.constant 0 : index
    %c0_10 = arith.constant 0 : index
    %10 = vector.load %arg5[%c0_9, %c0_10] : memref<1x128xf32, #tpu.memory_space<vmem>>, vector<1x128xf32>
    %11 = vector.broadcast %10 : vector<1x128xf32> to vector<2x128xf32>
    %12 = arith.addf %9, %11 : vector<2x128xf32>
    %c0_11 = arith.constant 0 : index
    %c0_12 = arith.constant 0 : index
    %13 = vector.load %arg6[%c0_11, %c0_12] : memref<2x128xf32, #tpu.memory_space<vmem>>, vector<2x128xf32>
    tpu.vector_store %arg6[%c0_11, %c0_12], %12 {strides = array<i32>} : memref<2x128xf32, #tpu.memory_space<vmem>>, vector<2x128xf32>,
    return
  }
  func.func @transform_0(%arg0: i32) -> (i32, i32) {
    %c0_i32 = arith.constant 0 : i32
    %c0_i32_0 = arith.constant 0 : i32
    return %arg0, %c0_i32 : i32, i32
  }
  func.func @transform_1(%arg0: i32) -> (i32, i32) {
    %c0_i32 = arith.constant 0 : i32
    %c0_i32_0 = arith.constant 0 : i32
    %c0_i32_1 = arith.constant 0 : i32
    return %c0_i32, %c0_i32_0 : i32, i32
  }
  func.func @transform_2(%arg0: i32) -> (i32, i32) {
    %c0_i32 = arith.constant 0 : i32
    %c0_i32_0 = arith.constant 0 : i32
    %c0_i32_1 = arith.constant 0 : i32
    return %c0_i32, %c0_i32_0 : i32, i32
  }
  func.func @transform_3(%arg0: i32) -> (i32, i32) {
    %c0_i32 = arith.constant 0 : i32
    %c0_i32_0 = arith.constant 0 : i32
    %c0_i32_1 = arith.constant 0 : i32
    return %c0_i32, %c0_i32_0 : i32, i32
  }
  func.func @transform_4(%arg0: i32) -> (i32, i32) {
    %c0_i32 = arith.constant 0 : i32
    %c0_i32_0 = arith.constant 0 : i32
    %c0_i32_1 = arith.constant 0 : i32
    return %c0_i32, %c0_i32_0 : i32, i32
  }
  func.func @transform_5(%arg0: i32) -> (i32, i32) {
    %c0_i32 = arith.constant 0 : i32
    %c0_i32_0 = arith.constant 0 : i32
    return %arg0, %c0_i32 : i32, i32
  }
}

</mosaic_0001>

<llo_original>
// kernel: feature_extractor_pallas.3
$region0: #{feature_extractor_pallas.3}
  #allocation0 [shape = 'u32[]', space=smem, size = 0x4, offset = 0x4, fixed_abs, tag = 'smem constant byte address 0x4 - core index']
  #allocation1 [shape = 'u32[72,128]{1,0:T(1,128)}', space=vmem, size = 0x9000, scoped, tag = 'internal scratch']
  %s0 = inlined_call_operand.vmem [shape: f32[2,3136], index: 0, kind: input, shape index: {}]
  %s1 = inlined_call_operand.vmem [shape: f32[3136,128], index: 1, kind: input, shape index: {}]
  %s2 = inlined_call_operand.vmem [shape: f32[1,128], index: 2, kind: input, shape index: {}]
  %s3 = inlined_call_operand.vmem [shape: f32[128,128], index: 3, kind: input, shape index: {}]
  %s4 = inlined_call_operand.vmem [shape: f32[1,128], index: 4, kind: input, shape index: {}]
  %s5 = inlined_call_operand.hbm [shape: f32[2,128], index: 5, kind: output, shape index: {}]
  %s6 = sld [smem:[#allocation0]]
  $region30: #{feature_extractor_pallas.3} parent=0
    _
  %s8 = ssub.s32 1, %s6
  %s9 = scalar_select 0, %s8, %s6
  $region1: #{feature_extractor_pallas.3} parent=0
    #allocation2 [shape = 'u8[1024]{0}', space=vmem, size = 0x400, scoped, tag = 'output window, operand 0, single buffered']
    #allocation3 [shape = 's32[1]{0}', space=sflag, size = 0x4, scoped, tag = 'scoped memory for feature_extractor_pallas.3']
    %10 = vsyncpa [#allocation3], 0
    // Predicated region
    $region2: #{feature_extractor_pallas.3} parent=1 // pred_check
      _
    $region3: #{feature_extractor_pallas.3} parent=1 // pred_check_branch
      %12 = sbr.rel (0) target = $region5
    $region4: #{feature_extractor_pallas.3} parent=1 // pred_region
      _
    $region5: #{feature_extractor_pallas.3} parent=1 // pred_fallthru
      _
    // Predicated region
    $region6: #{feature_extractor_pallas.3} parent=1 // pred_check
      _
    $region7: #{feature_extractor_pallas.3} parent=1 // pred_check_branch
      %14 = sbr.rel (0) target = $region9
    $region8: #{feature_extractor_pallas.3} parent=1 // pred_region
      _
    $region9: #{feature_extractor_pallas.3} parent=1 // pred_fallthru
      _
    // Predicated region
    $region10: #{feature_extractor_pallas.3} parent=1 // pred_check
      _
    $region11: #{feature_extractor_pallas.3} parent=1 // pred_check_branch
      %16 = sbr.rel (0) target = $region13
    $region12: #{feature_extractor_pallas.3} parent=1 // pred_region
      _
    $region13: #{feature_extractor_pallas.3} parent=1 // pred_fallthru
      _
    // Predicated region
    $region14: #{feature_extractor_pallas.3} parent=1 // pred_check
      _
    $region15: #{feature_extractor_pallas.3} parent=1 // pred_check_branch
      %18 = sbr.rel (0) target = $region17
    $region16: #{feature_extractor_pallas.3} parent=1 // pred_region
      _
    $region17: #{feature_extractor_pallas.3} parent=1 // pred_fallthru
      _
    // Predicated region
    $region18: #{feature_extractor_pallas.3} parent=1 // pred_check
      _
    $region19: #{feature_extractor_pallas.3} parent=1 // pred_check_branch
      %20 = sbr.rel (0) target = $region21
    $region20: #{feature_extractor_pallas.3} parent=1 // pred_region
      _
    $region21: #{feature_extractor_pallas.3} parent=1 // pred_fallthru
      _
    %v21 = vld [vmem:[%s0] sm:$0xff]
    %v22 = vld [vmem:[%s0 + $0x8] sm:$0xff]
    %v23 = vld [vmem:[%s0 + $0x10] sm:$0xff]
    %v24 = vld [vmem:[%s0 + $0x18] sm:$0xff]
    %v25 = vld [vmem:[%s0 + $0x20] sm:$0xff]
    %v26 = vld [vmem:[%s0 + $0x28] sm:$0xff]
    %v27 = vld [vmem:[%s0 + $0x30] sm:$0x3]
    %v28 = vld [vmem:[%s1] sm:$0xff]
    %v29 = vld [vmem:[%s1 + $0x8] sm:$0xff]
    %v30 = vld [vmem:[%s1 + $0x10] sm:$0xff]
    %v31 = vld [vmem:[%s1 + $0x18] sm:$0xff]
    %v32 = vld [vmem:[%s1 + $0x20] sm:$0xff]
    %v33 = vld [vmem:[%s1 + $0x28] sm:$0xff]
    %v34 = vld [vmem:[%s1 + $0x30] sm:$0xff]
    %v35 = vld [vmem:[%s1 + $0x38] sm:$0xff]
    %v36 = vld [vmem:[%s1 + $0x40] sm:$0xff]
    %v37 = vld [vmem:[%s1 + $0x48] sm:$0xff]
    %v38 = vld [vmem:[%s1 + $0x50] sm:$0xff]
    %v39 = vld [vmem:[%s1 + $0x58] sm:$0xff]
    %v40 = vld [vmem:[%s1 + $0x60] sm:$0xff]
    %v41 = vld [vmem:[%s1 + $0x68] sm:$0xff]
    %v42 = vld [vmem:[%s1 + $0x70] sm:$0xff]
    %v43 = vld [vmem:[%s1 + $0x78] sm:$0xff]
    %v44 = vld [vmem:[%s1 + $0x80] sm:$0xff]
    %v45 = vld [vmem:[%s1 + $0x88] sm:$0xff]
    %v46 = vld [vmem:[%s1 + $0x90] sm:$0xff]
    %v47 = vld [vmem:[%s1 + $0x98] sm:$0xff]
    %v48 = vld [vmem:[%s1 + $0xa0] sm:$0xff]
    %v49 = vld [vmem:[%s1 + $0xa8] sm:$0xff]
    %v50 = vld [vmem:[%s1 + $0xb0] sm:$0xff]
    %v51 = vld [vmem:[%s1 + $0xb8] sm:$0xff]
    %v52 = vld [vmem:[%s1 + $0xc0] sm:$0xff]
    %v53 = vld [vmem:[%s1 + $0xc8] sm:$0xff]
    %v54 = vld [vmem:[%s1 + $0xd0] sm:$0xff]
    %v55 = vld [vmem:[%s1 + $0xd8] sm:$0xff]
    %v56 = vld [vmem:[%s1 + $0xe0] sm:$0xff]
    %v57 = vld [vmem:[%s1 + $0xe8] sm:$0xff]
    %v58 = vld [vmem:[%s1 + $0xf0] sm:$0xff]
    %v59 = vld [vmem:[%s1 + $0xf8] sm:$0xff]
    %v60 = vld [vmem:[%s1 + $0x100] sm:$0xff]
    %v61 = vld [vmem:[%s1 + $0x108] sm:$0xff]
    %v62 = vld [vmem:[%s1 + $0x110] sm:$0xff]
    %v63 = vld [vmem:[%s1 + $0x118] sm:$0xff]
    %v64 = vld [vmem:[%s1 + $0x120] sm:$0xff]
    %v65 = vld [vmem:[%s1 + $0x128] sm:$0xff]
    %v66 = vld [vmem:[%s1 + $0x130] sm:$0xff]
    %v67 = vld [vmem:[%s1 + $0x138] sm:$0xff]
    %v68 = vld [vmem:[%s1 + $0x140] sm:$0xff]
    %v69 = vld [vmem:[%s1 + $0x148] sm:$0xff]
    %v70 = vld [vmem:[%s1 + $0x150] sm:$0xff]
    %v71 = vld [vmem:[%s1 + $0x158] sm:$0xff]
    %v72 = vld [vmem:[%s1 + $0x160] sm:$0xff]
    %v73 = vld [vmem:[%s1 + $0x168] sm:$0xff]
    %v74 = vld [vmem:[%s1 + $0x170] sm:$0xff]
    %v75 = vld [vmem:[%s1 + $0x178] sm:$0xff]
    %v76 = vld [vmem:[%s1 + $0x180] sm:$0xff]
    %v77 = vld [vmem:[%s1 + $0x188] sm:$0xff]
    %v78 = vld [vmem:[%s1 + $0x190] sm:$0xff]
    %v79 = vld [vmem:[%s1 + $0x198] sm:$0xff]
    %v80 = vld [vmem:[%s1 + $0x1a0] sm:$0xff]
    %v81 = vld [vmem:[%s1 + $0x1a8] sm:$0xff]
    %v82 = vld [vmem:[%s1 + $0x1b0] sm:$0xff]
    %v83 = vld [vmem:[%s1 + $0x1b8] sm:$0xff]
    %v84 = vld [vmem:[%s1 + $0x1c0] sm:$0xff]
    %v85 = vld [vmem:[%s1 + $0x1c8] sm:$0xff]
    %v86 = vld [vmem:[%s1 + $0x1d0] sm:$0xff]
    %v87 = vld [vmem:[%s1 + $0x1d8] sm:$0xff]
    %v88 = vld [vmem:[%s1 + $0x1e0] sm:$0xff]
    %v89 = vld [vmem:[%s1 + $0x1e8] sm:$0xff]
    %v90 = vld [vmem:[%s1 + $0x1f0] sm:$0xff]
    %v91 = vld [vmem:[%s1 + $0x1f8] sm:$0xff]
    %v92 = vld [vmem:[%s1 + $0x200] sm:$0xff]
    %v93 = vld [vmem:[%s1 + $0x208] sm:$0xff]
    %v94 = vld [vmem:[%s1 + $0x210] sm:$0xff]
    %v95 = vld [vmem:[%s1 + $0x218] sm:$0xff]
    %v96 = vld [vmem:[%s1 + $0x220] sm:$0xff]
    %v97 = vld [vmem:[%s1 + $0x228] sm:$0xff]
    %v98 = vld [vmem:[%s1 + $0x230] sm:$0xff]
    %v99 = vld [vmem:[%s1 + $0x238] sm:$0xff]
    %v100 = vld [vmem:[%s1 + $0x240] sm:$0xff]
    %v101 = vld [vmem:[%s1 + $0x248] sm:$0xff]
    %v102 = vld [vmem:[%s1 + $0x250] sm:$0xff]
    %v103 = vld [vmem:[%s1 + $0x258] sm:$0xff]
    %v104 = vld [vmem:[%s1 + $0x260] sm:$0xff]
    %v105 = vld [vmem:[%s1 + $0x268] sm:$0xff]
    %v106 = vld [vmem:[%s1 + $0x270] sm:$0xff]
    %v107 = vld [vmem:[%s1 + $0x278] sm:$0xff]
    %v108 = vld [vmem:[%s1 + $0x280] sm:$0xff]
    %v109 = vld [vmem:[%s1 + $0x288] sm:$0xff]
    %v110 = vld [vmem:[%s1 + $0x290] sm:$0xff]
    %v111 = vld [vmem:[%s1 + $0x298] sm:$0xff]
    %v112 = vld [vmem:[%s1 + $0x2a0] sm:$0xff]
    %v113 = vld [vmem:[%s1 + $0x2a8] sm:$0xff]
    %v114 = vld [vmem:[%s1 + $0x2b0] sm:$0xff]
    %v115 = vld [vmem:[%s1 + $0x2b8] sm:$0xff]
    %v116 = vld [vmem:[%s1 + $0x2c0] sm:$0xff]
    %v117 = vld [vmem:[%s1 + $0x2c8] sm:$0xff]
    %v118 = vld [vmem:[%s1 + $0x2d0] sm:$0xff]
    %v119 = vld [vmem:[%s1 + $0x2d8] sm:$0xff]
    %v120 = vld [vmem:[%s1 + $0x2e0] sm:$0xff]
    %v121 = vld [vmem:[%s1 + $0x2e8] sm:$0xff]
    %v122 = vld [vmem:[%s1 + $0x2f0] sm:$0xff]
    %v123 = vld [vmem:[%s1 + $0x2f8] sm:$0xff]
    %v124 = vld [vmem:[%s1 + $0x300] sm:$0xff]
    %v125 = vld [vmem:[%s1 + $0x308] sm:$0xff]
    %v126 = vld [vmem:[%s1 + $0x310] sm:$0xff]
    %v127 = vld [vmem:[%s1 + $0x318] sm:$0xff]
    %v128 = vld [vmem:[%s1 + $0x320] sm:$0xff]
    %v129 = vld [vmem:[%s1 + $0x328] sm:$0xff]
    %v130 = vld [vmem:[%s1 + $0x330] sm:$0xff]
    %v131 = vld [vmem:[%s1 + $0x338] sm:$0xff]
    %v132 = vld [vmem:[%s1 + $0x340] sm:$0xff]
    %v133 = vld [vmem:[%s1 + $0x348] sm:$0xff]
    %v134 = vld [vmem:[%s1 + $0x350] sm:$0xff]
    %v135 = vld [vmem:[%s1 + $0x358] sm:$0xff]
    %v136 = vld [vmem:[%s1 + $0x360] sm:$0xff]
    %v137 = vld [vmem:[%s1 + $0x368] sm:$0xff]
    %v138 = vld [vmem:[%s1 + $0x370] sm:$0xff]
    %v139 = vld [vmem:[%s1 + $0x378] sm:$0xff]
    %v140 = vld [vmem:[%s1 + $0x380] sm:$0xff]
    %v141 = vld [vmem:[%s1 + $0x388] sm:$0xff]
    %v142 = vld [vmem:[%s1 + $0x390] sm:$0xff]
    %v143 = vld [vmem:[%s1 + $0x398] sm:$0xff]
    %v144 = vld [vmem:[%s1 + $0x3a0] sm:$0xff]
    %v145 = vld [vmem:[%s1 + $0x3a8] sm:$0xff]
    %v146 = vld [vmem:[%s1 + $0x3b0] sm:$0xff]
    %v147 = vld [vmem:[%s1 + $0x3b8] sm:$0xff]
    %v148 = vld [vmem:[%s1 + $0x3c0] sm:$0xff]
    %v149 = vld [vmem:[%s1 + $0x3c8] sm:$0xff]
    %v150 = vld [vmem:[%s1 + $0x3d0] sm:$0xff]
    %v151 = vld [vmem:[%s1 + $0x3d8] sm:$0xff]
    %v152 = vld [vmem:[%s1 + $0x3e0] sm:$0xff]
    %v153 = vld [vmem:[%s1 + $0x3e8] sm:$0xff]
    %v154 = vld [vmem:[%s1 + $0x3f0] sm:$0xff]
    %v155 = vld [vmem:[%s1 + $0x3f8] sm:$0xff]
    %v156 = vld [vmem:[%s1 + $0x400] sm:$0xff]
    %v157 = vld [vmem:[%s1 + $0x408] sm:$0xff]
    %v158 = vld [vmem:[%s1 + $0x410] sm:$0xff]
    %v159 = vld [vmem:[%s1 + $0x418] sm:$0xff]
    %v160 = vld [vmem:[%s1 + $0x420] sm:$0xff]
    %v161 = vld [vmem:[%s1 + $0x428] sm:$0xff]
    %v162 = vld [vmem:[%s1 + $0x430] sm:$0xff]
    %v163 = vld [vmem:[%s1 + $0x438] sm:$0xff]
    %v164 = vld [vmem:[%s1 + $0x440] sm:$0xff]
    %v165 = vld [vmem:[%s1 + $0x448] sm:$0xff]
    %v166 = vld [vmem:[%s1 + $0x450] sm:$0xff]
    %v167 = vld [vmem:[%s1 + $0x458] sm:$0xff]
    %v168 = vld [vmem:[%s1 + $0x460] sm:$0xff]
    %v169 = vld [vmem:[%s1 + $0x468] sm:$0xff]
    %v170 = vld [vmem:[%s1 + $0x470] sm:$0xff]
    %v171 = vld [vmem:[%s1 + $0x478] sm:$0xff]
    %v172 = vld [vmem:[%s1 + $0x480] sm:$0xff]
    %v173 = vld [vmem:[%s1 + $0x488] sm:$0xff]
    %v174 = vld [vmem:[%s1 + $0x490] sm:$0xff]
    %v175 = vld [vmem:[%s1 + $0x498] sm:$0xff]
    %v176 = vld [vmem:[%s1 + $0x4a0] sm:$0xff]
    %v177 = vld [vmem:[%s1 + $0x4a8] sm:$0xff]
    %v178 = vld [vmem:[%s1 + $0x4b0] sm:$0xff]
    %v179 = vld [vmem:[%s1 + $0x4b8] sm:$0xff]
    %v180 = vld [vmem:[%s1 + $0x4c0] sm:$0xff]
    %v181 = vld [vmem:[%s1 + $0x4c8] sm:$0xff]
    %v182 = vld [vmem:[%s1 + $0x4d0] sm:$0xff]
    %v183 = vld [vmem:[%s1 + $0x4d8] sm:$0xff]
    %v184 = vld [vmem:[%s1 + $0x4e0] sm:$0xff]
    %v185 = vld [vmem:[%s1 + $0x4e8] sm:$0xff]
    %v186 = vld [vmem:[%s1 + $0x4f0] sm:$0xff]
    %v187 = vld [vmem:[%s1 + $0x4f8] sm:$0xff]
    %v188 = vld [vmem:[%s1 + $0x500] sm:$0xff]
    %v189 = vld [vmem:[%s1 + $0x508] sm:$0xff]
    %v190 = vld [vmem:[%s1 + $0x510] sm:$0xff]
    %v191 = vld [vmem:[%s1 + $0x518] sm:$0xff]
    %v192 = vld [vmem:[%s1 + $0x520] sm:$0xff]
    %v193 = vld [vmem:[%s1 + $0x528] sm:$0xff]
    %v194 = vld [vmem:[%s1 + $0x530] sm:$0xff]
    %v195 = vld [vmem:[%s1 + $0x538] sm:$0xff]
    %v196 = vld [vmem:[%s1 + $0x540] sm:$0xff]
    %v197 = vld [vmem:[%s1 + $0x548] sm:$0xff]
    %v198 = vld [vmem:[%s1 + $0x550] sm:$0xff]
    %v199 = vld [vmem:[%s1 + $0x558] sm:$0xff]
    %v200 = vld [vmem:[%s1 + $0x560] sm:$0xff]
    %v201 = vld [vmem:[%s1 + $0x568] sm:$0xff]
    %v202 = vld [vmem:[%s1 + $0x570] sm:$0xff]
    %v203 = vld [vmem:[%s1 + $0x578] sm:$0xff]
    %v204 = vld [vmem:[%s1 + $0x580] sm:$0xff]
    %v205 = vld [vmem:[%s1 + $0x588] sm:$0xff]
    %v206 = vld [vmem:[%s1 + $0x590] sm:$0xff]
    %v207 = vld [vmem:[%s1 + $0x598] sm:$0xff]
    %v208 = vld [vmem:[%s1 + $0x5a0] sm:$0xff]
    %v209 = vld [vmem:[%s1 + $0x5a8] sm:$0xff]
    %v210 = vld [vmem:[%s1 + $0x5b0] sm:$0xff]
    %v211 = vld [vmem:[%s1 + $0x5b8] sm:$0xff]
    %v212 = vld [vmem:[%s1 + $0x5c0] sm:$0xff]
    %v213 = vld [vmem:[%s1 + $0x5c8] sm:$0xff]
    %v214 = vld [vmem:[%s1 + $0x5d0] sm:$0xff]
    %v215 = vld [vmem:[%s1 + $0x5d8] sm:$0xff]
    %v216 = vld [vmem:[%s1 + $0x5e0] sm:$0xff]
    %v217 = vld [vmem:[%s1 + $0x5e8] sm:$0xff]
    %v218 = vld [vmem:[%s1 + $0x5f0] sm:$0xff]
    %v219 = vld [vmem:[%s1 + $0x5f8] sm:$0xff]
    %v220 = vld [vmem:[%s1 + $0x600] sm:$0xff]
    %v221 = vld [vmem:[%s1 + $0x608] sm:$0xff]
    %v222 = vld [vmem:[%s1 + $0x610] sm:$0xff]
    %v223 = vld [vmem:[%s1 + $0x618] sm:$0xff]
    %v224 = vld [vmem:[%s1 + $0x620] sm:$0xff]
    %v225 = vld [vmem:[%s1 + $0x628] sm:$0xff]
    %v226 = vld [vmem:[%s1 + $0x630] sm:$0xff]
    %v227 = vld [vmem:[%s1 + $0x638] sm:$0xff]
    %v228 = vld [vmem:[%s1 + $0x640] sm:$0xff]
    %v229 = vld [vmem:[%s1 + $0x648] sm:$0xff]
    %v230 = vld [vmem:[%s1 + $0x650] sm:$0xff]
    %v231 = vld [vmem:[%s1 + $0x658] sm:$0xff]
    %v232 = vld [vmem:[%s1 + $0x660] sm:$0xff]
    %v233 = vld [vmem:[%s1 + $0x668] sm:$0xff]
    %v234 = vld [vmem:[%s1 + $0x670] sm:$0xff]
    %v235 = vld [vmem:[%s1 + $0x678] sm:$0xff]
    %v236 = vld [vmem:[%s1 + $0x680] sm:$0xff]
    %v237 = vld [vmem:[%s1 + $0x688] sm:$0xff]
    %v238 = vld [vmem:[%s1 + $0x690] sm:$0xff]
    %v239 = vld [vmem:[%s1 + $0x698] sm:$0xff]
    %v240 = vld [vmem:[%s1 + $0x6a0] sm:$0xff]
    %v241 = vld [vmem:[%s1 + $0x6a8] sm:$0xff]
    %v242 = vld [vmem:[%s1 + $0x6b0] sm:$0xff]
    %v243 = vld [vmem:[%s1 + $0x6b8] sm:$0xff]
    %v244 = vld [vmem:[%s1 + $0x6c0] sm:$0xff]
    %v245 = vld [vmem:[%s1 + $0x6c8] sm:$0xff]
    %v246 = vld [vmem:[%s1 + $0x6d0] sm:$0xff]
    %v247 = vld [vmem:[%s1 + $0x6d8] sm:$0xff]
    %v248 = vld [vmem:[%s1 + $0x6e0] sm:$0xff]
    %v249 = vld [vmem:[%s1 + $0x6e8] sm:$0xff]
    %v250 = vld [vmem:[%s1 + $0x6f0] sm:$0xff]
    %v251 = vld [vmem:[%s1 + $0x6f8] sm:$0xff]
    %v252 = vld [vmem:[%s1 + $0x700] sm:$0xff]
    %v253 = vld [vmem:[%s1 + $0x708] sm:$0xff]
    %v254 = vld [vmem:[%s1 + $0x710] sm:$0xff]
    %v255 = vld [vmem:[%s1 + $0x718] sm:$0xff]
    %v256 = vld [vmem:[%s1 + $0x720] sm:$0xff]
    %v257 = vld [vmem:[%s1 + $0x728] sm:$0xff]
    %v258 = vld [vmem:[%s1 + $0x730] sm:$0xff]
    %v259 = vld [vmem:[%s1 + $0x738] sm:$0xff]
    %v260 = vld [vmem:[%s1 + $0x740] sm:$0xff]
    %v261 = vld [vmem:[%s1 + $0x748] sm:$0xff]
    %v262 = vld [vmem:[%s1 + $0x750] sm:$0xff]
    %v263 = vld [vmem:[%s1 + $0x758] sm:$0xff]
    %v264 = vld [vmem:[%s1 + $0x760] sm:$0xff]
    %v265 = vld [vmem:[%s1 + $0x768] sm:$0xff]
    %v266 = vld [vmem:[%s1 + $0x770] sm:$0xff]
    %v267 = vld [vmem:[%s1 + $0x778] sm:$0xff]
    %v268 = vld [vmem:[%s1 + $0x780] sm:$0xff]
    %v269 = vld [vmem:[%s1 + $0x788] sm:$0xff]
    %v270 = vld [vmem:[%s1 + $0x790] sm:$0xff]
    %v271 = vld [vmem:[%s1 + $0x798] sm:$0xff]
    %v272 = vld [vmem:[%s1 + $0x7a0] sm:$0xff]
    %v273 = vld [vmem:[%s1 + $0x7a8] sm:$0xff]
    %v274 = vld [vmem:[%s1 + $0x7b0] sm:$0xff]
    %v275 = vld [vmem:[%s1 + $0x7b8] sm:$0xff]
    %v276 = vld [vmem:[%s1 + $0x7c0] sm:$0xff]
    %v277 = vld [vmem:[%s1 + $0x7c8] sm:$0xff]
    %v278 = vld [vmem:[%s1 + $0x7d0] sm:$0xff]
    %v279 = vld [vmem:[%s1 + $0x7d8] sm:$0xff]
    %v280 = vld [vmem:[%s1 + $0x7e0] sm:$0xff]
    %v281 = vld [vmem:[%s1 + $0x7e8] sm:$0xff]
    %v282 = vld [vmem:[%s1 + $0x7f0] sm:$0xff]
    %v283 = vld [vmem:[%s1 + $0x7f8] sm:$0xff]
    %v284 = vld [vmem:[%s1 + $0x800] sm:$0xff]
    %v285 = vld [vmem:[%s1 + $0x808] sm:$0xff]
    %v286 = vld [vmem:[%s1 + $0x810] sm:$0xff]
    %v287 = vld [vmem:[%s1 + $0x818] sm:$0xff]
    %v288 = vld [vmem:[%s1 + $0x820] sm:$0xff]
    %v289 = vld [vmem:[%s1 + $0x828] sm:$0xff]
    %v290 = vld [vmem:[%s1 + $0x830] sm:$0xff]
    %v291 = vld [vmem:[%s1 + $0x838] sm:$0xff]
    %v292 = vld [vmem:[%s1 + $0x840] sm:$0xff]
    %v293 = vld [vmem:[%s1 + $0x848] sm:$0xff]
    %v294 = vld [vmem:[%s1 + $0x850] sm:$0xff]
    %v295 = vld [vmem:[%s1 + $0x858] sm:$0xff]
    %v296 = vld [vmem:[%s1 + $0x860] sm:$0xff]
    %v297 = vld [vmem:[%s1 + $0x868] sm:$0xff]
    %v298 = vld [vmem:[%s1 + $0x870] sm:$0xff]
    %v299 = vld [vmem:[%s1 + $0x878] sm:$0xff]
    %v300 = vld [vmem:[%s1 + $0x880] sm:$0xff]
    %v301 = vld [vmem:[%s1 + $0x888] sm:$0xff]
    %v302 = vld [vmem:[%s1 + $0x890] sm:$0xff]
    %v303 = vld [vmem:[%s1 + $0x898] sm:$0xff]
    %v304 = vld [vmem:[%s1 + $0x8a0] sm:$0xff]
    %v305 = vld [vmem:[%s1 + $0x8a8] sm:$0xff]
    %v306 = vld [vmem:[%s1 + $0x8b0] sm:$0xff]
    %v307 = vld [vmem:[%s1 + $0x8b8] sm:$0xff]
    %v308 = vld [vmem:[%s1 + $0x8c0] sm:$0xff]
    %v309 = vld [vmem:[%s1 + $0x8c8] sm:$0xff]
    %v310 = vld [vmem:[%s1 + $0x8d0] sm:$0xff]
    %v311 = vld [vmem:[%s1 + $0x8d8] sm:$0xff]
    %v312 = vld [vmem:[%s1 + $0x8e0] sm:$0xff]
    %v313 = vld [vmem:[%s1 + $0x8e8] sm:$0xff]
    %v314 = vld [vmem:[%s1 + $0x8f0] sm:$0xff]
    %v315 = vld [vmem:[%s1 + $0x8f8] sm:$0xff]
    %v316 = vld [vmem:[%s1 + $0x900] sm:$0xff]
    %v317 = vld [vmem:[%s1 + $0x908] sm:$0xff]
    %v318 = vld [vmem:[%s1 + $0x910] sm:$0xff]
    %v319 = vld [vmem:[%s1 + $0x918] sm:$0xff]
    %v320 = vld [vmem:[%s1 + $0x920] sm:$0xff]
    %v321 = vld [vmem:[%s1 + $0x928] sm:$0xff]
    %v322 = vld [vmem:[%s1 + $0x930] sm:$0xff]
    %v323 = vld [vmem:[%s1 + $0x938] sm:$0xff]
    %v324 = vld [vmem:[%s1 + $0x940] sm:$0xff]
    %v325 = vld [vmem:[%s1 + $0x948] sm:$0xff]
    %v326 = vld [vmem:[%s1 + $0x950] sm:$0xff]
    %v327 = vld [vmem:[%s1 + $0x958] sm:$0xff]
    %v328 = vld [vmem:[%s1 + $0x960] sm:$0xff]
    %v329 = vld [vmem:[%s1 + $0x968] sm:$0xff]
    %v330 = vld [vmem:[%s1 + $0x970] sm:$0xff]
    %v331 = vld [vmem:[%s1 + $0x978] sm:$0xff]
    %v332 = vld [vmem:[%s1 + $0x980] sm:$0xff]
    %v333 = vld [vmem:[%s1 + $0x988] sm:$0xff]
    %v334 = vld [vmem:[%s1 + $0x990] sm:$0xff]
    %v335 = vld [vmem:[%s1 + $0x998] sm:$0xff]
    %v336 = vld [vmem:[%s1 + $0x9a0] sm:$0xff]
    %v337 = vld [vmem:[%s1 + $0x9a8] sm:$0xff]
    %v338 = vld [vmem:[%s1 + $0x9b0] sm:$0xff]
    %v339 = vld [vmem:[%s1 + $0x9b8] sm:$0xff]
    %v340 = vld [vmem:[%s1 + $0x9c0] sm:$0xff]
    %v341 = vld [vmem:[%s1 + $0x9c8] sm:$0xff]
    %v342 = vld [vmem:[%s1 + $0x9d0] sm:$0xff]
    %v343 = vld [vmem:[%s1 + $0x9d8] sm:$0xff]
    %v344 = vld [vmem:[%s1 + $0x9e0] sm:$0xff]
    %v345 = vld [vmem:[%s1 + $0x9e8] sm:$0xff]
    %v346 = vld [vmem:[%s1 + $0x9f0] sm:$0xff]
    %v347 = vld [vmem:[%s1 + $0x9f8] sm:$0xff]
    %v348 = vld [vmem:[%s1 + $0xa00] sm:$0xff]
    %v349 = vld [vmem:[%s1 + $0xa08] sm:$0xff]
    %v350 = vld [vmem:[%s1 + $0xa10] sm:$0xff]
    %v351 = vld [vmem:[%s1 + $0xa18] sm:$0xff]
    %v352 = vld [vmem:[%s1 + $0xa20] sm:$0xff]
    %v353 = vld [vmem:[%s1 + $0xa28] sm:$0xff]
    %v354 = vld [vmem:[%s1 + $0xa30] sm:$0xff]
    %v355 = vld [vmem:[%s1 + $0xa38] sm:$0xff]
    %v356 = vld [vmem:[%s1 + $0xa40] sm:$0xff]
    %v357 = vld [vmem:[%s1 + $0xa48] sm:$0xff]
    %v358 = vld [vmem:[%s1 + $0xa50] sm:$0xff]
    %v359 = vld [vmem:[%s1 + $0xa58] sm:$0xff]
    %v360 = vld [vmem:[%s1 + $0xa60] sm:$0xff]
    %v361 = vld [vmem:[%s1 + $0xa68] sm:$0xff]
    %v362 = vld [vmem:[%s1 + $0xa70] sm:$0xff]
    %v363 = vld [vmem:[%s1 + $0xa78] sm:$0xff]
    %v364 = vld [vmem:[%s1 + $0xa80] sm:$0xff]
    %v365 = vld [vmem:[%s1 + $0xa88] sm:$0xff]
    %v366 = vld [vmem:[%s1 + $0xa90] sm:$0xff]
    %v367 = vld [vmem:[%s1 + $0xa98] sm:$0xff]
    %v368 = vld [vmem:[%s1 + $0xaa0] sm:$0xff]
    %v369 = vld [vmem:[%s1 + $0xaa8] sm:$0xff]
    %v370 = vld [vmem:[%s1 + $0xab0] sm:$0xff]
    %v371 = vld [vmem:[%s1 + $0xab8] sm:$0xff]
    %v372 = vld [vmem:[%s1 + $0xac0] sm:$0xff]
    %v373 = vld [vmem:[%s1 + $0xac8] sm:$0xff]
    %v374 = vld [vmem:[%s1 + $0xad0] sm:$0xff]
    %v375 = vld [vmem:[%s1 + $0xad8] sm:$0xff]
    %v376 = vld [vmem:[%s1 + $0xae0] sm:$0xff]
    %v377 = vld [vmem:[%s1 + $0xae8] sm:$0xff]
    %v378 = vld [vmem:[%s1 + $0xaf0] sm:$0xff]
    %v379 = vld [vmem:[%s1 + $0xaf8] sm:$0xff]
    %v380 = vld [vmem:[%s1 + $0xb00] sm:$0xff]
    %v381 = vld [vmem:[%s1 + $0xb08] sm:$0xff]
    %v382 = vld [vmem:[%s1 + $0xb10] sm:$0xff]
    %v383 = vld [vmem:[%s1 + $0xb18] sm:$0xff]
    %v384 = vld [vmem:[%s1 + $0xb20] sm:$0xff]
    %v385 = vld [vmem:[%s1 + $0xb28] sm:$0xff]
    %v386 = vld [vmem:[%s1 + $0xb30] sm:$0xff]
    %v387 = vld [vmem:[%s1 + $0xb38] sm:$0xff]
    %v388 = vld [vmem:[%s1 + $0xb40] sm:$0xff]
    %v389 = vld [vmem:[%s1 + $0xb48] sm:$0xff]
    %v390 = vld [vmem:[%s1 + $0xb50] sm:$0xff]
    %v391 = vld [vmem:[%s1 + $0xb58] sm:$0xff]
    %v392 = vld [vmem:[%s1 + $0xb60] sm:$0xff]
    %v393 = vld [vmem:[%s1 + $0xb68] sm:$0xff]
    %v394 = vld [vmem:[%s1 + $0xb70] sm:$0xff]
    %v395 = vld [vmem:[%s1 + $0xb78] sm:$0xff]
    %v396 = vld [vmem:[%s1 + $0xb80] sm:$0xff]
    %v397 = vld [vmem:[%s1 + $0xb88] sm:$0xff]
    %v398 = vld [vmem:[%s1 + $0xb90] sm:$0xff]
    %v399 = vld [vmem:[%s1 + $0xb98] sm:$0xff]
    %v400 = vld [vmem:[%s1 + $0xba0] sm:$0xff]
    %v401 = vld [vmem:[%s1 + $0xba8] sm:$0xff]
    %v402 = vld [vmem:[%s1 + $0xbb0] sm:$0xff]
    %v403 = vld [vmem:[%s1 + $0xbb8] sm:$0xff]
    %v404 = vld [vmem:[%s1 + $0xbc0] sm:$0xff]
    %v405 = vld [vmem:[%s1 + $0xbc8] sm:$0xff]
    %v406 = vld [vmem:[%s1 + $0xbd0] sm:$0xff]
    %v407 = vld [vmem:[%s1 + $0xbd8] sm:$0xff]
    %v408 = vld [vmem:[%s1 + $0xbe0] sm:$0xff]
    %v409 = vld [vmem:[%s1 + $0xbe8] sm:$0xff]
    %v410 = vld [vmem:[%s1 + $0xbf0] sm:$0xff]
    %v411 = vld [vmem:[%s1 + $0xbf8] sm:$0xff]
    %v412 = vld [vmem:[%s1 + $0xc00] sm:$0xff]
    %v413 = vld [vmem:[%s1 + $0xc08] sm:$0xff]
    %v414 = vld [vmem:[%s1 + $0xc10] sm:$0xff]
    %v415 = vld [vmem:[%s1 + $0xc18] sm:$0xff]
    %v416 = vld [vmem:[%s1 + $0xc20] sm:$0xff]
    %v417 = vld [vmem:[%s1 + $0xc28] sm:$0xff]
    %v418 = vld [vmem:[%s1 + $0xc30] sm:$0xff]
    %v419 = vld [vmem:[%s1 + $0xc38] sm:$0xff]
    %v420 = vld [vmem:[%s2] sm:$0x1]
    %v422 = vperm.slane %v420, 0
    %431 = vst [vmem:[#allocation1] ss:$4 sm:$0xff] %v21
    %s432 = scalar_lea.vmem [#allocation1], 32
    %433 = vst [vmem:[%s432] ss:$4 sm:$0xff] %v22
    %v434 = vld.sshfl [vmem:[#allocation1] sm:$0xff pattern:$0x73625140]
    %v435 = vld.sshfl [vmem:[#allocation1 + $0x8] sm:$0xff pattern:$0x73625140]
    %v436 = vld.sshfl [vmem:[#allocation1 + $0x10] sm:$0xff pattern:$0x73625140]
    %v437 = vld.sshfl [vmem:[#allocation1 + $0x18] sm:$0xff pattern:$0x73625140]
    %v438 = vld.sshfl [vmem:[#allocation1 + $0x20] sm:$0xff pattern:$0x73625140]
    %v439 = vld.sshfl [vmem:[#allocation1 + $0x28] sm:$0xff pattern:$0x73625140]
    %v440 = vld.sshfl [vmem:[#allocation1 + $0x30] sm:$0xff pattern:$0x73625140]
    %v441 = vld.sshfl [vmem:[#allocation1 + $0x38] sm:$0xff pattern:$0x73625140]
    %442 = vst [vmem:[#allocation1] ss:$4 sm:$0xff] %v23
    %443 = vst [vmem:[%s432] ss:$4 sm:$0xff] %v24
    %v444 = vld.sshfl [vmem:[#allocation1] sm:$0xff pattern:$0x73625140]
    %v445 = vld.sshfl [vmem:[#allocation1 + $0x8] sm:$0xff pattern:$0x73625140]
    %v446 = vld.sshfl [vmem:[#allocation1 + $0x10] sm:$0xff pattern:$0x73625140]
    %v447 = vld.sshfl [vmem:[#allocation1 + $0x18] sm:$0xff pattern:$0x73625140]
    %v448 = vld.sshfl [vmem:[#allocation1 + $0x20] sm:$0xff pattern:$0x73625140]
    %v449 = vld.sshfl [vmem:[#allocation1 + $0x28] sm:$0xff pattern:$0x73625140]
    %v450 = vld.sshfl [vmem:[#allocation1 + $0x30] sm:$0xff pattern:$0x73625140]
    %v451 = vld.sshfl [vmem:[#allocation1 + $0x38] sm:$0xff pattern:$0x73625140]
    %452 = vst [vmem:[#allocation1] ss:$4 sm:$0xff] %v25
    %453 = vst [vmem:[%s432] ss:$4 sm:$0xff] %v26
    %v454 = vld.sshfl [vmem:[#allocation1] sm:$0xff pattern:$0x73625140]
    %v455 = vld.sshfl [vmem:[#allocation1 + $0x8] sm:$0xff pattern:$0x73625140]
    %v456 = vld.sshfl [vmem:[#allocation1 + $0x10] sm:$0xff pattern:$0x73625140]
    %v457 = vld.sshfl [vmem:[#allocation1 + $0x18] sm:$0xff pattern:$0x73625140]
    %v458 = vld.sshfl [vmem:[#allocation1 + $0x20] sm:$0xff pattern:$0x73625140]
    %v459 = vld.sshfl [vmem:[#allocation1 + $0x28] sm:$0xff pattern:$0x73625140]
    %v460 = vld.sshfl [vmem:[#allocation1 + $0x30] sm:$0xff pattern:$0x73625140]
    %v461 = vld.sshfl [vmem:[#allocation1 + $0x38] sm:$0xff pattern:$0x73625140]
    %462 = vst [vmem:[#allocation1] ss:$4 sm:$0xff] %v27
    %v463 = vld.sshfl [vmem:[#allocation1] sm:$0xff pattern:$0x73625140]
    %vm488 = vcmask 523264
    %v489 = vsel %vm488, %v463, 0
    %491 = vmatpush.msra.mxu0 %v43
    %492 = vmatpush.msra.mxu0 %v42
    %493 = vmatpush.msra.mxu0 %v41
    %494 = vmatpush.msra.mxu0 %v40
    %495 = vmatpush.msra.mxu0 %v39
    %496 = vmatpush.msra.mxu0 %v38
    %497 = vmatpush.msra.mxu0 %v37
    %498 = vmatpush.msra.mxu0 %v36
    %499 = vmatpush.msra.mxu0 %v35
    %500 = vmatpush.msra.mxu0 %v34
    %501 = vmatpush.msra.mxu0 %v33
    %502 = vmatpush.msra.mxu0 %v32
    %503 = vmatpush.msra.mxu0 %v31
    %504 = vmatpush.msra.mxu0 %v30
    %505 = vmatpush.msra.mxu0 %v29
    %506 = vmatpush.msra.mxu0 %v28
    %507 = vmatmul.f32.gmra.mxu0 %v434
    %v508 = vpop.f32.mrf.mxu0
    %v509 = vadd.f32 %v422, %v508
    %510 = vdwg.mxu0
    %511 = vmatpush.msra.mxu0 %v59
    %512 = vmatpush.msra.mxu0 %v58
    %513 = vmatpush.msra.mxu0 %v57
    %514 = vmatpush.msra.mxu0 %v56
    %515 = vmatpush.msra.mxu0 %v55
    %516 = vmatpush.msra.mxu0 %v54
    %517 = vmatpush.msra.mxu0 %v53
    %518 = vmatpush.msra.mxu0 %v52
    %519 = vmatpush.msra.mxu0 %v51
    %520 = vmatpush.msra.mxu0 %v50
    %521 = vmatpush.msra.mxu0 %v49
    %522 = vmatpush.msra.mxu0 %v48
    %523 = vmatpush.msra.mxu0 %v47
    %524 = vmatpush.msra.mxu0 %v46
    %525 = vmatpush.msra.mxu0 %v45
    %526 = vmatpush.msra.mxu0 %v44
    %527 = vmatmul.f32.gmra.mxu0 %v435
    %v528 = vpop.f32.mrf.mxu0
    %v529 = vadd.f32 %v509, %v528
    %530 = vdwg.mxu0
    %531 = vmatpush.msra.mxu0 %v75
    %532 = vmatpush.msra.mxu0 %v74
    %533 = vmatpush.msra.mxu0 %v73
    %534 = vmatpush.msra.mxu0 %v72
    %535 = vmatpush.msra.mxu0 %v71
    %536 = vmatpush.msra.mxu0 %v70
    %537 = vmatpush.msra.mxu0 %v69
    %538 = vmatpush.msra.mxu0 %v68
    %539 = vmatpush.msra.mxu0 %v67
    %540 = vmatpush.msra.mxu0 %v66
    %541 = vmatpush.msra.mxu0 %v65
    %542 = vmatpush.msra.mxu0 %v64
    %543 = vmatpush.msra.mxu0 %v63
    %544 = vmatpush.msra.mxu0 %v62
    %545 = vmatpush.msra.mxu0 %v61
    %546 = vmatpush.msra.mxu0 %v60
    %547 = vmatmul.f32.gmra.mxu0 %v436
    %v548 = vpop.f32.mrf.mxu0
    %v549 = vadd.f32 %v529, %v548
    %550 = vdwg.mxu0
    %551 = vmatpush.msra.mxu0 %v91
    %552 = vmatpush.msra.mxu0 %v90
    %553 = vmatpush.msra.mxu0 %v89
    %554 = vmatpush.msra.mxu0 %v88
    %555 = vmatpush.msra.mxu0 %v87
    %556 = vmatpush.msra.mxu0 %v86
    %557 = vmatpush.msra.mxu0 %v85
    %558 = vmatpush.msra.mxu0 %v84
    %559 = vmatpush.msra.mxu0 %v83
    %560 = vmatpush.msra.mxu0 %v82
    %561 = vmatpush.msra.mxu0 %v81
    %562 = vmatpush.msra.mxu0 %v80
    %563 = vmatpush.msra.mxu0 %v79
    %564 = vmatpush.msra.mxu0 %v78
    %565 = vmatpush.msra.mxu0 %v77
    %566 = vmatpush.msra.mxu0 %v76
    %567 = vmatmul.f32.gmra.mxu0 %v437
    %v568 = vpop.f32.mrf.mxu0
    %v569 = vadd.f32 %v549, %v568
    %570 = vdwg.mxu0
    %571 = vmatpush.msra.mxu0 %v107
    %572 = vmatpush.msra.mxu0 %v106
    %573 = vmatpush.msra.mxu0 %v105
    %574 = vmatpush.msra.mxu0 %v104
    %575 = vmatpush.msra.mxu0 %v103
    %576 = vmatpush.msra.mxu0 %v102
    %577 = vmatpush.msra.mxu0 %v101
    %578 = vmatpush.msra.mxu0 %v100
    %579 = vmatpush.msra.mxu0 %v99
    %580 = vmatpush.msra.mxu0 %v98
    %581 = vmatpush.msra.mxu0 %v97
    %582 = vmatpush.msra.mxu0 %v96
    %583 = vmatpush.msra.mxu0 %v95
    %584 = vmatpush.msra.mxu0 %v94
    %585 = vmatpush.msra.mxu0 %v93
    %586 = vmatpush.msra.mxu0 %v92
    %587 = vmatmul.f32.gmra.mxu0 %v438
    %v588 = vpop.f32.mrf.mxu0
    %v589 = vadd.f32 %v569, %v588
    %590 = vdwg.mxu0
    %591 = vmatpush.msra.mxu0 %v123
    %592 = vmatpush.msra.mxu0 %v122
    %593 = vmatpush.msra.mxu0 %v121
    %594 = vmatpush.msra.mxu0 %v120
    %595 = vmatpush.msra.mxu0 %v119
    %596 = vmatpush.msra.mxu0 %v118
    %597 = vmatpush.msra.mxu0 %v117
    %598 = vmatpush.msra.mxu0 %v116
    %599 = vmatpush.msra.mxu0 %v115
    %600 = vmatpush.msra.mxu0 %v114
    %601 = vmatpush.msra.mxu0 %v113
    %602 = vmatpush.msra.mxu0 %v112
    %603 = vmatpush.msra.mxu0 %v111
    %604 = vmatpush.msra.mxu0 %v110
    %605 = vmatpush.msra.mxu0 %v109
    %606 = vmatpush.msra.mxu0 %v108
    %607 = vmatmul.f32.gmra.mxu0 %v439
    %v608 = vpop.f32.mrf.mxu0
    %v609 = vadd.f32 %v589, %v608
    %610 = vdwg.mxu0
    %611 = vmatpush.msra.mxu0 %v139
    %612 = vmatpush.msra.mxu0 %v138
    %613 = vmatpush.msra.mxu0 %v137
    %614 = vmatpush.msra.mxu0 %v136
    %615 = vmatpush.msra.mxu0 %v135
    %616 = vmatpush.msra.mxu0 %v134
    %617 = vmatpush.msra.mxu0 %v133
    %618 = vmatpush.msra.mxu0 %v132
    %619 = vmatpush.msra.mxu0 %v131
    %620 = vmatpush.msra.mxu0 %v130
    %621 = vmatpush.msra.mxu0 %v129
    %622 = vmatpush.msra.mxu0 %v128
    %623 = vmatpush.msra.mxu0 %v127
    %624 = vmatpush.msra.mxu0 %v126
    %625 = vmatpush.msra.mxu0 %v125
    %626 = vmatpush.msra.mxu0 %v124
    %627 = vmatmul.f32.gmra.mxu0 %v440
    %v628 = vpop.f32.mrf.mxu0
    %v629 = vadd.f32 %v609, %v628
    %630 = vdwg.mxu0
    %631 = vmatpush.msra.mxu0 %v155
    %632 = vmatpush.msra.mxu0 %v154
    %633 = vmatpush.msra.mxu0 %v153
    %634 = vmatpush.msra.mxu0 %v152
    %635 = vmatpush.msra.mxu0 %v151
    %636 = vmatpush.msra.mxu0 %v150
    %637 = vmatpush.msra.mxu0 %v149
    %638 = vmatpush.msra.mxu0 %v148
    %639 = vmatpush.msra.mxu0 %v147
    %640 = vmatpush.msra.mxu0 %v146
    %641 = vmatpush.msra.mxu0 %v145
    %642 = vmatpush.msra.mxu0 %v144
    %643 = vmatpush.msra.mxu0 %v143
    %644 = vmatpush.msra.mxu0 %v142
    %645 = vmatpush.msra.mxu0 %v141
    %646 = vmatpush.msra.mxu0 %v140
    %647 = vmatmul.f32.gmra.mxu0 %v441
    %v648 = vpop.f32.mrf.mxu0
    %v649 = vadd.f32 %v629, %v648
    %650 = vdwg.mxu0
    %651 = vmatpush.msra.mxu0 %v171
    %652 = vmatpush.msra.mxu0 %v170
    %653 = vmatpush.msra.mxu0 %v169
    %654 = vmatpush.msra.mxu0 %v168
    %655 = vmatpush.msra.mxu0 %v167
    %656 = vmatpush.msra.mxu0 %v166
    %657 = vmatpush.msra.mxu0 %v165
    %658 = vmatpush.msra.mxu0 %v164
    %659 = vmatpush.msra.mxu0 %v163
    %660 = vmatpush.msra.mxu0 %v162
    %661 = vmatpush.msra.mxu0 %v161
    %662 = vmatpush.msra.mxu0 %v160
    %663 = vmatpush.msra.mxu0 %v159
    %664 = vmatpush.msra.mxu0 %v158
    %665 = vmatpush.msra.mxu0 %v157
    %666 = vmatpush.msra.mxu0 %v156
    %667 = vmatmul.f32.gmra.mxu0 %v444
    %v668 = vpop.f32.mrf.mxu0
    %v669 = vadd.f32 %v649, %v668
    %670 = vdwg.mxu0
    %671 = vmatpush.msra.mxu0 %v187
    %672 = vmatpush.msra.mxu0 %v186
    %673 = vmatpush.msra.mxu0 %v185
    %674 = vmatpush.msra.mxu0 %v184
    %675 = vmatpush.msra.mxu0 %v183
    %676 = vmatpush.msra.mxu0 %v182
    %677 = vmatpush.msra.mxu0 %v181
    %678 = vmatpush.msra.mxu0 %v180
    %679 = vmatpush.msra.mxu0 %v179
    %680 = vmatpush.msra.mxu0 %v178
    %681 = vmatpush.msra.mxu0 %v177
    %682 = vmatpush.msra.mxu0 %v176
    %683 = vmatpush.msra.mxu0 %v175
    %684 = vmatpush.msra.mxu0 %v174
    %685 = vmatpush.msra.mxu0 %v173
    %686 = vmatpush.msra.mxu0 %v172
    %687 = vmatmul.f32.gmra.mxu0 %v445
    %v688 = vpop.f32.mrf.mxu0
    %v689 = vadd.f32 %v669, %v688
    %690 = vdwg.mxu0
    %691 = vmatpush.msra.mxu0 %v203
    %692 = vmatpush.msra.mxu0 %v202
    %693 = vmatpush.msra.mxu0 %v201
    %694 = vmatpush.msra.mxu0 %v200
    %695 = vmatpush.msra.mxu0 %v199
    %696 = vmatpush.msra.mxu0 %v198
    %697 = vmatpush.msra.mxu0 %v197
    %698 = vmatpush.msra.mxu0 %v196
    %699 = vmatpush.msra.mxu0 %v195
    %700 = vmatpush.msra.mxu0 %v194
    %701 = vmatpush.msra.mxu0 %v193
    %702 = vmatpush.msra.mxu0 %v192
    %703 = vmatpush.msra.mxu0 %v191
    %704 = vmatpush.msra.mxu0 %v190
    %705 = vmatpush.msra.mxu0 %v189
    %706 = vmatpush.msra.mxu0 %v188
    %707 = vmatmul.f32.gmra.mxu0 %v446
    %v708 = vpop.f32.mrf.mxu0
    %v709 = vadd.f32 %v689, %v708
    %710 = vdwg.mxu0
    %711 = vmatpush.msra.mxu0 %v219
    %712 = vmatpush.msra.mxu0 %v218
    %713 = vmatpush.msra.mxu0 %v217
    %714 = vmatpush.msra.mxu0 %v216
    %715 = vmatpush.msra.mxu0 %v215
    %716 = vmatpush.msra.mxu0 %v214
    %717 = vmatpush.msra.mxu0 %v213
    %718 = vmatpush.msra.mxu0 %v212
    %719 = vmatpush.msra.mxu0 %v211
    %720 = vmatpush.msra.mxu0 %v210
    %721 = vmatpush.msra.mxu0 %v209
    %722 = vmatpush.msra.mxu0 %v208
    %723 = vmatpush.msra.mxu0 %v207
    %724 = vmatpush.msra.mxu0 %v206
    %725 = vmatpush.msra.mxu0 %v205
    %726 = vmatpush.msra.mxu0 %v204
    %727 = vmatmul.f32.gmra.mxu0 %v447
    %v728 = vpop.f32.mrf.mxu0
    %v729 = vadd.f32 %v709, %v728
    %730 = vdwg.mxu0
    %731 = vmatpush.msra.mxu0 %v235
    %732 = vmatpush.msra.mxu0 %v234
    %733 = vmatpush.msra.mxu0 %v233
    %734 = vmatpush.msra.mxu0 %v232
    %735 = vmatpush.msra.mxu0 %v231
    %736 = vmatpush.msra.mxu0 %v230
    %737 = vmatpush.msra.mxu0 %v229
    %738 = vmatpush.msra.mxu0 %v228
    %739 = vmatpush.msra.mxu0 %v227
    %740 = vmatpush.msra.mxu0 %v226
    %741 = vmatpush.msra.mxu0 %v225
    %742 = vmatpush.msra.mxu0 %v224
    %743 = vmatpush.msra.mxu0 %v223
    %744 = vmatpush.msra.mxu0 %v222
    %745 = vmatpush.msra.mxu0 %v221
    %746 = vmatpush.msra.mxu0 %v220
    %747 = vmatmul.f32.gmra.mxu0 %v448
    %v748 = vpop.f32.mrf.mxu0
    %v749 = vadd.f32 %v729, %v748
    %750 = vdwg.mxu0
    %751 = vmatpush.msra.mxu0 %v251
    %752 = vmatpush.msra.mxu0 %v250
    %753 = vmatpush.msra.mxu0 %v249
    %754 = vmatpush.msra.mxu0 %v248
    %755 = vmatpush.msra.mxu0 %v247
    %756 = vmatpush.msra.mxu0 %v246
    %757 = vmatpush.msra.mxu0 %v245
    %758 = vmatpush.msra.mxu0 %v244
    %759 = vmatpush.msra.mxu0 %v243
    %760 = vmatpush.msra.mxu0 %v242
    %761 = vmatpush.msra.mxu0 %v241
    %762 = vmatpush.msra.mxu0 %v240
    %763 = vmatpush.msra.mxu0 %v239
    %764 = vmatpush.msra.mxu0 %v238
    %765 = vmatpush.msra.mxu0 %v237
    %766 = vmatpush.msra.mxu0 %v236
    %767 = vmatmul.f32.gmra.mxu0 %v449
    %v768 = vpop.f32.mrf.mxu0
    %v769 = vadd.f32 %v749, %v768
    %770 = vdwg.mxu0
    %771 = vmatpush.msra.mxu0 %v267
    %772 = vmatpush.msra.mxu0 %v266
    %773 = vmatpush.msra.mxu0 %v265
    %774 = vmatpush.msra.mxu0 %v264
    %775 = vmatpush.msra.mxu0 %v263
    %776 = vmatpush.msra.mxu0 %v262
    %777 = vmatpush.msra.mxu0 %v261
    %778 = vmatpush.msra.mxu0 %v260
    %779 = vmatpush.msra.mxu0 %v259
    %780 = vmatpush.msra.mxu0 %v258
    %781 = vmatpush.msra.mxu0 %v257
    %782 = vmatpush.msra.mxu0 %v256
    %783 = vmatpush.msra.mxu0 %v255
    %784 = vmatpush.msra.mxu0 %v254
    %785 = vmatpush.msra.mxu0 %v253
    %786 = vmatpush.msra.mxu0 %v252
    %787 = vmatmul.f32.gmra.mxu0 %v450
    %v788 = vpop.f32.mrf.mxu0
    %v789 = vadd.f32 %v769, %v788
    %790 = vdwg.mxu0
    %791 = vmatpush.msra.mxu0 %v283
    %792 = vmatpush.msra.mxu0 %v282
    %793 = vmatpush.msra.mxu0 %v281
    %794 = vmatpush.msra.mxu0 %v280
    %795 = vmatpush.msra.mxu0 %v279
    %796 = vmatpush.msra.mxu0 %v278
    %797 = vmatpush.msra.mxu0 %v277
    %798 = vmatpush.msra.mxu0 %v276
    %799 = vmatpush.msra.mxu0 %v275
    %800 = vmatpush.msra.mxu0 %v274
    %801 = vmatpush.msra.mxu0 %v273
    %802 = vmatpush.msra.mxu0 %v272
    %803 = vmatpush.msra.mxu0 %v271
    %804 = vmatpush.msra.mxu0 %v270
    %805 = vmatpush.msra.mxu0 %v269
    %806 = vmatpush.msra.mxu0 %v268
    %807 = vmatmul.f32.gmra.mxu0 %v451
    %v808 = vpop.f32.mrf.mxu0
    %v809 = vadd.f32 %v789, %v808
    %810 = vdwg.mxu0
    %811 = vmatpush.msra.mxu0 %v299
    %812 = vmatpush.msra.mxu0 %v298
    %813 = vmatpush.msra.mxu0 %v297
    %814 = vmatpush.msra.mxu0 %v296
    %815 = vmatpush.msra.mxu0 %v295
    %816 = vmatpush.msra.mxu0 %v294
    %817 = vmatpush.msra.mxu0 %v293
    %818 = vmatpush.msra.mxu0 %v292
    %819 = vmatpush.msra.mxu0 %v291
    %820 = vmatpush.msra.mxu0 %v290
    %821 = vmatpush.msra.mxu0 %v289
    %822 = vmatpush.msra.mxu0 %v288
    %823 = vmatpush.msra.mxu0 %v287
    %824 = vmatpush.msra.mxu0 %v286
    %825 = vmatpush.msra.mxu0 %v285
    %826 = vmatpush.msra.mxu0 %v284
    %827 = vmatmul.f32.gmra.mxu0 %v454
    %v828 = vpop.f32.mrf.mxu0
    %v829 = vadd.f32 %v809, %v828
    %830 = vdwg.mxu0
    %831 = vmatpush.msra.mxu0 %v315
    %832 = vmatpush.msra.mxu0 %v314
    %833 = vmatpush.msra.mxu0 %v313
    %834 = vmatpush.msra.mxu0 %v312
    %835 = vmatpush.msra.mxu0 %v311
    %836 = vmatpush.msra.mxu0 %v310
    %837 = vmatpush.msra.mxu0 %v309
    %838 = vmatpush.msra.mxu0 %v308
    %839 = vmatpush.msra.mxu0 %v307
    %840 = vmatpush.msra.mxu0 %v306
    %841 = vmatpush.msra.mxu0 %v305
    %842 = vmatpush.msra.mxu0 %v304
    %843 = vmatpush.msra.mxu0 %v303
    %844 = vmatpush.msra.mxu0 %v302
    %845 = vmatpush.msra.mxu0 %v301
    %846 = vmatpush.msra.mxu0 %v300
    %847 = vmatmul.f32.gmra.mxu0 %v455
    %v848 = vpop.f32.mrf.mxu0
    %v849 = vadd.f32 %v829, %v848
    %850 = vdwg.mxu0
    %851 = vmatpush.msra.mxu0 %v331
    %852 = vmatpush.msra.mxu0 %v330
    %853 = vmatpush.msra.mxu0 %v329
    %854 = vmatpush.msra.mxu0 %v328
    %855 = vmatpush.msra.mxu0 %v327
    %856 = vmatpush.msra.mxu0 %v326
    %857 = vmatpush.msra.mxu0 %v325
    %858 = vmatpush.msra.mxu0 %v324
    %859 = vmatpush.msra.mxu0 %v323
    %860 = vmatpush.msra.mxu0 %v322
    %861 = vmatpush.msra.mxu0 %v321
    %862 = vmatpush.msra.mxu0 %v320
    %863 = vmatpush.msra.mxu0 %v319
    %864 = vmatpush.msra.mxu0 %v318
    %865 = vmatpush.msra.mxu0 %v317
    %866 = vmatpush.msra.mxu0 %v316
    %867 = vmatmul.f32.gmra.mxu0 %v456
    %v868 = vpop.f32.mrf.mxu0
    %v869 = vadd.f32 %v849, %v868
    %870 = vdwg.mxu0
    %871 = vmatpush.msra.mxu0 %v347
    %872 = vmatpush.msra.mxu0 %v346
    %873 = vmatpush.msra.mxu0 %v345
    %874 = vmatpush.msra.mxu0 %v344
    %875 = vmatpush.msra.mxu0 %v343
    %876 = vmatpush.msra.mxu0 %v342
    %877 = vmatpush.msra.mxu0 %v341
    %878 = vmatpush.msra.mxu0 %v340
    %879 = vmatpush.msra.mxu0 %v339
    %880 = vmatpush.msra.mxu0 %v338
    %881 = vmatpush.msra.mxu0 %v337
    %882 = vmatpush.msra.mxu0 %v336
    %883 = vmatpush.msra.mxu0 %v335
    %884 = vmatpush.msra.mxu0 %v334
    %885 = vmatpush.msra.mxu0 %v333
    %886 = vmatpush.msra.mxu0 %v332
    %887 = vmatmul.f32.gmra.mxu0 %v457
    %v888 = vpop.f32.mrf.mxu0
    %v889 = vadd.f32 %v869, %v888
    %890 = vdwg.mxu0
    %891 = vmatpush.msra.mxu0 %v363
    %892 = vmatpush.msra.mxu0 %v362
    %893 = vmatpush.msra.mxu0 %v361
    %894 = vmatpush.msra.mxu0 %v360
    %895 = vmatpush.msra.mxu0 %v359
    %896 = vmatpush.msra.mxu0 %v358
    %897 = vmatpush.msra.mxu0 %v357
    %898 = vmatpush.msra.mxu0 %v356
    %899 = vmatpush.msra.mxu0 %v355
    %900 = vmatpush.msra.mxu0 %v354
    %901 = vmatpush.msra.mxu0 %v353
    %902 = vmatpush.msra.mxu0 %v352
    %903 = vmatpush.msra.mxu0 %v351
    %904 = vmatpush.msra.mxu0 %v350
    %905 = vmatpush.msra.mxu0 %v349
    %906 = vmatpush.msra.mxu0 %v348
    %907 = vmatmul.f32.gmra.mxu0 %v458
    %v908 = vpop.f32.mrf.mxu0
    %v909 = vadd.f32 %v889, %v908
    %910 = vdwg.mxu0
    %911 = vmatpush.msra.mxu0 %v379
    %912 = vmatpush.msra.mxu0 %v378
    %913 = vmatpush.msra.mxu0 %v377
    %914 = vmatpush.msra.mxu0 %v376
    %915 = vmatpush.msra.mxu0 %v375
    %916 = vmatpush.msra.mxu0 %v374
    %917 = vmatpush.msra.mxu0 %v373
    %918 = vmatpush.msra.mxu0 %v372
    %919 = vmatpush.msra.mxu0 %v371
    %920 = vmatpush.msra.mxu0 %v370
    %921 = vmatpush.msra.mxu0 %v369
    %922 = vmatpush.msra.mxu0 %v368
    %923 = vmatpush.msra.mxu0 %v367
    %924 = vmatpush.msra.mxu0 %v366
    %925 = vmatpush.msra.mxu0 %v365
    %926 = vmatpush.msra.mxu0 %v364
    %927 = vmatmul.f32.gmra.mxu0 %v459
    %v928 = vpop.f32.mrf.mxu0
    %v929 = vadd.f32 %v909, %v928
    %930 = vdwg.mxu0
    %931 = vmatpush.msra.mxu0 %v395
    %932 = vmatpush.msra.mxu0 %v394
    %933 = vmatpush.msra.mxu0 %v393
    %934 = vmatpush.msra.mxu0 %v392
    %935 = vmatpush.msra.mxu0 %v391
    %936 = vmatpush.msra.mxu0 %v390
    %937 = vmatpush.msra.mxu0 %v389
    %938 = vmatpush.msra.mxu0 %v388
    %939 = vmatpush.msra.mxu0 %v387
    %940 = vmatpush.msra.mxu0 %v386
    %941 = vmatpush.msra.mxu0 %v385
    %942 = vmatpush.msra.mxu0 %v384
    %943 = vmatpush.msra.mxu0 %v383
    %944 = vmatpush.msra.mxu0 %v382
    %945 = vmatpush.msra.mxu0 %v381
    %946 = vmatpush.msra.mxu0 %v380
    %947 = vmatmul.f32.gmra.mxu0 %v460
    %v948 = vpop.f32.mrf.mxu0
    %v949 = vadd.f32 %v929, %v948
    %950 = vdwg.mxu0
    %951 = vmatpush.msra.mxu0 %v411
    %952 = vmatpush.msra.mxu0 %v410
    %953 = vmatpush.msra.mxu0 %v409
    %954 = vmatpush.msra.mxu0 %v408
    %955 = vmatpush.msra.mxu0 %v407
    %956 = vmatpush.msra.mxu0 %v406
    %957 = vmatpush.msra.mxu0 %v405
    %958 = vmatpush.msra.mxu0 %v404
    %959 = vmatpush.msra.mxu0 %v403
    %960 = vmatpush.msra.mxu0 %v402
    %961 = vmatpush.msra.mxu0 %v401
    %962 = vmatpush.msra.mxu0 %v400
    %963 = vmatpush.msra.mxu0 %v399
    %964 = vmatpush.msra.mxu0 %v398
    %965 = vmatpush.msra.mxu0 %v397
    %966 = vmatpush.msra.mxu0 %v396
    %967 = vmatmul.f32.gmra.mxu0 %v461
    %v968 = vpop.f32.mrf.mxu0
    %v969 = vadd.f32 %v949, %v968
    %970 = vdwg.mxu0
    %971 = vmatpush.msra.mxu0 0.0
    %972 = vmatpush.msra.mxu0 0.0
    %973 = vmatpush.msra.mxu0 0.0
    %974 = vmatpush.msra.mxu0 0.0
    %975 = vmatpush.msra.mxu0 0.0
    %976 = vmatpush.msra.mxu0 0.0
    %977 = vmatpush.msra.mxu0 0.0
    %978 = vmatpush.msra.mxu0 0.0
    %979 = vmatpush.msra.mxu0 %v419
    %980 = vmatpush.msra.mxu0 %v418
    %981 = vmatpush.msra.mxu0 %v417
    %982 = vmatpush.msra.mxu0 %v416
    %983 = vmatpush.msra.mxu0 %v415
    %984 = vmatpush.msra.mxu0 %v414
    %985 = vmatpush.msra.mxu0 %v413
    %986 = vmatpush.msra.mxu0 %v412
    %987 = vmatmul.f32.gmra.mxu0 %v489
    %v988 = vpop.f32.mrf.mxu0
    %v989 = vadd.f32 %v969, %v988
    %990 = vdwg.mxu0
    %v991 = vmax.f32 %v989, 0.0
    %v992 = vld [vmem:[%s3] sm:$0xff]
    %v993 = vld [vmem:[%s3 + $0x8] sm:$0xff]
    %v994 = vld [vmem:[%s3 + $0x10] sm:$0xff]
    %v995 = vld [vmem:[%s3 + $0x18] sm:$0xff]
    %v996 = vld [vmem:[%s3 + $0x20] sm:$0xff]
    %v997 = vld [vmem:[%s3 + $0x28] sm:$0xff]
    %v998 = vld [vmem:[%s3 + $0x30] sm:$0xff]
    %v999 = vld [vmem:[%s3 + $0x38] sm:$0xff]
    %v1000 = vld [vmem:[%s3 + $0x40] sm:$0xff]
    %v1001 = vld [vmem:[%s3 + $0x48] sm:$0xff]
    %v1002 = vld [vmem:[%s3 + $0x50] sm:$0xff]
    %v1003 = vld [vmem:[%s3 + $0x58] sm:$0xff]
    %v1004 = vld [vmem:[%s3 + $0x60] sm:$0xff]
    %v1005 = vld [vmem:[%s3 + $0x68] sm:$0xff]
    %v1006 = vld [vmem:[%s3 + $0x70] sm:$0xff]
    %v1007 = vld [vmem:[%s3 + $0x78] sm:$0xff]
    %v1008 = vld [vmem:[%s4] sm:$0x1]
    %v1010 = vperm.slane %v1008, 0
    %1012 = vmatpush.msra.mxu0 %v1007
    %1013 = vmatpush.msra.mxu0 %v1006
    %1014 = vmatpush.msra.mxu0 %v1005
    %1015 = vmatpush.msra.mxu0 %v1004
    %1016 = vmatpush.msra.mxu0 %v1003
    %1017 = vmatpush.msra.mxu0 %v1002
    %1018 = vmatpush.msra.mxu0 %v1001
    %1019 = vmatpush.msra.mxu0 %v1000
    %1020 = vmatpush.msra.mxu0 %v999
    %1021 = vmatpush.msra.mxu0 %v998
    %1022 = vmatpush.msra.mxu0 %v997
    %1023 = vmatpush.msra.mxu0 %v996
    %1024 = vmatpush.msra.mxu0 %v995
    %1025 = vmatpush.msra.mxu0 %v994
    %1026 = vmatpush.msra.mxu0 %v993
    %1027 = vmatpush.msra.mxu0 %v992
    %1028 = vmatmul.f32.gmra.mxu0 %v991
    %v1029 = vpop.f32.mrf.mxu0
    %v1030 = vadd.f32 %v1010, %v1029
    %1031 = vdwg.mxu0
    %1032 = vst [vmem:[#allocation2] sm:$0x3] %v1030
    // Predicated region
    $region22: #{feature_extractor_pallas.3} parent=1 // pred_check
      _
    $region23: #{feature_extractor_pallas.3} parent=1 // pred_check_branch
      %1034 = sbr.rel (0) target = $region25
    $region24: #{feature_extractor_pallas.3} parent=1 // pred_region
      %1036 = vsyncadd [#allocation3], 0
      %s1038 = sshll.u32 [#allocation2], 4
      %s1039 = int_to_ptr.vmem [resolvable:$true] %s1038
      %s1040 = sshll.u32 %s5, 4
      %s1041 = int_to_ptr.hbm [resolvable:$true] %s1040
      %1043 = dma.vmem_to_hbm [thread:$0]  %s1039, 32, %s1041, [#allocation3]
    $region25: #{feature_extractor_pallas.3} parent=1 // pred_fallthru
      _
    // Predicated region
    $region26: #{feature_extractor_pallas.3} parent=1 // pred_check
      _
    $region27: #{feature_extractor_pallas.3} parent=1 // pred_check_branch
      %1045 = sbr.rel (0) target = $region29
    $region28: #{feature_extractor_pallas.3} parent=1 // pred_region
      %1047 = dma.done [#allocation3], 32
    $region29: #{feature_extractor_pallas.3} parent=1 // pred_fallthru
      _
    %1048 = vsyncpa [#allocation3], 1

// kernel: feature_extractor_pallas.2
$region0: #{feature_extractor_pallas.2}
  #allocation0 [shape = 'u32[]', space=smem, size = 0x4, offset = 0x4, fixed_abs, tag = 'smem constant byte address 0x4 - core index']
  #allocation1 [shape = 'u32[72,128]{1,0:T(1,128)}', space=vmem, size = 0x9000, scoped, tag = 'internal scratch']
  %s0 = inlined_call_operand.vmem [shape: f32[2,4,272,16], index: 0, kind: input, shape index: {}]
  %s1 = inlined_call_operand.vmem [shape: f32[16,32], index: 1, kind: input, shape index: {}]
  %s2 = inlined_call_operand.vmem [shape: f32[288,64], index: 2, kind: input, shape index: {}]
  %s3 = inlined_call_operand.vmem [shape: f32[1,64], index: 3, kind: input, shape index: {}]
  %s4 = inlined_call_operand.vmem [shape: f32[2,3136], index: 4, kind: output, shape index: {}]
  %s5 = sld [smem:[#allocation0]]
  $region26: #{feature_extractor_pallas.2} parent=0
    _
  %s7 = ssub.s32 1, %s5
  %s8 = scalar_select 0, %s7, %s5
  // Predicated region
  $region2: #{feature_extractor_pallas.2} parent=0 // pred_check
    _
  $region3: #{feature_extractor_pallas.2} parent=0 // pred_check_branch
    %10 = sbr.rel (0) target = $region5
  $region4: #{feature_extractor_pallas.2} parent=0 // pred_region
    _
  $region5: #{feature_extractor_pallas.2} parent=0 // pred_fallthru
    _
  // Predicated region
  $region6: #{feature_extractor_pallas.2} parent=0 // pred_check
    _
  $region7: #{feature_extractor_pallas.2} parent=0 // pred_check_branch
    %12 = sbr.rel (0) target = $region9
  $region8: #{feature_extractor_pallas.2} parent=0 // pred_region
    _
  $region9: #{feature_extractor_pallas.2} parent=0 // pred_fallthru
    _
  // Predicated region
  $region10: #{feature_extractor_pallas.2} parent=0 // pred_check
    _
  $region11: #{feature_extractor_pallas.2} parent=0 // pred_check_branch
    %14 = sbr.rel (0) target = $region13
  $region12: #{feature_extractor_pallas.2} parent=0 // pred_region
    _
  $region13: #{feature_extractor_pallas.2} parent=0 // pred_fallthru
    _
  // Predicated region
  $region14: #{feature_extractor_pallas.2} parent=0 // pred_check
    _
  $region15: #{feature_extractor_pallas.2} parent=0 // pred_check_branch
    %16 = sbr.rel (0) target = $region17
  $region16: #{feature_extractor_pallas.2} parent=0 // pred_region
    _
  $region17: #{feature_extractor_pallas.2} parent=0 // pred_fallthru
    _
  %v17 = vld [vmem:[%s0] sm:$0xff]
  %v18 = vld [vmem:[%s0 + $0x8] sm:$0xff]
  %v19 = vld [vmem:[%s0 + $0x10] sm:$0xff]
  %v20 = vld [vmem:[%s0 + $0x18] sm:$0xff]
  %v21 = vld [vmem:[%s0 + $0x20] sm:$0xff]
  %v22 = vld [vmem:[%s0 + $0x28] sm:$0xff]
  %v23 = vld [vmem:[%s0 + $0x30] sm:$0xff]
  %v24 = vld [vmem:[%s0 + $0x38] sm:$0xff]
  %v25 = vld [vmem:[%s0 + $0x40] sm:$0xff]
  %v26 = vld [vmem:[%s0 + $0x48] sm:$0xff]
  %v27 = vld [vmem:[%s0 + $0x50] sm:$0xff]
  %v28 = vld [vmem:[%s0 + $0x58] sm:$0xff]
  %v29 = vld [vmem:[%s0 + $0x60] sm:$0xff]
  %v30 = vld [vmem:[%s0 + $0x68] sm:$0xff]
  %v31 = vld [vmem:[%s0 + $0x70] sm:$0xff]
  %v32 = vld [vmem:[%s0 + $0x78] sm:$0xff]
  %v33 = vld [vmem:[%s0 + $0x80] sm:$0xff]
  %v34 = vld [vmem:[%s0 + $0x88] sm:$0xff]
  %v35 = vld [vmem:[%s0 + $0x90] sm:$0xff]
  %v36 = vld [vmem:[%s0 + $0x98] sm:$0xff]
  %v37 = vld [vmem:[%s0 + $0xa0] sm:$0xff]
  %v38 = vld [vmem:[%s0 + $0xa8] sm:$0xff]
  %v39 = vld [vmem:[%s0 + $0xb0] sm:$0xff]
  %v40 = vld [vmem:[%s0 + $0xb8] sm:$0xff]
  %v41 = vld [vmem:[%s0 + $0xc0] sm:$0xff]
  %v42 = vld [vmem:[%s0 + $0xc8] sm:$0xff]
  %v43 = vld [vmem:[%s0 + $0xd0] sm:$0xff]
  %v44 = vld [vmem:[%s0 + $0xd8] sm:$0xff]
  %v45 = vld [vmem:[%s0 + $0xe0] sm:$0xff]
  %v46 = vld [vmem:[%s0 + $0xe8] sm:$0xff]
  %v47 = vld [vmem:[%s0 + $0xf0] sm:$0xff]
  %v48 = vld [vmem:[%s0 + $0xf8] sm:$0xff]
  %v49 = vld [vmem:[%s0 + $0x100] sm:$0xff]
  %v50 = vld [vmem:[%s0 + $0x108] sm:$0xff]
  %v51 = vld [vmem:[%s0 + $0x110] sm:$0xff]
  %v52 = vld [vmem:[%s0 + $0x118] sm:$0xff]
  %v53 = vld [vmem:[%s0 + $0x120] sm:$0xff]
  %v54 = vld [vmem:[%s0 + $0x128] sm:$0xff]
  %v55 = vld [vmem:[%s0 + $0x130] sm:$0xff]
  %v56 = vld [vmem:[%s0 + $0x138] sm:$0xff]
  %v57 = vld [vmem:[%s0 + $0x140] sm:$0xff]
  %v58 = vld [vmem:[%s0 + $0x148] sm:$0xff]
  %v59 = vld [vmem:[%s0 + $0x150] sm:$0xff]
  %v60 = vld [vmem:[%s0 + $0x158] sm:$0xff]
  %v61 = vld [vmem:[%s0 + $0x160] sm:$0xff]
  %v62 = vld [vmem:[%s0 + $0x168] sm:$0xff]
  %v63 = vld [vmem:[%s0 + $0x170] sm:$0xff]
  %v64 = vld [vmem:[%s0 + $0x178] sm:$0xff]
  %v65 = vld [vmem:[%s0 + $0x180] sm:$0xff]
  %v66 = vld [vmem:[%s0 + $0x188] sm:$0xff]
  %v67 = vld [vmem:[%s0 + $0x190] sm:$0xff]
  %v68 = vld [vmem:[%s0 + $0x198] sm:$0xff]
  %v69 = vld [vmem:[%s0 + $0x1a0] sm:$0xff]
  %v70 = vld [vmem:[%s0 + $0x1a8] sm:$0xff]
  %v71 = vld [vmem:[%s0 + $0x1b0] sm:$0xff]
  %v72 = vld [vmem:[%s0 + $0x1b8] sm:$0xff]
  %v73 = vld [vmem:[%s0 + $0x1c0] sm:$0xff]
  %v74 = vld [vmem:[%s0 + $0x1c8] sm:$0xff]
  %v75 = vld [vmem:[%s0 + $0x1d0] sm:$0xff]
  %v76 = vld [vmem:[%s0 + $0x1d8] sm:$0xff]
  %v77 = vld [vmem:[%s0 + $0x1e0] sm:$0xff]
  %v78 = vld [vmem:[%s0 + $0x1e8] sm:$0xff]
  %v79 = vld [vmem:[%s0 + $0x1f0] sm:$0xff]
  %v80 = vld [vmem:[%s0 + $0x1f8] sm:$0xff]
  %v81 = vld [vmem:[%s0 + $0x200] sm:$0xff]
  %v82 = vld [vmem:[%s0 + $0x208] sm:$0xff]
  %v83 = vld [vmem:[%s0 + $0x210] sm:$0xff]
  %v84 = vld [vmem:[%s0 + $0x218] sm:$0xff]
  %v85 = vld [vmem:[%s0 + $0x220] sm:$0xff]
  %v86 = vld [vmem:[%s0 + $0x228] sm:$0xff]
  %v87 = vld [vmem:[%s0 + $0x230] sm:$0xff]
  %v88 = vld [vmem:[%s0 + $0x238] sm:$0xff]
  %v89 = vld [vmem:[%s0 + $0x240] sm:$0xff]
  %v90 = vld [vmem:[%s0 + $0x248] sm:$0xff]
  %v91 = vld [vmem:[%s0 + $0x250] sm:$0xff]
  %v92 = vld [vmem:[%s0 + $0x258] sm:$0xff]
  %v93 = vld [vmem:[%s0 + $0x260] sm:$0xff]
  %v94 = vld [vmem:[%s0 + $0x268] sm:$0xff]
  %v95 = vld [vmem:[%s0 + $0x270] sm:$0xff]
  %v96 = vld [vmem:[%s0 + $0x278] sm:$0xff]
  %v97 = vld [vmem:[%s0 + $0x280] sm:$0xff]
  %v98 = vld [vmem:[%s0 + $0x288] sm:$0xff]
  %v99 = vld [vmem:[%s0 + $0x290] sm:$0xff]
  %v100 = vld [vmem:[%s0 + $0x298] sm:$0xff]
  %v101 = vld [vmem:[%s0 + $0x2a0] sm:$0xff]
  %v102 = vld [vmem:[%s0 + $0x2a8] sm:$0xff]
  %v103 = vld [vmem:[%s0 + $0x2b0] sm:$0xff]
  %v104 = vld [vmem:[%s0 + $0x2b8] sm:$0xff]
  %v105 = vld [vmem:[%s0 + $0x2c0] sm:$0xff]
  %v106 = vld [vmem:[%s0 + $0x2c8] sm:$0xff]
  %v107 = vld [vmem:[%s0 + $0x2d0] sm:$0xff]
  %v108 = vld [vmem:[%s0 + $0x2d8] sm:$0xff]
  %v109 = vld [vmem:[%s0 + $0x2e0] sm:$0xff]
  %v110 = vld [vmem:[%s0 + $0x2e8] sm:$0xff]
  %v111 = vld [vmem:[%s0 + $0x2f0] sm:$0xff]
  %v112 = vld [vmem:[%s0 + $0x2f8] sm:$0xff]
  %v113 = vld [vmem:[%s0 + $0x300] sm:$0xff]
  %v114 = vld [vmem:[%s0 + $0x308] sm:$0xff]
  %v115 = vld [vmem:[%s0 + $0x310] sm:$0xff]
  %v116 = vld [vmem:[%s0 + $0x318] sm:$0xff]
  %v117 = vld [vmem:[%s0 + $0x320] sm:$0xff]
  %v118 = vld [vmem:[%s0 + $0x328] sm:$0xff]
  %v119 = vld [vmem:[%s0 + $0x330] sm:$0xff]
  %v120 = vld [vmem:[%s0 + $0x338] sm:$0xff]
  %v121 = vld [vmem:[%s0 + $0x340] sm:$0xff]
  %v122 = vld [vmem:[%s0 + $0x348] sm:$0xff]
  %v123 = vld [vmem:[%s0 + $0x350] sm:$0xff]
  %v124 = vld [vmem:[%s0 + $0x358] sm:$0xff]
  %v125 = vld [vmem:[%s0 + $0x360] sm:$0xff]
  %v126 = vld [vmem:[%s0 + $0x368] sm:$0xff]
  %v127 = vld [vmem:[%s0 + $0x370] sm:$0xff]
  %v128 = vld [vmem:[%s0 + $0x378] sm:$0xff]
  %v129 = vld [vmem:[%s0 + $0x380] sm:$0xff]
  %v130 = vld [vmem:[%s0 + $0x388] sm:$0xff]
  %v131 = vld [vmem:[%s0 + $0x390] sm:$0xff]
  %v132 = vld [vmem:[%s0 + $0x398] sm:$0xff]
  %v133 = vld [vmem:[%s0 + $0x3a0] sm:$0xff]
  %v134 = vld [vmem:[%s0 + $0x3a8] sm:$0xff]
  %v135 = vld [vmem:[%s0 + $0x3b0] sm:$0xff]
  %v136 = vld [vmem:[%s0 + $0x3b8] sm:$0xff]
  %v137 = vld [vmem:[%s0 + $0x3c0] sm:$0xff]
  %v138 = vld [vmem:[%s0 + $0x3c8] sm:$0xff]
  %v139 = vld [vmem:[%s0 + $0x3d0] sm:$0xff]
  %v140 = vld [vmem:[%s0 + $0x3d8] sm:$0xff]
  %v141 = vld [vmem:[%s0 + $0x3e0] sm:$0xff]
  %v142 = vld [vmem:[%s0 + $0x3e8] sm:$0xff]
  %v143 = vld [vmem:[%s0 + $0x3f0] sm:$0xff]
  %v144 = vld [vmem:[%s0 + $0x3f8] sm:$0xff]
  %v145 = vld [vmem:[%s0 + $0x400] sm:$0xff]
  %v146 = vld [vmem:[%s0 + $0x408] sm:$0xff]
  %v147 = vld [vmem:[%s0 + $0x410] sm:$0xff]
  %v148 = vld [vmem:[%s0 + $0x418] sm:$0xff]
  %v149 = vld [vmem:[%s0 + $0x420] sm:$0xff]
  %v150 = vld [vmem:[%s0 + $0x428] sm:$0xff]
  %v151 = vld [vmem:[%s0 + $0x430] sm:$0xff]
  %v152 = vld [vmem:[%s0 + $0x438] sm:$0xff]
  %v153 = vld [vmem:[%s0 + $0x440] sm:$0xff]
  %v154 = vld [vmem:[%s0 + $0x448] sm:$0xff]
  %v155 = vld [vmem:[%s0 + $0x450] sm:$0xff]
  %v156 = vld [vmem:[%s0 + $0x458] sm:$0xff]
  %v157 = vld [vmem:[%s0 + $0x460] sm:$0xff]
  %v158 = vld [vmem:[%s0 + $0x468] sm:$0xff]
  %v159 = vld [vmem:[%s0 + $0x470] sm:$0xff]
  %v160 = vld [vmem:[%s0 + $0x478] sm:$0xff]
  %v161 = vld [vmem:[%s0 + $0x480] sm:$0xff]
  %v162 = vld [vmem:[%s0 + $0x488] sm:$0xff]
  %v163 = vld [vmem:[%s0 + $0x490] sm:$0xff]
  %v164 = vld [vmem:[%s0 + $0x498] sm:$0xff]
  %v165 = vld [vmem:[%s0 + $0x4a0] sm:$0xff]
  %v166 = vld [vmem:[%s0 + $0x4a8] sm:$0xff]
  %v167 = vld [vmem:[%s0 + $0x4b0] sm:$0xff]
  %v168 = vld [vmem:[%s0 + $0x4b8] sm:$0xff]
  %v169 = vld [vmem:[%s0 + $0x4c0] sm:$0xff]
  %v170 = vld [vmem:[%s0 + $0x4c8] sm:$0xff]
  %v171 = vld [vmem:[%s0 + $0x4d0] sm:$0xff]
  %v172 = vld [vmem:[%s0 + $0x4d8] sm:$0xff]
  %v173 = vld [vmem:[%s0 + $0x4e0] sm:$0xff]
  %v174 = vld [vmem:[%s0 + $0x4e8] sm:$0xff]
  %v175 = vld [vmem:[%s0 + $0x4f0] sm:$0xff]
  %v176 = vld [vmem:[%s0 + $0x4f8] sm:$0xff]
  %v177 = vld [vmem:[%s0 + $0x500] sm:$0xff]
  %v178 = vld [vmem:[%s0 + $0x508] sm:$0xff]
  %v179 = vld [vmem:[%s0 + $0x510] sm:$0xff]
  %v180 = vld [vmem:[%s0 + $0x518] sm:$0xff]
  %v181 = vld [vmem:[%s0 + $0x520] sm:$0xff]
  %v182 = vld [vmem:[%s0 + $0x528] sm:$0xff]
  %v183 = vld [vmem:[%s0 + $0x530] sm:$0xff]
  %v184 = vld [vmem:[%s0 + $0x538] sm:$0xff]
  %v185 = vld [vmem:[%s0 + $0x540] sm:$0xff]
  %v186 = vld [vmem:[%s0 + $0x548] sm:$0xff]
  %v187 = vld [vmem:[%s0 + $0x550] sm:$0xff]
  %v188 = vld [vmem:[%s0 + $0x558] sm:$0xff]
  %v189 = vld [vmem:[%s0 + $0x560] sm:$0xff]
  %v190 = vld [vmem:[%s0 + $0x568] sm:$0xff]
  %v191 = vld [vmem:[%s0 + $0x570] sm:$0xff]
  %v192 = vld [vmem:[%s0 + $0x578] sm:$0xff]
  %v193 = vld [vmem:[%s0 + $0x580] sm:$0xff]
  %v194 = vld [vmem:[%s0 + $0x588] sm:$0xff]
  %v195 = vld [vmem:[%s0 + $0x590] sm:$0xff]
  %v196 = vld [vmem:[%s0 + $0x598] sm:$0xff]
  %v197 = vld [vmem:[%s0 + $0x5a0] sm:$0xff]
  %v198 = vld [vmem:[%s0 + $0x5a8] sm:$0xff]
  %v199 = vld [vmem:[%s0 + $0x5b0] sm:$0xff]
  %v200 = vld [vmem:[%s0 + $0x5b8] sm:$0xff]
  %v201 = vld [vmem:[%s0 + $0x5c0] sm:$0xff]
  %v202 = vld [vmem:[%s0 + $0x5c8] sm:$0xff]
  %v203 = vld [vmem:[%s0 + $0x5d0] sm:$0xff]
  %v204 = vld [vmem:[%s0 + $0x5d8] sm:$0xff]
  %v205 = vld [vmem:[%s0 + $0x5e0] sm:$0xff]
  %v206 = vld [vmem:[%s0 + $0x5e8] sm:$0xff]
  %v207 = vld [vmem:[%s0 + $0x5f0] sm:$0xff]
  %v208 = vld [vmem:[%s0 + $0x5f8] sm:$0xff]
  %v209 = vld [vmem:[%s0 + $0x600] sm:$0xff]
  %v210 = vld [vmem:[%s0 + $0x608] sm:$0xff]
  %v211 = vld [vmem:[%s0 + $0x610] sm:$0xff]
  %v212 = vld [vmem:[%s0 + $0x618] sm:$0xff]
  %v213 = vld [vmem:[%s0 + $0x620] sm:$0xff]
  %v214 = vld [vmem:[%s0 + $0x628] sm:$0xff]
  %v215 = vld [vmem:[%s0 + $0x630] sm:$0xff]
  %v216 = vld [vmem:[%s0 + $0x638] sm:$0xff]
  %v217 = vld [vmem:[%s0 + $0x640] sm:$0xff]
  %v218 = vld [vmem:[%s0 + $0x648] sm:$0xff]
  %v219 = vld [vmem:[%s0 + $0x650] sm:$0xff]
  %v220 = vld [vmem:[%s0 + $0x658] sm:$0xff]
  %v221 = vld [vmem:[%s0 + $0x660] sm:$0xff]
  %v222 = vld [vmem:[%s0 + $0x668] sm:$0xff]
  %v223 = vld [vmem:[%s0 + $0x670] sm:$0xff]
  %v224 = vld [vmem:[%s0 + $0x678] sm:$0xff]
  %v225 = vld [vmem:[%s0 + $0x680] sm:$0xff]
  %v226 = vld [vmem:[%s0 + $0x688] sm:$0xff]
  %v227 = vld [vmem:[%s0 + $0x690] sm:$0xff]
  %v228 = vld [vmem:[%s0 + $0x698] sm:$0xff]
  %v229 = vld [vmem:[%s0 + $0x6a0] sm:$0xff]
  %v230 = vld [vmem:[%s0 + $0x6a8] sm:$0xff]
  %v231 = vld [vmem:[%s0 + $0x6b0] sm:$0xff]
  %v232 = vld [vmem:[%s0 + $0x6b8] sm:$0xff]
  %v233 = vld [vmem:[%s0 + $0x6c0] sm:$0xff]
  %v234 = vld [vmem:[%s0 + $0x6c8] sm:$0xff]
  %v235 = vld [vmem:[%s0 + $0x6d0] sm:$0xff]
  %v236 = vld [vmem:[%s0 + $0x6d8] sm:$0xff]
  %v237 = vld [vmem:[%s0 + $0x6e0] sm:$0xff]
  %v238 = vld [vmem:[%s0 + $0x6e8] sm:$0xff]
  %v239 = vld [vmem:[%s0 + $0x6f0] sm:$0xff]
  %v240 = vld [vmem:[%s0 + $0x6f8] sm:$0xff]
  %v241 = vld [vmem:[%s0 + $0x700] sm:$0xff]
  %v242 = vld [vmem:[%s0 + $0x708] sm:$0xff]
  %v243 = vld [vmem:[%s0 + $0x710] sm:$0xff]
  %v244 = vld [vmem:[%s0 + $0x718] sm:$0xff]
  %v245 = vld [vmem:[%s0 + $0x720] sm:$0xff]
  %v246 = vld [vmem:[%s0 + $0x728] sm:$0xff]
  %v247 = vld [vmem:[%s0 + $0x730] sm:$0xff]
  %v248 = vld [vmem:[%s0 + $0x738] sm:$0xff]
  %v249 = vld [vmem:[%s0 + $0x740] sm:$0xff]
  %v250 = vld [vmem:[%s0 + $0x748] sm:$0xff]
  %v251 = vld [vmem:[%s0 + $0x750] sm:$0xff]
  %v252 = vld [vmem:[%s0 + $0x758] sm:$0xff]
  %v253 = vld [vmem:[%s0 + $0x760] sm:$0xff]
  %v254 = vld [vmem:[%s0 + $0x768] sm:$0xff]
  %v255 = vld [vmem:[%s0 + $0x770] sm:$0xff]
  %v256 = vld [vmem:[%s0 + $0x778] sm:$0xff]
  %v257 = vld [vmem:[%s0 + $0x780] sm:$0xff]
  %v258 = vld [vmem:[%s0 + $0x788] sm:$0xff]
  %v259 = vld [vmem:[%s0 + $0x790] sm:$0xff]
  %v260 = vld [vmem:[%s0 + $0x798] sm:$0xff]
  %v261 = vld [vmem:[%s0 + $0x7a0] sm:$0xff]
  %v262 = vld [vmem:[%s0 + $0x7a8] sm:$0xff]
  %v263 = vld [vmem:[%s0 + $0x7b0] sm:$0xff]
  %v264 = vld [vmem:[%s0 + $0x7b8] sm:$0xff]
  %v265 = vld [vmem:[%s0 + $0x7c0] sm:$0xff]
  %v266 = vld [vmem:[%s0 + $0x7c8] sm:$0xff]
  %v267 = vld [vmem:[%s0 + $0x7d0] sm:$0xff]
  %v268 = vld [vmem:[%s0 + $0x7d8] sm:$0xff]
  %v269 = vld [vmem:[%s0 + $0x7e0] sm:$0xff]
  %v270 = vld [vmem:[%s0 + $0x7e8] sm:$0xff]
  %v271 = vld [vmem:[%s0 + $0x7f0] sm:$0xff]
  %v272 = vld [vmem:[%s0 + $0x7f8] sm:$0xff]
  %v273 = vld [vmem:[%s0 + $0x800] sm:$0xff]
  %v274 = vld [vmem:[%s0 + $0x808] sm:$0xff]
  %v275 = vld [vmem:[%s0 + $0x810] sm:$0xff]
  %v276 = vld [vmem:[%s0 + $0x818] sm:$0xff]
  %v277 = vld [vmem:[%s0 + $0x820] sm:$0xff]
  %v278 = vld [vmem:[%s0 + $0x828] sm:$0xff]
  %v279 = vld [vmem:[%s0 + $0x830] sm:$0xff]
  %v280 = vld [vmem:[%s0 + $0x838] sm:$0xff]
  %v281 = vld [vmem:[%s0 + $0x840] sm:$0xff]
  %v282 = vld [vmem:[%s0 + $0x848] sm:$0xff]
  %v283 = vld [vmem:[%s0 + $0x850] sm:$0xff]
  %v284 = vld [vmem:[%s0 + $0x858] sm:$0xff]
  %v285 = vld [vmem:[%s0 + $0x860] sm:$0xff]
  %v286 = vld [vmem:[%s0 + $0x868] sm:$0xff]
  %v287 = vld [vmem:[%s0 + $0x870] sm:$0xff]
  %v288 = vld [vmem:[%s0 + $0x878] sm:$0xff]
  %v289 = vld [vmem:[%s1] sm:$0xff]
  %v290 = vld [vmem:[%s1 + $0x8] sm:$0xff]
  %vm291 = vcmask 130048
  %v293 = vsel %vm291, %v17, 0
  %v296 = vsel %vm291, %v18, 0
  %v299 = vsel %vm291, %v19, 0
  %v302 = vsel %vm291, %v20, 0
  %v305 = vsel %vm291, %v21, 0
  %v308 = vsel %vm291, %v22, 0
  %v311 = vsel %vm291, %v23, 0
  %v314 = vsel %vm291, %v24, 0
  %v317 = vsel %vm291, %v25, 0
  %v320 = vsel %vm291, %v26, 0
  %v323 = vsel %vm291, %v27, 0
  %v326 = vsel %vm291, %v28, 0
  %v329 = vsel %vm291, %v29, 0
  %v332 = vsel %vm291, %v30, 0
  %v335 = vsel %vm291, %v31, 0
  %v338 = vsel %vm291, %v32, 0
  %v341 = vsel %vm291, %v33, 0
  %v344 = vsel %vm291, %v34, 0
  %v347 = vsel %vm291, %v35, 0
  %v350 = vsel %vm291, %v36, 0
  %v353 = vsel %vm291, %v37, 0
  %v356 = vsel %vm291, %v38, 0
  %v359 = vsel %vm291, %v39, 0
  %v362 = vsel %vm291, %v40, 0
  %v365 = vsel %vm291, %v41, 0
  %v368 = vsel %vm291, %v42, 0
  %v371 = vsel %vm291, %v43, 0
  %v374 = vsel %vm291, %v44, 0
  %v377 = vsel %vm291, %v45, 0
  %v380 = vsel %vm291, %v46, 0
  %v383 = vsel %vm291, %v47, 0
  %v386 = vsel %vm291, %v48, 0
  %v389 = vsel %vm291, %v49, 0
  %v392 = vsel %vm291, %v50, 0
  %v395 = vsel %vm291, %v51, 0
  %v398 = vsel %vm291, %v52, 0
  %v401 = vsel %vm291, %v53, 0
  %v404 = vsel %vm291, %v54, 0
  %v407 = vsel %vm291, %v55, 0
  %v410 = vsel %vm291, %v56, 0
  %v413 = vsel %vm291, %v57, 0
  %v416 = vsel %vm291, %v58, 0
  %v419 = vsel %vm291, %v59, 0
  %v422 = vsel %vm291, %v60, 0
  %v425 = vsel %vm291, %v61, 0
  %v428 = vsel %vm291, %v62, 0
  %v431 = vsel %vm291, %v63, 0
  %v434 = vsel %vm291, %v64, 0
  %v437 = vsel %vm291, %v65, 0
  %v440 = vsel %vm291, %v66, 0
  %v443 = vsel %vm291, %v67, 0
  %v446 = vsel %vm291, %v68, 0
  %v449 = vsel %vm291, %v69, 0
  %v452 = vsel %vm291, %v70, 0
  %v455 = vsel %vm291, %v71, 0
  %v458 = vsel %vm291, %v72, 0
  %v461 = vsel %vm291, %v73, 0
  %v464 = vsel %vm291, %v74, 0
  %v467 = vsel %vm291, %v75, 0
  %v470 = vsel %vm291, %v76, 0
  %v473 = vsel %vm291, %v77, 0
  %v476 = vsel %vm291, %v78, 0
  %v479 = vsel %vm291, %v79, 0
  %v482 = vsel %vm291, %v80, 0
  %v485 = vsel %vm291, %v81, 0
  %v488 = vsel %vm291, %v82, 0
  %v491 = vsel %vm291, %v83, 0
  %v494 = vsel %vm291, %v84, 0
  %v497 = vsel %vm291, %v85, 0
  %v500 = vsel %vm291, %v86, 0
  %v503 = vsel %vm291, %v87, 0
  %v506 = vsel %vm291, %v88, 0
  %v509 = vsel %vm291, %v89, 0
  %v512 = vsel %vm291, %v90, 0
  %v515 = vsel %vm291, %v91, 0
  %v518 = vsel %vm291, %v92, 0
  %v521 = vsel %vm291, %v93, 0
  %v524 = vsel %vm291, %v94, 0
  %v527 = vsel %vm291, %v95, 0
  %v530 = vsel %vm291, %v96, 0
  %v533 = vsel %vm291, %v97, 0
  %v536 = vsel %vm291, %v98, 0
  %v539 = vsel %vm291, %v99, 0
  %v542 = vsel %vm291, %v100, 0
  %v545 = vsel %vm291, %v101, 0
  %v548 = vsel %vm291, %v102, 0
  %v551 = vsel %vm291, %v103, 0
  %v554 = vsel %vm291, %v104, 0
  %v557 = vsel %vm291, %v105, 0
  %v560 = vsel %vm291, %v106, 0
  %v563 = vsel %vm291, %v107, 0
  %v566 = vsel %vm291, %v108, 0
  %v569 = vsel %vm291, %v109, 0
  %v572 = vsel %vm291, %v110, 0
  %v575 = vsel %vm291, %v111, 0
  %v578 = vsel %vm291, %v112, 0
  %v581 = vsel %vm291, %v113, 0
  %v584 = vsel %vm291, %v114, 0
  %v587 = vsel %vm291, %v115, 0
  %v590 = vsel %vm291, %v116, 0
  %v593 = vsel %vm291, %v117, 0
  %v596 = vsel %vm291, %v118, 0
  %v599 = vsel %vm291, %v119, 0
  %v602 = vsel %vm291, %v120, 0
  %v605 = vsel %vm291, %v121, 0
  %v608 = vsel %vm291, %v122, 0
  %v611 = vsel %vm291, %v123, 0
  %v614 = vsel %vm291, %v124, 0
  %v617 = vsel %vm291, %v125, 0
  %v620 = vsel %vm291, %v126, 0
  %v623 = vsel %vm291, %v127, 0
  %v626 = vsel %vm291, %v128, 0
  %v629 = vsel %vm291, %v129, 0
  %v632 = vsel %vm291, %v130, 0
  %v635 = vsel %vm291, %v131, 0
  %v638 = vsel %vm291, %v132, 0
  %v641 = vsel %vm291, %v133, 0
  %v644 = vsel %vm291, %v134, 0
  %v647 = vsel %vm291, %v135, 0
  %v650 = vsel %vm291, %v136, 0
  %v653 = vsel %vm291, %v137, 0
  %v656 = vsel %vm291, %v138, 0
  %v659 = vsel %vm291, %v139, 0
  %v662 = vsel %vm291, %v140, 0
  %v665 = vsel %vm291, %v141, 0
  %v668 = vsel %vm291, %v142, 0
  %v671 = vsel %vm291, %v143, 0
  %v674 = vsel %vm291, %v144, 0
  %v677 = vsel %vm291, %v145, 0
  %v680 = vsel %vm291, %v146, 0
  %v683 = vsel %vm291, %v147, 0
  %v686 = vsel %vm291, %v148, 0
  %v689 = vsel %vm291, %v149, 0
  %v692 = vsel %vm291, %v150, 0
  %v695 = vsel %vm291, %v151, 0
  %v698 = vsel %vm291, %v152, 0
  %v701 = vsel %vm291, %v153, 0
  %v704 = vsel %vm291, %v154, 0
  %v707 = vsel %vm291, %v155, 0
  %v710 = vsel %vm291, %v156, 0
  %v713 = vsel %vm291, %v157, 0
  %v716 = vsel %vm291, %v158, 0
  %v719 = vsel %vm291, %v159, 0
  %v722 = vsel %vm291, %v160, 0
  %v725 = vsel %vm291, %v161, 0
  %v728 = vsel %vm291, %v162, 0
  %v731 = vsel %vm291, %v163, 0
  %v734 = vsel %vm291, %v164, 0
  %v737 = vsel %vm291, %v165, 0
  %v740 = vsel %vm291, %v166, 0
  %v743 = vsel %vm291, %v167, 0
  %v746 = vsel %vm291, %v168, 0
  %v749 = vsel %vm291, %v169, 0
  %v752 = vsel %vm291, %v170, 0
  %v755 = vsel %vm291, %v171, 0
  %v758 = vsel %vm291, %v172, 0
  %v761 = vsel %vm291, %v173, 0
  %v764 = vsel %vm291, %v174, 0
  %v767 = vsel %vm291, %v175, 0
  %v770 = vsel %vm291, %v176, 0
  %v773 = vsel %vm291, %v177, 0
  %v776 = vsel %vm291, %v178, 0
  %v779 = vsel %vm291, %v179, 0
  %v782 = vsel %vm291, %v180, 0
  %v785 = vsel %vm291, %v181, 0
  %v788 = vsel %vm291, %v182, 0
  %v791 = vsel %vm291, %v183, 0
  %v794 = vsel %vm291, %v184, 0
  %v797 = vsel %vm291, %v185, 0
  %v800 = vsel %vm291, %v186, 0
  %v803 = vsel %vm291, %v187, 0
  %v806 = vsel %vm291, %v188, 0
  %v809 = vsel %vm291, %v189, 0
  %v812 = vsel %vm291, %v190, 0
  %v815 = vsel %vm291, %v191, 0
  %v818 = vsel %vm291, %v192, 0
  %v821 = vsel %vm291, %v193, 0
  %v824 = vsel %vm291, %v194, 0
  %v827 = vsel %vm291, %v195, 0
  %v830 = vsel %vm291, %v196, 0
  %v833 = vsel %vm291, %v197, 0
  %v836 = vsel %vm291, %v198, 0
  %v839 = vsel %vm291, %v199, 0
  %v842 = vsel %vm291, %v200, 0
  %v845 = vsel %vm291, %v201, 0
  %v848 = vsel %vm291, %v202, 0
  %v851 = vsel %vm291, %v203, 0
  %v854 = vsel %vm291, %v204, 0
  %v857 = vsel %vm291, %v205, 0
  %v860 = vsel %vm291, %v206, 0
  %v863 = vsel %vm291, %v207, 0
  %v866 = vsel %vm291, %v208, 0
  %v869 = vsel %vm291, %v209, 0
  %v872 = vsel %vm291, %v210, 0
  %v875 = vsel %vm291, %v211, 0
  %v878 = vsel %vm291, %v212, 0
  %v881 = vsel %vm291, %v213, 0
  %v884 = vsel %vm291, %v214, 0
  %v887 = vsel %vm291, %v215, 0
  %v890 = vsel %vm291, %v216, 0
  %v893 = vsel %vm291, %v217, 0
  %v896 = vsel %vm291, %v218, 0
  %v899 = vsel %vm291, %v219, 0
  %v902 = vsel %vm291, %v220, 0
  %v905 = vsel %vm291, %v221, 0
  %v908 = vsel %vm291, %v222, 0
  %v911 = vsel %vm291, %v223, 0
  %v914 = vsel %vm291, %v224, 0
  %v917 = vsel %vm291, %v225, 0
  %v920 = vsel %vm291, %v226, 0
  %v923 = vsel %vm291, %v227, 0
  %v926 = vsel %vm291, %v228, 0
  %v929 = vsel %vm291, %v229, 0
  %v932 = vsel %vm291, %v230, 0
  %v935 = vsel %vm291, %v231, 0
  %v938 = vsel %vm291, %v232, 0
  %v941 = vsel %vm291, %v233, 0
  %v944 = vsel %vm291, %v234, 0
  %v947 = vsel %vm291, %v235, 0
  %v950 = vsel %vm291, %v236, 0
  %v953 = vsel %vm291, %v237, 0
  %v956 = vsel %vm291, %v238, 0
  %v959 = vsel %vm291, %v239, 0
  %v962 = vsel %vm291, %v240, 0
  %v965 = vsel %vm291, %v241, 0
  %v968 = vsel %vm291, %v242, 0
  %v971 = vsel %vm291, %v243, 0
  %v974 = vsel %vm291, %v244, 0
  %v977 = vsel %vm291, %v245, 0
  %v980 = vsel %vm291, %v246, 0
  %v983 = vsel %vm291, %v247, 0
  %v986 = vsel %vm291, %v248, 0
  %v989 = vsel %vm291, %v249, 0
  %v992 = vsel %vm291, %v250, 0
  %v995 = vsel %vm291, %v251, 0
  %v998 = vsel %vm291, %v252, 0
  %v1001 = vsel %vm291, %v253, 0
  %v1004 = vsel %vm291, %v254, 0
  %v1007 = vsel %vm291, %v255, 0
  %v1010 = vsel %vm291, %v256, 0
  %v1013 = vsel %vm291, %v257, 0
  %v1016 = vsel %vm291, %v258, 0
  %v1019 = vsel %vm291, %v259, 0
  %v1022 = vsel %vm291, %v260, 0
  %v1025 = vsel %vm291, %v261, 0
  %v1028 = vsel %vm291, %v262, 0
  %v1031 = vsel %vm291, %v263, 0
  %v1034 = vsel %vm291, %v264, 0
  %v1037 = vsel %vm291, %v265, 0
  %v1040 = vsel %vm291, %v266, 0
  %v1043 = vsel %vm291, %v267, 0
  %v1046 = vsel %vm291, %v268, 0
  %v1049 = vsel %vm291, %v269, 0
  %v1052 = vsel %vm291, %v270, 0
  %v1055 = vsel %vm291, %v271, 0
  %v1058 = vsel %vm291, %v272, 0
  %v1061 = vsel %vm291, %v273, 0
  %v1064 = vsel %vm291, %v274, 0
  %v1067 = vsel %vm291, %v275, 0
  %v1070 = vsel %vm291, %v276, 0
  %v1073 = vsel %vm291, %v277, 0
  %v1076 = vsel %vm291, %v278, 0
  %v1079 = vsel %vm291, %v279, 0
  %v1082 = vsel %vm291, %v280, 0
  %v1085 = vsel %vm291, %v281, 0
  %v1088 = vsel %vm291, %v282, 0
  %v1091 = vsel %vm291, %v283, 0
  %v1094 = vsel %vm291, %v284, 0
  %v1097 = vsel %vm291, %v285, 0
  %v1100 = vsel %vm291, %v286, 0
  %v1103 = vsel %vm291, %v287, 0
  %v1106 = vsel %vm291, %v288, 0
  %1108 = vmatpush.msra.mxu0 0.0
  %1109 = vmatpush.msra.mxu0 0.0
  %1110 = vmatpush.msra.mxu0 0.0
  %1111 = vmatpush.msra.mxu0 0.0
  %1112 = vmatpush.msra.mxu0 0.0
  %1113 = vmatpush.msra.mxu0 0.0
  %1114 = vmatpush.msra.mxu0 0.0
  %1115 = vmatpush.msra.mxu0 0.0
  %1116 = vmatpush.msra.mxu0 0.0
  %1117 = vmatpush.msra.mxu0 0.0
  %1118 = vmatpush.msra.mxu0 0.0
  %1119 = vmatpush.msra.mxu0 0.0
  %1120 = vmatpush.msra.mxu0 0.0
  %1121 = vmatpush.msra.mxu0 0.0
  %1122 = vmatpush.msra.mxu0 %v290
  %1123 = vmatpush.msra.mxu0 %v289
  %1124 = vmatmul.f32.gmra.mxu0 %v293
  %v1125 = vpop.f32.mrf.mxu0
  %v1126 = vadd.f32 0.0, %v1125
  %1127 = vmatmul.f32.gmra.mxu0 %v296
  %v1128 = vpop.f32.mrf.mxu0
  %v1129 = vadd.f32 0.0, %v1128
  %1130 = vmatmul.f32.gmra.mxu0 %v299
  %v1131 = vpop.f32.mrf.mxu0
  %v1132 = vadd.f32 0.0, %v1131
  %1133 = vmatmul.f32.gmra.mxu0 %v302
  %v1134 = vpop.f32.mrf.mxu0
  %v1135 = vadd.f32 0.0, %v1134
  %1136 = vmatmul.f32.gmra.mxu0 %v305
  %v1137 = vpop.f32.mrf.mxu0
  %v1138 = vadd.f32 0.0, %v1137
  %1139 = vmatmul.f32.gmra.mxu0 %v308
  %v1140 = vpop.f32.mrf.mxu0
  %v1141 = vadd.f32 0.0, %v1140
  %1142 = vmatmul.f32.gmra.mxu0 %v311
  %v1143 = vpop.f32.mrf.mxu0
  %v1144 = vadd.f32 0.0, %v1143
  %1145 = vmatmul.f32.gmra.mxu0 %v314
  %v1146 = vpop.f32.mrf.mxu0
  %v1147 = vadd.f32 0.0, %v1146
  %1148 = vmatmul.f32.gmra.mxu0 %v317
  %v1149 = vpop.f32.mrf.mxu0
  %v1150 = vadd.f32 0.0, %v1149
  %1151 = vmatmul.f32.gmra.mxu0 %v320
  %v1152 = vpop.f32.mrf.mxu0
  %v1153 = vadd.f32 0.0, %v1152
  %1154 = vmatmul.f32.gmra.mxu0 %v323
  %v1155 = vpop.f32.mrf.mxu0
  %v1156 = vadd.f32 0.0, %v1155
  %1157 = vmatmul.f32.gmra.mxu0 %v326
  %v1158 = vpop.f32.mrf.mxu0
  %v1159 = vadd.f32 0.0, %v1158
  %1160 = vmatmul.f32.gmra.mxu0 %v329
  %v1161 = vpop.f32.mrf.mxu0
  %v1162 = vadd.f32 0.0, %v1161
  %1163 = vmatmul.f32.gmra.mxu0 %v332
  %v1164 = vpop.f32.mrf.mxu0
  %v1165 = vadd.f32 0.0, %v1164
  %1166 = vmatmul.f32.gmra.mxu0 %v335
  %v1167 = vpop.f32.mrf.mxu0
  %v1168 = vadd.f32 0.0, %v1167
  %1169 = vmatmul.f32.gmra.mxu0 %v338
  %v1170 = vpop.f32.mrf.mxu0
  %v1171 = vadd.f32 0.0, %v1170
  %1172 = vmatmul.f32.gmra.mxu0 %v341
  %v1173 = vpop.f32.mrf.mxu0
  %v1174 = vadd.f32 0.0, %v1173
  %1175 = vmatmul.f32.gmra.mxu0 %v344
  %v1176 = vpop.f32.mrf.mxu0
  %v1177 = vadd.f32 0.0, %v1176
  %1178 = vmatmul.f32.gmra.mxu0 %v347
  %v1179 = vpop.f32.mrf.mxu0
  %v1180 = vadd.f32 0.0, %v1179
  %1181 = vmatmul.f32.gmra.mxu0 %v350
  %v1182 = vpop.f32.mrf.mxu0
  %v1183 = vadd.f32 0.0, %v1182
  %1184 = vmatmul.f32.gmra.mxu0 %v353
  %v1185 = vpop.f32.mrf.mxu0
  %v1186 = vadd.f32 0.0, %v1185
  %1187 = vmatmul.f32.gmra.mxu0 %v356
  %v1188 = vpop.f32.mrf.mxu0
  %v1189 = vadd.f32 0.0, %v1188
  %1190 = vmatmul.f32.gmra.mxu0 %v359
  %v1191 = vpop.f32.mrf.mxu0
  %v1192 = vadd.f32 0.0, %v1191
  %1193 = vmatmul.f32.gmra.mxu0 %v362
  %v1194 = vpop.f32.mrf.mxu0
  %v1195 = vadd.f32 0.0, %v1194
  %1196 = vmatmul.f32.gmra.mxu0 %v365
  %v1197 = vpop.f32.mrf.mxu0
  %v1198 = vadd.f32 0.0, %v1197
  %1199 = vmatmul.f32.gmra.mxu0 %v368
  %v1200 = vpop.f32.mrf.mxu0
  %v1201 = vadd.f32 0.0, %v1200
  %1202 = vmatmul.f32.gmra.mxu0 %v371
  %v1203 = vpop.f32.mrf.mxu0
  %v1204 = vadd.f32 0.0, %v1203
  %1205 = vmatmul.f32.gmra.mxu0 %v374
  %v1206 = vpop.f32.mrf.mxu0
  %v1207 = vadd.f32 0.0, %v1206
  %1208 = vmatmul.f32.gmra.mxu0 %v377
  %v1209 = vpop.f32.mrf.mxu0
  %v1210 = vadd.f32 0.0, %v1209
  %1211 = vmatmul.f32.gmra.mxu0 %v380
  %v1212 = vpop.f32.mrf.mxu0
  %v1213 = vadd.f32 0.0, %v1212
  %1214 = vmatmul.f32.gmra.mxu0 %v383
  %v1215 = vpop.f32.mrf.mxu0
  %v1216 = vadd.f32 0.0, %v1215
  %1217 = vmatmul.f32.gmra.mxu0 %v386
  %v1218 = vpop.f32.mrf.mxu0
  %v1219 = vadd.f32 0.0, %v1218
  %1220 = vmatmul.f32.gmra.mxu0 %v389
  %v1221 = vpop.f32.mrf.mxu0
  %v1222 = vadd.f32 0.0, %v1221
  %1223 = vmatmul.f32.gmra.mxu0 %v392
  %v1224 = vpop.f32.mrf.mxu0
  %1225 = vmatmul.f32.gmra.mxu0 %v395
  %v1226 = vpop.f32.mrf.mxu0
  %v1227 = vadd.f32 0.0, %v1226
  %1228 = vmatmul.f32.gmra.mxu0 %v398
  %v1229 = vpop.f32.mrf.mxu0
  %v1230 = vadd.f32 0.0, %v1229
  %1231 = vmatmul.f32.gmra.mxu0 %v401
  %v1232 = vpop.f32.mrf.mxu0
  %v1233 = vadd.f32 0.0, %v1232
  %1234 = vmatmul.f32.gmra.mxu0 %v404
  %v1235 = vpop.f32.mrf.mxu0
  %v1236 = vadd.f32 0.0, %v1235
  %1237 = vmatmul.f32.gmra.mxu0 %v407
  %v1238 = vpop.f32.mrf.mxu0
  %v1239 = vadd.f32 0.0, %v1238
  %1240 = vmatmul.f32.gmra.mxu0 %v410
  %v1241 = vpop.f32.mrf.mxu0
  %v1242 = vadd.f32 0.0, %v1241
  %1243 = vmatmul.f32.gmra.mxu0 %v413
  %v1244 = vpop.f32.mrf.mxu0
  %v1245 = vadd.f32 0.0, %v1244
  %1246 = vmatmul.f32.gmra.mxu0 %v416
  %v1247 = vpop.f32.mrf.mxu0
  %v1248 = vadd.f32 0.0, %v1247
  %1249 = vmatmul.f32.gmra.mxu0 %v419
  %v1250 = vpop.f32.mrf.mxu0
  %v1251 = vadd.f32 0.0, %v1250
  %1252 = vmatmul.f32.gmra.mxu0 %v422
  %v1253 = vpop.f32.mrf.mxu0
  %v1254 = vadd.f32 0.0, %v1253
  %1255 = vmatmul.f32.gmra.mxu0 %v425
  %v1256 = vpop.f32.mrf.mxu0
  %v1257 = vadd.f32 0.0, %v1256
  %1258 = vmatmul.f32.gmra.mxu0 %v428
  %v1259 = vpop.f32.mrf.mxu0
  %v1260 = vadd.f32 0.0, %v1259
  %1261 = vmatmul.f32.gmra.mxu0 %v431
  %v1262 = vpop.f32.mrf.mxu0
  %v1263 = vadd.f32 0.0, %v1262
  %1264 = vmatmul.f32.gmra.mxu0 %v434
  %v1265 = vpop.f32.mrf.mxu0
  %v1266 = vadd.f32 0.0, %v1265
  %1267 = vmatmul.f32.gmra.mxu0 %v437
  %v1268 = vpop.f32.mrf.mxu0
  %v1269 = vadd.f32 0.0, %v1268
  %1270 = vmatmul.f32.gmra.mxu0 %v440
  %v1271 = vpop.f32.mrf.mxu0
  %v1272 = vadd.f32 0.0, %v1271
  %1273 = vmatmul.f32.gmra.mxu0 %v443
  %v1274 = vpop.f32.mrf.mxu0
  %v1275 = vadd.f32 0.0, %v1274
  %1276 = vmatmul.f32.gmra.mxu0 %v446
  %v1277 = vpop.f32.mrf.mxu0
  %v1278 = vadd.f32 0.0, %v1277
  %1279 = vmatmul.f32.gmra.mxu0 %v449
  %v1280 = vpop.f32.mrf.mxu0
  %v1281 = vadd.f32 0.0, %v1280
  %1282 = vmatmul.f32.gmra.mxu0 %v452
  %v1283 = vpop.f32.mrf.mxu0
  %v1284 = vadd.f32 0.0, %v1283
  %1285 = vmatmul.f32.gmra.mxu0 %v455
  %v1286 = vpop.f32.mrf.mxu0
  %v1287 = vadd.f32 0.0, %v1286
  %1288 = vmatmul.f32.gmra.mxu0 %v458
  %v1289 = vpop.f32.mrf.mxu0
  %v1290 = vadd.f32 0.0, %v1289
  %1291 = vmatmul.f32.gmra.mxu0 %v461
  %v1292 = vpop.f32.mrf.mxu0
  %v1293 = vadd.f32 0.0, %v1292
  %1294 = vmatmul.f32.gmra.mxu0 %v464
  %v1295 = vpop.f32.mrf.mxu0
  %v1296 = vadd.f32 0.0, %v1295
  %1297 = vmatmul.f32.gmra.mxu0 %v467
  %v1298 = vpop.f32.mrf.mxu0
  %v1299 = vadd.f32 0.0, %v1298
  %1300 = vmatmul.f32.gmra.mxu0 %v470
  %v1301 = vpop.f32.mrf.mxu0
  %v1302 = vadd.f32 0.0, %v1301
  %1303 = vmatmul.f32.gmra.mxu0 %v473
  %v1304 = vpop.f32.mrf.mxu0
  %v1305 = vadd.f32 0.0, %v1304
  %1306 = vmatmul.f32.gmra.mxu0 %v476
  %v1307 = vpop.f32.mrf.mxu0
  %v1308 = vadd.f32 0.0, %v1307
  %1309 = vmatmul.f32.gmra.mxu0 %v479
  %v1310 = vpop.f32.mrf.mxu0
  %v1311 = vadd.f32 0.0, %v1310
  %1312 = vmatmul.f32.gmra.mxu0 %v482
  %v1313 = vpop.f32.mrf.mxu0
  %v1314 = vadd.f32 0.0, %v1313
  %1315 = vmatmul.f32.gmra.mxu0 %v485
  %v1316 = vpop.f32.mrf.mxu0
  %v1317 = vadd.f32 0.0, %v1316
  %1318 = vmatmul.f32.gmra.mxu0 %v488
  %v1319 = vpop.f32.mrf.mxu0
  %v1320 = vadd.f32 0.0, %v1319
  %1321 = vmatmul.f32.gmra.mxu0 %v491
  %v1322 = vpop.f32.mrf.mxu0
  %v1323 = vadd.f32 0.0, %v1322
  %1324 = vmatmul.f32.gmra.mxu0 %v494
  %v1325 = vpop.f32.mrf.mxu0
  %1326 = vmatmul.f32.gmra.mxu0 %v497
  %v1327 = vpop.f32.mrf.mxu0
  %v1328 = vadd.f32 0.0, %v1327
  %1329 = vmatmul.f32.gmra.mxu0 %v500
  %v1330 = vpop.f32.mrf.mxu0
  %v1331 = vadd.f32 0.0, %v1330
  %1332 = vmatmul.f32.gmra.mxu0 %v503
  %v1333 = vpop.f32.mrf.mxu0
  %v1334 = vadd.f32 0.0, %v1333
  %1335 = vmatmul.f32.gmra.mxu0 %v506
  %v1336 = vpop.f32.mrf.mxu0
  %v1337 = vadd.f32 0.0, %v1336
  %1338 = vmatmul.f32.gmra.mxu0 %v509
  %v1339 = vpop.f32.mrf.mxu0
  %v1340 = vadd.f32 0.0, %v1339
  %1341 = vmatmul.f32.gmra.mxu0 %v512
  %v1342 = vpop.f32.mrf.mxu0
  %v1343 = vadd.f32 0.0, %v1342
  %1344 = vmatmul.f32.gmra.mxu0 %v515
  %v1345 = vpop.f32.mrf.mxu0
  %v1346 = vadd.f32 0.0, %v1345
  %1347 = vmatmul.f32.gmra.mxu0 %v518
  %v1348 = vpop.f32.mrf.mxu0
  %v1349 = vadd.f32 0.0, %v1348
  %1350 = vmatmul.f32.gmra.mxu0 %v521
  %v1351 = vpop.f32.mrf.mxu0
  %v1352 = vadd.f32 0.0, %v1351
  %1353 = vmatmul.f32.gmra.mxu0 %v524
  %v1354 = vpop.f32.mrf.mxu0
  %v1355 = vadd.f32 0.0, %v1354
  %1356 = vmatmul.f32.gmra.mxu0 %v527
  %v1357 = vpop.f32.mrf.mxu0
  %v1358 = vadd.f32 0.0, %v1357
  %1359 = vmatmul.f32.gmra.mxu0 %v530
  %v1360 = vpop.f32.mrf.mxu0
  %v1361 = vadd.f32 0.0, %v1360
  %1362 = vmatmul.f32.gmra.mxu0 %v533
  %v1363 = vpop.f32.mrf.mxu0
  %v1364 = vadd.f32 0.0, %v1363
  %1365 = vmatmul.f32.gmra.mxu0 %v536
  %v1366 = vpop.f32.mrf.mxu0
  %v1367 = vadd.f32 0.0, %v1366
  %1368 = vmatmul.f32.gmra.mxu0 %v539
  %v1369 = vpop.f32.mrf.mxu0
  %v1370 = vadd.f32 0.0, %v1369
  %1371 = vmatmul.f32.gmra.mxu0 %v542
  %v1372 = vpop.f32.mrf.mxu0
  %v1373 = vadd.f32 0.0, %v1372
  %1374 = vmatmul.f32.gmra.mxu0 %v545
  %v1375 = vpop.f32.mrf.mxu0
  %v1376 = vadd.f32 0.0, %v1375
  %1377 = vmatmul.f32.gmra.mxu0 %v548
  %v1378 = vpop.f32.mrf.mxu0
  %v1379 = vadd.f32 0.0, %v1378
  %1380 = vmatmul.f32.gmra.mxu0 %v551
  %v1381 = vpop.f32.mrf.mxu0
  %v1382 = vadd.f32 0.0, %v1381
  %1383 = vmatmul.f32.gmra.mxu0 %v554
  %v1384 = vpop.f32.mrf.mxu0
  %v1385 = vadd.f32 0.0, %v1384
  %1386 = vmatmul.f32.gmra.mxu0 %v557
  %v1387 = vpop.f32.mrf.mxu0
  %v1388 = vadd.f32 0.0, %v1387
  %1389 = vmatmul.f32.gmra.mxu0 %v560
  %v1390 = vpop.f32.mrf.mxu0
  %v1391 = vadd.f32 0.0, %v1390
  %1392 = vmatmul.f32.gmra.mxu0 %v563
  %v1393 = vpop.f32.mrf.mxu0
  %v1394 = vadd.f32 0.0, %v1393
  %1395 = vmatmul.f32.gmra.mxu0 %v566
  %v1396 = vpop.f32.mrf.mxu0
  %v1397 = vadd.f32 0.0, %v1396
  %1398 = vmatmul.f32.gmra.mxu0 %v569
  %v1399 = vpop.f32.mrf.mxu0
  %v1400 = vadd.f32 0.0, %v1399
  %1401 = vmatmul.f32.gmra.mxu0 %v572
  %v1402 = vpop.f32.mrf.mxu0
  %v1403 = vadd.f32 0.0, %v1402
  %1404 = vmatmul.f32.gmra.mxu0 %v575
  %v1405 = vpop.f32.mrf.mxu0
  %v1406 = vadd.f32 0.0, %v1405
  %1407 = vmatmul.f32.gmra.mxu0 %v578
  %v1408 = vpop.f32.mrf.mxu0
  %v1409 = vadd.f32 0.0, %v1408
  %1410 = vmatmul.f32.gmra.mxu0 %v581
  %v1411 = vpop.f32.mrf.mxu0
  %v1412 = vadd.f32 0.0, %v1411
  %1413 = vmatmul.f32.gmra.mxu0 %v584
  %v1414 = vpop.f32.mrf.mxu0
  %v1415 = vadd.f32 0.0, %v1414
  %1416 = vmatmul.f32.gmra.mxu0 %v587
  %v1417 = vpop.f32.mrf.mxu0
  %v1418 = vadd.f32 0.0, %v1417
  %1419 = vmatmul.f32.gmra.mxu0 %v590
  %v1420 = vpop.f32.mrf.mxu0
  %v1421 = vadd.f32 0.0, %v1420
  %1422 = vmatmul.f32.gmra.mxu0 %v593
  %v1423 = vpop.f32.mrf.mxu0
  %v1424 = vadd.f32 0.0, %v1423
  %1425 = vmatmul.f32.gmra.mxu0 %v596
  %v1426 = vpop.f32.mrf.mxu0
  %1427 = vmatmul.f32.gmra.mxu0 %v599
  %v1428 = vpop.f32.mrf.mxu0
  %v1429 = vadd.f32 0.0, %v1428
  %1430 = vmatmul.f32.gmra.mxu0 %v602
  %v1431 = vpop.f32.mrf.mxu0
  %v1432 = vadd.f32 0.0, %v1431
  %1433 = vmatmul.f32.gmra.mxu0 %v605
  %v1434 = vpop.f32.mrf.mxu0
  %v1435 = vadd.f32 0.0, %v1434
  %1436 = vmatmul.f32.gmra.mxu0 %v608
  %v1437 = vpop.f32.mrf.mxu0
  %v1438 = vadd.f32 0.0, %v1437
  %1439 = vmatmul.f32.gmra.mxu0 %v611
  %v1440 = vpop.f32.mrf.mxu0
  %v1441 = vadd.f32 0.0, %v1440
  %1442 = vmatmul.f32.gmra.mxu0 %v614
  %v1443 = vpop.f32.mrf.mxu0
  %v1444 = vadd.f32 0.0, %v1443
  %1445 = vmatmul.f32.gmra.mxu0 %v617
  %v1446 = vpop.f32.mrf.mxu0
  %v1447 = vadd.f32 0.0, %v1446
  %1448 = vmatmul.f32.gmra.mxu0 %v620
  %v1449 = vpop.f32.mrf.mxu0
  %v1450 = vadd.f32 0.0, %v1449
  %1451 = vmatmul.f32.gmra.mxu0 %v623
  %v1452 = vpop.f32.mrf.mxu0
  %v1453 = vadd.f32 0.0, %v1452
  %1454 = vmatmul.f32.gmra.mxu0 %v626
  %v1455 = vpop.f32.mrf.mxu0
  %v1456 = vadd.f32 0.0, %v1455
  %1457 = vmatmul.f32.gmra.mxu0 %v629
  %v1458 = vpop.f32.mrf.mxu0
  %v1459 = vadd.f32 0.0, %v1458
  %1460 = vmatmul.f32.gmra.mxu0 %v632
  %v1461 = vpop.f32.mrf.mxu0
  %v1462 = vadd.f32 0.0, %v1461
  %1463 = vmatmul.f32.gmra.mxu0 %v635
  %v1464 = vpop.f32.mrf.mxu0
  %v1465 = vadd.f32 0.0, %v1464
  %1466 = vmatmul.f32.gmra.mxu0 %v638
  %v1467 = vpop.f32.mrf.mxu0
  %v1468 = vadd.f32 0.0, %v1467
  %1469 = vmatmul.f32.gmra.mxu0 %v641
  %v1470 = vpop.f32.mrf.mxu0
  %v1471 = vadd.f32 0.0, %v1470
  %1472 = vmatmul.f32.gmra.mxu0 %v644
  %v1473 = vpop.f32.mrf.mxu0
  %v1474 = vadd.f32 0.0, %v1473
  %1475 = vmatmul.f32.gmra.mxu0 %v647
  %v1476 = vpop.f32.mrf.mxu0
  %v1477 = vadd.f32 0.0, %v1476
  %1478 = vmatmul.f32.gmra.mxu0 %v650
  %v1479 = vpop.f32.mrf.mxu0
  %v1480 = vadd.f32 0.0, %v1479
  %1481 = vmatmul.f32.gmra.mxu0 %v653
  %v1482 = vpop.f32.mrf.mxu0
  %v1483 = vadd.f32 0.0, %v1482
  %1484 = vmatmul.f32.gmra.mxu0 %v656
  %v1485 = vpop.f32.mrf.mxu0
  %v1486 = vadd.f32 0.0, %v1485
  %1487 = vmatmul.f32.gmra.mxu0 %v659
  %v1488 = vpop.f32.mrf.mxu0
  %v1489 = vadd.f32 0.0, %v1488
  %1490 = vmatmul.f32.gmra.mxu0 %v662
  %v1491 = vpop.f32.mrf.mxu0
  %v1492 = vadd.f32 0.0, %v1491
  %1493 = vmatmul.f32.gmra.mxu0 %v665
  %v1494 = vpop.f32.mrf.mxu0
  %v1495 = vadd.f32 0.0, %v1494
  %1496 = vmatmul.f32.gmra.mxu0 %v668
  %v1497 = vpop.f32.mrf.mxu0
  %v1498 = vadd.f32 0.0, %v1497
  %1499 = vmatmul.f32.gmra.mxu0 %v671
  %v1500 = vpop.f32.mrf.mxu0
  %v1501 = vadd.f32 0.0, %v1500
  %1502 = vmatmul.f32.gmra.mxu0 %v674
  %v1503 = vpop.f32.mrf.mxu0
  %v1504 = vadd.f32 0.0, %v1503
  %1505 = vmatmul.f32.gmra.mxu0 %v677
  %v1506 = vpop.f32.mrf.mxu0
  %v1507 = vadd.f32 0.0, %v1506
  %1508 = vmatmul.f32.gmra.mxu0 %v680
  %v1509 = vpop.f32.mrf.mxu0
  %v1510 = vadd.f32 0.0, %v1509
  %1511 = vmatmul.f32.gmra.mxu0 %v683
  %v1512 = vpop.f32.mrf.mxu0
  %v1513 = vadd.f32 0.0, %v1512
  %1514 = vmatmul.f32.gmra.mxu0 %v686
  %v1515 = vpop.f32.mrf.mxu0
  %v1516 = vadd.f32 0.0, %v1515
  %1517 = vmatmul.f32.gmra.mxu0 %v689
  %v1518 = vpop.f32.mrf.mxu0
  %v1519 = vadd.f32 0.0, %v1518
  %1520 = vmatmul.f32.gmra.mxu0 %v692
  %v1521 = vpop.f32.mrf.mxu0
  %v1522 = vadd.f32 0.0, %v1521
  %1523 = vmatmul.f32.gmra.mxu0 %v695
  %v1524 = vpop.f32.mrf.mxu0
  %v1525 = vadd.f32 0.0, %v1524
  %1526 = vmatmul.f32.gmra.mxu0 %v698
  %v1527 = vpop.f32.mrf.mxu0
  %1528 = vmatmul.f32.gmra.mxu0 %v701
  %v1529 = vpop.f32.mrf.mxu0
  %v1530 = vadd.f32 0.0, %v1529
  %1531 = vmatmul.f32.gmra.mxu0 %v704
  %v1532 = vpop.f32.mrf.mxu0
  %v1533 = vadd.f32 0.0, %v1532
  %1534 = vmatmul.f32.gmra.mxu0 %v707
  %v1535 = vpop.f32.mrf.mxu0
  %v1536 = vadd.f32 0.0, %v1535
  %1537 = vmatmul.f32.gmra.mxu0 %v710
  %v1538 = vpop.f32.mrf.mxu0
  %v1539 = vadd.f32 0.0, %v1538
  %1540 = vmatmul.f32.gmra.mxu0 %v713
  %v1541 = vpop.f32.mrf.mxu0
  %v1542 = vadd.f32 0.0, %v1541
  %1543 = vmatmul.f32.gmra.mxu0 %v716
  %v1544 = vpop.f32.mrf.mxu0
  %v1545 = vadd.f32 0.0, %v1544
  %1546 = vmatmul.f32.gmra.mxu0 %v719
  %v1547 = vpop.f32.mrf.mxu0
  %v1548 = vadd.f32 0.0, %v1547
  %1549 = vmatmul.f32.gmra.mxu0 %v722
  %v1550 = vpop.f32.mrf.mxu0
  %v1551 = vadd.f32 0.0, %v1550
  %1552 = vmatmul.f32.gmra.mxu0 %v725
  %v1553 = vpop.f32.mrf.mxu0
  %v1554 = vadd.f32 0.0, %v1553
  %1555 = vmatmul.f32.gmra.mxu0 %v728
  %v1556 = vpop.f32.mrf.mxu0
  %v1557 = vadd.f32 0.0, %v1556
  %1558 = vmatmul.f32.gmra.mxu0 %v731
  %v1559 = vpop.f32.mrf.mxu0
  %v1560 = vadd.f32 0.0, %v1559
  %1561 = vmatmul.f32.gmra.mxu0 %v734
  %v1562 = vpop.f32.mrf.mxu0
  %v1563 = vadd.f32 0.0, %v1562
  %1564 = vmatmul.f32.gmra.mxu0 %v737
  %v1565 = vpop.f32.mrf.mxu0
  %v1566 = vadd.f32 0.0, %v1565
  %1567 = vmatmul.f32.gmra.mxu0 %v740
  %v1568 = vpop.f32.mrf.mxu0
  %v1569 = vadd.f32 0.0, %v1568
  %1570 = vmatmul.f32.gmra.mxu0 %v743
  %v1571 = vpop.f32.mrf.mxu0
  %v1572 = vadd.f32 0.0, %v1571
  %1573 = vmatmul.f32.gmra.mxu0 %v746
  %v1574 = vpop.f32.mrf.mxu0
  %v1575 = vadd.f32 0.0, %v1574
  %1576 = vmatmul.f32.gmra.mxu0 %v749
  %v1577 = vpop.f32.mrf.mxu0
  %v1578 = vadd.f32 0.0, %v1577
  %1579 = vmatmul.f32.gmra.mxu0 %v752
  %v1580 = vpop.f32.mrf.mxu0
  %v1581 = vadd.f32 0.0, %v1580
  %1582 = vmatmul.f32.gmra.mxu0 %v755
  %v1583 = vpop.f32.mrf.mxu0
  %v1584 = vadd.f32 0.0, %v1583
  %1585 = vmatmul.f32.gmra.mxu0 %v758
  %v1586 = vpop.f32.mrf.mxu0
  %v1587 = vadd.f32 0.0, %v1586
  %1588 = vmatmul.f32.gmra.mxu0 %v761
  %v1589 = vpop.f32.mrf.mxu0
  %v1590 = vadd.f32 0.0, %v1589
  %1591 = vmatmul.f32.gmra.mxu0 %v764
  %v1592 = vpop.f32.mrf.mxu0
  %v1593 = vadd.f32 0.0, %v1592
  %1594 = vmatmul.f32.gmra.mxu0 %v767
  %v1595 = vpop.f32.mrf.mxu0
  %v1596 = vadd.f32 0.0, %v1595
  %1597 = vmatmul.f32.gmra.mxu0 %v770
  %v1598 = vpop.f32.mrf.mxu0
  %v1599 = vadd.f32 0.0, %v1598
  %1600 = vmatmul.f32.gmra.mxu0 %v773
  %v1601 = vpop.f32.mrf.mxu0
  %v1602 = vadd.f32 0.0, %v1601
  %1603 = vmatmul.f32.gmra.mxu0 %v776
  %v1604 = vpop.f32.mrf.mxu0
  %v1605 = vadd.f32 0.0, %v1604
  %1606 = vmatmul.f32.gmra.mxu0 %v779
  %v1607 = vpop.f32.mrf.mxu0
  %v1608 = vadd.f32 0.0, %v1607
  %1609 = vmatmul.f32.gmra.mxu0 %v782
  %v1610 = vpop.f32.mrf.mxu0
  %v1611 = vadd.f32 0.0, %v1610
  %1612 = vmatmul.f32.gmra.mxu0 %v785
  %v1613 = vpop.f32.mrf.mxu0
  %v1614 = vadd.f32 0.0, %v1613
  %1615 = vmatmul.f32.gmra.mxu0 %v788
  %v1616 = vpop.f32.mrf.mxu0
  %v1617 = vadd.f32 0.0, %v1616
  %1618 = vmatmul.f32.gmra.mxu0 %v791
  %v1619 = vpop.f32.mrf.mxu0
  %v1620 = vadd.f32 0.0, %v1619
  %1621 = vmatmul.f32.gmra.mxu0 %v794
  %v1622 = vpop.f32.mrf.mxu0
  %v1623 = vadd.f32 0.0, %v1622
  %1624 = vmatmul.f32.gmra.mxu0 %v797
  %v1625 = vpop.f32.mrf.mxu0
  %v1626 = vadd.f32 0.0, %v1625
  %1627 = vmatmul.f32.gmra.mxu0 %v800
  %v1628 = vpop.f32.mrf.mxu0
  %1629 = vmatmul.f32.gmra.mxu0 %v803
  %v1630 = vpop.f32.mrf.mxu0
  %v1631 = vadd.f32 0.0, %v1630
  %1632 = vmatmul.f32.gmra.mxu0 %v806
  %v1633 = vpop.f32.mrf.mxu0
  %v1634 = vadd.f32 0.0, %v1633
  %1635 = vmatmul.f32.gmra.mxu0 %v809
  %v1636 = vpop.f32.mrf.mxu0
  %v1637 = vadd.f32 0.0, %v1636
  %1638 = vmatmul.f32.gmra.mxu0 %v812
  %v1639 = vpop.f32.mrf.mxu0
  %v1640 = vadd.f32 0.0, %v1639
  %1641 = vmatmul.f32.gmra.mxu0 %v815
  %v1642 = vpop.f32.mrf.mxu0
  %v1643 = vadd.f32 0.0, %v1642
  %1644 = vmatmul.f32.gmra.mxu0 %v818
  %v1645 = vpop.f32.mrf.mxu0
  %v1646 = vadd.f32 0.0, %v1645
  %1647 = vmatmul.f32.gmra.mxu0 %v821
  %v1648 = vpop.f32.mrf.mxu0
  %v1649 = vadd.f32 0.0, %v1648
  %1650 = vmatmul.f32.gmra.mxu0 %v824
  %v1651 = vpop.f32.mrf.mxu0
  %v1652 = vadd.f32 0.0, %v1651
  %1653 = vmatmul.f32.gmra.mxu0 %v827
  %v1654 = vpop.f32.mrf.mxu0
  %v1655 = vadd.f32 0.0, %v1654
  %1656 = vmatmul.f32.gmra.mxu0 %v830
  %v1657 = vpop.f32.mrf.mxu0
  %v1658 = vadd.f32 0.0, %v1657
  %1659 = vmatmul.f32.gmra.mxu0 %v833
  %v1660 = vpop.f32.mrf.mxu0
  %v1661 = vadd.f32 0.0, %v1660
  %1662 = vmatmul.f32.gmra.mxu0 %v836
  %v1663 = vpop.f32.mrf.mxu0
  %v1664 = vadd.f32 0.0, %v1663
  %1665 = vmatmul.f32.gmra.mxu0 %v839
  %v1666 = vpop.f32.mrf.mxu0
  %v1667 = vadd.f32 0.0, %v1666
  %1668 = vmatmul.f32.gmra.mxu0 %v842
  %v1669 = vpop.f32.mrf.mxu0
  %v1670 = vadd.f32 0.0, %v1669
  %1671 = vmatmul.f32.gmra.mxu0 %v845
  %v1672 = vpop.f32.mrf.mxu0
  %v1673 = vadd.f32 0.0, %v1672
  %1674 = vmatmul.f32.gmra.mxu0 %v848
  %v1675 = vpop.f32.mrf.mxu0
  %v1676 = vadd.f32 0.0, %v1675
  %1677 = vmatmul.f32.gmra.mxu0 %v851
  %v1678 = vpop.f32.mrf.mxu0
  %v1679 = vadd.f32 0.0, %v1678
  %1680 = vmatmul.f32.gmra.mxu0 %v854
  %v1681 = vpop.f32.mrf.mxu0
  %v1682 = vadd.f32 0.0, %v1681
  %1683 = vmatmul.f32.gmra.mxu0 %v857
  %v1684 = vpop.f32.mrf.mxu0
  %v1685 = vadd.f32 0.0, %v1684
  %1686 = vmatmul.f32.gmra.mxu0 %v860
  %v1687 = vpop.f32.mrf.mxu0
  %v1688 = vadd.f32 0.0, %v1687
  %1689 = vmatmul.f32.gmra.mxu0 %v863
  %v1690 = vpop.f32.mrf.mxu0
  %v1691 = vadd.f32 0.0, %v1690
  %1692 = vmatmul.f32.gmra.mxu0 %v866
  %v1693 = vpop.f32.mrf.mxu0
  %v1694 = vadd.f32 0.0, %v1693
  %1695 = vmatmul.f32.gmra.mxu0 %v869
  %v1696 = vpop.f32.mrf.mxu0
  %v1697 = vadd.f32 0.0, %v1696
  %1698 = vmatmul.f32.gmra.mxu0 %v872
  %v1699 = vpop.f32.mrf.mxu0
  %v1700 = vadd.f32 0.0, %v1699
  %1701 = vmatmul.f32.gmra.mxu0 %v875
  %v1702 = vpop.f32.mrf.mxu0
  %v1703 = vadd.f32 0.0, %v1702
  %1704 = vmatmul.f32.gmra.mxu0 %v878
  %v1705 = vpop.f32.mrf.mxu0
  %v1706 = vadd.f32 0.0, %v1705
  %1707 = vmatmul.f32.gmra.mxu0 %v881
  %v1708 = vpop.f32.mrf.mxu0
  %v1709 = vadd.f32 0.0, %v1708
  %1710 = vmatmul.f32.gmra.mxu0 %v884
  %v1711 = vpop.f32.mrf.mxu0
  %v1712 = vadd.f32 0.0, %v1711
  %1713 = vmatmul.f32.gmra.mxu0 %v887
  %v1714 = vpop.f32.mrf.mxu0
  %v1715 = vadd.f32 0.0, %v1714
  %1716 = vmatmul.f32.gmra.mxu0 %v890
  %v1717 = vpop.f32.mrf.mxu0
  %v1718 = vadd.f32 0.0, %v1717
  %1719 = vmatmul.f32.gmra.mxu0 %v893
  %v1720 = vpop.f32.mrf.mxu0
  %v1721 = vadd.f32 0.0, %v1720
  %1722 = vmatmul.f32.gmra.mxu0 %v896
  %v1723 = vpop.f32.mrf.mxu0
  %v1724 = vadd.f32 0.0, %v1723
  %1725 = vmatmul.f32.gmra.mxu0 %v899
  %v1726 = vpop.f32.mrf.mxu0
  %v1727 = vadd.f32 0.0, %v1726
  %1728 = vmatmul.f32.gmra.mxu0 %v902
  %v1729 = vpop.f32.mrf.mxu0
  %1730 = vmatmul.f32.gmra.mxu0 %v905
  %v1731 = vpop.f32.mrf.mxu0
  %v1732 = vadd.f32 0.0, %v1731
  %1733 = vmatmul.f32.gmra.mxu0 %v908
  %v1734 = vpop.f32.mrf.mxu0
  %v1735 = vadd.f32 0.0, %v1734
  %1736 = vmatmul.f32.gmra.mxu0 %v911
  %v1737 = vpop.f32.mrf.mxu0
  %v1738 = vadd.f32 0.0, %v1737
  %1739 = vmatmul.f32.gmra.mxu0 %v914
  %v1740 = vpop.f32.mrf.mxu0
  %v1741 = vadd.f32 0.0, %v1740
  %1742 = vmatmul.f32.gmra.mxu0 %v917
  %v1743 = vpop.f32.mrf.mxu0
  %v1744 = vadd.f32 0.0, %v1743
  %1745 = vmatmul.f32.gmra.mxu0 %v920
  %v1746 = vpop.f32.mrf.mxu0
  %v1747 = vadd.f32 0.0, %v1746
  %1748 = vmatmul.f32.gmra.mxu0 %v923
  %v1749 = vpop.f32.mrf.mxu0
  %v1750 = vadd.f32 0.0, %v1749
  %1751 = vmatmul.f32.gmra.mxu0 %v926
  %v1752 = vpop.f32.mrf.mxu0
  %v1753 = vadd.f32 0.0, %v1752
  %1754 = vmatmul.f32.gmra.mxu0 %v929
  %v1755 = vpop.f32.mrf.mxu0
  %v1756 = vadd.f32 0.0, %v1755
  %1757 = vmatmul.f32.gmra.mxu0 %v932
  %v1758 = vpop.f32.mrf.mxu0
  %v1759 = vadd.f32 0.0, %v1758
  %1760 = vmatmul.f32.gmra.mxu0 %v935
  %v1761 = vpop.f32.mrf.mxu0
  %v1762 = vadd.f32 0.0, %v1761
  %1763 = vmatmul.f32.gmra.mxu0 %v938
  %v1764 = vpop.f32.mrf.mxu0
  %v1765 = vadd.f32 0.0, %v1764
  %1766 = vmatmul.f32.gmra.mxu0 %v941
  %v1767 = vpop.f32.mrf.mxu0
  %v1768 = vadd.f32 0.0, %v1767
  %1769 = vmatmul.f32.gmra.mxu0 %v944
  %v1770 = vpop.f32.mrf.mxu0
  %v1771 = vadd.f32 0.0, %v1770
  %1772 = vmatmul.f32.gmra.mxu0 %v947
  %v1773 = vpop.f32.mrf.mxu0
  %v1774 = vadd.f32 0.0, %v1773
  %1775 = vmatmul.f32.gmra.mxu0 %v950
  %v1776 = vpop.f32.mrf.mxu0
  %v1777 = vadd.f32 0.0, %v1776
  %1778 = vmatmul.f32.gmra.mxu0 %v953
  %v1779 = vpop.f32.mrf.mxu0
  %v1780 = vadd.f32 0.0, %v1779
  %1781 = vmatmul.f32.gmra.mxu0 %v956
  %v1782 = vpop.f32.mrf.mxu0
  %v1783 = vadd.f32 0.0, %v1782
  %1784 = vmatmul.f32.gmra.mxu0 %v959
  %v1785 = vpop.f32.mrf.mxu0
  %v1786 = vadd.f32 0.0, %v1785
  %1787 = vmatmul.f32.gmra.mxu0 %v962
  %v1788 = vpop.f32.mrf.mxu0
  %v1789 = vadd.f32 0.0, %v1788
  %1790 = vmatmul.f32.gmra.mxu0 %v965
  %v1791 = vpop.f32.mrf.mxu0
  %v1792 = vadd.f32 0.0, %v1791
  %1793 = vmatmul.f32.gmra.mxu0 %v968
  %v1794 = vpop.f32.mrf.mxu0
  %v1795 = vadd.f32 0.0, %v1794
  %1796 = vmatmul.f32.gmra.mxu0 %v971
  %v1797 = vpop.f32.mrf.mxu0
  %v1798 = vadd.f32 0.0, %v1797
  %1799 = vmatmul.f32.gmra.mxu0 %v974
  %v1800 = vpop.f32.mrf.mxu0
  %v1801 = vadd.f32 0.0, %v1800
  %1802 = vmatmul.f32.gmra.mxu0 %v977
  %v1803 = vpop.f32.mrf.mxu0
  %v1804 = vadd.f32 0.0, %v1803
  %1805 = vmatmul.f32.gmra.mxu0 %v980
  %v1806 = vpop.f32.mrf.mxu0
  %v1807 = vadd.f32 0.0, %v1806
  %1808 = vmatmul.f32.gmra.mxu0 %v983
  %v1809 = vpop.f32.mrf.mxu0
  %v1810 = vadd.f32 0.0, %v1809
  %1811 = vmatmul.f32.gmra.mxu0 %v986
  %v1812 = vpop.f32.mrf.mxu0
  %v1813 = vadd.f32 0.0, %v1812
  %1814 = vmatmul.f32.gmra.mxu0 %v989
  %v1815 = vpop.f32.mrf.mxu0
  %v1816 = vadd.f32 0.0, %v1815
  %1817 = vmatmul.f32.gmra.mxu0 %v992
  %v1818 = vpop.f32.mrf.mxu0
  %v1819 = vadd.f32 0.0, %v1818
  %1820 = vmatmul.f32.gmra.mxu0 %v995
  %v1821 = vpop.f32.mrf.mxu0
  %v1822 = vadd.f32 0.0, %v1821
  %1823 = vmatmul.f32.gmra.mxu0 %v998
  %v1824 = vpop.f32.mrf.mxu0
  %v1825 = vadd.f32 0.0, %v1824
  %1826 = vmatmul.f32.gmra.mxu0 %v1001
  %v1827 = vpop.f32.mrf.mxu0
  %v1828 = vadd.f32 0.0, %v1827
  %1829 = vmatmul.f32.gmra.mxu0 %v1004
  %v1830 = vpop.f32.mrf.mxu0
  %1831 = vmatmul.f32.gmra.mxu0 %v1007
  %v1832 = vpop.f32.mrf.mxu0
  %v1833 = vadd.f32 0.0, %v1832
  %1834 = vmatmul.f32.gmra.mxu0 %v1010
  %v1835 = vpop.f32.mrf.mxu0
  %v1836 = vadd.f32 0.0, %v1835
  %1837 = vmatmul.f32.gmra.mxu0 %v1013
  %v1838 = vpop.f32.mrf.mxu0
  %v1839 = vadd.f32 0.0, %v1838
  %1840 = vmatmul.f32.gmra.mxu0 %v1016
  %v1841 = vpop.f32.mrf.mxu0
  %v1842 = vadd.f32 0.0, %v1841
  %1843 = vmatmul.f32.gmra.mxu0 %v1019
  %v1844 = vpop.f32.mrf.mxu0
  %v1845 = vadd.f32 0.0, %v1844
  %1846 = vmatmul.f32.gmra.mxu0 %v1022
  %v1847 = vpop.f32.mrf.mxu0
  %v1848 = vadd.f32 0.0, %v1847
  %1849 = vmatmul.f32.gmra.mxu0 %v1025
  %v1850 = vpop.f32.mrf.mxu0
  %v1851 = vadd.f32 0.0, %v1850
  %1852 = vmatmul.f32.gmra.mxu0 %v1028
  %v1853 = vpop.f32.mrf.mxu0
  %v1854 = vadd.f32 0.0, %v1853
  %1855 = vmatmul.f32.gmra.mxu0 %v1031
  %v1856 = vpop.f32.mrf.mxu0
  %v1857 = vadd.f32 0.0, %v1856
  %1858 = vmatmul.f32.gmra.mxu0 %v1034
  %v1859 = vpop.f32.mrf.mxu0
  %v1860 = vadd.f32 0.0, %v1859
  %1861 = vmatmul.f32.gmra.mxu0 %v1037
  %v1862 = vpop.f32.mrf.mxu0
  %v1863 = vadd.f32 0.0, %v1862
  %1864 = vmatmul.f32.gmra.mxu0 %v1040
  %v1865 = vpop.f32.mrf.mxu0
  %v1866 = vadd.f32 0.0, %v1865
  %1867 = vmatmul.f32.gmra.mxu0 %v1043
  %v1868 = vpop.f32.mrf.mxu0
  %v1869 = vadd.f32 0.0, %v1868
  %1870 = vmatmul.f32.gmra.mxu0 %v1046
  %v1871 = vpop.f32.mrf.mxu0
  %v1872 = vadd.f32 0.0, %v1871
  %1873 = vmatmul.f32.gmra.mxu0 %v1049
  %v1874 = vpop.f32.mrf.mxu0
  %v1875 = vadd.f32 0.0, %v1874
  %1876 = vmatmul.f32.gmra.mxu0 %v1052
  %v1877 = vpop.f32.mrf.mxu0
  %v1878 = vadd.f32 0.0, %v1877
  %1879 = vmatmul.f32.gmra.mxu0 %v1055
  %v1880 = vpop.f32.mrf.mxu0
  %v1881 = vadd.f32 0.0, %v1880
  %1882 = vmatmul.f32.gmra.mxu0 %v1058
  %v1883 = vpop.f32.mrf.mxu0
  %v1884 = vadd.f32 0.0, %v1883
  %1885 = vmatmul.f32.gmra.mxu0 %v1061
  %v1886 = vpop.f32.mrf.mxu0
  %v1887 = vadd.f32 0.0, %v1886
  %1888 = vmatmul.f32.gmra.mxu0 %v1064
  %v1889 = vpop.f32.mrf.mxu0
  %v1890 = vadd.f32 0.0, %v1889
  %1891 = vmatmul.f32.gmra.mxu0 %v1067
  %v1892 = vpop.f32.mrf.mxu0
  %v1893 = vadd.f32 0.0, %v1892
  %1894 = vmatmul.f32.gmra.mxu0 %v1070
  %v1895 = vpop.f32.mrf.mxu0
  %v1896 = vadd.f32 0.0, %v1895
  %1897 = vmatmul.f32.gmra.mxu0 %v1073
  %v1898 = vpop.f32.mrf.mxu0
  %v1899 = vadd.f32 0.0, %v1898
  %1900 = vmatmul.f32.gmra.mxu0 %v1076
  %v1901 = vpop.f32.mrf.mxu0
  %v1902 = vadd.f32 0.0, %v1901
  %1903 = vmatmul.f32.gmra.mxu0 %v1079
  %v1904 = vpop.f32.mrf.mxu0
  %v1905 = vadd.f32 0.0, %v1904
  %1906 = vmatmul.f32.gmra.mxu0 %v1082
  %v1907 = vpop.f32.mrf.mxu0
  %v1908 = vadd.f32 0.0, %v1907
  %1909 = vmatmul.f32.gmra.mxu0 %v1085
  %v1910 = vpop.f32.mrf.mxu0
  %v1911 = vadd.f32 0.0, %v1910
  %1912 = vmatmul.f32.gmra.mxu0 %v1088
  %v1913 = vpop.f32.mrf.mxu0
  %v1914 = vadd.f32 0.0, %v1913
  %1915 = vmatmul.f32.gmra.mxu0 %v1091
  %v1916 = vpop.f32.mrf.mxu0
  %v1917 = vadd.f32 0.0, %v1916
  %1918 = vmatmul.f32.gmra.mxu0 %v1094
  %v1919 = vpop.f32.mrf.mxu0
  %v1920 = vadd.f32 0.0, %v1919
  %1921 = vmatmul.f32.gmra.mxu0 %v1097
  %v1922 = vpop.f32.mrf.mxu0
  %v1923 = vadd.f32 0.0, %v1922
  %1924 = vmatmul.f32.gmra.mxu0 %v1100
  %v1925 = vpop.f32.mrf.mxu0
  %v1926 = vadd.f32 0.0, %v1925
  %1927 = vmatmul.f32.gmra.mxu0 %v1103
  %v1928 = vpop.f32.mrf.mxu0
  %v1929 = vadd.f32 0.0, %v1928
  %1930 = vmatmul.f32.gmra.mxu0 %v1106
  %v1931 = vpop.f32.mrf.mxu0
  %1932 = vdwg.mxu0
  %v1933 = vmax.f32 %v1126, 0.0
  %v1934 = vmax.f32 %v1129, 0.0
  %v1935 = vmax.f32 %v1132, 0.0
  %v1936 = vmax.f32 %v1135, 0.0
  %v1937 = vmax.f32 %v1138, 0.0
  %v1938 = vmax.f32 %v1141, 0.0
  %v1939 = vmax.f32 %v1144, 0.0
  %v1940 = vmax.f32 %v1147, 0.0
  %v1941 = vmax.f32 %v1150, 0.0
  %v1942 = vmax.f32 %v1153, 0.0
  %v1943 = vmax.f32 %v1156, 0.0
  %v1944 = vmax.f32 %v1159, 0.0
  %v1945 = vmax.f32 %v1162, 0.0
  %v1946 = vmax.f32 %v1165, 0.0
  %v1947 = vmax.f32 %v1168, 0.0
  %v1948 = vmax.f32 %v1171, 0.0
  %v1949 = vmax.f32 %v1174, 0.0
  %v1950 = vmax.f32 %v1177, 0.0
  %v1951 = vmax.f32 %v1180, 0.0
  %v1952 = vmax.f32 %v1183, 0.0
  %v1953 = vmax.f32 %v1186, 0.0
  %v1954 = vmax.f32 %v1189, 0.0
  %v1955 = vmax.f32 %v1192, 0.0
  %v1956 = vmax.f32 %v1195, 0.0
  %v1957 = vmax.f32 %v1198, 0.0
  %v1958 = vmax.f32 %v1201, 0.0
  %v1959 = vmax.f32 %v1204, 0.0
  %v1960 = vmax.f32 %v1207, 0.0
  %v1961 = vmax.f32 %v1210, 0.0
  %v1962 = vmax.f32 %v1213, 0.0
  %v1963 = vmax.f32 %v1216, 0.0
  %v1964 = vmax.f32 %v1219, 0.0
  %v1965 = vmax.f32 %v1222, 0.0
  %v1966 = vmax.f32 %v1227, 0.0
  %v1967 = vmax.f32 %v1230, 0.0
  %v1968 = vmax.f32 %v1233, 0.0
  %v1969 = vmax.f32 %v1236, 0.0
  %v1970 = vmax.f32 %v1239, 0.0
  %v1971 = vmax.f32 %v1242, 0.0
  %v1972 = vmax.f32 %v1245, 0.0
  %v1973 = vmax.f32 %v1248, 0.0
  %v1974 = vmax.f32 %v1251, 0.0
  %v1975 = vmax.f32 %v1254, 0.0
  %v1976 = vmax.f32 %v1257, 0.0
  %v1977 = vmax.f32 %v1260, 0.0
  %v1978 = vmax.f32 %v1263, 0.0
  %v1979 = vmax.f32 %v1266, 0.0
  %v1980 = vmax.f32 %v1269, 0.0
  %v1981 = vmax.f32 %v1272, 0.0
  %v1982 = vmax.f32 %v1275, 0.0
  %v1983 = vmax.f32 %v1278, 0.0
  %v1984 = vmax.f32 %v1281, 0.0
  %v1985 = vmax.f32 %v1284, 0.0
  %v1986 = vmax.f32 %v1287, 0.0
  %v1987 = vmax.f32 %v1290, 0.0
  %v1988 = vmax.f32 %v1293, 0.0
  %v1989 = vmax.f32 %v1296, 0.0
  %v1990 = vmax.f32 %v1299, 0.0
  %v1991 = vmax.f32 %v1302, 0.0
  %v1992 = vmax.f32 %v1305, 0.0
  %v1993 = vmax.f32 %v1308, 0.0
  %v1994 = vmax.f32 %v1311, 0.0
  %v1995 = vmax.f32 %v1314, 0.0
  %v1996 = vmax.f32 %v1317, 0.0
  %v1997 = vmax.f32 %v1320, 0.0
  %v1998 = vmax.f32 %v1323, 0.0
  %v1999 = vmax.f32 %v1328, 0.0
  %v2000 = vmax.f32 %v1331, 0.0
  %v2001 = vmax.f32 %v1334, 0.0
  %v2002 = vmax.f32 %v1337, 0.0
  %v2003 = vmax.f32 %v1340, 0.0
  %v2004 = vmax.f32 %v1343, 0.0
  %v2005 = vmax.f32 %v1346, 0.0
  %v2006 = vmax.f32 %v1349, 0.0
  %v2007 = vmax.f32 %v1352, 0.0
  %v2008 = vmax.f32 %v1355, 0.0
  %v2009 = vmax.f32 %v1358, 0.0
  %v2010 = vmax.f32 %v1361, 0.0
  %v2011 = vmax.f32 %v1364, 0.0
  %v2012 = vmax.f32 %v1367, 0.0
  %v2013 = vmax.f32 %v1370, 0.0
  %v2014 = vmax.f32 %v1373, 0.0
  %v2015 = vmax.f32 %v1376, 0.0
  %v2016 = vmax.f32 %v1379, 0.0
  %v2017 = vmax.f32 %v1382, 0.0
  %v2018 = vmax.f32 %v1385, 0.0
  %v2019 = vmax.f32 %v1388, 0.0
  %v2020 = vmax.f32 %v1391, 0.0
  %v2021 = vmax.f32 %v1394, 0.0
  %v2022 = vmax.f32 %v1397, 0.0
  %v2023 = vmax.f32 %v1400, 0.0
  %v2024 = vmax.f32 %v1403, 0.0
  %v2025 = vmax.f32 %v1406, 0.0
  %v2026 = vmax.f32 %v1409, 0.0
  %v2027 = vmax.f32 %v1412, 0.0
  %v2028 = vmax.f32 %v1415, 0.0
  %v2029 = vmax.f32 %v1418, 0.0
  %v2030 = vmax.f32 %v1421, 0.0
  %v2031 = vmax.f32 %v1424, 0.0
  %v2032 = vmax.f32 %v1429, 0.0
  %v2033 = vmax.f32 %v1432, 0.0
  %v2034 = vmax.f32 %v1435, 0.0
  %v2035 = vmax.f32 %v1438, 0.0
  %v2036 = vmax.f32 %v1441, 0.0
  %v2037 = vmax.f32 %v1444, 0.0
  %v2038 = vmax.f32 %v1447, 0.0
  %v2039 = vmax.f32 %v1450, 0.0
  %v2040 = vmax.f32 %v1453, 0.0
  %v2041 = vmax.f32 %v1456, 0.0
  %v2042 = vmax.f32 %v1459, 0.0
  %v2043 = vmax.f32 %v1462, 0.0
  %v2044 = vmax.f32 %v1465, 0.0
  %v2045 = vmax.f32 %v1468, 0.0
  %v2046 = vmax.f32 %v1471, 0.0
  %v2047 = vmax.f32 %v1474, 0.0
  %v2048 = vmax.f32 %v1477, 0.0
  %v2049 = vmax.f32 %v1480, 0.0
  %v2050 = vmax.f32 %v1483, 0.0
  %v2051 = vmax.f32 %v1486, 0.0
  %v2052 = vmax.f32 %v1489, 0.0
  %v2053 = vmax.f32 %v1492, 0.0
  %v2054 = vmax.f32 %v1495, 0.0
  %v2055 = vmax.f32 %v1498, 0.0
  %v2056 = vmax.f32 %v1501, 0.0
  %v2057 = vmax.f32 %v1504, 0.0
  %v2058 = vmax.f32 %v1507, 0.0
  %v2059 = vmax.f32 %v1510, 0.0
  %v2060 = vmax.f32 %v1513, 0.0
  %v2061 = vmax.f32 %v1516, 0.0
  %v2062 = vmax.f32 %v1519, 0.0
  %v2063 = vmax.f32 %v1522, 0.0
  %v2064 = vmax.f32 %v1525, 0.0
  %v2065 = vmax.f32 %v1530, 0.0
  %v2066 = vmax.f32 %v1533, 0.0
  %v2067 = vmax.f32 %v1536, 0.0
  %v2068 = vmax.f32 %v1539, 0.0
  %v2069 = vmax.f32 %v1542, 0.0
  %v2070 = vmax.f32 %v1545, 0.0
  %v2071 = vmax.f32 %v1548, 0.0
  %v2072 = vmax.f32 %v1551, 0.0
  %v2073 = vmax.f32 %v1554, 0.0
  %v2074 = vmax.f32 %v1557, 0.0
  %v2075 = vmax.f32 %v1560, 0.0
  %v2076 = vmax.f32 %v1563, 0.0
  %v2077 = vmax.f32 %v1566, 0.0
  %v2078 = vmax.f32 %v1569, 0.0
  %v2079 = vmax.f32 %v1572, 0.0
  %v2080 = vmax.f32 %v1575, 0.0
  %v2081 = vmax.f32 %v1578, 0.0
  %v2082 = vmax.f32 %v1581, 0.0
  %v2083 = vmax.f32 %v1584, 0.0
  %v2084 = vmax.f32 %v1587, 0.0
  %v2085 = vmax.f32 %v1590, 0.0
  %v2086 = vmax.f32 %v1593, 0.0
  %v2087 = vmax.f32 %v1596, 0.0
  %v2088 = vmax.f32 %v1599, 0.0
  %v2089 = vmax.f32 %v1602, 0.0
  %v2090 = vmax.f32 %v1605, 0.0
  %v2091 = vmax.f32 %v1608, 0.0
  %v2092 = vmax.f32 %v1611, 0.0
  %v2093 = vmax.f32 %v1614, 0.0
  %v2094 = vmax.f32 %v1617, 0.0
  %v2095 = vmax.f32 %v1620, 0.0
  %v2096 = vmax.f32 %v1623, 0.0
  %v2097 = vmax.f32 %v1626, 0.0
  %v2098 = vmax.f32 %v1631, 0.0
  %v2099 = vmax.f32 %v1634, 0.0
  %v2100 = vmax.f32 %v1637, 0.0
  %v2101 = vmax.f32 %v1640, 0.0
  %v2102 = vmax.f32 %v1643, 0.0
  %v2103 = vmax.f32 %v1646, 0.0
  %v2104 = vmax.f32 %v1649, 0.0
  %v2105 = vmax.f32 %v1652, 0.0
  %v2106 = vmax.f32 %v1655, 0.0
  %v2107 = vmax.f32 %v1658, 0.0
  %v2108 = vmax.f32 %v1661, 0.0
  %v2109 = vmax.f32 %v1664, 0.0
  %v2110 = vmax.f32 %v1667, 0.0
  %v2111 = vmax.f32 %v1670, 0.0
  %v2112 = vmax.f32 %v1673, 0.0
  %v2113 = vmax.f32 %v1676, 0.0
  %v2114 = vmax.f32 %v1679, 0.0
  %v2115 = vmax.f32 %v1682, 0.0
  %v2116 = vmax.f32 %v1685, 0.0
  %v2117 = vmax.f32 %v1688, 0.0
  %v2118 = vmax.f32 %v1691, 0.0
  %v2119 = vmax.f32 %v1694, 0.0
  %v2120 = vmax.f32 %v1697, 0.0
  %v2121 = vmax.f32 %v1700, 0.0
  %v2122 = vmax.f32 %v1703, 0.0
  %v2123 = vmax.f32 %v1706, 0.0
  %v2124 = vmax.f32 %v1709, 0.0
  %v2125 = vmax.f32 %v1712, 0.0
  %v2126 = vmax.f32 %v1715, 0.0
  %v2127 = vmax.f32 %v1718, 0.0
  %v2128 = vmax.f32 %v1721, 0.0
  %v2129 = vmax.f32 %v1724, 0.0
  %v2130 = vmax.f32 %v1727, 0.0
  %v2131 = vmax.f32 %v1732, 0.0
  %v2132 = vmax.f32 %v1735, 0.0
  %v2133 = vmax.f32 %v1738, 0.0
  %v2134 = vmax.f32 %v1741, 0.0
  %v2135 = vmax.f32 %v1744, 0.0
  %v2136 = vmax.f32 %v1747, 0.0
  %v2137 = vmax.f32 %v1750, 0.0
  %v2138 = vmax.f32 %v1753, 0.0
  %v2139 = vmax.f32 %v1756, 0.0
  %v2140 = vmax.f32 %v1759, 0.0
  %v2141 = vmax.f32 %v1762, 0.0
  %v2142 = vmax.f32 %v1765, 0.0
  %v2143 = vmax.f32 %v1768, 0.0
  %v2144 = vmax.f32 %v1771, 0.0
  %v2145 = vmax.f32 %v1774, 0.0
  %v2146 = vmax.f32 %v1777, 0.0
  %v2147 = vmax.f32 %v1780, 0.0
  %v2148 = vmax.f32 %v1783, 0.0
  %v2149 = vmax.f32 %v1786, 0.0
  %v2150 = vmax.f32 %v1789, 0.0
  %v2151 = vmax.f32 %v1792, 0.0
  %v2152 = vmax.f32 %v1795, 0.0
  %v2153 = vmax.f32 %v1798, 0.0
  %v2154 = vmax.f32 %v1801, 0.0
  %v2155 = vmax.f32 %v1804, 0.0
  %v2156 = vmax.f32 %v1807, 0.0
  %v2157 = vmax.f32 %v1810, 0.0
  %v2158 = vmax.f32 %v1813, 0.0
  %v2159 = vmax.f32 %v1816, 0.0
  %v2160 = vmax.f32 %v1819, 0.0
  %v2161 = vmax.f32 %v1822, 0.0
  %v2162 = vmax.f32 %v1825, 0.0
  %v2163 = vmax.f32 %v1828, 0.0
  %v2164 = vmax.f32 %v1833, 0.0
  %v2165 = vmax.f32 %v1836, 0.0
  %v2166 = vmax.f32 %v1839, 0.0
  %v2167 = vmax.f32 %v1842, 0.0
  %v2168 = vmax.f32 %v1845, 0.0
  %v2169 = vmax.f32 %v1848, 0.0
  %v2170 = vmax.f32 %v1851, 0.0
  %v2171 = vmax.f32 %v1854, 0.0
  %v2172 = vmax.f32 %v1857, 0.0
  %v2173 = vmax.f32 %v1860, 0.0
  %v2174 = vmax.f32 %v1863, 0.0
  %v2175 = vmax.f32 %v1866, 0.0
  %v2176 = vmax.f32 %v1869, 0.0
  %v2177 = vmax.f32 %v1872, 0.0
  %v2178 = vmax.f32 %v1875, 0.0
  %v2179 = vmax.f32 %v1878, 0.0
  %v2180 = vmax.f32 %v1881, 0.0
  %v2181 = vmax.f32 %v1884, 0.0
  %v2182 = vmax.f32 %v1887, 0.0
  %v2183 = vmax.f32 %v1890, 0.0
  %v2184 = vmax.f32 %v1893, 0.0
  %v2185 = vmax.f32 %v1896, 0.0
  %v2186 = vmax.f32 %v1899, 0.0
  %v2187 = vmax.f32 %v1902, 0.0
  %v2188 = vmax.f32 %v1905, 0.0
  %v2189 = vmax.f32 %v1908, 0.0
  %v2190 = vmax.f32 %v1911, 0.0
  %v2191 = vmax.f32 %v1914, 0.0
  %v2192 = vmax.f32 %v1917, 0.0
  %v2193 = vmax.f32 %v1920, 0.0
  %v2194 = vmax.f32 %v1923, 0.0
  %v2195 = vmax.f32 %v1926, 0.0
  %v2196 = vmax.f32 %v1929, 0.0
  %v2197 = vmax.f32 %v1933, %v1966
  %v2198 = vmax.f32 %v1934, %v1967
  %v2199 = vmax.f32 %v1935, %v1968
  %v2200 = vmax.f32 %v1936, %v1969
  %v2201 = vmax.f32 %v1937, %v1970
  %v2202 = vmax.f32 %v1938, %v1971
  %v2203 = vmax.f32 %v1939, %v1972
  %v2204 = vmax.f32 %v1940, %v1973
  %v2205 = vmax.f32 %v1941, %v1974
  %v2206 = vmax.f32 %v1942, %v1975
  %v2207 = vmax.f32 %v1943, %v1976
  %v2208 = vmax.f32 %v1944, %v1977
  %v2209 = vmax.f32 %v1945, %v1978
  %v2210 = vmax.f32 %v1946, %v1979
  %v2211 = vmax.f32 %v1947, %v1980
  %v2212 = vmax.f32 %v1948, %v1981
  %v2213 = vmax.f32 %v1949, %v1982
  %v2214 = vmax.f32 %v1950, %v1983
  %v2215 = vmax.f32 %v1951, %v1984
  %v2216 = vmax.f32 %v1952, %v1985
  %v2217 = vmax.f32 %v1953, %v1986
  %v2218 = vmax.f32 %v1954, %v1987
  %v2219 = vmax.f32 %v1955, %v1988
  %v2220 = vmax.f32 %v1956, %v1989
  %v2221 = vmax.f32 %v1957, %v1990
  %v2222 = vmax.f32 %v1958, %v1991
  %v2223 = vmax.f32 %v1959, %v1992
  %v2224 = vmax.f32 %v1960, %v1993
  %v2225 = vmax.f32 %v1961, %v1994
  %v2226 = vmax.f32 %v1962, %v1995
  %v2227 = vmax.f32 %v1963, %v1996
  %v2228 = vmax.f32 %v1964, %v1997
  %v2229 = vmax.f32 %v1965, %v1998
  %v2230 = vmax.f32 %v2065, %v2098
  %v2231 = vmax.f32 %v2066, %v2099
  %v2232 = vmax.f32 %v2067, %v2100
  %v2233 = vmax.f32 %v2068, %v2101
  %v2234 = vmax.f32 %v2069, %v2102
  %v2235 = vmax.f32 %v2070, %v2103
  %v2236 = vmax.f32 %v2071, %v2104
  %v2237 = vmax.f32 %v2072, %v2105
  %v2238 = vmax.f32 %v2073, %v2106
  %v2239 = vmax.f32 %v2074, %v2107
  %v2240 = vmax.f32 %v2075, %v2108
  %v2241 = vmax.f32 %v2076, %v2109
  %v2242 = vmax.f32 %v2077, %v2110
  %v2243 = vmax.f32 %v2078, %v2111
  %v2244 = vmax.f32 %v2079, %v2112
  %v2245 = vmax.f32 %v2080, %v2113
  %v2246 = vmax.f32 %v2081, %v2114
  %v2247 = vmax.f32 %v2082, %v2115
  %v2248 = vmax.f32 %v2083, %v2116
  %v2249 = vmax.f32 %v2084, %v2117
  %v2250 = vmax.f32 %v2085, %v2118
  %v2251 = vmax.f32 %v2086, %v2119
  %v2252 = vmax.f32 %v2087, %v2120
  %v2253 = vmax.f32 %v2088, %v2121
  %v2254 = vmax.f32 %v2089, %v2122
  %v2255 = vmax.f32 %v2090, %v2123
  %v2256 = vmax.f32 %v2091, %v2124
  %v2257 = vmax.f32 %v2092, %v2125
  %v2258 = vmax.f32 %v2093, %v2126
  %v2259 = vmax.f32 %v2094, %v2127
  %v2260 = vmax.f32 %v2095, %v2128
  %v2261 = vmax.f32 %v2096, %v2129
  %v2262 = vmax.f32 %v2097, %v2130
  %v2263 = vmax.f32 %v1999, %v2032
  %v2264 = vmax.f32 %v2000, %v2033
  %v2265 = vmax.f32 %v2001, %v2034
  %v2266 = vmax.f32 %v2002, %v2035
  %v2267 = vmax.f32 %v2003, %v2036
  %v2268 = vmax.f32 %v2004, %v2037
  %v2269 = vmax.f32 %v2005, %v2038
  %v2270 = vmax.f32 %v2006, %v2039
  %v2271 = vmax.f32 %v2007, %v2040
  %v2272 = vmax.f32 %v2008, %v2041
  %v2273 = vmax.f32 %v2009, %v2042
  %v2274 = vmax.f32 %v2010, %v2043
  %v2275 = vmax.f32 %v2011, %v2044
  %v2276 = vmax.f32 %v2012, %v2045
  %v2277 = vmax.f32 %v2013, %v2046
  %v2278 = vmax.f32 %v2014, %v2047
  %v2279 = vmax.f32 %v2015, %v2048
  %v2280 = vmax.f32 %v2016, %v2049
  %v2281 = vmax.f32 %v2017, %v2050
  %v2282 = vmax.f32 %v2018, %v2051
  %v2283 = vmax.f32 %v2019, %v2052
  %v2284 = vmax.f32 %v2020, %v2053
  %v2285 = vmax.f32 %v2021, %v2054
  %v2286 = vmax.f32 %v2022, %v2055
  %v2287 = vmax.f32 %v2023, %v2056
  %v2288 = vmax.f32 %v2024, %v2057
  %v2289 = vmax.f32 %v2025, %v2058
  %v2290 = vmax.f32 %v2026, %v2059
  %v2291 = vmax.f32 %v2027, %v2060
  %v2292 = vmax.f32 %v2028, %v2061
  %v2293 = vmax.f32 %v2029, %v2062
  %v2294 = vmax.f32 %v2030, %v2063
  %v2295 = vmax.f32 %v2031, %v2064
  %v2296 = vmax.f32 %v2131, %v2164
  %v2297 = vmax.f32 %v2132, %v2165
  %v2298 = vmax.f32 %v2133, %v2166
  %v2299 = vmax.f32 %v2134, %v2167
  %v2300 = vmax.f32 %v2135, %v2168
  %v2301 = vmax.f32 %v2136, %v2169
  %v2302 = vmax.f32 %v2137, %v2170
  %v2303 = vmax.f32 %v2138, %v2171
  %v2304 = vmax.f32 %v2139, %v2172
  %v2305 = vmax.f32 %v2140, %v2173
  %v2306 = vmax.f32 %v2141, %v2174
  %v2307 = vmax.f32 %v2142, %v2175
  %v2308 = vmax.f32 %v2143, %v2176
  %v2309 = vmax.f32 %v2144, %v2177
  %v2310 = vmax.f32 %v2145, %v2178
  %v2311 = vmax.f32 %v2146, %v2179
  %v2312 = vmax.f32 %v2147, %v2180
  %v2313 = vmax.f32 %v2148, %v2181
  %v2314 = vmax.f32 %v2149, %v2182
  %v2315 = vmax.f32 %v2150, %v2183
  %v2316 = vmax.f32 %v2151, %v2184
  %v2317 = vmax.f32 %v2152, %v2185
  %v2318 = vmax.f32 %v2153, %v2186
  %v2319 = vmax.f32 %v2154, %v2187
  %v2320 = vmax.f32 %v2155, %v2188
  %v2321 = vmax.f32 %v2156, %v2189
  %v2322 = vmax.f32 %v2157, %v2190
  %v2323 = vmax.f32 %v2158, %v2191
  %v2324 = vmax.f32 %v2159, %v2192
  %v2325 = vmax.f32 %v2160, %v2193
  %v2326 = vmax.f32 %v2161, %v2194
  %v2327 = vmax.f32 %v2162, %v2195
  %v2328 = vmax.f32 %v2163, %v2196
  %v2329 = vmax.f32 %v2197, %v2263
  %v2330 = vmax.f32 %v2198, %v2264
  %v2331 = vmax.f32 %v2199, %v2265
  %v2332 = vmax.f32 %v2200, %v2266
  %v2333 = vmax.f32 %v2201, %v2267
  %v2334 = vmax.f32 %v2202, %v2268
  %v2335 = vmax.f32 %v2203, %v2269
  %v2336 = vmax.f32 %v2204, %v2270
  %v2337 = vmax.f32 %v2205, %v2271
  %v2338 = vmax.f32 %v2206, %v2272
  %v2339 = vmax.f32 %v2207, %v2273
  %v2340 = vmax.f32 %v2208, %v2274
  %v2341 = vmax.f32 %v2209, %v2275
  %v2342 = vmax.f32 %v2210, %v2276
  %v2343 = vmax.f32 %v2211, %v2277
  %v2344 = vmax.f32 %v2212, %v2278
  %v2345 = vmax.f32 %v2213, %v2279
  %v2346 = vmax.f32 %v2214, %v2280
  %v2347 = vmax.f32 %v2215, %v2281
  %v2348 = vmax.f32 %v2216, %v2282
  %v2349 = vmax.f32 %v2217, %v2283
  %v2350 = vmax.f32 %v2218, %v2284
  %v2351 = vmax.f32 %v2219, %v2285
  %v2352 = vmax.f32 %v2220, %v2286
  %v2353 = vmax.f32 %v2221, %v2287
  %v2354 = vmax.f32 %v2222, %v2288
  %v2355 = vmax.f32 %v2223, %v2289
  %v2356 = vmax.f32 %v2224, %v2290
  %v2357 = vmax.f32 %v2225, %v2291
  %v2358 = vmax.f32 %v2226, %v2292
  %v2359 = vmax.f32 %v2227, %v2293
  %v2360 = vmax.f32 %v2228, %v2294
  %v2361 = vmax.f32 %v2229, %v2295
  %v2362 = vmax.f32 %v2230, %v2296
  %v2363 = vmax.f32 %v2231, %v2297
  %v2364 = vmax.f32 %v2232, %v2298
  %v2365 = vmax.f32 %v2233, %v2299
  %v2366 = vmax.f32 %v2234, %v2300
  %v2367 = vmax.f32 %v2235, %v2301
  %v2368 = vmax.f32 %v2236, %v2302
  %v2369 = vmax.f32 %v2237, %v2303
  %v2370 = vmax.f32 %v2238, %v2304
  %v2371 = vmax.f32 %v2239, %v2305
  %v2372 = vmax.f32 %v2240, %v2306
  %v2373 = vmax.f32 %v2241, %v2307
  %v2374 = vmax.f32 %v2242, %v2308
  %v2375 = vmax.f32 %v2243, %v2309
  %v2376 = vmax.f32 %v2244, %v2310
  %v2377 = vmax.f32 %v2245, %v2311
  %v2378 = vmax.f32 %v2246, %v2312
  %v2379 = vmax.f32 %v2247, %v2313
  %v2380 = vmax.f32 %v2248, %v2314
  %v2381 = vmax.f32 %v2249, %v2315
  %v2382 = vmax.f32 %v2250, %v2316
  %v2383 = vmax.f32 %v2251, %v2317
  %v2384 = vmax.f32 %v2252, %v2318
  %v2385 = vmax.f32 %v2253, %v2319
  %v2386 = vmax.f32 %v2254, %v2320
  %v2387 = vmax.f32 %v2255, %v2321
  %v2388 = vmax.f32 %v2256, %v2322
  %v2389 = vmax.f32 %v2257, %v2323
  %v2390 = vmax.f32 %v2258, %v2324
  %v2391 = vmax.f32 %v2259, %v2325
  %v2392 = vmax.f32 %v2260, %v2326
  %v2393 = vmax.f32 %v2261, %v2327
  %v2394 = vmax.f32 %v2262, %v2328
  %vm2453 = vcmask 1046528
  %v2454 = vrot.slane %v2329, 1
  %v2455 = vrot.slane %v2330, 1
  %v2456 = vsel %vm2453, %v2454, %v2455
  %v2457 = vrot.slane %v2331, 1
  %v2458 = vsel %vm2453, %v2455, %v2457
  %v2459 = vrot.slane %v2332, 1
  %v2460 = vsel %vm2453, %v2457, %v2459
  %v2461 = vrot.slane %v2333, 1
  %v2462 = vsel %vm2453, %v2459, %v2461
  %v2463 = vrot.slane %v2334, 1
  %v2464 = vsel %vm2453, %v2461, %v2463
  %v2465 = vrot.slane %v2335, 1
  %v2466 = vsel %vm2453, %v2463, %v2465
  %v2467 = vrot.slane %v2336, 1
  %v2468 = vsel %vm2453, %v2465, %v2467
  %v2469 = vrot.slane %v2337, 1
  %v2470 = vsel %vm2453, %v2467, %v2469
  %v2471 = vrot.slane %v2338, 1
  %v2472 = vsel %vm2453, %v2469, %v2471
  %v2473 = vrot.slane %v2339, 1
  %v2474 = vsel %vm2453, %v2471, %v2473
  %v2475 = vrot.slane %v2340, 1
  %v2476 = vsel %vm2453, %v2473, %v2475
  %v2477 = vrot.slane %v2341, 1
  %v2478 = vsel %vm2453, %v2475, %v2477
  %v2479 = vrot.slane %v2342, 1
  %v2480 = vsel %vm2453, %v2477, %v2479
  %v2481 = vrot.slane %v2343, 1
  %v2482 = vsel %vm2453, %v2479, %v2481
  %v2483 = vrot.slane %v2344, 1
  %v2484 = vsel %vm2453, %v2481, %v2483
  %v2485 = vrot.slane %v2345, 1
  %v2486 = vsel %vm2453, %v2483, %v2485
  %v2487 = vrot.slane %v2346, 1
  %v2488 = vsel %vm2453, %v2485, %v2487
  %v2489 = vrot.slane %v2347, 1
  %v2490 = vsel %vm2453, %v2487, %v2489
  %v2491 = vrot.slane %v2348, 1
  %v2492 = vsel %vm2453, %v2489, %v2491
  %v2493 = vrot.slane %v2349, 1
  %v2494 = vsel %vm2453, %v2491, %v2493
  %v2495 = vrot.slane %v2350, 1
  %v2496 = vsel %vm2453, %v2493, %v2495
  %v2497 = vrot.slane %v2351, 1
  %v2498 = vsel %vm2453, %v2495, %v2497
  %v2499 = vrot.slane %v2352, 1
  %v2500 = vsel %vm2453, %v2497, %v2499
  %v2501 = vrot.slane %v2353, 1
  %v2502 = vsel %vm2453, %v2499, %v2501
  %v2503 = vrot.slane %v2354, 1
  %v2504 = vsel %vm2453, %v2501, %v2503
  %v2505 = vrot.slane %v2355, 1
  %v2506 = vsel %vm2453, %v2503, %v2505
  %v2507 = vrot.slane %v2356, 1
  %v2508 = vsel %vm2453, %v2505, %v2507
  %v2509 = vrot.slane %v2357, 1
  %v2510 = vsel %vm2453, %v2507, %v2509
  %v2511 = vrot.slane %v2362, 1
  %v2512 = vrot.slane %v2363, 1
  %v2513 = vsel %vm2453, %v2511, %v2512
  %v2514 = vrot.slane %v2364, 1
  %v2515 = vsel %vm2453, %v2512, %v2514
  %v2516 = vrot.slane %v2365, 1
  %v2517 = vsel %vm2453, %v2514, %v2516
  %v2518 = vrot.slane %v2366, 1
  %v2519 = vsel %vm2453, %v2516, %v2518
  %v2520 = vrot.slane %v2367, 1
  %v2521 = vsel %vm2453, %v2518, %v2520
  %v2522 = vrot.slane %v2368, 1
  %v2523 = vsel %vm2453, %v2520, %v2522
  %v2524 = vrot.slane %v2369, 1
  %v2525 = vsel %vm2453, %v2522, %v2524
  %v2526 = vrot.slane %v2370, 1
  %v2527 = vsel %vm2453, %v2524, %v2526
  %v2528 = vrot.slane %v2371, 1
  %v2529 = vsel %vm2453, %v2526, %v2528
  %v2530 = vrot.slane %v2372, 1
  %v2531 = vsel %vm2453, %v2528, %v2530
  %v2532 = vrot.slane %v2373, 1
  %v2533 = vsel %vm2453, %v2530, %v2532
  %v2534 = vrot.slane %v2374, 1
  %v2535 = vsel %vm2453, %v2532, %v2534
  %v2536 = vrot.slane %v2375, 1
  %v2537 = vsel %vm2453, %v2534, %v2536
  %v2538 = vrot.slane %v2376, 1
  %v2539 = vsel %vm2453, %v2536, %v2538
  %v2540 = vrot.slane %v2377, 1
  %v2541 = vsel %vm2453, %v2538, %v2540
  %v2542 = vrot.slane %v2378, 1
  %v2543 = vsel %vm2453, %v2540, %v2542
  %v2544 = vrot.slane %v2379, 1
  %v2545 = vsel %vm2453, %v2542, %v2544
  %v2546 = vrot.slane %v2380, 1
  %v2547 = vsel %vm2453, %v2544, %v2546
  %v2548 = vrot.slane %v2381, 1
  %v2549 = vsel %vm2453, %v2546, %v2548
  %v2550 = vrot.slane %v2382, 1
  %v2551 = vsel %vm2453, %v2548, %v2550
  %v2552 = vrot.slane %v2383, 1
  %v2553 = vsel %vm2453, %v2550, %v2552
  %v2554 = vrot.slane %v2384, 1
  %v2555 = vsel %vm2453, %v2552, %v2554
  %v2556 = vrot.slane %v2385, 1
  %v2557 = vsel %vm2453, %v2554, %v2556
  %v2558 = vrot.slane %v2386, 1
  %v2559 = vsel %vm2453, %v2556, %v2558
  %v2560 = vrot.slane %v2387, 1
  %v2561 = vsel %vm2453, %v2558, %v2560
  %v2562 = vrot.slane %v2388, 1
  %v2563 = vsel %vm2453, %v2560, %v2562
  %v2564 = vrot.slane %v2389, 1
  %v2565 = vsel %vm2453, %v2562, %v2564
  %v2566 = vrot.slane %v2390, 1
  %v2567 = vsel %vm2453, %v2564, %v2566
  %vm2568 = vcmask 1045504
  %v2569 = vrot.slane %v2329, 2
  %v2570 = vrot.slane %v2330, 2
  %v2571 = vsel %vm2568, %v2569, %v2570
  %v2572 = vrot.slane %v2331, 2
  %v2573 = vsel %vm2568, %v2570, %v2572
  %v2574 = vrot.slane %v2332, 2
  %v2575 = vsel %vm2568, %v2572, %v2574
  %v2576 = vrot.slane %v2333, 2
  %v2577 = vsel %vm2568, %v2574, %v2576
  %v2578 = vrot.slane %v2334, 2
  %v2579 = vsel %vm2568, %v2576, %v2578
  %v2580 = vrot.slane %v2335, 2
  %v2581 = vsel %vm2568, %v2578, %v2580
  %v2582 = vrot.slane %v2336, 2
  %v2583 = vsel %vm2568, %v2580, %v2582
  %v2584 = vrot.slane %v2337, 2
  %v2585 = vsel %vm2568, %v2582, %v2584
  %v2586 = vrot.slane %v2338, 2
  %v2587 = vsel %vm2568, %v2584, %v2586
  %v2588 = vrot.slane %v2339, 2
  %v2589 = vsel %vm2568, %v2586, %v2588
  %v2590 = vrot.slane %v2340, 2
  %v2591 = vsel %vm2568, %v2588, %v2590
  %v2592 = vrot.slane %v2341, 2
  %v2593 = vsel %vm2568, %v2590, %v2592
  %v2594 = vrot.slane %v2342, 2
  %v2595 = vsel %vm2568, %v2592, %v2594
  %v2596 = vrot.slane %v2343, 2
  %v2597 = vsel %vm2568, %v2594, %v2596
  %v2598 = vrot.slane %v2344, 2
  %v2599 = vsel %vm2568, %v2596, %v2598
  %v2600 = vrot.slane %v2345, 2
  %v2601 = vsel %vm2568, %v2598, %v2600
  %v2602 = vrot.slane %v2346, 2
  %v2603 = vsel %vm2568, %v2600, %v2602
  %v2604 = vrot.slane %v2347, 2
  %v2605 = vsel %vm2568, %v2602, %v2604
  %v2606 = vrot.slane %v2348, 2
  %v2607 = vsel %vm2568, %v2604, %v2606
  %v2608 = vrot.slane %v2349, 2
  %v2609 = vsel %vm2568, %v2606, %v2608
  %v2610 = vrot.slane %v2350, 2
  %v2611 = vsel %vm2568, %v2608, %v2610
  %v2612 = vrot.slane %v2351, 2
  %v2613 = vsel %vm2568, %v2610, %v2612
  %v2614 = vrot.slane %v2352, 2
  %v2615 = vsel %vm2568, %v2612, %v2614
  %v2616 = vrot.slane %v2353, 2
  %v2617 = vsel %vm2568, %v2614, %v2616
  %v2618 = vrot.slane %v2354, 2
  %v2619 = vsel %vm2568, %v2616, %v2618
  %v2620 = vrot.slane %v2355, 2
  %v2621 = vsel %vm2568, %v2618, %v2620
  %v2622 = vrot.slane %v2356, 2
  %v2623 = vsel %vm2568, %v2620, %v2622
  %v2624 = vrot.slane %v2357, 2
  %v2625 = vsel %vm2568, %v2622, %v2624
  %v2626 = vrot.slane %v2362, 2
  %v2627 = vrot.slane %v2363, 2
  %v2628 = vsel %vm2568, %v2626, %v2627
  %v2629 = vrot.slane %v2364, 2
  %v2630 = vsel %vm2568, %v2627, %v2629
  %v2631 = vrot.slane %v2365, 2
  %v2632 = vsel %vm2568, %v2629, %v2631
  %v2633 = vrot.slane %v2366, 2
  %v2634 = vsel %vm2568, %v2631, %v2633
  %v2635 = vrot.slane %v2367, 2
  %v2636 = vsel %vm2568, %v2633, %v2635
  %v2637 = vrot.slane %v2368, 2
  %v2638 = vsel %vm2568, %v2635, %v2637
  %v2639 = vrot.slane %v2369, 2
  %v2640 = vsel %vm2568, %v2637, %v2639
  %v2641 = vrot.slane %v2370, 2
  %v2642 = vsel %vm2568, %v2639, %v2641
  %v2643 = vrot.slane %v2371, 2
  %v2644 = vsel %vm2568, %v2641, %v2643
  %v2645 = vrot.slane %v2372, 2
  %v2646 = vsel %vm2568, %v2643, %v2645
  %v2647 = vrot.slane %v2373, 2
  %v2648 = vsel %vm2568, %v2645, %v2647
  %v2649 = vrot.slane %v2374, 2
  %v2650 = vsel %vm2568, %v2647, %v2649
  %v2651 = vrot.slane %v2375, 2
  %v2652 = vsel %vm2568, %v2649, %v2651
  %v2653 = vrot.slane %v2376, 2
  %v2654 = vsel %vm2568, %v2651, %v2653
  %v2655 = vrot.slane %v2377, 2
  %v2656 = vsel %vm2568, %v2653, %v2655
  %v2657 = vrot.slane %v2378, 2
  %v2658 = vsel %vm2568, %v2655, %v2657
  %v2659 = vrot.slane %v2379, 2
  %v2660 = vsel %vm2568, %v2657, %v2659
  %v2661 = vrot.slane %v2380, 2
  %v2662 = vsel %vm2568, %v2659, %v2661
  %v2663 = vrot.slane %v2381, 2
  %v2664 = vsel %vm2568, %v2661, %v2663
  %v2665 = vrot.slane %v2382, 2
  %v2666 = vsel %vm2568, %v2663, %v2665
  %v2667 = vrot.slane %v2383, 2
  %v2668 = vsel %vm2568, %v2665, %v2667
  %v2669 = vrot.slane %v2384, 2
  %v2670 = vsel %vm2568, %v2667, %v2669
  %v2671 = vrot.slane %v2385, 2
  %v2672 = vsel %vm2568, %v2669, %v2671
  %v2673 = vrot.slane %v2386, 2
  %v2674 = vsel %vm2568, %v2671, %v2673
  %v2675 = vrot.slane %v2387, 2
  %v2676 = vsel %vm2568, %v2673, %v2675
  %v2677 = vrot.slane %v2388, 2
  %v2678 = vsel %vm2568, %v2675, %v2677
  %v2679 = vrot.slane %v2389, 2
  %v2680 = vsel %vm2568, %v2677, %v2679
  %v2681 = vrot.slane %v2390, 2
  %v2682 = vsel %vm2568, %v2679, %v2681
  %v2687 = vrot.slane %v2358, 1
  %v2688 = vsel %vm2453, %v2509, %v2687
  %v2689 = vrot.slane %v2359, 1
  %v2690 = vsel %vm2453, %v2687, %v2689
  %v2691 = vrot.slane %v2391, 1
  %v2692 = vsel %vm2453, %v2566, %v2691
  %v2693 = vrot.slane %v2392, 1
  %v2694 = vsel %vm2453, %v2691, %v2693
  %v2751 = vrot.slane %v2358, 2
  %v2752 = vsel %vm2568, %v2624, %v2751
  %v2753 = vrot.slane %v2359, 2
  %v2754 = vsel %vm2568, %v2751, %v2753
  %v2755 = vrot.slane %v2391, 2
  %v2756 = vsel %vm2568, %v2681, %v2755
  %v2757 = vrot.slane %v2392, 2
  %v2758 = vsel %vm2568, %v2755, %v2757
  %v2763 = vrot.slane %v2360, 1
  %v2764 = vsel %vm2453, %v2689, %v2763
  %v2765 = vrot.slane %v2361, 1
  %v2766 = vsel %vm2453, %v2763, %v2765
  %v2767 = vrot.slane %v2393, 1
  %v2768 = vsel %vm2453, %v2693, %v2767
  %v2769 = vrot.slane %v2394, 1
  %v2770 = vsel %vm2453, %v2767, %v2769
  %v2771 = vrot.slane %v2360, 2
  %v2772 = vsel %vm2568, %v2753, %v2771
  %v2773 = vrot.slane %v2361, 2
  %v2774 = vsel %vm2568, %v2771, %v2773
  %v2775 = vrot.slane %v2393, 2
  %v2776 = vsel %vm2568, %v2757, %v2775
  %v2777 = vrot.slane %v2394, 2
  %v2778 = vsel %vm2568, %v2775, %v2777
  %2779 = vrot.lane.b32.xlu0 %v2456, 32
  %v2780 = vpop.permute.xlu0 %2779
  %2781 = vrot.lane.b32.xlu0 %v2458, 32
  %v2782 = vpop.permute.xlu0 %2781
  %2783 = vrot.lane.b32.xlu0 %v2460, 32
  %v2784 = vpop.permute.xlu0 %2783
  %2785 = vrot.lane.b32.xlu0 %v2462, 32
  %v2786 = vpop.permute.xlu0 %2785
  %2787 = vrot.lane.b32.xlu0 %v2464, 32
  %v2788 = vpop.permute.xlu0 %2787
  %2789 = vrot.lane.b32.xlu0 %v2466, 32
  %v2790 = vpop.permute.xlu0 %2789
  %2791 = vrot.lane.b32.xlu0 %v2468, 32
  %v2792 = vpop.permute.xlu0 %2791
  %2793 = vrot.lane.b32.xlu0 %v2470, 32
  %v2794 = vpop.permute.xlu0 %2793
  %2795 = vrot.lane.b32.xlu0 %v2472, 32
  %v2796 = vpop.permute.xlu0 %2795
  %2797 = vrot.lane.b32.xlu0 %v2474, 32
  %v2798 = vpop.permute.xlu0 %2797
  %2799 = vrot.lane.b32.xlu0 %v2476, 32
  %v2800 = vpop.permute.xlu0 %2799
  %2801 = vrot.lane.b32.xlu0 %v2478, 32
  %v2802 = vpop.permute.xlu0 %2801
  %2803 = vrot.lane.b32.xlu0 %v2480, 32
  %v2804 = vpop.permute.xlu0 %2803
  %2805 = vrot.lane.b32.xlu0 %v2482, 32
  %v2806 = vpop.permute.xlu0 %2805
  %2807 = vrot.lane.b32.xlu0 %v2484, 32
  %v2808 = vpop.permute.xlu0 %2807
  %2809 = vrot.lane.b32.xlu0 %v2486, 32
  %v2810 = vpop.permute.xlu0 %2809
  %2811 = vrot.lane.b32.xlu0 %v2488, 32
  %v2812 = vpop.permute.xlu0 %2811
  %2813 = vrot.lane.b32.xlu0 %v2490, 32
  %v2814 = vpop.permute.xlu0 %2813
  %2815 = vrot.lane.b32.xlu0 %v2492, 32
  %v2816 = vpop.permute.xlu0 %2815
  %2817 = vrot.lane.b32.xlu0 %v2494, 32
  %v2818 = vpop.permute.xlu0 %2817
  %2819 = vrot.lane.b32.xlu0 %v2496, 32
  %v2820 = vpop.permute.xlu0 %2819
  %2821 = vrot.lane.b32.xlu0 %v2498, 32
  %v2822 = vpop.permute.xlu0 %2821
  %2823 = vrot.lane.b32.xlu0 %v2500, 32
  %v2824 = vpop.permute.xlu0 %2823
  %2825 = vrot.lane.b32.xlu0 %v2502, 32
  %v2826 = vpop.permute.xlu0 %2825
  %2827 = vrot.lane.b32.xlu0 %v2504, 32
  %v2828 = vpop.permute.xlu0 %2827
  %2829 = vrot.lane.b32.xlu0 %v2506, 32
  %v2830 = vpop.permute.xlu0 %2829
  %2831 = vrot.lane.b32.xlu0 %v2508, 32
  %v2832 = vpop.permute.xlu0 %2831
  %2833 = vrot.lane.b32.xlu0 %v2510, 32
  %v2834 = vpop.permute.xlu0 %2833
  %2835 = vrot.lane.b32.xlu0 %v2513, 32
  %v2836 = vpop.permute.xlu0 %2835
  %2837 = vrot.lane.b32.xlu0 %v2515, 32
  %v2838 = vpop.permute.xlu0 %2837
  %2839 = vrot.lane.b32.xlu0 %v2517, 32
  %v2840 = vpop.permute.xlu0 %2839
  %2841 = vrot.lane.b32.xlu0 %v2519, 32
  %v2842 = vpop.permute.xlu0 %2841
  %2843 = vrot.lane.b32.xlu0 %v2521, 32
  %v2844 = vpop.permute.xlu0 %2843
  %2845 = vrot.lane.b32.xlu0 %v2523, 32
  %v2846 = vpop.permute.xlu0 %2845
  %2847 = vrot.lane.b32.xlu0 %v2525, 32
  %v2848 = vpop.permute.xlu0 %2847
  %2849 = vrot.lane.b32.xlu0 %v2527, 32
  %v2850 = vpop.permute.xlu0 %2849
  %2851 = vrot.lane.b32.xlu0 %v2529, 32
  %v2852 = vpop.permute.xlu0 %2851
  %2853 = vrot.lane.b32.xlu0 %v2531, 32
  %v2854 = vpop.permute.xlu0 %2853
  %2855 = vrot.lane.b32.xlu0 %v2533, 32
  %v2856 = vpop.permute.xlu0 %2855
  %2857 = vrot.lane.b32.xlu0 %v2535, 32
  %v2858 = vpop.permute.xlu0 %2857
  %2859 = vrot.lane.b32.xlu0 %v2537, 32
  %v2860 = vpop.permute.xlu0 %2859
  %2861 = vrot.lane.b32.xlu0 %v2539, 32
  %v2862 = vpop.permute.xlu0 %2861
  %2863 = vrot.lane.b32.xlu0 %v2541, 32
  %v2864 = vpop.permute.xlu0 %2863
  %2865 = vrot.lane.b32.xlu0 %v2543, 32
  %v2866 = vpop.permute.xlu0 %2865
  %2867 = vrot.lane.b32.xlu0 %v2545, 32
  %v2868 = vpop.permute.xlu0 %2867
  %2869 = vrot.lane.b32.xlu0 %v2547, 32
  %v2870 = vpop.permute.xlu0 %2869
  %2871 = vrot.lane.b32.xlu0 %v2549, 32
  %v2872 = vpop.permute.xlu0 %2871
  %2873 = vrot.lane.b32.xlu0 %v2551, 32
  %v2874 = vpop.permute.xlu0 %2873
  %2875 = vrot.lane.b32.xlu0 %v2553, 32
  %v2876 = vpop.permute.xlu0 %2875
  %2877 = vrot.lane.b32.xlu0 %v2555, 32
  %v2878 = vpop.permute.xlu0 %2877
  %2879 = vrot.lane.b32.xlu0 %v2557, 32
  %v2880 = vpop.permute.xlu0 %2879
  %2881 = vrot.lane.b32.xlu0 %v2559, 32
  %v2882 = vpop.permute.xlu0 %2881
  %2883 = vrot.lane.b32.xlu0 %v2561, 32
  %v2884 = vpop.permute.xlu0 %2883
  %2885 = vrot.lane.b32.xlu0 %v2563, 32
  %v2886 = vpop.permute.xlu0 %2885
  %2887 = vrot.lane.b32.xlu0 %v2565, 32
  %v2888 = vpop.permute.xlu0 %2887
  %2889 = vrot.lane.b32.xlu0 %v2567, 32
  %v2890 = vpop.permute.xlu0 %2889
  %2947 = vrot.lane.b32.xlu0 %v2571, 64
  %v2948 = vpop.permute.xlu0 %2947
  %2949 = vrot.lane.b32.xlu0 %v2573, 64
  %v2950 = vpop.permute.xlu0 %2949
  %2951 = vrot.lane.b32.xlu0 %v2575, 64
  %v2952 = vpop.permute.xlu0 %2951
  %2953 = vrot.lane.b32.xlu0 %v2577, 64
  %v2954 = vpop.permute.xlu0 %2953
  %2955 = vrot.lane.b32.xlu0 %v2579, 64
  %v2956 = vpop.permute.xlu0 %2955
  %2957 = vrot.lane.b32.xlu0 %v2581, 64
  %v2958 = vpop.permute.xlu0 %2957
  %2959 = vrot.lane.b32.xlu0 %v2583, 64
  %v2960 = vpop.permute.xlu0 %2959
  %2961 = vrot.lane.b32.xlu0 %v2585, 64
  %v2962 = vpop.permute.xlu0 %2961
  %2963 = vrot.lane.b32.xlu0 %v2587, 64
  %v2964 = vpop.permute.xlu0 %2963
  %2965 = vrot.lane.b32.xlu0 %v2589, 64
  %v2966 = vpop.permute.xlu0 %2965
  %2967 = vrot.lane.b32.xlu0 %v2591, 64
  %v2968 = vpop.permute.xlu0 %2967
  %2969 = vrot.lane.b32.xlu0 %v2593, 64
  %v2970 = vpop.permute.xlu0 %2969
  %2971 = vrot.lane.b32.xlu0 %v2595, 64
  %v2972 = vpop.permute.xlu0 %2971
  %2973 = vrot.lane.b32.xlu0 %v2597, 64
  %v2974 = vpop.permute.xlu0 %2973
  %2975 = vrot.lane.b32.xlu0 %v2599, 64
  %v2976 = vpop.permute.xlu0 %2975
  %2977 = vrot.lane.b32.xlu0 %v2601, 64
  %v2978 = vpop.permute.xlu0 %2977
  %2979 = vrot.lane.b32.xlu0 %v2603, 64
  %v2980 = vpop.permute.xlu0 %2979
  %2981 = vrot.lane.b32.xlu0 %v2605, 64
  %v2982 = vpop.permute.xlu0 %2981
  %2983 = vrot.lane.b32.xlu0 %v2607, 64
  %v2984 = vpop.permute.xlu0 %2983
  %2985 = vrot.lane.b32.xlu0 %v2609, 64
  %v2986 = vpop.permute.xlu0 %2985
  %2987 = vrot.lane.b32.xlu0 %v2611, 64
  %v2988 = vpop.permute.xlu0 %2987
  %2989 = vrot.lane.b32.xlu0 %v2613, 64
  %v2990 = vpop.permute.xlu0 %2989
  %2991 = vrot.lane.b32.xlu0 %v2615, 64
  %v2992 = vpop.permute.xlu0 %2991
  %2993 = vrot.lane.b32.xlu0 %v2617, 64
  %v2994 = vpop.permute.xlu0 %2993
  %2995 = vrot.lane.b32.xlu0 %v2619, 64
  %v2996 = vpop.permute.xlu0 %2995
  %2997 = vrot.lane.b32.xlu0 %v2621, 64
  %v2998 = vpop.permute.xlu0 %2997
  %2999 = vrot.lane.b32.xlu0 %v2623, 64
  %v3000 = vpop.permute.xlu0 %2999
  %3001 = vrot.lane.b32.xlu0 %v2625, 64
  %v3002 = vpop.permute.xlu0 %3001
  %3003 = vrot.lane.b32.xlu0 %v2628, 64
  %v3004 = vpop.permute.xlu0 %3003
  %3005 = vrot.lane.b32.xlu0 %v2630, 64
  %v3006 = vpop.permute.xlu0 %3005
  %3007 = vrot.lane.b32.xlu0 %v2632, 64
  %v3008 = vpop.permute.xlu0 %3007
  %3009 = vrot.lane.b32.xlu0 %v2634, 64
  %v3010 = vpop.permute.xlu0 %3009
  %3011 = vrot.lane.b32.xlu0 %v2636, 64
  %v3012 = vpop.permute.xlu0 %3011
  %3013 = vrot.lane.b32.xlu0 %v2638, 64
  %v3014 = vpop.permute.xlu0 %3013
  %3015 = vrot.lane.b32.xlu0 %v2640, 64
  %v3016 = vpop.permute.xlu0 %3015
  %3017 = vrot.lane.b32.xlu0 %v2642, 64
  %v3018 = vpop.permute.xlu0 %3017
  %3019 = vrot.lane.b32.xlu0 %v2644, 64
  %v3020 = vpop.permute.xlu0 %3019
  %3021 = vrot.lane.b32.xlu0 %v2646, 64
  %v3022 = vpop.permute.xlu0 %3021
  %3023 = vrot.lane.b32.xlu0 %v2648, 64
  %v3024 = vpop.permute.xlu0 %3023
  %3025 = vrot.lane.b32.xlu0 %v2650, 64
  %v3026 = vpop.permute.xlu0 %3025
  %3027 = vrot.lane.b32.xlu0 %v2652, 64
  %v3028 = vpop.permute.xlu0 %3027
  %3029 = vrot.lane.b32.xlu0 %v2654, 64
  %v3030 = vpop.permute.xlu0 %3029
  %3031 = vrot.lane.b32.xlu0 %v2656, 64
  %v3032 = vpop.permute.xlu0 %3031
  %3033 = vrot.lane.b32.xlu0 %v2658, 64
  %v3034 = vpop.permute.xlu0 %3033
  %3035 = vrot.lane.b32.xlu0 %v2660, 64
  %v3036 = vpop.permute.xlu0 %3035
  %3037 = vrot.lane.b32.xlu0 %v2662, 64
  %v3038 = vpop.permute.xlu0 %3037
  %3039 = vrot.lane.b32.xlu0 %v2664, 64
  %v3040 = vpop.permute.xlu0 %3039
  %3041 = vrot.lane.b32.xlu0 %v2666, 64
  %v3042 = vpop.permute.xlu0 %3041
  %3043 = vrot.lane.b32.xlu0 %v2668, 64
  %v3044 = vpop.permute.xlu0 %3043
  %3045 = vrot.lane.b32.xlu0 %v2670, 64
  %v3046 = vpop.permute.xlu0 %3045
  %3047 = vrot.lane.b32.xlu0 %v2672, 64
  %v3048 = vpop.permute.xlu0 %3047
  %3049 = vrot.lane.b32.xlu0 %v2674, 64
  %v3050 = vpop.permute.xlu0 %3049
  %3051 = vrot.lane.b32.xlu0 %v2676, 64
  %v3052 = vpop.permute.xlu0 %3051
  %3053 = vrot.lane.b32.xlu0 %v2678, 64
  %v3054 = vpop.permute.xlu0 %3053
  %3055 = vrot.lane.b32.xlu0 %v2680, 64
  %v3056 = vpop.permute.xlu0 %3055
  %3057 = vrot.lane.b32.xlu0 %v2682, 64
  %v3058 = vpop.permute.xlu0 %3057
  %3115 = vrot.lane.b32.xlu0 %v2331, 96
  %v3116 = vpop.permute.xlu0 %3115
  %3117 = vrot.lane.b32.xlu0 %v2332, 96
  %v3118 = vpop.permute.xlu0 %3117
  %3119 = vrot.lane.b32.xlu0 %v2333, 96
  %v3120 = vpop.permute.xlu0 %3119
  %3121 = vrot.lane.b32.xlu0 %v2334, 96
  %v3122 = vpop.permute.xlu0 %3121
  %3123 = vrot.lane.b32.xlu0 %v2335, 96
  %v3124 = vpop.permute.xlu0 %3123
  %3125 = vrot.lane.b32.xlu0 %v2336, 96
  %v3126 = vpop.permute.xlu0 %3125
  %3127 = vrot.lane.b32.xlu0 %v2337, 96
  %v3128 = vpop.permute.xlu0 %3127
  %3129 = vrot.lane.b32.xlu0 %v2338, 96
  %v3130 = vpop.permute.xlu0 %3129
  %3131 = vrot.lane.b32.xlu0 %v2339, 96
  %v3132 = vpop.permute.xlu0 %3131
  %3133 = vrot.lane.b32.xlu0 %v2340, 96
  %v3134 = vpop.permute.xlu0 %3133
  %3135 = vrot.lane.b32.xlu0 %v2341, 96
  %v3136 = vpop.permute.xlu0 %3135
  %3137 = vrot.lane.b32.xlu0 %v2342, 96
  %v3138 = vpop.permute.xlu0 %3137
  %3139 = vrot.lane.b32.xlu0 %v2343, 96
  %v3140 = vpop.permute.xlu0 %3139
  %3141 = vrot.lane.b32.xlu0 %v2344, 96
  %v3142 = vpop.permute.xlu0 %3141
  %3143 = vrot.lane.b32.xlu0 %v2345, 96
  %v3144 = vpop.permute.xlu0 %3143
  %3145 = vrot.lane.b32.xlu0 %v2346, 96
  %v3146 = vpop.permute.xlu0 %3145
  %3147 = vrot.lane.b32.xlu0 %v2347, 96
  %v3148 = vpop.permute.xlu0 %3147
  %3149 = vrot.lane.b32.xlu0 %v2348, 96
  %v3150 = vpop.permute.xlu0 %3149
  %3151 = vrot.lane.b32.xlu0 %v2349, 96
  %v3152 = vpop.permute.xlu0 %3151
  %3153 = vrot.lane.b32.xlu0 %v2350, 96
  %v3154 = vpop.permute.xlu0 %3153
  %3155 = vrot.lane.b32.xlu0 %v2351, 96
  %v3156 = vpop.permute.xlu0 %3155
  %3157 = vrot.lane.b32.xlu0 %v2352, 96
  %v3158 = vpop.permute.xlu0 %3157
  %3159 = vrot.lane.b32.xlu0 %v2353, 96
  %v3160 = vpop.permute.xlu0 %3159
  %3161 = vrot.lane.b32.xlu0 %v2354, 96
  %v3162 = vpop.permute.xlu0 %3161
  %3163 = vrot.lane.b32.xlu0 %v2355, 96
  %v3164 = vpop.permute.xlu0 %3163
  %3165 = vrot.lane.b32.xlu0 %v2356, 96
  %v3166 = vpop.permute.xlu0 %3165
  %3167 = vrot.lane.b32.xlu0 %v2357, 96
  %v3168 = vpop.permute.xlu0 %3167
  %3169 = vrot.lane.b32.xlu0 %v2358, 96
  %v3170 = vpop.permute.xlu0 %3169
  %3171 = vrot.lane.b32.xlu0 %v2364, 96
  %v3172 = vpop.permute.xlu0 %3171
  %3173 = vrot.lane.b32.xlu0 %v2365, 96
  %v3174 = vpop.permute.xlu0 %3173
  %3175 = vrot.lane.b32.xlu0 %v2366, 96
  %v3176 = vpop.permute.xlu0 %3175
  %3177 = vrot.lane.b32.xlu0 %v2367, 96
  %v3178 = vpop.permute.xlu0 %3177
  %3179 = vrot.lane.b32.xlu0 %v2368, 96
  %v3180 = vpop.permute.xlu0 %3179
  %3181 = vrot.lane.b32.xlu0 %v2369, 96
  %v3182 = vpop.permute.xlu0 %3181
  %3183 = vrot.lane.b32.xlu0 %v2370, 96
  %v3184 = vpop.permute.xlu0 %3183
  %3185 = vrot.lane.b32.xlu0 %v2371, 96
  %v3186 = vpop.permute.xlu0 %3185
  %3187 = vrot.lane.b32.xlu0 %v2372, 96
  %v3188 = vpop.permute.xlu0 %3187
  %3189 = vrot.lane.b32.xlu0 %v2373, 96
  %v3190 = vpop.permute.xlu0 %3189
  %3191 = vrot.lane.b32.xlu0 %v2374, 96
  %v3192 = vpop.permute.xlu0 %3191
  %3193 = vrot.lane.b32.xlu0 %v2375, 96
  %v3194 = vpop.permute.xlu0 %3193
  %3195 = vrot.lane.b32.xlu0 %v2376, 96
  %v3196 = vpop.permute.xlu0 %3195
  %3197 = vrot.lane.b32.xlu0 %v2377, 96
  %v3198 = vpop.permute.xlu0 %3197
  %3199 = vrot.lane.b32.xlu0 %v2378, 96
  %v3200 = vpop.permute.xlu0 %3199
  %3201 = vrot.lane.b32.xlu0 %v2379, 96
  %v3202 = vpop.permute.xlu0 %3201
  %3203 = vrot.lane.b32.xlu0 %v2380, 96
  %v3204 = vpop.permute.xlu0 %3203
  %3205 = vrot.lane.b32.xlu0 %v2381, 96
  %v3206 = vpop.permute.xlu0 %3205
  %3207 = vrot.lane.b32.xlu0 %v2382, 96
  %v3208 = vpop.permute.xlu0 %3207
  %3209 = vrot.lane.b32.xlu0 %v2383, 96
  %v3210 = vpop.permute.xlu0 %3209
  %3211 = vrot.lane.b32.xlu0 %v2384, 96
  %v3212 = vpop.permute.xlu0 %3211
  %3213 = vrot.lane.b32.xlu0 %v2385, 96
  %v3214 = vpop.permute.xlu0 %3213
  %3215 = vrot.lane.b32.xlu0 %v2386, 96
  %v3216 = vpop.permute.xlu0 %3215
  %3217 = vrot.lane.b32.xlu0 %v2387, 96
  %v3218 = vpop.permute.xlu0 %3217
  %3219 = vrot.lane.b32.xlu0 %v2388, 96
  %v3220 = vpop.permute.xlu0 %3219
  %3221 = vrot.lane.b32.xlu0 %v2389, 96
  %v3222 = vpop.permute.xlu0 %3221
  %3223 = vrot.lane.b32.xlu0 %v2390, 96
  %v3224 = vpop.permute.xlu0 %3223
  %3225 = vrot.lane.b32.xlu0 %v2391, 96
  %v3226 = vpop.permute.xlu0 %3225
  %3283 = vrot.lane.b32.xlu0 %v2575, 32
  %v3284 = vpop.permute.xlu0 %3283
  %3285 = vrot.lane.b32.xlu0 %v2577, 32
  %v3286 = vpop.permute.xlu0 %3285
  %3287 = vrot.lane.b32.xlu0 %v2579, 32
  %v3288 = vpop.permute.xlu0 %3287
  %3289 = vrot.lane.b32.xlu0 %v2581, 32
  %v3290 = vpop.permute.xlu0 %3289
  %3291 = vrot.lane.b32.xlu0 %v2583, 32
  %v3292 = vpop.permute.xlu0 %3291
  %3293 = vrot.lane.b32.xlu0 %v2585, 32
  %v3294 = vpop.permute.xlu0 %3293
  %3295 = vrot.lane.b32.xlu0 %v2587, 32
  %v3296 = vpop.permute.xlu0 %3295
  %3297 = vrot.lane.b32.xlu0 %v2589, 32
  %v3298 = vpop.permute.xlu0 %3297
  %3299 = vrot.lane.b32.xlu0 %v2591, 32
  %v3300 = vpop.permute.xlu0 %3299
  %3301 = vrot.lane.b32.xlu0 %v2593, 32
  %v3302 = vpop.permute.xlu0 %3301
  %3303 = vrot.lane.b32.xlu0 %v2595, 32
  %v3304 = vpop.permute.xlu0 %3303
  %3305 = vrot.lane.b32.xlu0 %v2597, 32
  %v3306 = vpop.permute.xlu0 %3305
  %3307 = vrot.lane.b32.xlu0 %v2599, 32
  %v3308 = vpop.permute.xlu0 %3307
  %3309 = vrot.lane.b32.xlu0 %v2601, 32
  %v3310 = vpop.permute.xlu0 %3309
  %3311 = vrot.lane.b32.xlu0 %v2603, 32
  %v3312 = vpop.permute.xlu0 %3311
  %3313 = vrot.lane.b32.xlu0 %v2605, 32
  %v3314 = vpop.permute.xlu0 %3313
  %3315 = vrot.lane.b32.xlu0 %v2607, 32
  %v3316 = vpop.permute.xlu0 %3315
  %3317 = vrot.lane.b32.xlu0 %v2609, 32
  %v3318 = vpop.permute.xlu0 %3317
  %3319 = vrot.lane.b32.xlu0 %v2611, 32
  %v3320 = vpop.permute.xlu0 %3319
  %3321 = vrot.lane.b32.xlu0 %v2613, 32
  %v3322 = vpop.permute.xlu0 %3321
  %3323 = vrot.lane.b32.xlu0 %v2615, 32
  %v3324 = vpop.permute.xlu0 %3323
  %3325 = vrot.lane.b32.xlu0 %v2617, 32
  %v3326 = vpop.permute.xlu0 %3325
  %3327 = vrot.lane.b32.xlu0 %v2619, 32
  %v3328 = vpop.permute.xlu0 %3327
  %3329 = vrot.lane.b32.xlu0 %v2621, 32
  %v3330 = vpop.permute.xlu0 %3329
  %3331 = vrot.lane.b32.xlu0 %v2623, 32
  %v3332 = vpop.permute.xlu0 %3331
  %3333 = vrot.lane.b32.xlu0 %v2625, 32
  %v3334 = vpop.permute.xlu0 %3333
  %3335 = vrot.lane.b32.xlu0 %v2752, 32
  %v3336 = vpop.permute.xlu0 %3335
  %3337 = vrot.lane.b32.xlu0 %v2754, 32
  %v3338 = vpop.permute.xlu0 %3337
  %3339 = vrot.lane.b32.xlu0 %v2632, 32
  %v3340 = vpop.permute.xlu0 %3339
  %3341 = vrot.lane.b32.xlu0 %v2634, 32
  %v3342 = vpop.permute.xlu0 %3341
  %3343 = vrot.lane.b32.xlu0 %v2636, 32
  %v3344 = vpop.permute.xlu0 %3343
  %3345 = vrot.lane.b32.xlu0 %v2638, 32
  %v3346 = vpop.permute.xlu0 %3345
  %3347 = vrot.lane.b32.xlu0 %v2640, 32
  %v3348 = vpop.permute.xlu0 %3347
  %3349 = vrot.lane.b32.xlu0 %v2642, 32
  %v3350 = vpop.permute.xlu0 %3349
  %3351 = vrot.lane.b32.xlu0 %v2644, 32
  %v3352 = vpop.permute.xlu0 %3351
  %3353 = vrot.lane.b32.xlu0 %v2646, 32
  %v3354 = vpop.permute.xlu0 %3353
  %3355 = vrot.lane.b32.xlu0 %v2648, 32
  %v3356 = vpop.permute.xlu0 %3355
  %3357 = vrot.lane.b32.xlu0 %v2650, 32
  %v3358 = vpop.permute.xlu0 %3357
  %3359 = vrot.lane.b32.xlu0 %v2652, 32
  %v3360 = vpop.permute.xlu0 %3359
  %3361 = vrot.lane.b32.xlu0 %v2654, 32
  %v3362 = vpop.permute.xlu0 %3361
  %3363 = vrot.lane.b32.xlu0 %v2656, 32
  %v3364 = vpop.permute.xlu0 %3363
  %3365 = vrot.lane.b32.xlu0 %v2658, 32
  %v3366 = vpop.permute.xlu0 %3365
  %3367 = vrot.lane.b32.xlu0 %v2660, 32
  %v3368 = vpop.permute.xlu0 %3367
  %3369 = vrot.lane.b32.xlu0 %v2662, 32
  %v3370 = vpop.permute.xlu0 %3369
  %3371 = vrot.lane.b32.xlu0 %v2664, 32
  %v3372 = vpop.permute.xlu0 %3371
  %3373 = vrot.lane.b32.xlu0 %v2666, 32
  %v3374 = vpop.permute.xlu0 %3373
  %3375 = vrot.lane.b32.xlu0 %v2668, 32
  %v3376 = vpop.permute.xlu0 %3375
  %3377 = vrot.lane.b32.xlu0 %v2670, 32
  %v3378 = vpop.permute.xlu0 %3377
  %3379 = vrot.lane.b32.xlu0 %v2672, 32
  %v3380 = vpop.permute.xlu0 %3379
  %3381 = vrot.lane.b32.xlu0 %v2674, 32
  %v3382 = vpop.permute.xlu0 %3381
  %3383 = vrot.lane.b32.xlu0 %v2676, 32
  %v3384 = vpop.permute.xlu0 %3383
  %3385 = vrot.lane.b32.xlu0 %v2678, 32
  %v3386 = vpop.permute.xlu0 %3385
  %3387 = vrot.lane.b32.xlu0 %v2680, 32
  %v3388 = vpop.permute.xlu0 %3387
  %3389 = vrot.lane.b32.xlu0 %v2682, 32
  %v3390 = vpop.permute.xlu0 %3389
  %3391 = vrot.lane.b32.xlu0 %v2756, 32
  %v3392 = vpop.permute.xlu0 %3391
  %3393 = vrot.lane.b32.xlu0 %v2758, 32
  %v3394 = vpop.permute.xlu0 %3393
  %3451 = vrot.lane.b32.xlu0 %v2333, 64
  %v3452 = vpop.permute.xlu0 %3451
  %3453 = vrot.lane.b32.xlu0 %v2334, 64
  %v3454 = vpop.permute.xlu0 %3453
  %3455 = vrot.lane.b32.xlu0 %v2335, 64
  %v3456 = vpop.permute.xlu0 %3455
  %3457 = vrot.lane.b32.xlu0 %v2336, 64
  %v3458 = vpop.permute.xlu0 %3457
  %3459 = vrot.lane.b32.xlu0 %v2337, 64
  %v3460 = vpop.permute.xlu0 %3459
  %3461 = vrot.lane.b32.xlu0 %v2338, 64
  %v3462 = vpop.permute.xlu0 %3461
  %3463 = vrot.lane.b32.xlu0 %v2339, 64
  %v3464 = vpop.permute.xlu0 %3463
  %3465 = vrot.lane.b32.xlu0 %v2340, 64
  %v3466 = vpop.permute.xlu0 %3465
  %3467 = vrot.lane.b32.xlu0 %v2341, 64
  %v3468 = vpop.permute.xlu0 %3467
  %3469 = vrot.lane.b32.xlu0 %v2342, 64
  %v3470 = vpop.permute.xlu0 %3469
  %3471 = vrot.lane.b32.xlu0 %v2343, 64
  %v3472 = vpop.permute.xlu0 %3471
  %3473 = vrot.lane.b32.xlu0 %v2344, 64
  %v3474 = vpop.permute.xlu0 %3473
  %3475 = vrot.lane.b32.xlu0 %v2345, 64
  %v3476 = vpop.permute.xlu0 %3475
  %3477 = vrot.lane.b32.xlu0 %v2346, 64
  %v3478 = vpop.permute.xlu0 %3477
  %3479 = vrot.lane.b32.xlu0 %v2347, 64
  %v3480 = vpop.permute.xlu0 %3479
  %3481 = vrot.lane.b32.xlu0 %v2348, 64
  %v3482 = vpop.permute.xlu0 %3481
  %3483 = vrot.lane.b32.xlu0 %v2349, 64
  %v3484 = vpop.permute.xlu0 %3483
  %3485 = vrot.lane.b32.xlu0 %v2350, 64
  %v3486 = vpop.permute.xlu0 %3485
  %3487 = vrot.lane.b32.xlu0 %v2351, 64
  %v3488 = vpop.permute.xlu0 %3487
  %3489 = vrot.lane.b32.xlu0 %v2352, 64
  %v3490 = vpop.permute.xlu0 %3489
  %3491 = vrot.lane.b32.xlu0 %v2353, 64
  %v3492 = vpop.permute.xlu0 %3491
  %3493 = vrot.lane.b32.xlu0 %v2354, 64
  %v3494 = vpop.permute.xlu0 %3493
  %3495 = vrot.lane.b32.xlu0 %v2355, 64
  %v3496 = vpop.permute.xlu0 %3495
  %3497 = vrot.lane.b32.xlu0 %v2356, 64
  %v3498 = vpop.permute.xlu0 %3497
  %3499 = vrot.lane.b32.xlu0 %v2357, 64
  %v3500 = vpop.permute.xlu0 %3499
  %3501 = vrot.lane.b32.xlu0 %v2358, 64
  %v3502 = vpop.permute.xlu0 %3501
  %3503 = vrot.lane.b32.xlu0 %v2359, 64
  %v3504 = vpop.permute.xlu0 %3503
  %3505 = vrot.lane.b32.xlu0 %v2360, 64
  %v3506 = vpop.permute.xlu0 %3505
  %3507 = vrot.lane.b32.xlu0 %v2366, 64
  %v3508 = vpop.permute.xlu0 %3507
  %3509 = vrot.lane.b32.xlu0 %v2367, 64
  %v3510 = vpop.permute.xlu0 %3509
  %3511 = vrot.lane.b32.xlu0 %v2368, 64
  %v3512 = vpop.permute.xlu0 %3511
  %3513 = vrot.lane.b32.xlu0 %v2369, 64
  %v3514 = vpop.permute.xlu0 %3513
  %3515 = vrot.lane.b32.xlu0 %v2370, 64
  %v3516 = vpop.permute.xlu0 %3515
  %3517 = vrot.lane.b32.xlu0 %v2371, 64
  %v3518 = vpop.permute.xlu0 %3517
  %3519 = vrot.lane.b32.xlu0 %v2372, 64
  %v3520 = vpop.permute.xlu0 %3519
  %3521 = vrot.lane.b32.xlu0 %v2373, 64
  %v3522 = vpop.permute.xlu0 %3521
  %3523 = vrot.lane.b32.xlu0 %v2374, 64
  %v3524 = vpop.permute.xlu0 %3523
  %3525 = vrot.lane.b32.xlu0 %v2375, 64
  %v3526 = vpop.permute.xlu0 %3525
  %3527 = vrot.lane.b32.xlu0 %v2376, 64
  %v3528 = vpop.permute.xlu0 %3527
  %3529 = vrot.lane.b32.xlu0 %v2377, 64
  %v3530 = vpop.permute.xlu0 %3529
  %3531 = vrot.lane.b32.xlu0 %v2378, 64
  %v3532 = vpop.permute.xlu0 %3531
  %3533 = vrot.lane.b32.xlu0 %v2379, 64
  %v3534 = vpop.permute.xlu0 %3533
  %3535 = vrot.lane.b32.xlu0 %v2380, 64
  %v3536 = vpop.permute.xlu0 %3535
  %3537 = vrot.lane.b32.xlu0 %v2381, 64
  %v3538 = vpop.permute.xlu0 %3537
  %3539 = vrot.lane.b32.xlu0 %v2382, 64
  %v3540 = vpop.permute.xlu0 %3539
  %3541 = vrot.lane.b32.xlu0 %v2383, 64
  %v3542 = vpop.permute.xlu0 %3541
  %3543 = vrot.lane.b32.xlu0 %v2384, 64
  %v3544 = vpop.permute.xlu0 %3543
  %3545 = vrot.lane.b32.xlu0 %v2385, 64
  %v3546 = vpop.permute.xlu0 %3545
  %3547 = vrot.lane.b32.xlu0 %v2386, 64
  %v3548 = vpop.permute.xlu0 %3547
  %3549 = vrot.lane.b32.xlu0 %v2387, 64
  %v3550 = vpop.permute.xlu0 %3549
  %3551 = vrot.lane.b32.xlu0 %v2388, 64
  %v3552 = vpop.permute.xlu0 %3551
  %3553 = vrot.lane.b32.xlu0 %v2389, 64
  %v3554 = vpop.permute.xlu0 %3553
  %3555 = vrot.lane.b32.xlu0 %v2390, 64
  %v3556 = vpop.permute.xlu0 %3555
  %3557 = vrot.lane.b32.xlu0 %v2391, 64
  %v3558 = vpop.permute.xlu0 %3557
  %3559 = vrot.lane.b32.xlu0 %v2392, 64
  %v3560 = vpop.permute.xlu0 %3559
  %3561 = vrot.lane.b32.xlu0 %v2393, 64
  %v3562 = vpop.permute.xlu0 %3561
  %3619 = vrot.lane.b32.xlu0 %v2464, 96
  %v3620 = vpop.permute.xlu0 %3619
  %3621 = vrot.lane.b32.xlu0 %v2466, 96
  %v3622 = vpop.permute.xlu0 %3621
  %3623 = vrot.lane.b32.xlu0 %v2468, 96
  %v3624 = vpop.permute.xlu0 %3623
  %3625 = vrot.lane.b32.xlu0 %v2470, 96
  %v3626 = vpop.permute.xlu0 %3625
  %3627 = vrot.lane.b32.xlu0 %v2472, 96
  %v3628 = vpop.permute.xlu0 %3627
  %3629 = vrot.lane.b32.xlu0 %v2474, 96
  %v3630 = vpop.permute.xlu0 %3629
  %3631 = vrot.lane.b32.xlu0 %v2476, 96
  %v3632 = vpop.permute.xlu0 %3631
  %3633 = vrot.lane.b32.xlu0 %v2478, 96
  %v3634 = vpop.permute.xlu0 %3633
  %3635 = vrot.lane.b32.xlu0 %v2480, 96
  %v3636 = vpop.permute.xlu0 %3635
  %3637 = vrot.lane.b32.xlu0 %v2482, 96
  %v3638 = vpop.permute.xlu0 %3637
  %3639 = vrot.lane.b32.xlu0 %v2484, 96
  %v3640 = vpop.permute.xlu0 %3639
  %3641 = vrot.lane.b32.xlu0 %v2486, 96
  %v3642 = vpop.permute.xlu0 %3641
  %3643 = vrot.lane.b32.xlu0 %v2488, 96
  %v3644 = vpop.permute.xlu0 %3643
  %3645 = vrot.lane.b32.xlu0 %v2490, 96
  %v3646 = vpop.permute.xlu0 %3645
  %3647 = vrot.lane.b32.xlu0 %v2492, 96
  %v3648 = vpop.permute.xlu0 %3647
  %3649 = vrot.lane.b32.xlu0 %v2494, 96
  %v3650 = vpop.permute.xlu0 %3649
  %3651 = vrot.lane.b32.xlu0 %v2496, 96
  %v3652 = vpop.permute.xlu0 %3651
  %3653 = vrot.lane.b32.xlu0 %v2498, 96
  %v3654 = vpop.permute.xlu0 %3653
  %3655 = vrot.lane.b32.xlu0 %v2500, 96
  %v3656 = vpop.permute.xlu0 %3655
  %3657 = vrot.lane.b32.xlu0 %v2502, 96
  %v3658 = vpop.permute.xlu0 %3657
  %3659 = vrot.lane.b32.xlu0 %v2504, 96
  %v3660 = vpop.permute.xlu0 %3659
  %3661 = vrot.lane.b32.xlu0 %v2506, 96
  %v3662 = vpop.permute.xlu0 %3661
  %3663 = vrot.lane.b32.xlu0 %v2508, 96
  %v3664 = vpop.permute.xlu0 %3663
  %3665 = vrot.lane.b32.xlu0 %v2510, 96
  %v3666 = vpop.permute.xlu0 %3665
  %3667 = vrot.lane.b32.xlu0 %v2688, 96
  %v3668 = vpop.permute.xlu0 %3667
  %3669 = vrot.lane.b32.xlu0 %v2690, 96
  %v3670 = vpop.permute.xlu0 %3669
  %3671 = vrot.lane.b32.xlu0 %v2764, 96
  %v3672 = vpop.permute.xlu0 %3671
  %3673 = vrot.lane.b32.xlu0 %v2766, 96
  %v3674 = vpop.permute.xlu0 %3673
  %3675 = vrot.lane.b32.xlu0 %v2521, 96
  %v3676 = vpop.permute.xlu0 %3675
  %3677 = vrot.lane.b32.xlu0 %v2523, 96
  %v3678 = vpop.permute.xlu0 %3677
  %3679 = vrot.lane.b32.xlu0 %v2525, 96
  %v3680 = vpop.permute.xlu0 %3679
  %3681 = vrot.lane.b32.xlu0 %v2527, 96
  %v3682 = vpop.permute.xlu0 %3681
  %3683 = vrot.lane.b32.xlu0 %v2529, 96
  %v3684 = vpop.permute.xlu0 %3683
  %3685 = vrot.lane.b32.xlu0 %v2531, 96
  %v3686 = vpop.permute.xlu0 %3685
  %3687 = vrot.lane.b32.xlu0 %v2533, 96
  %v3688 = vpop.permute.xlu0 %3687
  %3689 = vrot.lane.b32.xlu0 %v2535, 96
  %v3690 = vpop.permute.xlu0 %3689
  %3691 = vrot.lane.b32.xlu0 %v2537, 96
  %v3692 = vpop.permute.xlu0 %3691
  %3693 = vrot.lane.b32.xlu0 %v2539, 96
  %v3694 = vpop.permute.xlu0 %3693
  %3695 = vrot.lane.b32.xlu0 %v2541, 96
  %v3696 = vpop.permute.xlu0 %3695
  %3697 = vrot.lane.b32.xlu0 %v2543, 96
  %v3698 = vpop.permute.xlu0 %3697
  %3699 = vrot.lane.b32.xlu0 %v2545, 96
  %v3700 = vpop.permute.xlu0 %3699
  %3701 = vrot.lane.b32.xlu0 %v2547, 96
  %v3702 = vpop.permute.xlu0 %3701
  %3703 = vrot.lane.b32.xlu0 %v2549, 96
  %v3704 = vpop.permute.xlu0 %3703
  %3705 = vrot.lane.b32.xlu0 %v2551, 96
  %v3706 = vpop.permute.xlu0 %3705
  %3707 = vrot.lane.b32.xlu0 %v2553, 96
  %v3708 = vpop.permute.xlu0 %3707
  %3709 = vrot.lane.b32.xlu0 %v2555, 96
  %v3710 = vpop.permute.xlu0 %3709
  %3711 = vrot.lane.b32.xlu0 %v2557, 96
  %v3712 = vpop.permute.xlu0 %3711
  %3713 = vrot.lane.b32.xlu0 %v2559, 96
  %v3714 = vpop.permute.xlu0 %3713
  %3715 = vrot.lane.b32.xlu0 %v2561, 96
  %v3716 = vpop.permute.xlu0 %3715
  %3717 = vrot.lane.b32.xlu0 %v2563, 96
  %v3718 = vpop.permute.xlu0 %3717
  %3719 = vrot.lane.b32.xlu0 %v2565, 96
  %v3720 = vpop.permute.xlu0 %3719
  %3721 = vrot.lane.b32.xlu0 %v2567, 96
  %v3722 = vpop.permute.xlu0 %3721
  %3723 = vrot.lane.b32.xlu0 %v2692, 96
  %v3724 = vpop.permute.xlu0 %3723
  %3725 = vrot.lane.b32.xlu0 %v2694, 96
  %v3726 = vpop.permute.xlu0 %3725
  %3727 = vrot.lane.b32.xlu0 %v2768, 96
  %v3728 = vpop.permute.xlu0 %3727
  %3729 = vrot.lane.b32.xlu0 %v2770, 96
  %v3730 = vpop.permute.xlu0 %3729
  %vm3787 = vcmask 261120
  %v3788 = vsel %vm3787, %v2329, %v2780
  %v3789 = vsel %vm3787, %v2330, %v2782
  %v3790 = vsel %vm3787, %v2331, %v2784
  %v3791 = vsel %vm3787, %v2332, %v2786
  %v3792 = vsel %vm3787, %v2333, %v2788
  %v3793 = vsel %vm3787, %v2334, %v2790
  %v3794 = vsel %vm3787, %v2335, %v2792
  %v3795 = vsel %vm3787, %v2336, %v2794
  %v3796 = vsel %vm3787, %v2337, %v2796
  %v3797 = vsel %vm3787, %v2338, %v2798
  %v3798 = vsel %vm3787, %v2339, %v2800
  %v3799 = vsel %vm3787, %v2340, %v2802
  %v3800 = vsel %vm3787, %v2341, %v2804
  %v3801 = vsel %vm3787, %v2342, %v2806
  %v3802 = vsel %vm3787, %v2343, %v2808
  %v3803 = vsel %vm3787, %v2344, %v2810
  %v3804 = vsel %vm3787, %v2345, %v2812
  %v3805 = vsel %vm3787, %v2346, %v2814
  %v3806 = vsel %vm3787, %v2347, %v2816
  %v3807 = vsel %vm3787, %v2348, %v2818
  %v3808 = vsel %vm3787, %v2349, %v2820
  %v3809 = vsel %vm3787, %v2350, %v2822
  %v3810 = vsel %vm3787, %v2351, %v2824
  %v3811 = vsel %vm3787, %v2352, %v2826
  %v3812 = vsel %vm3787, %v2353, %v2828
  %v3813 = vsel %vm3787, %v2354, %v2830
  %v3814 = vsel %vm3787, %v2355, %v2832
  %v3815 = vsel %vm3787, %v2356, %v2834
  %v3816 = vsel %vm3787, %v2362, %v2836
  %v3817 = vsel %vm3787, %v2363, %v2838
  %v3818 = vsel %vm3787, %v2364, %v2840
  %v3819 = vsel %vm3787, %v2365, %v2842
  %v3820 = vsel %vm3787, %v2366, %v2844
  %v3821 = vsel %vm3787, %v2367, %v2846
  %v3822 = vsel %vm3787, %v2368, %v2848
  %v3823 = vsel %vm3787, %v2369, %v2850
  %v3824 = vsel %vm3787, %v2370, %v2852
  %v3825 = vsel %vm3787, %v2371, %v2854
  %v3826 = vsel %vm3787, %v2372, %v2856
  %v3827 = vsel %vm3787, %v2373, %v2858
  %v3828 = vsel %vm3787, %v2374, %v2860
  %v3829 = vsel %vm3787, %v2375, %v2862
  %v3830 = vsel %vm3787, %v2376, %v2864
  %v3831 = vsel %vm3787, %v2377, %v2866
  %v3832 = vsel %vm3787, %v2378, %v2868
  %v3833 = vsel %vm3787, %v2379, %v2870
  %v3834 = vsel %vm3787, %v2380, %v2872
  %v3835 = vsel %vm3787, %v2381, %v2874
  %v3836 = vsel %vm3787, %v2382, %v2876
  %v3837 = vsel %vm3787, %v2383, %v2878
  %v3838 = vsel %vm3787, %v2384, %v2880
  %v3839 = vsel %vm3787, %v2385, %v2882
  %v3840 = vsel %vm3787, %v2386, %v2884
  %v3841 = vsel %vm3787, %v2387, %v2886
  %v3842 = vsel %vm3787, %v2388, %v2888
  %v3843 = vsel %vm3787, %v2389, %v2890
  %vm3844 = vcmask 523264
  %v3845 = vsel %vm3844, %v3788, %v2948
  %v3846 = vsel %vm3844, %v3789, %v2950
  %v3847 = vsel %vm3844, %v3790, %v2952
  %v3848 = vsel %vm3844, %v3791, %v2954
  %v3849 = vsel %vm3844, %v3792, %v2956
  %v3850 = vsel %vm3844, %v3793, %v2958
  %v3851 = vsel %vm3844, %v3794, %v2960
  %v3852 = vsel %vm3844, %v3795, %v2962
  %v3853 = vsel %vm3844, %v3796, %v2964
  %v3854 = vsel %vm3844, %v3797, %v2966
  %v3855 = vsel %vm3844, %v3798, %v2968
  %v3856 = vsel %vm3844, %v3799, %v2970
  %v3857 = vsel %vm3844, %v3800, %v2972
  %v3858 = vsel %vm3844, %v3801, %v2974
  %v3859 = vsel %vm3844, %v3802, %v2976
  %v3860 = vsel %vm3844, %v3803, %v2978
  %v3861 = vsel %vm3844, %v3804, %v2980
  %v3862 = vsel %vm3844, %v3805, %v2982
  %v3863 = vsel %vm3844, %v3806, %v2984
  %v3864 = vsel %vm3844, %v3807, %v2986
  %v3865 = vsel %vm3844, %v3808, %v2988
  %v3866 = vsel %vm3844, %v3809, %v2990
  %v3867 = vsel %vm3844, %v3810, %v2992
  %v3868 = vsel %vm3844, %v3811, %v2994
  %v3869 = vsel %vm3844, %v3812, %v2996
  %v3870 = vsel %vm3844, %v3813, %v2998
  %v3871 = vsel %vm3844, %v3814, %v3000
  %v3872 = vsel %vm3844, %v3815, %v3002
  %v3873 = vsel %vm3844, %v3816, %v3004
  %v3874 = vsel %vm3844, %v3817, %v3006
  %v3875 = vsel %vm3844, %v3818, %v3008
  %v3876 = vsel %vm3844, %v3819, %v3010
  %v3877 = vsel %vm3844, %v3820, %v3012
  %v3878 = vsel %vm3844, %v3821, %v3014
  %v3879 = vsel %vm3844, %v3822, %v3016
  %v3880 = vsel %vm3844, %v3823, %v3018
  %v3881 = vsel %vm3844, %v3824, %v3020
  %v3882 = vsel %vm3844, %v3825, %v3022
  %v3883 = vsel %vm3844, %v3826, %v3024
  %v3884 = vsel %vm3844, %v3827, %v3026
  %v3885 = vsel %vm3844, %v3828, %v3028
  %v3886 = vsel %vm3844, %v3829, %v3030
  %v3887 = vsel %vm3844, %v3830, %v3032
  %v3888 = vsel %vm3844, %v3831, %v3034
  %v3889 = vsel %vm3844, %v3832, %v3036
  %v3890 = vsel %vm3844, %v3833, %v3038
  %v3891 = vsel %vm3844, %v3834, %v3040
  %v3892 = vsel %vm3844, %v3835, %v3042
  %v3893 = vsel %vm3844, %v3836, %v3044
  %v3894 = vsel %vm3844, %v3837, %v3046
  %v3895 = vsel %vm3844, %v3838, %v3048
  %v3896 = vsel %vm3844, %v3839, %v3050
  %v3897 = vsel %vm3844, %v3840, %v3052
  %v3898 = vsel %vm3844, %v3841, %v3054
  %v3899 = vsel %vm3844, %v3842, %v3056
  %v3900 = vsel %vm3844, %v3843, %v3058
  %vm3901 = vcmask 785408
  %v3902 = vsel %vm3901, %v3845, %v3116
  %v3903 = vsel %vm3901, %v3846, %v3118
  %v3904 = vsel %vm3901, %v3847, %v3120
  %v3905 = vsel %vm3901, %v3848, %v3122
  %v3906 = vsel %vm3901, %v3849, %v3124
  %v3907 = vsel %vm3901, %v3850, %v3126
  %v3908 = vsel %vm3901, %v3851, %v3128
  %v3909 = vsel %vm3901, %v3852, %v3130
  %v3910 = vsel %vm3901, %v3853, %v3132
  %v3911 = vsel %vm3901, %v3854, %v3134
  %v3912 = vsel %vm3901, %v3855, %v3136
  %v3913 = vsel %vm3901, %v3856, %v3138
  %v3914 = vsel %vm3901, %v3857, %v3140
  %v3915 = vsel %vm3901, %v3858, %v3142
  %v3916 = vsel %vm3901, %v3859, %v3144
  %v3917 = vsel %vm3901, %v3860, %v3146
  %v3918 = vsel %vm3901, %v3861, %v3148
  %v3919 = vsel %vm3901, %v3862, %v3150
  %v3920 = vsel %vm3901, %v3863, %v3152
  %v3921 = vsel %vm3901, %v3864, %v3154
  %v3922 = vsel %vm3901, %v3865, %v3156
  %v3923 = vsel %vm3901, %v3866, %v3158
  %v3924 = vsel %vm3901, %v3867, %v3160
  %v3925 = vsel %vm3901, %v3868, %v3162
  %v3926 = vsel %vm3901, %v3869, %v3164
  %v3927 = vsel %vm3901, %v3870, %v3166
  %v3928 = vsel %vm3901, %v3871, %v3168
  %v3929 = vsel %vm3901, %v3872, %v3170
  %v3930 = vsel %vm3901, %v3873, %v3172
  %v3931 = vsel %vm3901, %v3874, %v3174
  %v3932 = vsel %vm3901, %v3875, %v3176
  %v3933 = vsel %vm3901, %v3876, %v3178
  %v3934 = vsel %vm3901, %v3877, %v3180
  %v3935 = vsel %vm3901, %v3878, %v3182
  %v3936 = vsel %vm3901, %v3879, %v3184
  %v3937 = vsel %vm3901, %v3880, %v3186
  %v3938 = vsel %vm3901, %v3881, %v3188
  %v3939 = vsel %vm3901, %v3882, %v3190
  %v3940 = vsel %vm3901, %v3883, %v3192
  %v3941 = vsel %vm3901, %v3884, %v3194
  %v3942 = vsel %vm3901, %v3885, %v3196
  %v3943 = vsel %vm3901, %v3886, %v3198
  %v3944 = vsel %vm3901, %v3887, %v3200
  %v3945 = vsel %vm3901, %v3888, %v3202
  %v3946 = vsel %vm3901, %v3889, %v3204
  %v3947 = vsel %vm3901, %v3890, %v3206
  %v3948 = vsel %vm3901, %v3891, %v3208
  %v3949 = vsel %vm3901, %v3892, %v3210
  %v3950 = vsel %vm3901, %v3893, %v3212
  %v3951 = vsel %vm3901, %v3894, %v3214
  %v3952 = vsel %vm3901, %v3895, %v3216
  %v3953 = vsel %vm3901, %v3896, %v3218
  %v3954 = vsel %vm3901, %v3897, %v3220
  %v3955 = vsel %vm3901, %v3898, %v3222
  %v3956 = vsel %vm3901, %v3899, %v3224
  %v3957 = vsel %vm3901, %v3900, %v3226
  %v3958 = vsel %vm3787, %v2460, %v3284
  %v3959 = vsel %vm3787, %v2462, %v3286
  %v3960 = vsel %vm3787, %v2464, %v3288
  %v3961 = vsel %vm3787, %v2466, %v3290
  %v3962 = vsel %vm3787, %v2468, %v3292
  %v3963 = vsel %vm3787, %v2470, %v3294
  %v3964 = vsel %vm3787, %v2472, %v3296
  %v3965 = vsel %vm3787, %v2474, %v3298
  %v3966 = vsel %vm3787, %v2476, %v3300
  %v3967 = vsel %vm3787, %v2478, %v3302
  %v3968 = vsel %vm3787, %v2480, %v3304
  %v3969 = vsel %vm3787, %v2482, %v3306
  %v3970 = vsel %vm3787, %v2484, %v3308
  %v3971 = vsel %vm3787, %v2486, %v3310
  %v3972 = vsel %vm3787, %v2488, %v3312
  %v3973 = vsel %vm3787, %v2490, %v3314
  %v3974 = vsel %vm3787, %v2492, %v3316
  %v3975 = vsel %vm3787, %v2494, %v3318
  %v3976 = vsel %vm3787, %v2496, %v3320
  %v3977 = vsel %vm3787, %v2498, %v3322
  %v3978 = vsel %vm3787, %v2500, %v3324
  %v3979 = vsel %vm3787, %v2502, %v3326
  %v3980 = vsel %vm3787, %v2504, %v3328
  %v3981 = vsel %vm3787, %v2506, %v3330
  %v3982 = vsel %vm3787, %v2508, %v3332
  %v3983 = vsel %vm3787, %v2510, %v3334
  %v3984 = vsel %vm3787, %v2688, %v3336
  %v3985 = vsel %vm3787, %v2690, %v3338
  %v3986 = vsel %vm3787, %v2517, %v3340
  %v3987 = vsel %vm3787, %v2519, %v3342
  %v3988 = vsel %vm3787, %v2521, %v3344
  %v3989 = vsel %vm3787, %v2523, %v3346
  %v3990 = vsel %vm3787, %v2525, %v3348
  %v3991 = vsel %vm3787, %v2527, %v3350
  %v3992 = vsel %vm3787, %v2529, %v3352
  %v3993 = vsel %vm3787, %v2531, %v3354
  %v3994 = vsel %vm3787, %v2533, %v3356
  %v3995 = vsel %vm3787, %v2535, %v3358
  %v3996 = vsel %vm3787, %v2537, %v3360
  %v3997 = vsel %vm3787, %v2539, %v3362
  %v3998 = vsel %vm3787, %v2541, %v3364
  %v3999 = vsel %vm3787, %v2543, %v3366
  %v4000 = vsel %vm3787, %v2545, %v3368
  %v4001 = vsel %vm3787, %v2547, %v3370
  %v4002 = vsel %vm3787, %v2549, %v3372
  %v4003 = vsel %vm3787, %v2551, %v3374
  %v4004 = vsel %vm3787, %v2553, %v3376
  %v4005 = vsel %vm3787, %v2555, %v3378
  %v4006 = vsel %vm3787, %v2557, %v3380
  %v4007 = vsel %vm3787, %v2559, %v3382
  %v4008 = vsel %vm3787, %v2561, %v3384
  %v4009 = vsel %vm3787, %v2563, %v3386
  %v4010 = vsel %vm3787, %v2565, %v3388
  %v4011 = vsel %vm3787, %v2567, %v3390
  %v4012 = vsel %vm3787, %v2692, %v3392
  %v4013 = vsel %vm3787, %v2694, %v3394
  %v4014 = vsel %vm3844, %v3958, %v3452
  %v4015 = vsel %vm3844, %v3959, %v3454
  %v4016 = vsel %vm3844, %v3960, %v3456
  %v4017 = vsel %vm3844, %v3961, %v3458
  %v4018 = vsel %vm3844, %v3962, %v3460
  %v4019 = vsel %vm3844, %v3963, %v3462
  %v4020 = vsel %vm3844, %v3964, %v3464
  %v4021 = vsel %vm3844, %v3965, %v3466
  %v4022 = vsel %vm3844, %v3966, %v3468
  %v4023 = vsel %vm3844, %v3967, %v3470
  %v4024 = vsel %vm3844, %v3968, %v3472
  %v4025 = vsel %vm3844, %v3969, %v3474
  %v4026 = vsel %vm3844, %v3970, %v3476
  %v4027 = vsel %vm3844, %v3971, %v3478
  %v4028 = vsel %vm3844, %v3972, %v3480
  %v4029 = vsel %vm3844, %v3973, %v3482
  %v4030 = vsel %vm3844, %v3974, %v3484
  %v4031 = vsel %vm3844, %v3975, %v3486
  %v4032 = vsel %vm3844, %v3976, %v3488
  %v4033 = vsel %vm3844, %v3977, %v3490
  %v4034 = vsel %vm3844, %v3978, %v3492
  %v4035 = vsel %vm3844, %v3979, %v3494
  %v4036 = vsel %vm3844, %v3980, %v3496
  %v4037 = vsel %vm3844, %v3981, %v3498
  %v4038 = vsel %vm3844, %v3982, %v3500
  %v4039 = vsel %vm3844, %v3983, %v3502
  %v4040 = vsel %vm3844, %v3984, %v3504
  %v4041 = vsel %vm3844, %v3985, %v3506
  %v4042 = vsel %vm3844, %v3986, %v3508
  %v4043 = vsel %vm3844, %v3987, %v3510
  %v4044 = vsel %vm3844, %v3988, %v3512
  %v4045 = vsel %vm3844, %v3989, %v3514
  %v4046 = vsel %vm3844, %v3990, %v3516
  %v4047 = vsel %vm3844, %v3991, %v3518
  %v4048 = vsel %vm3844, %v3992, %v3520
  %v4049 = vsel %vm3844, %v3993, %v3522
  %v4050 = vsel %vm3844, %v3994, %v3524
  %v4051 = vsel %vm3844, %v3995, %v3526
  %v4052 = vsel %vm3844, %v3996, %v3528
  %v4053 = vsel %vm3844, %v3997, %v3530
  %v4054 = vsel %vm3844, %v3998, %v3532
  %v4055 = vsel %vm3844, %v3999, %v3534
  %v4056 = vsel %vm3844, %v4000, %v3536
  %v4057 = vsel %vm3844, %v4001, %v3538
  %v4058 = vsel %vm3844, %v4002, %v3540
  %v4059 = vsel %vm3844, %v4003, %v3542
  %v4060 = vsel %vm3844, %v4004, %v3544
  %v4061 = vsel %vm3844, %v4005, %v3546
  %v4062 = vsel %vm3844, %v4006, %v3548
  %v4063 = vsel %vm3844, %v4007, %v3550
  %v4064 = vsel %vm3844, %v4008, %v3552
  %v4065 = vsel %vm3844, %v4009, %v3554
  %v4066 = vsel %vm3844, %v4010, %v3556
  %v4067 = vsel %vm3844, %v4011, %v3558
  %v4068 = vsel %vm3844, %v4012, %v3560
  %v4069 = vsel %vm3844, %v4013, %v3562
  %v4070 = vsel %vm3901, %v4014, %v3620
  %v4071 = vsel %vm3901, %v4015, %v3622
  %v4072 = vsel %vm3901, %v4016, %v3624
  %v4073 = vsel %vm3901, %v4017, %v3626
  %v4074 = vsel %vm3901, %v4018, %v3628
  %v4075 = vsel %vm3901, %v4019, %v3630
  %v4076 = vsel %vm3901, %v4020, %v3632
  %v4077 = vsel %vm3901, %v4021, %v3634
  %v4078 = vsel %vm3901, %v4022, %v3636
  %v4079 = vsel %vm3901, %v4023, %v3638
  %v4080 = vsel %vm3901, %v4024, %v3640
  %v4081 = vsel %vm3901, %v4025, %v3642
  %v4082 = vsel %vm3901, %v4026, %v3644
  %v4083 = vsel %vm3901, %v4027, %v3646
  %v4084 = vsel %vm3901, %v4028, %v3648
  %v4085 = vsel %vm3901, %v4029, %v3650
  %v4086 = vsel %vm3901, %v4030, %v3652
  %v4087 = vsel %vm3901, %v4031, %v3654
  %v4088 = vsel %vm3901, %v4032, %v3656
  %v4089 = vsel %vm3901, %v4033, %v3658
  %v4090 = vsel %vm3901, %v4034, %v3660
  %v4091 = vsel %vm3901, %v4035, %v3662
  %v4092 = vsel %vm3901, %v4036, %v3664
  %v4093 = vsel %vm3901, %v4037, %v3666
  %v4094 = vsel %vm3901, %v4038, %v3668
  %v4095 = vsel %vm3901, %v4039, %v3670
  %v4096 = vsel %vm3901, %v4040, %v3672
  %v4097 = vsel %vm3901, %v4041, %v3674
  %v4098 = vsel %vm3901, %v4042, %v3676
  %v4099 = vsel %vm3901, %v4043, %v3678
  %v4100 = vsel %vm3901, %v4044, %v3680
  %v4101 = vsel %vm3901, %v4045, %v3682
  %v4102 = vsel %vm3901, %v4046, %v3684
  %v4103 = vsel %vm3901, %v4047, %v3686
  %v4104 = vsel %vm3901, %v4048, %v3688
  %v4105 = vsel %vm3901, %v4049, %v3690
  %v4106 = vsel %vm3901, %v4050, %v3692
  %v4107 = vsel %vm3901, %v4051, %v3694
  %v4108 = vsel %vm3901, %v4052, %v3696
  %v4109 = vsel %vm3901, %v4053, %v3698
  %v4110 = vsel %vm3901, %v4054, %v3700
  %v4111 = vsel %vm3901, %v4055, %v3702
  %v4112 = vsel %vm3901, %v4056, %v3704
  %v4113 = vsel %vm3901, %v4057, %v3706
  %v4114 = vsel %vm3901, %v4058, %v3708
  %v4115 = vsel %vm3901, %v4059, %v3710
  %v4116 = vsel %vm3901, %v4060, %v3712
  %v4117 = vsel %vm3901, %v4061, %v3714
  %v4118 = vsel %vm3901, %v4062, %v3716
  %v4119 = vsel %vm3901, %v4063, %v3718
  %v4120 = vsel %vm3901, %v4064, %v3720
  %v4121 = vsel %vm3901, %v4065, %v3722
  %v4122 = vsel %vm3901, %v4066, %v3724
  %v4123 = vsel %vm3901, %v4067, %v3726
  %v4124 = vsel %vm3901, %v4068, %v3728
  %v4125 = vsel %vm3901, %v4069, %v3730
  %v4126 = vld [vmem:[%s2] sm:$0xff]
  %v4127 = vld [vmem:[%s2 + $0x8] sm:$0xff]
  %v4128 = vld [vmem:[%s2 + $0x10] sm:$0xff]
  %v4129 = vld [vmem:[%s2 + $0x18] sm:$0xff]
  %v4130 = vld [vmem:[%s2 + $0x20] sm:$0xff]
  %v4131 = vld [vmem:[%s2 + $0x28] sm:$0xff]
  %v4132 = vld [vmem:[%s2 + $0x30] sm:$0xff]
  %v4133 = vld [vmem:[%s2 + $0x38] sm:$0xff]
  %v4134 = vld [vmem:[%s2 + $0x40] sm:$0xff]
  %v4135 = vld [vmem:[%s2 + $0x48] sm:$0xff]
  %v4136 = vld [vmem:[%s2 + $0x50] sm:$0xff]
  %v4137 = vld [vmem:[%s2 + $0x58] sm:$0xff]
  %v4138 = vld [vmem:[%s2 + $0x60] sm:$0xff]
  %v4139 = vld [vmem:[%s2 + $0x68] sm:$0xff]
  %v4140 = vld [vmem:[%s2 + $0x70] sm:$0xff]
  %v4141 = vld [vmem:[%s2 + $0x78] sm:$0xff]
  %v4142 = vld [vmem:[%s2 + $0x80] sm:$0xff]
  %v4143 = vld [vmem:[%s2 + $0x88] sm:$0xff]
  %v4144 = vld [vmem:[%s2 + $0x90] sm:$0xff]
  %v4145 = vld [vmem:[%s2 + $0x98] sm:$0xff]
  %v4146 = vld [vmem:[%s2 + $0xa0] sm:$0xff]
  %v4147 = vld [vmem:[%s2 + $0xa8] sm:$0xff]
  %v4148 = vld [vmem:[%s2 + $0xb0] sm:$0xff]
  %v4149 = vld [vmem:[%s2 + $0xb8] sm:$0xff]
  %v4150 = vld [vmem:[%s2 + $0xc0] sm:$0xff]
  %v4151 = vld [vmem:[%s2 + $0xc8] sm:$0xff]
  %v4152 = vld [vmem:[%s2 + $0xd0] sm:$0xff]
  %v4153 = vld [vmem:[%s2 + $0xd8] sm:$0xff]
  %v4154 = vld [vmem:[%s2 + $0xe0] sm:$0xff]
  %v4155 = vld [vmem:[%s2 + $0xe8] sm:$0xff]
  %v4156 = vld [vmem:[%s2 + $0xf0] sm:$0xff]
  %v4157 = vld [vmem:[%s2 + $0xf8] sm:$0xff]
  %v4158 = vld [vmem:[%s2 + $0x100] sm:$0xff]
  %v4159 = vld [vmem:[%s2 + $0x108] sm:$0xff]
  %v4160 = vld [vmem:[%s2 + $0x110] sm:$0xff]
  %v4161 = vld [vmem:[%s2 + $0x118] sm:$0xff]
  %v4162 = vld [vmem:[%s3] sm:$0x1]
  %v4164 = vperm.slane %v4162, 0
  %v4166 = vsel %vm3787, %v2579, 0
  %v4168 = vsel %vm3787, %v2581, 0
  %v4170 = vsel %vm3787, %v2583, 0
  %v4172 = vsel %vm3787, %v2585, 0
  %v4174 = vsel %vm3787, %v2587, 0
  %v4176 = vsel %vm3787, %v2589, 0
  %v4178 = vsel %vm3787, %v2591, 0
  %v4180 = vsel %vm3787, %v2593, 0
  %v4182 = vsel %vm3787, %v2595, 0
  %v4184 = vsel %vm3787, %v2597, 0
  %v4186 = vsel %vm3787, %v2599, 0
  %v4188 = vsel %vm3787, %v2601, 0
  %v4190 = vsel %vm3787, %v2603, 0
  %v4192 = vsel %vm3787, %v2605, 0
  %v4194 = vsel %vm3787, %v2607, 0
  %v4196 = vsel %vm3787, %v2609, 0
  %v4198 = vsel %vm3787, %v2611, 0
  %v4200 = vsel %vm3787, %v2613, 0
  %v4202 = vsel %vm3787, %v2615, 0
  %v4204 = vsel %vm3787, %v2617, 0
  %v4206 = vsel %vm3787, %v2619, 0
  %v4208 = vsel %vm3787, %v2621, 0
  %v4210 = vsel %vm3787, %v2623, 0
  %v4212 = vsel %vm3787, %v2625, 0
  %v4214 = vsel %vm3787, %v2752, 0
  %v4216 = vsel %vm3787, %v2754, 0
  %v4218 = vsel %vm3787, %v2772, 0
  %v4220 = vsel %vm3787, %v2774, 0
  %v4222 = vsel %vm3787, %v2636, 0
  %v4224 = vsel %vm3787, %v2638, 0
  %v4226 = vsel %vm3787, %v2640, 0
  %v4228 = vsel %vm3787, %v2642, 0
  %v4230 = vsel %vm3787, %v2644, 0
  %v4232 = vsel %vm3787, %v2646, 0
  %v4234 = vsel %vm3787, %v2648, 0
  %v4236 = vsel %vm3787, %v2650, 0
  %v4238 = vsel %vm3787, %v2652, 0
  %v4240 = vsel %vm3787, %v2654, 0
  %v4242 = vsel %vm3787, %v2656, 0
  %v4244 = vsel %vm3787, %v2658, 0
  %v4246 = vsel %vm3787, %v2660, 0
  %v4248 = vsel %vm3787, %v2662, 0
  %v4250 = vsel %vm3787, %v2664, 0
  %v4252 = vsel %vm3787, %v2666, 0
  %v4254 = vsel %vm3787, %v2668, 0
  %v4256 = vsel %vm3787, %v2670, 0
  %v4258 = vsel %vm3787, %v2672, 0
  %v4260 = vsel %vm3787, %v2674, 0
  %v4262 = vsel %vm3787, %v2676, 0
  %v4264 = vsel %vm3787, %v2678, 0
  %v4266 = vsel %vm3787, %v2680, 0
  %v4268 = vsel %vm3787, %v2682, 0
  %v4270 = vsel %vm3787, %v2756, 0
  %v4272 = vsel %vm3787, %v2758, 0
  %v4274 = vsel %vm3787, %v2776, 0
  %v4276 = vsel %vm3787, %v2778, 0
  %4278 = vmatpush.msra.mxu0 %v4141
  %4279 = vmatpush.msra.mxu0 %v4140
  %4280 = vmatpush.msra.mxu0 %v4139
  %4281 = vmatpush.msra.mxu0 %v4138
  %4282 = vmatpush.msra.mxu0 %v4137
  %4283 = vmatpush.msra.mxu0 %v4136
  %4284 = vmatpush.msra.mxu0 %v4135
  %4285 = vmatpush.msra.mxu0 %v4134
  %4286 = vmatpush.msra.mxu0 %v4133
  %4287 = vmatpush.msra.mxu0 %v4132
  %4288 = vmatpush.msra.mxu0 %v4131
  %4289 = vmatpush.msra.mxu0 %v4130
  %4290 = vmatpush.msra.mxu0 %v4129
  %4291 = vmatpush.msra.mxu0 %v4128
  %4292 = vmatpush.msra.mxu0 %v4127
  %4293 = vmatpush.msra.mxu0 %v4126
  %4294 = vmatmul.f32.gmra.mxu0 %v3902
  %v4295 = vpop.f32.mrf.mxu0
  %v4296 = vadd.f32 %v4164, %v4295
  %4297 = vmatmul.f32.gmra.mxu0 %v3903
  %v4298 = vpop.f32.mrf.mxu0
  %v4299 = vadd.f32 %v4164, %v4298
  %4300 = vmatmul.f32.gmra.mxu0 %v3904
  %v4301 = vpop.f32.mrf.mxu0
  %v4302 = vadd.f32 %v4164, %v4301
  %4303 = vmatmul.f32.gmra.mxu0 %v3905
  %v4304 = vpop.f32.mrf.mxu0
  %v4305 = vadd.f32 %v4164, %v4304
  %4306 = vmatmul.f32.gmra.mxu0 %v3906
  %v4307 = vpop.f32.mrf.mxu0
  %v4308 = vadd.f32 %v4164, %v4307
  %4309 = vmatmul.f32.gmra.mxu0 %v3907
  %v4310 = vpop.f32.mrf.mxu0
  %v4311 = vadd.f32 %v4164, %v4310
  %4312 = vmatmul.f32.gmra.mxu0 %v3908
  %v4313 = vpop.f32.mrf.mxu0
  %v4314 = vadd.f32 %v4164, %v4313
  %4315 = vmatmul.f32.gmra.mxu0 %v3909
  %v4316 = vpop.f32.mrf.mxu0
  %v4317 = vadd.f32 %v4164, %v4316
  %4318 = vmatmul.f32.gmra.mxu0 %v3910
  %v4319 = vpop.f32.mrf.mxu0
  %v4320 = vadd.f32 %v4164, %v4319
  %4321 = vmatmul.f32.gmra.mxu0 %v3911
  %v4322 = vpop.f32.mrf.mxu0
  %v4323 = vadd.f32 %v4164, %v4322
  %4324 = vmatmul.f32.gmra.mxu0 %v3912
  %v4325 = vpop.f32.mrf.mxu0
  %v4326 = vadd.f32 %v4164, %v4325
  %4327 = vmatmul.f32.gmra.mxu0 %v3913
  %v4328 = vpop.f32.mrf.mxu0
  %v4329 = vadd.f32 %v4164, %v4328
  %4330 = vmatmul.f32.gmra.mxu0 %v3914
  %v4331 = vpop.f32.mrf.mxu0
  %v4332 = vadd.f32 %v4164, %v4331
  %4333 = vmatmul.f32.gmra.mxu0 %v3915
  %v4334 = vpop.f32.mrf.mxu0
  %v4335 = vadd.f32 %v4164, %v4334
  %4336 = vmatmul.f32.gmra.mxu0 %v3916
  %v4337 = vpop.f32.mrf.mxu0
  %v4338 = vadd.f32 %v4164, %v4337
  %4339 = vmatmul.f32.gmra.mxu0 %v3917
  %v4340 = vpop.f32.mrf.mxu0
  %v4341 = vadd.f32 %v4164, %v4340
  %4342 = vmatmul.f32.gmra.mxu0 %v3918
  %v4343 = vpop.f32.mrf.mxu0
  %v4344 = vadd.f32 %v4164, %v4343
  %4345 = vmatmul.f32.gmra.mxu0 %v3919
  %v4346 = vpop.f32.mrf.mxu0
  %v4347 = vadd.f32 %v4164, %v4346
  %4348 = vmatmul.f32.gmra.mxu0 %v3920
  %v4349 = vpop.f32.mrf.mxu0
  %v4350 = vadd.f32 %v4164, %v4349
  %4351 = vmatmul.f32.gmra.mxu0 %v3921
  %v4352 = vpop.f32.mrf.mxu0
  %v4353 = vadd.f32 %v4164, %v4352
  %4354 = vmatmul.f32.gmra.mxu0 %v3922
  %v4355 = vpop.f32.mrf.mxu0
  %v4356 = vadd.f32 %v4164, %v4355
  %4357 = vmatmul.f32.gmra.mxu0 %v3923
  %v4358 = vpop.f32.mrf.mxu0
  %v4359 = vadd.f32 %v4164, %v4358
  %4360 = vmatmul.f32.gmra.mxu0 %v3924
  %v4361 = vpop.f32.mrf.mxu0
  %v4362 = vadd.f32 %v4164, %v4361
  %4363 = vmatmul.f32.gmra.mxu0 %v3925
  %v4364 = vpop.f32.mrf.mxu0
  %v4365 = vadd.f32 %v4164, %v4364
  %4366 = vmatmul.f32.gmra.mxu0 %v3926
  %v4367 = vpop.f32.mrf.mxu0
  %v4368 = vadd.f32 %v4164, %v4367
  %4369 = vmatmul.f32.gmra.mxu0 %v3927
  %v4370 = vpop.f32.mrf.mxu0
  %v4371 = vadd.f32 %v4164, %v4370
  %4372 = vmatmul.f32.gmra.mxu0 %v3928
  %v4373 = vpop.f32.mrf.mxu0
  %v4374 = vadd.f32 %v4164, %v4373
  %4375 = vmatmul.f32.gmra.mxu0 %v3929
  %v4376 = vpop.f32.mrf.mxu0
  %v4377 = vadd.f32 %v4164, %v4376
  %4378 = vmatmul.f32.gmra.mxu0 %v3930
  %v4379 = vpop.f32.mrf.mxu0
  %v4380 = vadd.f32 %v4164, %v4379
  %4381 = vmatmul.f32.gmra.mxu0 %v3931
  %v4382 = vpop.f32.mrf.mxu0
  %v4383 = vadd.f32 %v4164, %v4382
  %4384 = vmatmul.f32.gmra.mxu0 %v3932
  %v4385 = vpop.f32.mrf.mxu0
  %v4386 = vadd.f32 %v4164, %v4385
  %4387 = vmatmul.f32.gmra.mxu0 %v3933
  %v4388 = vpop.f32.mrf.mxu0
  %v4389 = vadd.f32 %v4164, %v4388
  %4390 = vmatmul.f32.gmra.mxu0 %v3934
  %v4391 = vpop.f32.mrf.mxu0
  %v4392 = vadd.f32 %v4164, %v4391
  %4393 = vmatmul.f32.gmra.mxu0 %v3935
  %v4394 = vpop.f32.mrf.mxu0
  %v4395 = vadd.f32 %v4164, %v4394
  %4396 = vmatmul.f32.gmra.mxu0 %v3936
  %v4397 = vpop.f32.mrf.mxu0
  %v4398 = vadd.f32 %v4164, %v4397
  %4399 = vmatmul.f32.gmra.mxu0 %v3937
  %v4400 = vpop.f32.mrf.mxu0
  %v4401 = vadd.f32 %v4164, %v4400
  %4402 = vmatmul.f32.gmra.mxu0 %v3938
  %v4403 = vpop.f32.mrf.mxu0
  %v4404 = vadd.f32 %v4164, %v4403
  %4405 = vmatmul.f32.gmra.mxu0 %v3939
  %v4406 = vpop.f32.mrf.mxu0
  %v4407 = vadd.f32 %v4164, %v4406
  %4408 = vmatmul.f32.gmra.mxu0 %v3940
  %v4409 = vpop.f32.mrf.mxu0
  %v4410 = vadd.f32 %v4164, %v4409
  %4411 = vmatmul.f32.gmra.mxu0 %v3941
  %v4412 = vpop.f32.mrf.mxu0
  %v4413 = vadd.f32 %v4164, %v4412
  %4414 = vmatmul.f32.gmra.mxu0 %v3942
  %v4415 = vpop.f32.mrf.mxu0
  %v4416 = vadd.f32 %v4164, %v4415
  %4417 = vmatmul.f32.gmra.mxu0 %v3943
  %v4418 = vpop.f32.mrf.mxu0
  %v4419 = vadd.f32 %v4164, %v4418
  %4420 = vmatmul.f32.gmra.mxu0 %v3944
  %v4421 = vpop.f32.mrf.mxu0
  %v4422 = vadd.f32 %v4164, %v4421
  %4423 = vmatmul.f32.gmra.mxu0 %v3945
  %v4424 = vpop.f32.mrf.mxu0
  %v4425 = vadd.f32 %v4164, %v4424
  %4426 = vmatmul.f32.gmra.mxu0 %v3946
  %v4427 = vpop.f32.mrf.mxu0
  %v4428 = vadd.f32 %v4164, %v4427
  %4429 = vmatmul.f32.gmra.mxu0 %v3947
  %v4430 = vpop.f32.mrf.mxu0
  %v4431 = vadd.f32 %v4164, %v4430
  %4432 = vmatmul.f32.gmra.mxu0 %v3948
  %v4433 = vpop.f32.mrf.mxu0
  %v4434 = vadd.f32 %v4164, %v4433
  %4435 = vmatmul.f32.gmra.mxu0 %v3949
  %v4436 = vpop.f32.mrf.mxu0
  %v4437 = vadd.f32 %v4164, %v4436
  %4438 = vmatmul.f32.gmra.mxu0 %v3950
  %v4439 = vpop.f32.mrf.mxu0
  %v4440 = vadd.f32 %v4164, %v4439
  %4441 = vmatmul.f32.gmra.mxu0 %v3951
  %v4442 = vpop.f32.mrf.mxu0
  %v4443 = vadd.f32 %v4164, %v4442
  %4444 = vmatmul.f32.gmra.mxu0 %v3952
  %v4445 = vpop.f32.mrf.mxu0
  %v4446 = vadd.f32 %v4164, %v4445
  %4447 = vmatmul.f32.gmra.mxu0 %v3953
  %v4448 = vpop.f32.mrf.mxu0
  %v4449 = vadd.f32 %v4164, %v4448
  %4450 = vmatmul.f32.gmra.mxu0 %v3954
  %v4451 = vpop.f32.mrf.mxu0
  %v4452 = vadd.f32 %v4164, %v4451
  %4453 = vmatmul.f32.gmra.mxu0 %v3955
  %v4454 = vpop.f32.mrf.mxu0
  %v4455 = vadd.f32 %v4164, %v4454
  %4456 = vmatmul.f32.gmra.mxu0 %v3956
  %v4457 = vpop.f32.mrf.mxu0
  %v4458 = vadd.f32 %v4164, %v4457
  %4459 = vmatmul.f32.gmra.mxu0 %v3957
  %v4460 = vpop.f32.mrf.mxu0
  %v4461 = vadd.f32 %v4164, %v4460
  %4462 = vdwg.mxu0
  %4463 = vmatpush.msra.mxu0 %v4157
  %4464 = vmatpush.msra.mxu0 %v4156
  %4465 = vmatpush.msra.mxu0 %v4155
  %4466 = vmatpush.msra.mxu0 %v4154
  %4467 = vmatpush.msra.mxu0 %v4153
  %4468 = vmatpush.msra.mxu0 %v4152
  %4469 = vmatpush.msra.mxu0 %v4151
  %4470 = vmatpush.msra.mxu0 %v4150
  %4471 = vmatpush.msra.mxu0 %v4149
  %4472 = vmatpush.msra.mxu0 %v4148
  %4473 = vmatpush.msra.mxu0 %v4147
  %4474 = vmatpush.msra.mxu0 %v4146
  %4475 = vmatpush.msra.mxu0 %v4145
  %4476 = vmatpush.msra.mxu0 %v4144
  %4477 = vmatpush.msra.mxu0 %v4143
  %4478 = vmatpush.msra.mxu0 %v4142
  %4479 = vmatmul.f32.gmra.mxu0 %v4070
  %v4480 = vpop.f32.mrf.mxu0
  %v4481 = vadd.f32 %v4296, %v4480
  %4482 = vmatmul.f32.gmra.mxu0 %v4071
  %v4483 = vpop.f32.mrf.mxu0
  %v4484 = vadd.f32 %v4299, %v4483
  %4485 = vmatmul.f32.gmra.mxu0 %v4072
  %v4486 = vpop.f32.mrf.mxu0
  %v4487 = vadd.f32 %v4302, %v4486
  %4488 = vmatmul.f32.gmra.mxu0 %v4073
  %v4489 = vpop.f32.mrf.mxu0
  %v4490 = vadd.f32 %v4305, %v4489
  %4491 = vmatmul.f32.gmra.mxu0 %v4074
  %v4492 = vpop.f32.mrf.mxu0
  %v4493 = vadd.f32 %v4308, %v4492
  %4494 = vmatmul.f32.gmra.mxu0 %v4075
  %v4495 = vpop.f32.mrf.mxu0
  %v4496 = vadd.f32 %v4311, %v4495
  %4497 = vmatmul.f32.gmra.mxu0 %v4076
  %v4498 = vpop.f32.mrf.mxu0
  %v4499 = vadd.f32 %v4314, %v4498
  %4500 = vmatmul.f32.gmra.mxu0 %v4077
  %v4501 = vpop.f32.mrf.mxu0
  %v4502 = vadd.f32 %v4317, %v4501
  %4503 = vmatmul.f32.gmra.mxu0 %v4078
  %v4504 = vpop.f32.mrf.mxu0
  %v4505 = vadd.f32 %v4320, %v4504
  %4506 = vmatmul.f32.gmra.mxu0 %v4079
  %v4507 = vpop.f32.mrf.mxu0
  %v4508 = vadd.f32 %v4323, %v4507
  %4509 = vmatmul.f32.gmra.mxu0 %v4080
  %v4510 = vpop.f32.mrf.mxu0
  %v4511 = vadd.f32 %v4326, %v4510
  %4512 = vmatmul.f32.gmra.mxu0 %v4081
  %v4513 = vpop.f32.mrf.mxu0
  %v4514 = vadd.f32 %v4329, %v4513
  %4515 = vmatmul.f32.gmra.mxu0 %v4082
  %v4516 = vpop.f32.mrf.mxu0
  %v4517 = vadd.f32 %v4332, %v4516
  %4518 = vmatmul.f32.gmra.mxu0 %v4083
  %v4519 = vpop.f32.mrf.mxu0
  %v4520 = vadd.f32 %v4335, %v4519
  %4521 = vmatmul.f32.gmra.mxu0 %v4084
  %v4522 = vpop.f32.mrf.mxu0
  %v4523 = vadd.f32 %v4338, %v4522
  %4524 = vmatmul.f32.gmra.mxu0 %v4085
  %v4525 = vpop.f32.mrf.mxu0
  %v4526 = vadd.f32 %v4341, %v4525
  %4527 = vmatmul.f32.gmra.mxu0 %v4086
  %v4528 = vpop.f32.mrf.mxu0
  %v4529 = vadd.f32 %v4344, %v4528
  %4530 = vmatmul.f32.gmra.mxu0 %v4087
  %v4531 = vpop.f32.mrf.mxu0
  %v4532 = vadd.f32 %v4347, %v4531
  %4533 = vmatmul.f32.gmra.mxu0 %v4088
  %v4534 = vpop.f32.mrf.mxu0
  %v4535 = vadd.f32 %v4350, %v4534
  %4536 = vmatmul.f32.gmra.mxu0 %v4089
  %v4537 = vpop.f32.mrf.mxu0
  %v4538 = vadd.f32 %v4353, %v4537
  %4539 = vmatmul.f32.gmra.mxu0 %v4090
  %v4540 = vpop.f32.mrf.mxu0
  %v4541 = vadd.f32 %v4356, %v4540
  %4542 = vmatmul.f32.gmra.mxu0 %v4091
  %v4543 = vpop.f32.mrf.mxu0
  %v4544 = vadd.f32 %v4359, %v4543
  %4545 = vmatmul.f32.gmra.mxu0 %v4092
  %v4546 = vpop.f32.mrf.mxu0
  %v4547 = vadd.f32 %v4362, %v4546
  %4548 = vmatmul.f32.gmra.mxu0 %v4093
  %v4549 = vpop.f32.mrf.mxu0
  %v4550 = vadd.f32 %v4365, %v4549
  %4551 = vmatmul.f32.gmra.mxu0 %v4094
  %v4552 = vpop.f32.mrf.mxu0
  %v4553 = vadd.f32 %v4368, %v4552
  %4554 = vmatmul.f32.gmra.mxu0 %v4095
  %v4555 = vpop.f32.mrf.mxu0
  %v4556 = vadd.f32 %v4371, %v4555
  %4557 = vmatmul.f32.gmra.mxu0 %v4096
  %v4558 = vpop.f32.mrf.mxu0
  %v4559 = vadd.f32 %v4374, %v4558
  %4560 = vmatmul.f32.gmra.mxu0 %v4097
  %v4561 = vpop.f32.mrf.mxu0
  %v4562 = vadd.f32 %v4377, %v4561
  %4563 = vmatmul.f32.gmra.mxu0 %v4098
  %v4564 = vpop.f32.mrf.mxu0
  %v4565 = vadd.f32 %v4380, %v4564
  %4566 = vmatmul.f32.gmra.mxu0 %v4099
  %v4567 = vpop.f32.mrf.mxu0
  %v4568 = vadd.f32 %v4383, %v4567
  %4569 = vmatmul.f32.gmra.mxu0 %v4100
  %v4570 = vpop.f32.mrf.mxu0
  %v4571 = vadd.f32 %v4386, %v4570
  %4572 = vmatmul.f32.gmra.mxu0 %v4101
  %v4573 = vpop.f32.mrf.mxu0
  %v4574 = vadd.f32 %v4389, %v4573
  %4575 = vmatmul.f32.gmra.mxu0 %v4102
  %v4576 = vpop.f32.mrf.mxu0
  %v4577 = vadd.f32 %v4392, %v4576
  %4578 = vmatmul.f32.gmra.mxu0 %v4103
  %v4579 = vpop.f32.mrf.mxu0
  %v4580 = vadd.f32 %v4395, %v4579
  %4581 = vmatmul.f32.gmra.mxu0 %v4104
  %v4582 = vpop.f32.mrf.mxu0
  %v4583 = vadd.f32 %v4398, %v4582
  %4584 = vmatmul.f32.gmra.mxu0 %v4105
  %v4585 = vpop.f32.mrf.mxu0
  %v4586 = vadd.f32 %v4401, %v4585
  %4587 = vmatmul.f32.gmra.mxu0 %v4106
  %v4588 = vpop.f32.mrf.mxu0
  %v4589 = vadd.f32 %v4404, %v4588
  %4590 = vmatmul.f32.gmra.mxu0 %v4107
  %v4591 = vpop.f32.mrf.mxu0
  %v4592 = vadd.f32 %v4407, %v4591
  %4593 = vmatmul.f32.gmra.mxu0 %v4108
  %v4594 = vpop.f32.mrf.mxu0
  %v4595 = vadd.f32 %v4410, %v4594
  %4596 = vmatmul.f32.gmra.mxu0 %v4109
  %v4597 = vpop.f32.mrf.mxu0
  %v4598 = vadd.f32 %v4413, %v4597
  %4599 = vmatmul.f32.gmra.mxu0 %v4110
  %v4600 = vpop.f32.mrf.mxu0
  %v4601 = vadd.f32 %v4416, %v4600
  %4602 = vmatmul.f32.gmra.mxu0 %v4111
  %v4603 = vpop.f32.mrf.mxu0
  %v4604 = vadd.f32 %v4419, %v4603
  %4605 = vmatmul.f32.gmra.mxu0 %v4112
  %v4606 = vpop.f32.mrf.mxu0
  %v4607 = vadd.f32 %v4422, %v4606
  %4608 = vmatmul.f32.gmra.mxu0 %v4113
  %v4609 = vpop.f32.mrf.mxu0
  %v4610 = vadd.f32 %v4425, %v4609
  %4611 = vmatmul.f32.gmra.mxu0 %v4114
  %v4612 = vpop.f32.mrf.mxu0
  %v4613 = vadd.f32 %v4428, %v4612
  %4614 = vmatmul.f32.gmra.mxu0 %v4115
  %v4615 = vpop.f32.mrf.mxu0
  %v4616 = vadd.f32 %v4431, %v4615
  %4617 = vmatmul.f32.gmra.mxu0 %v4116
  %v4618 = vpop.f32.mrf.mxu0
  %v4619 = vadd.f32 %v4434, %v4618
  %4620 = vmatmul.f32.gmra.mxu0 %v4117
  %v4621 = vpop.f32.mrf.mxu0
  %v4622 = vadd.f32 %v4437, %v4621
  %4623 = vmatmul.f32.gmra.mxu0 %v4118
  %v4624 = vpop.f32.mrf.mxu0
  %v4625 = vadd.f32 %v4440, %v4624
  %4626 = vmatmul.f32.gmra.mxu0 %v4119
  %v4627 = vpop.f32.mrf.mxu0
  %v4628 = vadd.f32 %v4443, %v4627
  %4629 = vmatmul.f32.gmra.mxu0 %v4120
  %v4630 = vpop.f32.mrf.mxu0
  %v4631 = vadd.f32 %v4446, %v4630
  %4632 = vmatmul.f32.gmra.mxu0 %v4121
  %v4633 = vpop.f32.mrf.mxu0
  %v4634 = vadd.f32 %v4449, %v4633
  %4635 = vmatmul.f32.gmra.mxu0 %v4122
  %v4636 = vpop.f32.mrf.mxu0
  %v4637 = vadd.f32 %v4452, %v4636
  %4638 = vmatmul.f32.gmra.mxu0 %v4123
  %v4639 = vpop.f32.mrf.mxu0
  %v4640 = vadd.f32 %v4455, %v4639
  %4641 = vmatmul.f32.gmra.mxu0 %v4124
  %v4642 = vpop.f32.mrf.mxu0
  %v4643 = vadd.f32 %v4458, %v4642
  %4644 = vmatmul.f32.gmra.mxu0 %v4125
  %v4645 = vpop.f32.mrf.mxu0
  %v4646 = vadd.f32 %v4461, %v4645
  %4647 = vdwg.mxu0
  %4648 = vmatpush.msra.mxu0 0.0
  %4649 = vmatpush.msra.mxu0 0.0
  %4650 = vmatpush.msra.mxu0 0.0
  %4651 = vmatpush.msra.mxu0 0.0
  %4652 = vmatpush.msra.mxu0 0.0
  %4653 = vmatpush.msra.mxu0 0.0
  %4654 = vmatpush.msra.mxu0 0.0
  %4655 = vmatpush.msra.mxu0 0.0
  %4656 = vmatpush.msra.mxu0 0.0
  %4657 = vmatpush.msra.mxu0 0.0
  %4658 = vmatpush.msra.mxu0 0.0
  %4659 = vmatpush.msra.mxu0 0.0
  %4660 = vmatpush.msra.mxu0 %v4161
  %4661 = vmatpush.msra.mxu0 %v4160
  %4662 = vmatpush.msra.mxu0 %v4159
  %4663 = vmatpush.msra.mxu0 %v4158
  %4664 = vmatmul.f32.gmra.mxu0 %v4166
  %v4665 = vpop.f32.mrf.mxu0
  %v4666 = vadd.f32 %v4481, %v4665
  %4667 = vmatmul.f32.gmra.mxu0 %v4168
  %v4668 = vpop.f32.mrf.mxu0
  %v4669 = vadd.f32 %v4484, %v4668
  %4670 = vmatmul.f32.gmra.mxu0 %v4170
  %v4671 = vpop.f32.mrf.mxu0
  %v4672 = vadd.f32 %v4487, %v4671
  %4673 = vmatmul.f32.gmra.mxu0 %v4172
  %v4674 = vpop.f32.mrf.mxu0
  %v4675 = vadd.f32 %v4490, %v4674
  %4676 = vmatmul.f32.gmra.mxu0 %v4174
  %v4677 = vpop.f32.mrf.mxu0
  %v4678 = vadd.f32 %v4493, %v4677
  %4679 = vmatmul.f32.gmra.mxu0 %v4176
  %v4680 = vpop.f32.mrf.mxu0
  %v4681 = vadd.f32 %v4496, %v4680
  %4682 = vmatmul.f32.gmra.mxu0 %v4178
  %v4683 = vpop.f32.mrf.mxu0
  %v4684 = vadd.f32 %v4499, %v4683
  %4685 = vmatmul.f32.gmra.mxu0 %v4180
  %v4686 = vpop.f32.mrf.mxu0
  %v4687 = vadd.f32 %v4502, %v4686
  %4688 = vmatmul.f32.gmra.mxu0 %v4182
  %v4689 = vpop.f32.mrf.mxu0
  %v4690 = vadd.f32 %v4505, %v4689
  %4691 = vmatmul.f32.gmra.mxu0 %v4184
  %v4692 = vpop.f32.mrf.mxu0
  %v4693 = vadd.f32 %v4508, %v4692
  %4694 = vmatmul.f32.gmra.mxu0 %v4186
  %v4695 = vpop.f32.mrf.mxu0
  %v4696 = vadd.f32 %v4511, %v4695
  %4697 = vmatmul.f32.gmra.mxu0 %v4188
  %v4698 = vpop.f32.mrf.mxu0
  %v4699 = vadd.f32 %v4514, %v4698
  %4700 = vmatmul.f32.gmra.mxu0 %v4190
  %v4701 = vpop.f32.mrf.mxu0
  %v4702 = vadd.f32 %v4517, %v4701
  %4703 = vmatmul.f32.gmra.mxu0 %v4192
  %v4704 = vpop.f32.mrf.mxu0
  %v4705 = vadd.f32 %v4520, %v4704
  %4706 = vmatmul.f32.gmra.mxu0 %v4194
  %v4707 = vpop.f32.mrf.mxu0
  %v4708 = vadd.f32 %v4523, %v4707
  %4709 = vmatmul.f32.gmra.mxu0 %v4196
  %v4710 = vpop.f32.mrf.mxu0
  %v4711 = vadd.f32 %v4526, %v4710
  %4712 = vmatmul.f32.gmra.mxu0 %v4198
  %v4713 = vpop.f32.mrf.mxu0
  %v4714 = vadd.f32 %v4529, %v4713
  %4715 = vmatmul.f32.gmra.mxu0 %v4200
  %v4716 = vpop.f32.mrf.mxu0
  %v4717 = vadd.f32 %v4532, %v4716
  %4718 = vmatmul.f32.gmra.mxu0 %v4202
  %v4719 = vpop.f32.mrf.mxu0
  %v4720 = vadd.f32 %v4535, %v4719
  %4721 = vmatmul.f32.gmra.mxu0 %v4204
  %v4722 = vpop.f32.mrf.mxu0
  %v4723 = vadd.f32 %v4538, %v4722
  %4724 = vmatmul.f32.gmra.mxu0 %v4206
  %v4725 = vpop.f32.mrf.mxu0
  %v4726 = vadd.f32 %v4541, %v4725
  %4727 = vmatmul.f32.gmra.mxu0 %v4208
  %v4728 = vpop.f32.mrf.mxu0
  %v4729 = vadd.f32 %v4544, %v4728
  %4730 = vmatmul.f32.gmra.mxu0 %v4210
  %v4731 = vpop.f32.mrf.mxu0
  %v4732 = vadd.f32 %v4547, %v4731
  %4733 = vmatmul.f32.gmra.mxu0 %v4212
  %v4734 = vpop.f32.mrf.mxu0
  %v4735 = vadd.f32 %v4550, %v4734
  %4736 = vmatmul.f32.gmra.mxu0 %v4214
  %v4737 = vpop.f32.mrf.mxu0
  %v4738 = vadd.f32 %v4553, %v4737
  %4739 = vmatmul.f32.gmra.mxu0 %v4216
  %v4740 = vpop.f32.mrf.mxu0
  %v4741 = vadd.f32 %v4556, %v4740
  %4742 = vmatmul.f32.gmra.mxu0 %v4218
  %v4743 = vpop.f32.mrf.mxu0
  %v4744 = vadd.f32 %v4559, %v4743
  %4745 = vmatmul.f32.gmra.mxu0 %v4220
  %v4746 = vpop.f32.mrf.mxu0
  %v4747 = vadd.f32 %v4562, %v4746
  %4748 = vmatmul.f32.gmra.mxu0 %v4222
  %v4749 = vpop.f32.mrf.mxu0
  %v4750 = vadd.f32 %v4565, %v4749
  %4751 = vmatmul.f32.gmra.mxu0 %v4224
  %v4752 = vpop.f32.mrf.mxu0
  %v4753 = vadd.f32 %v4568, %v4752
  %4754 = vmatmul.f32.gmra.mxu0 %v4226
  %v4755 = vpop.f32.mrf.mxu0
  %v4756 = vadd.f32 %v4571, %v4755
  %4757 = vmatmul.f32.gmra.mxu0 %v4228
  %v4758 = vpop.f32.mrf.mxu0
  %v4759 = vadd.f32 %v4574, %v4758
  %4760 = vmatmul.f32.gmra.mxu0 %v4230
  %v4761 = vpop.f32.mrf.mxu0
  %v4762 = vadd.f32 %v4577, %v4761
  %4763 = vmatmul.f32.gmra.mxu0 %v4232
  %v4764 = vpop.f32.mrf.mxu0
  %v4765 = vadd.f32 %v4580, %v4764
  %4766 = vmatmul.f32.gmra.mxu0 %v4234
  %v4767 = vpop.f32.mrf.mxu0
  %v4768 = vadd.f32 %v4583, %v4767
  %4769 = vmatmul.f32.gmra.mxu0 %v4236
  %v4770 = vpop.f32.mrf.mxu0
  %v4771 = vadd.f32 %v4586, %v4770
  %4772 = vmatmul.f32.gmra.mxu0 %v4238
  %v4773 = vpop.f32.mrf.mxu0
  %v4774 = vadd.f32 %v4589, %v4773
  %4775 = vmatmul.f32.gmra.mxu0 %v4240
  %v4776 = vpop.f32.mrf.mxu0
  %v4777 = vadd.f32 %v4592, %v4776
  %4778 = vmatmul.f32.gmra.mxu0 %v4242
  %v4779 = vpop.f32.mrf.mxu0
  %v4780 = vadd.f32 %v4595, %v4779
  %4781 = vmatmul.f32.gmra.mxu0 %v4244
  %v4782 = vpop.f32.mrf.mxu0
  %v4783 = vadd.f32 %v4598, %v4782
  %4784 = vmatmul.f32.gmra.mxu0 %v4246
  %v4785 = vpop.f32.mrf.mxu0
  %v4786 = vadd.f32 %v4601, %v4785
  %4787 = vmatmul.f32.gmra.mxu0 %v4248
  %v4788 = vpop.f32.mrf.mxu0
  %v4789 = vadd.f32 %v4604, %v4788
  %4790 = vmatmul.f32.gmra.mxu0 %v4250
  %v4791 = vpop.f32.mrf.mxu0
  %v4792 = vadd.f32 %v4607, %v4791
  %4793 = vmatmul.f32.gmra.mxu0 %v4252
  %v4794 = vpop.f32.mrf.mxu0
  %v4795 = vadd.f32 %v4610, %v4794
  %4796 = vmatmul.f32.gmra.mxu0 %v4254
  %v4797 = vpop.f32.mrf.mxu0
  %v4798 = vadd.f32 %v4613, %v4797
  %4799 = vmatmul.f32.gmra.mxu0 %v4256
  %v4800 = vpop.f32.mrf.mxu0
  %v4801 = vadd.f32 %v4616, %v4800
  %4802 = vmatmul.f32.gmra.mxu0 %v4258
  %v4803 = vpop.f32.mrf.mxu0
  %v4804 = vadd.f32 %v4619, %v4803
  %4805 = vmatmul.f32.gmra.mxu0 %v4260
  %v4806 = vpop.f32.mrf.mxu0
  %v4807 = vadd.f32 %v4622, %v4806
  %4808 = vmatmul.f32.gmra.mxu0 %v4262
  %v4809 = vpop.f32.mrf.mxu0
  %v4810 = vadd.f32 %v4625, %v4809
  %4811 = vmatmul.f32.gmra.mxu0 %v4264
  %v4812 = vpop.f32.mrf.mxu0
  %v4813 = vadd.f32 %v4628, %v4812
  %4814 = vmatmul.f32.gmra.mxu0 %v4266
  %v4815 = vpop.f32.mrf.mxu0
  %v4816 = vadd.f32 %v4631, %v4815
  %4817 = vmatmul.f32.gmra.mxu0 %v4268
  %v4818 = vpop.f32.mrf.mxu0
  %v4819 = vadd.f32 %v4634, %v4818
  %4820 = vmatmul.f32.gmra.mxu0 %v4270
  %v4821 = vpop.f32.mrf.mxu0
  %v4822 = vadd.f32 %v4637, %v4821
  %4823 = vmatmul.f32.gmra.mxu0 %v4272
  %v4824 = vpop.f32.mrf.mxu0
  %v4825 = vadd.f32 %v4640, %v4824
  %4826 = vmatmul.f32.gmra.mxu0 %v4274
  %v4827 = vpop.f32.mrf.mxu0
  %v4828 = vadd.f32 %v4643, %v4827
  %4829 = vmatmul.f32.gmra.mxu0 %v4276
  %v4830 = vpop.f32.mrf.mxu0
  %v4831 = vadd.f32 %v4646, %v4830
  %4832 = vdwg.mxu0
  %v4833 = vmax.f32 %v4666, 0.0
  %v4834 = vmax.f32 %v4669, 0.0
  %v4835 = vmax.f32 %v4672, 0.0
  %v4836 = vmax.f32 %v4675, 0.0
  %v4837 = vmax.f32 %v4678, 0.0
  %v4838 = vmax.f32 %v4681, 0.0
  %v4839 = vmax.f32 %v4684, 0.0
  %v4840 = vmax.f32 %v4687, 0.0
  %v4841 = vmax.f32 %v4690, 0.0
  %v4842 = vmax.f32 %v4693, 0.0
  %v4843 = vmax.f32 %v4696, 0.0
  %v4844 = vmax.f32 %v4699, 0.0
  %v4845 = vmax.f32 %v4702, 0.0
  %v4846 = vmax.f32 %v4705, 0.0
  %v4847 = vmax.f32 %v4708, 0.0
  %v4848 = vmax.f32 %v4711, 0.0
  %v4849 = vmax.f32 %v4714, 0.0
  %v4850 = vmax.f32 %v4717, 0.0
  %v4851 = vmax.f32 %v4720, 0.0
  %v4852 = vmax.f32 %v4723, 0.0
  %v4853 = vmax.f32 %v4726, 0.0
  %v4854 = vmax.f32 %v4729, 0.0
  %v4855 = vmax.f32 %v4732, 0.0
  %v4856 = vmax.f32 %v4735, 0.0
  %v4857 = vmax.f32 %v4738, 0.0
  %v4858 = vmax.f32 %v4741, 0.0
  %v4859 = vmax.f32 %v4744, 0.0
  %v4860 = vmax.f32 %v4747, 0.0
  %v4861 = vmax.f32 %v4750, 0.0
  %v4862 = vmax.f32 %v4753, 0.0
  %v4863 = vmax.f32 %v4756, 0.0
  %v4864 = vmax.f32 %v4759, 0.0
  %v4865 = vmax.f32 %v4762, 0.0
  %v4866 = vmax.f32 %v4765, 0.0
  %v4867 = vmax.f32 %v4768, 0.0
  %v4868 = vmax.f32 %v4771, 0.0
  %v4869 = vmax.f32 %v4774, 0.0
  %v4870 = vmax.f32 %v4777, 0.0
  %v4871 = vmax.f32 %v4780, 0.0
  %v4872 = vmax.f32 %v4783, 0.0
  %v4873 = vmax.f32 %v4786, 0.0
  %v4874 = vmax.f32 %v4789, 0.0
  %v4875 = vmax.f32 %v4792, 0.0
  %v4876 = vmax.f32 %v4795, 0.0
  %v4877 = vmax.f32 %v4798, 0.0
  %v4878 = vmax.f32 %v4801, 0.0
  %v4879 = vmax.f32 %v4804, 0.0
  %v4880 = vmax.f32 %v4807, 0.0
  %v4881 = vmax.f32 %v4810, 0.0
  %v4882 = vmax.f32 %v4813, 0.0
  %v4883 = vmax.f32 %v4816, 0.0
  %v4884 = vmax.f32 %v4819, 0.0
  %v4885 = vmax.f32 %v4822, 0.0
  %v4886 = vmax.f32 %v4825, 0.0
  %v4887 = vmax.f32 %v4828, 0.0
  %v4888 = vmax.f32 %v4831, 0.0
  %v4945 = vrot.slane %v4833, 2
  %v4946 = vrot.slane %v4833, 4
  %v4947 = vrot.slane %v4833, 6
  %v4948 = vrot.slane %v4834, 2
  %v4949 = vrot.slane %v4834, 4
  %v4950 = vrot.slane %v4835, 2
  %v4951 = vrot.slane %v4835, 4
  %v4952 = vrot.slane %v4835, 6
  %v4953 = vrot.slane %v4836, 2
  %v4954 = vrot.slane %v4836, 4
  %v4955 = vrot.slane %v4837, 2
  %v4956 = vrot.slane %v4837, 4
  %v4957 = vrot.slane %v4837, 6
  %v4958 = vrot.slane %v4838, 2
  %v4959 = vrot.slane %v4838, 4
  %v4960 = vrot.slane %v4839, 2
  %v4961 = vrot.slane %v4839, 4
  %v4962 = vrot.slane %v4839, 6
  %v4963 = vrot.slane %v4840, 2
  %v4964 = vrot.slane %v4840, 4
  %v4965 = vrot.slane %v4841, 2
  %v4966 = vrot.slane %v4841, 4
  %v4967 = vrot.slane %v4841, 6
  %v4968 = vrot.slane %v4842, 2
  %v4969 = vrot.slane %v4842, 4
  %v4970 = vrot.slane %v4843, 2
  %v4971 = vrot.slane %v4843, 4
  %v4972 = vrot.slane %v4843, 6
  %v4973 = vrot.slane %v4844, 2
  %v4974 = vrot.slane %v4844, 4
  %v4975 = vrot.slane %v4845, 2
  %v4976 = vrot.slane %v4845, 4
  %v4977 = vrot.slane %v4845, 6
  %v4978 = vrot.slane %v4846, 2
  %v4979 = vrot.slane %v4846, 4
  %v4980 = vrot.slane %v4847, 2
  %v4981 = vrot.slane %v4847, 4
  %v4982 = vrot.slane %v4847, 6
  %v4983 = vrot.slane %v4848, 2
  %v4984 = vrot.slane %v4848, 4
  %v4985 = vrot.slane %v4849, 2
  %v4986 = vrot.slane %v4849, 4
  %v4987 = vrot.slane %v4849, 6
  %v4988 = vrot.slane %v4850, 2
  %v4989 = vrot.slane %v4850, 4
  %v4990 = vrot.slane %v4851, 2
  %v4991 = vrot.slane %v4851, 4
  %v4992 = vrot.slane %v4851, 6
  %v4993 = vrot.slane %v4852, 2
  %v4994 = vrot.slane %v4852, 4
  %v4995 = vrot.slane %v4853, 2
  %v4996 = vrot.slane %v4853, 4
  %v4997 = vrot.slane %v4853, 6
  %v4998 = vrot.slane %v4854, 2
  %v4999 = vrot.slane %v4854, 4
  %v5000 = vrot.slane %v4855, 2
  %v5001 = vrot.slane %v4855, 4
  %v5002 = vrot.slane %v4855, 6
  %v5003 = vrot.slane %v4856, 2
  %v5004 = vrot.slane %v4856, 4
  %v5005 = vrot.slane %v4857, 2
  %v5006 = vrot.slane %v4857, 4
  %v5007 = vrot.slane %v4857, 6
  %v5008 = vrot.slane %v4858, 2
  %v5009 = vrot.slane %v4858, 4
  %v5010 = vrot.slane %v4859, 2
  %v5011 = vrot.slane %v4859, 4
  %v5012 = vrot.slane %v4859, 6
  %v5013 = vrot.slane %v4860, 2
  %v5014 = vrot.slane %v4860, 4
  %v5015 = vrot.slane %v4861, 2
  %v5016 = vrot.slane %v4861, 4
  %v5017 = vrot.slane %v4861, 6
  %v5018 = vrot.slane %v4862, 2
  %v5019 = vrot.slane %v4862, 4
  %v5020 = vrot.slane %v4863, 2
  %v5021 = vrot.slane %v4863, 4
  %v5022 = vrot.slane %v4863, 6
  %v5023 = vrot.slane %v4864, 2
  %v5024 = vrot.slane %v4864, 4
  %v5025 = vrot.slane %v4865, 2
  %v5026 = vrot.slane %v4865, 4
  %v5027 = vrot.slane %v4865, 6
  %v5028 = vrot.slane %v4866, 2
  %v5029 = vrot.slane %v4866, 4
  %v5030 = vrot.slane %v4867, 2
  %v5031 = vrot.slane %v4867, 4
  %v5032 = vrot.slane %v4867, 6
  %v5033 = vrot.slane %v4868, 2
  %v5034 = vrot.slane %v4868, 4
  %v5035 = vrot.slane %v4869, 2
  %v5036 = vrot.slane %v4869, 4
  %v5037 = vrot.slane %v4869, 6
  %v5038 = vrot.slane %v4870, 2
  %v5039 = vrot.slane %v4870, 4
  %v5040 = vrot.slane %v4871, 2
  %v5041 = vrot.slane %v4871, 4
  %v5042 = vrot.slane %v4871, 6
  %v5043 = vrot.slane %v4872, 2
  %v5044 = vrot.slane %v4872, 4
  %v5045 = vrot.slane %v4873, 2
  %v5046 = vrot.slane %v4873, 4
  %v5047 = vrot.slane %v4873, 6
  %v5048 = vrot.slane %v4874, 2
  %v5049 = vrot.slane %v4874, 4
  %v5050 = vrot.slane %v4875, 2
  %v5051 = vrot.slane %v4875, 4
  %v5052 = vrot.slane %v4875, 6
  %v5053 = vrot.slane %v4876, 2
  %v5054 = vrot.slane %v4876, 4
  %v5055 = vrot.slane %v4877, 2
  %v5056 = vrot.slane %v4877, 4
  %v5057 = vrot.slane %v4877, 6
  %v5058 = vrot.slane %v4878, 2
  %v5059 = vrot.slane %v4878, 4
  %v5060 = vrot.slane %v4879, 2
  %v5061 = vrot.slane %v4879, 4
  %v5062 = vrot.slane %v4879, 6
  %v5063 = vrot.slane %v4880, 2
  %v5064 = vrot.slane %v4880, 4
  %v5065 = vrot.slane %v4881, 2
  %v5066 = vrot.slane %v4881, 4
  %v5067 = vrot.slane %v4881, 6
  %v5068 = vrot.slane %v4882, 2
  %v5069 = vrot.slane %v4882, 4
  %v5070 = vrot.slane %v4883, 2
  %v5071 = vrot.slane %v4883, 4
  %v5072 = vrot.slane %v4883, 6
  %v5073 = vrot.slane %v4884, 2
  %v5074 = vrot.slane %v4884, 4
  %v5075 = vrot.slane %v4885, 2
  %v5076 = vrot.slane %v4885, 4
  %v5077 = vrot.slane %v4885, 6
  %v5078 = vrot.slane %v4886, 2
  %v5079 = vrot.slane %v4886, 4
  %v5080 = vrot.slane %v4887, 2
  %v5081 = vrot.slane %v4887, 4
  %v5082 = vrot.slane %v4887, 6
  %v5083 = vrot.slane %v4888, 2
  %v5084 = vrot.slane %v4888, 4
  %v5225 = vrot.slane %v4833, 7
  %v5226 = vrot.slane %v5225, 2
  %v5227 = vrot.slane %v4945, 7
  %v5228 = vrot.slane %v5227, 2
  %v5229 = vrot.slane %v4946, 7
  %v5230 = vrot.slane %v5229, 2
  %v5231 = vrot.slane %v4947, 7
  %v5232 = vrot.slane %v5231, 2
  %v5233 = vrot.slane %v4834, 7
  %v5234 = vrot.slane %v5233, 2
  %v5235 = vrot.slane %v4948, 7
  %v5236 = vrot.slane %v5235, 2
  %v5237 = vrot.slane %v4949, 7
  %v5238 = vrot.slane %v5237, 2
  %v5239 = vrot.slane %v4835, 7
  %v5240 = vrot.slane %v5239, 2
  %v5241 = vrot.slane %v4950, 7
  %v5242 = vrot.slane %v5241, 2
  %v5243 = vrot.slane %v4951, 7
  %v5244 = vrot.slane %v5243, 2
  %v5245 = vrot.slane %v4952, 7
  %v5246 = vrot.slane %v5245, 2
  %v5247 = vrot.slane %v4836, 7
  %v5248 = vrot.slane %v5247, 2
  %v5249 = vrot.slane %v4953, 7
  %v5250 = vrot.slane %v5249, 2
  %v5251 = vrot.slane %v4954, 7
  %v5252 = vrot.slane %v5251, 2
  %v5253 = vrot.slane %v4837, 7
  %v5254 = vrot.slane %v5253, 2
  %v5255 = vrot.slane %v4955, 7
  %v5256 = vrot.slane %v5255, 2
  %v5257 = vrot.slane %v4956, 7
  %v5258 = vrot.slane %v5257, 2
  %v5259 = vrot.slane %v4957, 7
  %v5260 = vrot.slane %v5259, 2
  %v5261 = vrot.slane %v4838, 7
  %v5262 = vrot.slane %v5261, 2
  %v5263 = vrot.slane %v4958, 7
  %v5264 = vrot.slane %v5263, 2
  %v5265 = vrot.slane %v4959, 7
  %v5266 = vrot.slane %v5265, 2
  %v5267 = vrot.slane %v4839, 7
  %v5268 = vrot.slane %v5267, 2
  %v5269 = vrot.slane %v4960, 7
  %v5270 = vrot.slane %v5269, 2
  %v5271 = vrot.slane %v4961, 7
  %v5272 = vrot.slane %v5271, 2
  %v5273 = vrot.slane %v4962, 7
  %v5274 = vrot.slane %v5273, 2
  %v5275 = vrot.slane %v4840, 7
  %v5276 = vrot.slane %v5275, 2
  %v5277 = vrot.slane %v4963, 7
  %v5278 = vrot.slane %v5277, 2
  %v5279 = vrot.slane %v4964, 7
  %v5280 = vrot.slane %v5279, 2
  %v5281 = vrot.slane %v4841, 7
  %v5282 = vrot.slane %v5281, 2
  %v5283 = vrot.slane %v4965, 7
  %v5284 = vrot.slane %v5283, 2
  %v5285 = vrot.slane %v4966, 7
  %v5286 = vrot.slane %v5285, 2
  %v5287 = vrot.slane %v4967, 7
  %v5288 = vrot.slane %v5287, 2
  %v5289 = vrot.slane %v4842, 7
  %v5290 = vrot.slane %v5289, 2
  %v5291 = vrot.slane %v4968, 7
  %v5292 = vrot.slane %v5291, 2
  %v5293 = vrot.slane %v4969, 7
  %v5294 = vrot.slane %v5293, 2
  %v5295 = vrot.slane %v4843, 7
  %v5296 = vrot.slane %v5295, 2
  %v5297 = vrot.slane %v4970, 7
  %v5298 = vrot.slane %v5297, 2
  %v5299 = vrot.slane %v4971, 7
  %v5300 = vrot.slane %v5299, 2
  %v5301 = vrot.slane %v4972, 7
  %v5302 = vrot.slane %v5301, 2
  %v5303 = vrot.slane %v4844, 7
  %v5304 = vrot.slane %v5303, 2
  %v5305 = vrot.slane %v4973, 7
  %v5306 = vrot.slane %v5305, 2
  %v5307 = vrot.slane %v4974, 7
  %v5308 = vrot.slane %v5307, 2
  %v5309 = vrot.slane %v4845, 7
  %v5310 = vrot.slane %v5309, 2
  %v5311 = vrot.slane %v4975, 7
  %v5312 = vrot.slane %v5311, 2
  %v5313 = vrot.slane %v4976, 7
  %v5314 = vrot.slane %v5313, 2
  %v5315 = vrot.slane %v4977, 7
  %v5316 = vrot.slane %v5315, 2
  %v5317 = vrot.slane %v4846, 7
  %v5318 = vrot.slane %v5317, 2
  %v5319 = vrot.slane %v4978, 7
  %v5320 = vrot.slane %v5319, 2
  %v5321 = vrot.slane %v4979, 7
  %v5322 = vrot.slane %v5321, 2
  %v5323 = vrot.slane %v4847, 7
  %v5324 = vrot.slane %v5323, 2
  %v5325 = vrot.slane %v4980, 7
  %v5326 = vrot.slane %v5325, 2
  %v5327 = vrot.slane %v4981, 7
  %v5328 = vrot.slane %v5327, 2
  %v5329 = vrot.slane %v4982, 7
  %v5330 = vrot.slane %v5329, 2
  %v5331 = vrot.slane %v4848, 7
  %v5332 = vrot.slane %v5331, 2
  %v5333 = vrot.slane %v4983, 7
  %v5334 = vrot.slane %v5333, 2
  %v5335 = vrot.slane %v4984, 7
  %v5336 = vrot.slane %v5335, 2
  %v5337 = vrot.slane %v4849, 7
  %v5338 = vrot.slane %v5337, 2
  %v5339 = vrot.slane %v4985, 7
  %v5340 = vrot.slane %v5339, 2
  %v5341 = vrot.slane %v4986, 7
  %v5342 = vrot.slane %v5341, 2
  %v5343 = vrot.slane %v4987, 7
  %v5344 = vrot.slane %v5343, 2
  %v5345 = vrot.slane %v4850, 7
  %v5346 = vrot.slane %v5345, 2
  %v5347 = vrot.slane %v4988, 7
  %v5348 = vrot.slane %v5347, 2
  %v5349 = vrot.slane %v4989, 7
  %v5350 = vrot.slane %v5349, 2
  %v5351 = vrot.slane %v4851, 7
  %v5352 = vrot.slane %v5351, 2
  %v5353 = vrot.slane %v4990, 7
  %v5354 = vrot.slane %v5353, 2
  %v5355 = vrot.slane %v4991, 7
  %v5356 = vrot.slane %v5355, 2
  %v5357 = vrot.slane %v4992, 7
  %v5358 = vrot.slane %v5357, 2
  %v5359 = vrot.slane %v4852, 7
  %v5360 = vrot.slane %v5359, 2
  %v5361 = vrot.slane %v4993, 7
  %v5362 = vrot.slane %v5361, 2
  %v5363 = vrot.slane %v4994, 7
  %v5364 = vrot.slane %v5363, 2
  %v5365 = vrot.slane %v4853, 7
  %v5366 = vrot.slane %v5365, 2
  %v5367 = vrot.slane %v4995, 7
  %v5368 = vrot.slane %v5367, 2
  %v5369 = vrot.slane %v4996, 7
  %v5370 = vrot.slane %v5369, 2
  %v5371 = vrot.slane %v4997, 7
  %v5372 = vrot.slane %v5371, 2
  %v5373 = vrot.slane %v4854, 7
  %v5374 = vrot.slane %v5373, 2
  %v5375 = vrot.slane %v4998, 7
  %v5376 = vrot.slane %v5375, 2
  %v5377 = vrot.slane %v4999, 7
  %v5378 = vrot.slane %v5377, 2
  %v5379 = vrot.slane %v4855, 7
  %v5380 = vrot.slane %v5379, 2
  %v5381 = vrot.slane %v5000, 7
  %v5382 = vrot.slane %v5381, 2
  %v5383 = vrot.slane %v5001, 7
  %v5384 = vrot.slane %v5383, 2
  %v5385 = vrot.slane %v5002, 7
  %v5386 = vrot.slane %v5385, 2
  %v5387 = vrot.slane %v4856, 7
  %v5388 = vrot.slane %v5387, 2
  %v5389 = vrot.slane %v5003, 7
  %v5390 = vrot.slane %v5389, 2
  %v5391 = vrot.slane %v5004, 7
  %v5392 = vrot.slane %v5391, 2
  %v5393 = vrot.slane %v4857, 7
  %v5394 = vrot.slane %v5393, 2
  %v5395 = vrot.slane %v5005, 7
  %v5396 = vrot.slane %v5395, 2
  %v5397 = vrot.slane %v5006, 7
  %v5398 = vrot.slane %v5397, 2
  %v5399 = vrot.slane %v5007, 7
  %v5400 = vrot.slane %v5399, 2
  %v5401 = vrot.slane %v4858, 7
  %v5402 = vrot.slane %v5401, 2
  %v5403 = vrot.slane %v5008, 7
  %v5404 = vrot.slane %v5403, 2
  %v5405 = vrot.slane %v5009, 7
  %v5406 = vrot.slane %v5405, 2
  %v5407 = vrot.slane %v4859, 7
  %v5408 = vrot.slane %v5407, 2
  %v5409 = vrot.slane %v5010, 7
  %v5410 = vrot.slane %v5409, 2
  %v5411 = vrot.slane %v5011, 7
  %v5412 = vrot.slane %v5411, 2
  %v5413 = vrot.slane %v5012, 7
  %v5414 = vrot.slane %v5413, 2
  %v5415 = vrot.slane %v4860, 7
  %v5416 = vrot.slane %v5415, 2
  %v5417 = vrot.slane %v5013, 7
  %v5418 = vrot.slane %v5417, 2
  %v5419 = vrot.slane %v5014, 7
  %v5420 = vrot.slane %v5419, 2
  %v5421 = vrot.slane %v4861, 7
  %v5422 = vrot.slane %v5421, 2
  %v5423 = vrot.slane %v5015, 7
  %v5424 = vrot.slane %v5423, 2
  %v5425 = vrot.slane %v5016, 7
  %v5426 = vrot.slane %v5425, 2
  %v5427 = vrot.slane %v5017, 7
  %v5428 = vrot.slane %v5427, 2
  %v5429 = vrot.slane %v4862, 7
  %v5430 = vrot.slane %v5429, 2
  %v5431 = vrot.slane %v5018, 7
  %v5432 = vrot.slane %v5431, 2
  %v5433 = vrot.slane %v5019, 7
  %v5434 = vrot.slane %v5433, 2
  %v5435 = vrot.slane %v4863, 7
  %v5436 = vrot.slane %v5435, 2
  %v5437 = vrot.slane %v5020, 7
  %v5438 = vrot.slane %v5437, 2
  %v5439 = vrot.slane %v5021, 7
  %v5440 = vrot.slane %v5439, 2
  %v5441 = vrot.slane %v5022, 7
  %v5442 = vrot.slane %v5441, 2
  %v5443 = vrot.slane %v4864, 7
  %v5444 = vrot.slane %v5443, 2
  %v5445 = vrot.slane %v5023, 7
  %v5446 = vrot.slane %v5445, 2
  %v5447 = vrot.slane %v5024, 7
  %v5448 = vrot.slane %v5447, 2
  %v5449 = vrot.slane %v4865, 7
  %v5450 = vrot.slane %v5449, 2
  %v5451 = vrot.slane %v5025, 7
  %v5452 = vrot.slane %v5451, 2
  %v5453 = vrot.slane %v5026, 7
  %v5454 = vrot.slane %v5453, 2
  %v5455 = vrot.slane %v5027, 7
  %v5456 = vrot.slane %v5455, 2
  %v5457 = vrot.slane %v4866, 7
  %v5458 = vrot.slane %v5457, 2
  %v5459 = vrot.slane %v5028, 7
  %v5460 = vrot.slane %v5459, 2
  %v5461 = vrot.slane %v5029, 7
  %v5462 = vrot.slane %v5461, 2
  %v5463 = vrot.slane %v4867, 7
  %v5464 = vrot.slane %v5463, 2
  %v5465 = vrot.slane %v5030, 7
  %v5466 = vrot.slane %v5465, 2
  %v5467 = vrot.slane %v5031, 7
  %v5468 = vrot.slane %v5467, 2
  %v5469 = vrot.slane %v5032, 7
  %v5470 = vrot.slane %v5469, 2
  %v5471 = vrot.slane %v4868, 7
  %v5472 = vrot.slane %v5471, 2
  %v5473 = vrot.slane %v5033, 7
  %v5474 = vrot.slane %v5473, 2
  %v5475 = vrot.slane %v5034, 7
  %v5476 = vrot.slane %v5475, 2
  %v5477 = vrot.slane %v4869, 7
  %v5478 = vrot.slane %v5477, 2
  %v5479 = vrot.slane %v5035, 7
  %v5480 = vrot.slane %v5479, 2
  %v5481 = vrot.slane %v5036, 7
  %v5482 = vrot.slane %v5481, 2
  %v5483 = vrot.slane %v5037, 7
  %v5484 = vrot.slane %v5483, 2
  %v5485 = vrot.slane %v4870, 7
  %v5486 = vrot.slane %v5485, 2
  %v5487 = vrot.slane %v5038, 7
  %v5488 = vrot.slane %v5487, 2
  %v5489 = vrot.slane %v5039, 7
  %v5490 = vrot.slane %v5489, 2
  %v5491 = vrot.slane %v4871, 7
  %v5492 = vrot.slane %v5491, 2
  %v5493 = vrot.slane %v5040, 7
  %v5494 = vrot.slane %v5493, 2
  %v5495 = vrot.slane %v5041, 7
  %v5496 = vrot.slane %v5495, 2
  %v5497 = vrot.slane %v5042, 7
  %v5498 = vrot.slane %v5497, 2
  %v5499 = vrot.slane %v4872, 7
  %v5500 = vrot.slane %v5499, 2
  %v5501 = vrot.slane %v5043, 7
  %v5502 = vrot.slane %v5501, 2
  %v5503 = vrot.slane %v5044, 7
  %v5504 = vrot.slane %v5503, 2
  %v5505 = vrot.slane %v4873, 7
  %v5506 = vrot.slane %v5505, 2
  %v5507 = vrot.slane %v5045, 7
  %v5508 = vrot.slane %v5507, 2
  %v5509 = vrot.slane %v5046, 7
  %v5510 = vrot.slane %v5509, 2
  %v5511 = vrot.slane %v5047, 7
  %v5512 = vrot.slane %v5511, 2
  %v5513 = vrot.slane %v4874, 7
  %v5514 = vrot.slane %v5513, 2
  %v5515 = vrot.slane %v5048, 7
  %v5516 = vrot.slane %v5515, 2
  %v5517 = vrot.slane %v5049, 7
  %v5518 = vrot.slane %v5517, 2
  %v5519 = vrot.slane %v4875, 7
  %v5520 = vrot.slane %v5519, 2
  %v5521 = vrot.slane %v5050, 7
  %v5522 = vrot.slane %v5521, 2
  %v5523 = vrot.slane %v5051, 7
  %v5524 = vrot.slane %v5523, 2
  %v5525 = vrot.slane %v5052, 7
  %v5526 = vrot.slane %v5525, 2
  %v5527 = vrot.slane %v4876, 7
  %v5528 = vrot.slane %v5527, 2
  %v5529 = vrot.slane %v5053, 7
  %v5530 = vrot.slane %v5529, 2
  %v5531 = vrot.slane %v5054, 7
  %v5532 = vrot.slane %v5531, 2
  %v5533 = vrot.slane %v4877, 7
  %v5534 = vrot.slane %v5533, 2
  %v5535 = vrot.slane %v5055, 7
  %v5536 = vrot.slane %v5535, 2
  %v5537 = vrot.slane %v5056, 7
  %v5538 = vrot.slane %v5537, 2
  %v5539 = vrot.slane %v5057, 7
  %v5540 = vrot.slane %v5539, 2
  %v5541 = vrot.slane %v4878, 7
  %v5542 = vrot.slane %v5541, 2
  %v5543 = vrot.slane %v5058, 7
  %v5544 = vrot.slane %v5543, 2
  %v5545 = vrot.slane %v5059, 7
  %v5546 = vrot.slane %v5545, 2
  %v5547 = vrot.slane %v4879, 7
  %v5548 = vrot.slane %v5547, 2
  %v5549 = vrot.slane %v5060, 7
  %v5550 = vrot.slane %v5549, 2
  %v5551 = vrot.slane %v5061, 7
  %v5552 = vrot.slane %v5551, 2
  %v5553 = vrot.slane %v5062, 7
  %v5554 = vrot.slane %v5553, 2
  %v5555 = vrot.slane %v4880, 7
  %v5556 = vrot.slane %v5555, 2
  %v5557 = vrot.slane %v5063, 7
  %v5558 = vrot.slane %v5557, 2
  %v5559 = vrot.slane %v5064, 7
  %v5560 = vrot.slane %v5559, 2
  %v5561 = vrot.slane %v4881, 7
  %v5562 = vrot.slane %v5561, 2
  %v5563 = vrot.slane %v5065, 7
  %v5564 = vrot.slane %v5563, 2
  %v5565 = vrot.slane %v5066, 7
  %v5566 = vrot.slane %v5565, 2
  %v5567 = vrot.slane %v5067, 7
  %v5568 = vrot.slane %v5567, 2
  %v5569 = vrot.slane %v4882, 7
  %v5570 = vrot.slane %v5569, 2
  %v5571 = vrot.slane %v5068, 7
  %v5572 = vrot.slane %v5571, 2
  %v5573 = vrot.slane %v5069, 7
  %v5574 = vrot.slane %v5573, 2
  %v5575 = vrot.slane %v4883, 7
  %v5576 = vrot.slane %v5575, 2
  %v5577 = vrot.slane %v5070, 7
  %v5578 = vrot.slane %v5577, 2
  %v5579 = vrot.slane %v5071, 7
  %v5580 = vrot.slane %v5579, 2
  %v5581 = vrot.slane %v5072, 7
  %v5582 = vrot.slane %v5581, 2
  %v5583 = vrot.slane %v4884, 7
  %v5584 = vrot.slane %v5583, 2
  %v5585 = vrot.slane %v5073, 7
  %v5586 = vrot.slane %v5585, 2
  %v5587 = vrot.slane %v5074, 7
  %v5588 = vrot.slane %v5587, 2
  %v5589 = vrot.slane %v4885, 7
  %v5590 = vrot.slane %v5589, 2
  %v5591 = vrot.slane %v5075, 7
  %v5592 = vrot.slane %v5591, 2
  %v5593 = vrot.slane %v5076, 7
  %v5594 = vrot.slane %v5593, 2
  %v5595 = vrot.slane %v5077, 7
  %v5596 = vrot.slane %v5595, 2
  %v5597 = vrot.slane %v4886, 7
  %v5598 = vrot.slane %v5597, 2
  %v5599 = vrot.slane %v5078, 7
  %v5600 = vrot.slane %v5599, 2
  %v5601 = vrot.slane %v5079, 7
  %v5602 = vrot.slane %v5601, 2
  %v5603 = vrot.slane %v4887, 7
  %v5604 = vrot.slane %v5603, 2
  %v5605 = vrot.slane %v5080, 7
  %v5606 = vrot.slane %v5605, 2
  %v5607 = vrot.slane %v5081, 7
  %v5608 = vrot.slane %v5607, 2
  %v5609 = vrot.slane %v5082, 7
  %v5610 = vrot.slane %v5609, 2
  %v5611 = vrot.slane %v4888, 7
  %v5612 = vrot.slane %v5611, 2
  %v5613 = vrot.slane %v5083, 7
  %v5614 = vrot.slane %v5613, 2
  %v5615 = vrot.slane %v5084, 7
  %v5616 = vrot.slane %v5615, 2
  %v5813 = vmax.f32 %v4833, %v5226
  %v5814 = vmax.f32 %v4945, %v5228
  %v5815 = vmax.f32 %v4946, %v5230
  %v5816 = vmax.f32 %v4947, %v5232
  %v5817 = vmax.f32 %v4834, %v5234
  %v5818 = vmax.f32 %v4948, %v5236
  %v5819 = vmax.f32 %v4949, %v5238
  %v5820 = vmax.f32 %v4835, %v5240
  %v5821 = vmax.f32 %v4950, %v5242
  %v5822 = vmax.f32 %v4951, %v5244
  %v5823 = vmax.f32 %v4952, %v5246
  %v5824 = vmax.f32 %v4836, %v5248
  %v5825 = vmax.f32 %v4953, %v5250
  %v5826 = vmax.f32 %v4954, %v5252
  %v5827 = vmax.f32 %v4837, %v5254
  %v5828 = vmax.f32 %v4955, %v5256
  %v5829 = vmax.f32 %v4956, %v5258
  %v5830 = vmax.f32 %v4957, %v5260
  %v5831 = vmax.f32 %v4838, %v5262
  %v5832 = vmax.f32 %v4958, %v5264
  %v5833 = vmax.f32 %v4959, %v5266
  %v5834 = vmax.f32 %v4839, %v5268
  %v5835 = vmax.f32 %v4960, %v5270
  %v5836 = vmax.f32 %v4961, %v5272
  %v5837 = vmax.f32 %v4962, %v5274
  %v5838 = vmax.f32 %v4840, %v5276
  %v5839 = vmax.f32 %v4963, %v5278
  %v5840 = vmax.f32 %v4964, %v5280
  %v5841 = vmax.f32 %v4841, %v5282
  %v5842 = vmax.f32 %v4965, %v5284
  %v5843 = vmax.f32 %v4966, %v5286
  %v5844 = vmax.f32 %v4967, %v5288
  %v5845 = vmax.f32 %v4842, %v5290
  %v5846 = vmax.f32 %v4968, %v5292
  %v5847 = vmax.f32 %v4969, %v5294
  %v5848 = vmax.f32 %v4843, %v5296
  %v5849 = vmax.f32 %v4970, %v5298
  %v5850 = vmax.f32 %v4971, %v5300
  %v5851 = vmax.f32 %v4972, %v5302
  %v5852 = vmax.f32 %v4844, %v5304
  %v5853 = vmax.f32 %v4973, %v5306
  %v5854 = vmax.f32 %v4974, %v5308
  %v5855 = vmax.f32 %v4845, %v5310
  %v5856 = vmax.f32 %v4975, %v5312
  %v5857 = vmax.f32 %v4976, %v5314
  %v5858 = vmax.f32 %v4977, %v5316
  %v5859 = vmax.f32 %v4846, %v5318
  %v5860 = vmax.f32 %v4978, %v5320
  %v5861 = vmax.f32 %v4979, %v5322
  %v5862 = vmax.f32 %v4847, %v5324
  %v5863 = vmax.f32 %v4980, %v5326
  %v5864 = vmax.f32 %v4981, %v5328
  %v5865 = vmax.f32 %v4982, %v5330
  %v5866 = vmax.f32 %v4848, %v5332
  %v5867 = vmax.f32 %v4983, %v5334
  %v5868 = vmax.f32 %v4984, %v5336
  %v5869 = vmax.f32 %v4849, %v5338
  %v5870 = vmax.f32 %v4985, %v5340
  %v5871 = vmax.f32 %v4986, %v5342
  %v5872 = vmax.f32 %v4987, %v5344
  %v5873 = vmax.f32 %v4850, %v5346
  %v5874 = vmax.f32 %v4988, %v5348
  %v5875 = vmax.f32 %v4989, %v5350
  %v5876 = vmax.f32 %v4851, %v5352
  %v5877 = vmax.f32 %v4990, %v5354
  %v5878 = vmax.f32 %v4991, %v5356
  %v5879 = vmax.f32 %v4992, %v5358
  %v5880 = vmax.f32 %v4852, %v5360
  %v5881 = vmax.f32 %v4993, %v5362
  %v5882 = vmax.f32 %v4994, %v5364
  %v5883 = vmax.f32 %v4853, %v5366
  %v5884 = vmax.f32 %v4995, %v5368
  %v5885 = vmax.f32 %v4996, %v5370
  %v5886 = vmax.f32 %v4997, %v5372
  %v5887 = vmax.f32 %v4854, %v5374
  %v5888 = vmax.f32 %v4998, %v5376
  %v5889 = vmax.f32 %v4999, %v5378
  %v5890 = vmax.f32 %v4855, %v5380
  %v5891 = vmax.f32 %v5000, %v5382
  %v5892 = vmax.f32 %v5001, %v5384
  %v5893 = vmax.f32 %v5002, %v5386
  %v5894 = vmax.f32 %v4856, %v5388
  %v5895 = vmax.f32 %v5003, %v5390
  %v5896 = vmax.f32 %v5004, %v5392
  %v5897 = vmax.f32 %v4857, %v5394
  %v5898 = vmax.f32 %v5005, %v5396
  %v5899 = vmax.f32 %v5006, %v5398
  %v5900 = vmax.f32 %v5007, %v5400
  %v5901 = vmax.f32 %v4858, %v5402
  %v5902 = vmax.f32 %v5008, %v5404
  %v5903 = vmax.f32 %v5009, %v5406
  %v5904 = vmax.f32 %v4859, %v5408
  %v5905 = vmax.f32 %v5010, %v5410
  %v5906 = vmax.f32 %v5011, %v5412
  %v5907 = vmax.f32 %v5012, %v5414
  %v5908 = vmax.f32 %v4860, %v5416
  %v5909 = vmax.f32 %v5013, %v5418
  %v5910 = vmax.f32 %v5014, %v5420
  %v5911 = vmax.f32 %v4861, %v5422
  %v5912 = vmax.f32 %v5015, %v5424
  %v5913 = vmax.f32 %v5016, %v5426
  %v5914 = vmax.f32 %v5017, %v5428
  %v5915 = vmax.f32 %v4862, %v5430
  %v5916 = vmax.f32 %v5018, %v5432
  %v5917 = vmax.f32 %v5019, %v5434
  %v5918 = vmax.f32 %v4863, %v5436
  %v5919 = vmax.f32 %v5020, %v5438
  %v5920 = vmax.f32 %v5021, %v5440
  %v5921 = vmax.f32 %v5022, %v5442
  %v5922 = vmax.f32 %v4864, %v5444
  %v5923 = vmax.f32 %v5023, %v5446
  %v5924 = vmax.f32 %v5024, %v5448
  %v5925 = vmax.f32 %v4865, %v5450
  %v5926 = vmax.f32 %v5025, %v5452
  %v5927 = vmax.f32 %v5026, %v5454
  %v5928 = vmax.f32 %v5027, %v5456
  %v5929 = vmax.f32 %v4866, %v5458
  %v5930 = vmax.f32 %v5028, %v5460
  %v5931 = vmax.f32 %v5029, %v5462
  %v5932 = vmax.f32 %v4867, %v5464
  %v5933 = vmax.f32 %v5030, %v5466
  %v5934 = vmax.f32 %v5031, %v5468
  %v5935 = vmax.f32 %v5032, %v5470
  %v5936 = vmax.f32 %v4868, %v5472
  %v5937 = vmax.f32 %v5033, %v5474
  %v5938 = vmax.f32 %v5034, %v5476
  %v5939 = vmax.f32 %v4869, %v5478
  %v5940 = vmax.f32 %v5035, %v5480
  %v5941 = vmax.f32 %v5036, %v5482
  %v5942 = vmax.f32 %v5037, %v5484
  %v5943 = vmax.f32 %v4870, %v5486
  %v5944 = vmax.f32 %v5038, %v5488
  %v5945 = vmax.f32 %v5039, %v5490
  %v5946 = vmax.f32 %v4871, %v5492
  %v5947 = vmax.f32 %v5040, %v5494
  %v5948 = vmax.f32 %v5041, %v5496
  %v5949 = vmax.f32 %v5042, %v5498
  %v5950 = vmax.f32 %v4872, %v5500
  %v5951 = vmax.f32 %v5043, %v5502
  %v5952 = vmax.f32 %v5044, %v5504
  %v5953 = vmax.f32 %v4873, %v5506
  %v5954 = vmax.f32 %v5045, %v5508
  %v5955 = vmax.f32 %v5046, %v5510
  %v5956 = vmax.f32 %v5047, %v5512
  %v5957 = vmax.f32 %v4874, %v5514
  %v5958 = vmax.f32 %v5048, %v5516
  %v5959 = vmax.f32 %v5049, %v5518
  %v5960 = vmax.f32 %v4875, %v5520
  %v5961 = vmax.f32 %v5050, %v5522
  %v5962 = vmax.f32 %v5051, %v5524
  %v5963 = vmax.f32 %v5052, %v5526
  %v5964 = vmax.f32 %v4876, %v5528
  %v5965 = vmax.f32 %v5053, %v5530
  %v5966 = vmax.f32 %v5054, %v5532
  %v5967 = vmax.f32 %v4877, %v5534
  %v5968 = vmax.f32 %v5055, %v5536
  %v5969 = vmax.f32 %v5056, %v5538
  %v5970 = vmax.f32 %v5057, %v5540
  %v5971 = vmax.f32 %v4878, %v5542
  %v5972 = vmax.f32 %v5058, %v5544
  %v5973 = vmax.f32 %v5059, %v5546
  %v5974 = vmax.f32 %v4879, %v5548
  %v5975 = vmax.f32 %v5060, %v5550
  %v5976 = vmax.f32 %v5061, %v5552
  %v5977 = vmax.f32 %v5062, %v5554
  %v5978 = vmax.f32 %v4880, %v5556
  %v5979 = vmax.f32 %v5063, %v5558
  %v5980 = vmax.f32 %v5064, %v5560
  %v5981 = vmax.f32 %v4881, %v5562
  %v5982 = vmax.f32 %v5065, %v5564
  %v5983 = vmax.f32 %v5066, %v5566
  %v5984 = vmax.f32 %v5067, %v5568
  %v5985 = vmax.f32 %v4882, %v5570
  %v5986 = vmax.f32 %v5068, %v5572
  %v5987 = vmax.f32 %v5069, %v5574
  %v5988 = vmax.f32 %v4883, %v5576
  %v5989 = vmax.f32 %v5070, %v5578
  %v5990 = vmax.f32 %v5071, %v5580
  %v5991 = vmax.f32 %v5072, %v5582
  %v5992 = vmax.f32 %v4884, %v5584
  %v5993 = vmax.f32 %v5073, %v5586
  %v5994 = vmax.f32 %v5074, %v5588
  %v5995 = vmax.f32 %v4885, %v5590
  %v5996 = vmax.f32 %v5075, %v5592
  %v5997 = vmax.f32 %v5076, %v5594
  %v5998 = vmax.f32 %v5077, %v5596
  %v5999 = vmax.f32 %v4886, %v5598
  %v6000 = vmax.f32 %v5078, %v5600
  %v6001 = vmax.f32 %v5079, %v5602
  %v6002 = vmax.f32 %v4887, %v5604
  %v6003 = vmax.f32 %v5080, %v5606
  %v6004 = vmax.f32 %v5081, %v5608
  %v6005 = vmax.f32 %v5082, %v5610
  %v6006 = vmax.f32 %v4888, %v5612
  %v6007 = vmax.f32 %v5083, %v5614
  %v6008 = vmax.f32 %v5084, %v5616
  %v6009 = vmax.f32 %v5813, %v5820
  %v6010 = vmax.f32 %v5814, %v5821
  %v6011 = vmax.f32 %v5815, %v5822
  %v6012 = vmax.f32 %v5816, %v5823
  %v6013 = vmax.f32 %v5817, %v5824
  %v6014 = vmax.f32 %v5818, %v5825
  %v6015 = vmax.f32 %v5819, %v5826
  %v6016 = vmax.f32 %v5827, %v5834
  %v6017 = vmax.f32 %v5828, %v5835
  %v6018 = vmax.f32 %v5829, %v5836
  %v6019 = vmax.f32 %v5830, %v5837
  %v6020 = vmax.f32 %v5831, %v5838
  %v6021 = vmax.f32 %v5832, %v5839
  %v6022 = vmax.f32 %v5833, %v5840
  %v6023 = vmax.f32 %v5841, %v5848
  %v6024 = vmax.f32 %v5842, %v5849
  %v6025 = vmax.f32 %v5843, %v5850
  %v6026 = vmax.f32 %v5844, %v5851
  %v6027 = vmax.f32 %v5845, %v5852
  %v6028 = vmax.f32 %v5846, %v5853
  %v6029 = vmax.f32 %v5847, %v5854
  %v6030 = vmax.f32 %v5855, %v5862
  %v6031 = vmax.f32 %v5856, %v5863
  %v6032 = vmax.f32 %v5857, %v5864
  %v6033 = vmax.f32 %v5858, %v5865
  %v6034 = vmax.f32 %v5859, %v5866
  %v6035 = vmax.f32 %v5860, %v5867
  %v6036 = vmax.f32 %v5861, %v5868
  %v6037 = vmax.f32 %v5869, %v5876
  %v6038 = vmax.f32 %v5870, %v5877
  %v6039 = vmax.f32 %v5871, %v5878
  %v6040 = vmax.f32 %v5872, %v5879
  %v6041 = vmax.f32 %v5873, %v5880
  %v6042 = vmax.f32 %v5874, %v5881
  %v6043 = vmax.f32 %v5875, %v5882
  %v6044 = vmax.f32 %v5883, %v5890
  %v6045 = vmax.f32 %v5884, %v5891
  %v6046 = vmax.f32 %v5885, %v5892
  %v6047 = vmax.f32 %v5886, %v5893
  %v6048 = vmax.f32 %v5887, %v5894
  %v6049 = vmax.f32 %v5888, %v5895
  %v6050 = vmax.f32 %v5889, %v5896
  %v6051 = vmax.f32 %v5897, %v5904
  %v6052 = vmax.f32 %v5898, %v5905
  %v6053 = vmax.f32 %v5899, %v5906
  %v6054 = vmax.f32 %v5900, %v5907
  %v6055 = vmax.f32 %v5901, %v5908
  %v6056 = vmax.f32 %v5902, %v5909
  %v6057 = vmax.f32 %v5903, %v5910
  %v6058 = vmax.f32 %v5911, %v5918
  %v6059 = vmax.f32 %v5912, %v5919
  %v6060 = vmax.f32 %v5913, %v5920
  %v6061 = vmax.f32 %v5914, %v5921
  %v6062 = vmax.f32 %v5915, %v5922
  %v6063 = vmax.f32 %v5916, %v5923
  %v6064 = vmax.f32 %v5917, %v5924
  %v6065 = vmax.f32 %v5925, %v5932
  %v6066 = vmax.f32 %v5926, %v5933
  %v6067 = vmax.f32 %v5927, %v5934
  %v6068 = vmax.f32 %v5928, %v5935
  %v6069 = vmax.f32 %v5929, %v5936
  %v6070 = vmax.f32 %v5930, %v5937
  %v6071 = vmax.f32 %v5931, %v5938
  %v6072 = vmax.f32 %v5939, %v5946
  %v6073 = vmax.f32 %v5940, %v5947
  %v6074 = vmax.f32 %v5941, %v5948
  %v6075 = vmax.f32 %v5942, %v5949
  %v6076 = vmax.f32 %v5943, %v5950
  %v6077 = vmax.f32 %v5944, %v5951
  %v6078 = vmax.f32 %v5945, %v5952
  %v6079 = vmax.f32 %v5953, %v5960
  %v6080 = vmax.f32 %v5954, %v5961
  %v6081 = vmax.f32 %v5955, %v5962
  %v6082 = vmax.f32 %v5956, %v5963
  %v6083 = vmax.f32 %v5957, %v5964
  %v6084 = vmax.f32 %v5958, %v5965
  %v6085 = vmax.f32 %v5959, %v5966
  %v6086 = vmax.f32 %v5967, %v5974
  %v6087 = vmax.f32 %v5968, %v5975
  %v6088 = vmax.f32 %v5969, %v5976
  %v6089 = vmax.f32 %v5970, %v5977
  %v6090 = vmax.f32 %v5971, %v5978
  %v6091 = vmax.f32 %v5972, %v5979
  %v6092 = vmax.f32 %v5973, %v5980
  %v6093 = vmax.f32 %v5981, %v5988
  %v6094 = vmax.f32 %v5982, %v5989
  %v6095 = vmax.f32 %v5983, %v5990
  %v6096 = vmax.f32 %v5984, %v5991
  %v6097 = vmax.f32 %v5985, %v5992
  %v6098 = vmax.f32 %v5986, %v5993
  %v6099 = vmax.f32 %v5987, %v5994
  %v6100 = vmax.f32 %v5995, %v6002
  %v6101 = vmax.f32 %v5996, %v6003
  %v6102 = vmax.f32 %v5997, %v6004
  %v6103 = vmax.f32 %v5998, %v6005
  %v6104 = vmax.f32 %v5999, %v6006
  %v6105 = vmax.f32 %v6000, %v6007
  %v6106 = vmax.f32 %v6001, %v6008
  %vm6109 = vcmask 1044484
  %v6110 = vsel %vm6109, %v6009, %v6009
  %vm6111 = vcmask 1046534
  %v6112 = vsel %vm6111, %v6009, %v6110
  %v6113 = vrot.slane %v6058, 7
  %vm6114 = vcmask 1041409
  %v6115 = vsel %vm6114, %v6113, %v6112
  %vm6116 = vcmask 1043459
  %v6117 = vsel %vm6116, %v6113, %v6115
  %vm6118 = vcmask 1045509
  %v6119 = vsel %vm6118, %v6113, %v6117
  %vm6120 = vcmask 1047559
  %v6121 = vsel %vm6120, %v6113, %v6119
  %vm6123 = vcmask 517120
  %6124 = vst.msk [vmem:[%s4] sm:$0x3] %vm6123, %v6121
  %v6127 = vsel %vm6109, %v6010, %v6010
  %v6128 = vsel %vm6111, %v6010, %v6127
  %v6129 = vrot.slane %v6059, 7
  %v6130 = vsel %vm6114, %v6129, %v6128
  %v6131 = vsel %vm6116, %v6129, %v6130
  %v6132 = vsel %vm6118, %v6129, %v6131
  %v6133 = vsel %vm6120, %v6129, %v6132
  %6134 = vrot.lane.b32.xlu0 %v6133, 64
  %v6135 = vpop.permute.xlu0 %6134
  %vm6137 = vcmask 1041920
  %6138 = vst.msk [vmem:[%s4] sm:$0x3] %vm6137, %v6135
  %v6141 = vsel %vm6109, %v6011, %v6011
  %v6142 = vsel %vm6111, %v6011, %v6141
  %v6143 = vrot.slane %v6060, 7
  %v6144 = vsel %vm6114, %v6143, %v6142
  %v6145 = vsel %vm6116, %v6143, %v6144
  %v6146 = vsel %vm6118, %v6143, %v6145
  %v6147 = vsel %vm6120, %v6143, %v6146
  %6149 = vst.msk [vmem:[%s4 + $0x2] sm:$0x3] %vm6123, %v6147
  %v6152 = vsel %vm6109, %v6012, %v6012
  %v6153 = vsel %vm6111, %v6012, %v6152
  %v6154 = vrot.slane %v6061, 7
  %v6155 = vsel %vm6114, %v6154, %v6153
  %v6156 = vsel %vm6116, %v6154, %v6155
  %v6157 = vsel %vm6118, %v6154, %v6156
  %v6158 = vsel %vm6120, %v6154, %v6157
  %6159 = vrot.lane.b32.xlu0 %v6158, 64
  %v6160 = vpop.permute.xlu0 %6159
  %6162 = vst.msk [vmem:[%s4 + $0x2] sm:$0x3] %vm6137, %v6160
  %v6165 = vsel %vm6109, %v6013, %v6013
  %v6166 = vsel %vm6111, %v6013, %v6165
  %v6167 = vrot.slane %v6062, 7
  %v6168 = vsel %vm6114, %v6167, %v6166
  %v6169 = vsel %vm6116, %v6167, %v6168
  %v6170 = vsel %vm6118, %v6167, %v6169
  %v6171 = vsel %vm6120, %v6167, %v6170
  %6173 = vst.msk [vmem:[%s4 + $0x4] sm:$0x3] %vm6123, %v6171
  %v6176 = vsel %vm6109, %v6014, %v6014
  %v6177 = vsel %vm6111, %v6014, %v6176
  %v6178 = vrot.slane %v6063, 7
  %v6179 = vsel %vm6114, %v6178, %v6177
  %v6180 = vsel %vm6116, %v6178, %v6179
  %v6181 = vsel %vm6118, %v6178, %v6180
  %v6182 = vsel %vm6120, %v6178, %v6181
  %6183 = vrot.lane.b32.xlu0 %v6182, 64
  %v6184 = vpop.permute.xlu0 %6183
  %6186 = vst.msk [vmem:[%s4 + $0x4] sm:$0x3] %vm6137, %v6184
  %v6189 = vsel %vm6109, %v6015, %v6015
  %v6190 = vsel %vm6111, %v6015, %v6189
  %v6191 = vrot.slane %v6064, 7
  %v6192 = vsel %vm6114, %v6191, %v6190
  %v6193 = vsel %vm6116, %v6191, %v6192
  %v6194 = vsel %vm6118, %v6191, %v6193
  %v6195 = vsel %vm6120, %v6191, %v6194
  %6197 = vst.msk [vmem:[%s4 + $0x6] sm:$0x3] %vm6123, %v6195
  %v6200 = vsel %vm6109, %v6016, %v6016
  %v6201 = vsel %vm6111, %v6016, %v6200
  %v6202 = vrot.slane %v6065, 7
  %v6203 = vsel %vm6114, %v6202, %v6201
  %v6204 = vsel %vm6116, %v6202, %v6203
  %v6205 = vsel %vm6118, %v6202, %v6204
  %v6206 = vsel %vm6120, %v6202, %v6205
  %6207 = vrot.lane.b32.xlu0 %v6206, 64
  %v6208 = vpop.permute.xlu0 %6207
  %6210 = vst.msk [vmem:[%s4 + $0x6] sm:$0x3] %vm6137, %v6208
  %v6213 = vsel %vm6109, %v6017, %v6017
  %v6214 = vsel %vm6111, %v6017, %v6213
  %v6215 = vrot.slane %v6066, 7
  %v6216 = vsel %vm6114, %v6215, %v6214
  %v6217 = vsel %vm6116, %v6215, %v6216
  %v6218 = vsel %vm6118, %v6215, %v6217
  %v6219 = vsel %vm6120, %v6215, %v6218
  %6221 = vst.msk [vmem:[%s4 + $0x8] sm:$0x3] %vm6123, %v6219
  %v6224 = vsel %vm6109, %v6018, %v6018
  %v6225 = vsel %vm6111, %v6018, %v6224
  %v6226 = vrot.slane %v6067, 7
  %v6227 = vsel %vm6114, %v6226, %v6225
  %v6228 = vsel %vm6116, %v6226, %v6227
  %v6229 = vsel %vm6118, %v6226, %v6228
  %v6230 = vsel %vm6120, %v6226, %v6229
  %6231 = vrot.lane.b32.xlu0 %v6230, 64
  %v6232 = vpop.permute.xlu0 %6231
  %6234 = vst.msk [vmem:[%s4 + $0x8] sm:$0x3] %vm6137, %v6232
  %v6237 = vsel %vm6109, %v6019, %v6019
  %v6238 = vsel %vm6111, %v6019, %v6237
  %v6239 = vrot.slane %v6068, 7
  %v6240 = vsel %vm6114, %v6239, %v6238
  %v6241 = vsel %vm6116, %v6239, %v6240
  %v6242 = vsel %vm6118, %v6239, %v6241
  %v6243 = vsel %vm6120, %v6239, %v6242
  %6245 = vst.msk [vmem:[%s4 + $0xa] sm:$0x3] %vm6123, %v6243
  %v6248 = vsel %vm6109, %v6020, %v6020
  %v6249 = vsel %vm6111, %v6020, %v6248
  %v6250 = vrot.slane %v6069, 7
  %v6251 = vsel %vm6114, %v6250, %v6249
  %v6252 = vsel %vm6116, %v6250, %v6251
  %v6253 = vsel %vm6118, %v6250, %v6252
  %v6254 = vsel %vm6120, %v6250, %v6253
  %6255 = vrot.lane.b32.xlu0 %v6254, 64
  %v6256 = vpop.permute.xlu0 %6255
  %6258 = vst.msk [vmem:[%s4 + $0xa] sm:$0x3] %vm6137, %v6256
  %v6261 = vsel %vm6109, %v6021, %v6021
  %v6262 = vsel %vm6111, %v6021, %v6261
  %v6263 = vrot.slane %v6070, 7
  %v6264 = vsel %vm6114, %v6263, %v6262
  %v6265 = vsel %vm6116, %v6263, %v6264
  %v6266 = vsel %vm6118, %v6263, %v6265
  %v6267 = vsel %vm6120, %v6263, %v6266
  %6269 = vst.msk [vmem:[%s4 + $0xc] sm:$0x3] %vm6123, %v6267
  %v6272 = vsel %vm6109, %v6022, %v6022
  %v6273 = vsel %vm6111, %v6022, %v6272
  %v6274 = vrot.slane %v6071, 7
  %v6275 = vsel %vm6114, %v6274, %v6273
  %v6276 = vsel %vm6116, %v6274, %v6275
  %v6277 = vsel %vm6118, %v6274, %v6276
  %v6278 = vsel %vm6120, %v6274, %v6277
  %6279 = vrot.lane.b32.xlu0 %v6278, 64
  %v6280 = vpop.permute.xlu0 %6279
  %6282 = vst.msk [vmem:[%s4 + $0xc] sm:$0x3] %vm6137, %v6280
  %v6285 = vsel %vm6109, %v6023, %v6023
  %v6286 = vsel %vm6111, %v6023, %v6285
  %v6287 = vrot.slane %v6072, 7
  %v6288 = vsel %vm6114, %v6287, %v6286
  %v6289 = vsel %vm6116, %v6287, %v6288
  %v6290 = vsel %vm6118, %v6287, %v6289
  %v6291 = vsel %vm6120, %v6287, %v6290
  %6293 = vst.msk [vmem:[%s4 + $0xe] sm:$0x3] %vm6123, %v6291
  %v6296 = vsel %vm6109, %v6024, %v6024
  %v6297 = vsel %vm6111, %v6024, %v6296
  %v6298 = vrot.slane %v6073, 7
  %v6299 = vsel %vm6114, %v6298, %v6297
  %v6300 = vsel %vm6116, %v6298, %v6299
  %v6301 = vsel %vm6118, %v6298, %v6300
  %v6302 = vsel %vm6120, %v6298, %v6301
  %6303 = vrot.lane.b32.xlu0 %v6302, 64
  %v6304 = vpop.permute.xlu0 %6303
  %6306 = vst.msk [vmem:[%s4 + $0xe] sm:$0x3] %vm6137, %v6304
  %v6309 = vsel %vm6109, %v6025, %v6025
  %v6310 = vsel %vm6111, %v6025, %v6309
  %v6311 = vrot.slane %v6074, 7
  %v6312 = vsel %vm6114, %v6311, %v6310
  %v6313 = vsel %vm6116, %v6311, %v6312
  %v6314 = vsel %vm6118, %v6311, %v6313
  %v6315 = vsel %vm6120, %v6311, %v6314
  %6317 = vst.msk [vmem:[%s4 + $0x10] sm:$0x3] %vm6123, %v6315
  %v6320 = vsel %vm6109, %v6026, %v6026
  %v6321 = vsel %vm6111, %v6026, %v6320
  %v6322 = vrot.slane %v6075, 7
  %v6323 = vsel %vm6114, %v6322, %v6321
  %v6324 = vsel %vm6116, %v6322, %v6323
  %v6325 = vsel %vm6118, %v6322, %v6324
  %v6326 = vsel %vm6120, %v6322, %v6325
  %6327 = vrot.lane.b32.xlu0 %v6326, 64
  %v6328 = vpop.permute.xlu0 %6327
  %6330 = vst.msk [vmem:[%s4 + $0x10] sm:$0x3] %vm6137, %v6328
  %v6333 = vsel %vm6109, %v6027, %v6027
  %v6334 = vsel %vm6111, %v6027, %v6333
  %v6335 = vrot.slane %v6076, 7
  %v6336 = vsel %vm6114, %v6335, %v6334
  %v6337 = vsel %vm6116, %v6335, %v6336
  %v6338 = vsel %vm6118, %v6335, %v6337
  %v6339 = vsel %vm6120, %v6335, %v6338
  %6341 = vst.msk [vmem:[%s4 + $0x12] sm:$0x3] %vm6123, %v6339
  %v6344 = vsel %vm6109, %v6028, %v6028
  %v6345 = vsel %vm6111, %v6028, %v6344
  %v6346 = vrot.slane %v6077, 7
  %v6347 = vsel %vm6114, %v6346, %v6345
  %v6348 = vsel %vm6116, %v6346, %v6347
  %v6349 = vsel %vm6118, %v6346, %v6348
  %v6350 = vsel %vm6120, %v6346, %v6349
  %6351 = vrot.lane.b32.xlu0 %v6350, 64
  %v6352 = vpop.permute.xlu0 %6351
  %6354 = vst.msk [vmem:[%s4 + $0x12] sm:$0x3] %vm6137, %v6352
  %v6357 = vsel %vm6109, %v6029, %v6029
  %v6358 = vsel %vm6111, %v6029, %v6357
  %v6359 = vrot.slane %v6078, 7
  %v6360 = vsel %vm6114, %v6359, %v6358
  %v6361 = vsel %vm6116, %v6359, %v6360
  %v6362 = vsel %vm6118, %v6359, %v6361
  %v6363 = vsel %vm6120, %v6359, %v6362
  %6365 = vst.msk [vmem:[%s4 + $0x14] sm:$0x3] %vm6123, %v6363
  %v6368 = vsel %vm6109, %v6030, %v6030
  %v6369 = vsel %vm6111, %v6030, %v6368
  %v6370 = vrot.slane %v6079, 7
  %v6371 = vsel %vm6114, %v6370, %v6369
  %v6372 = vsel %vm6116, %v6370, %v6371
  %v6373 = vsel %vm6118, %v6370, %v6372
  %v6374 = vsel %vm6120, %v6370, %v6373
  %6375 = vrot.lane.b32.xlu0 %v6374, 64
  %v6376 = vpop.permute.xlu0 %6375
  %6378 = vst.msk [vmem:[%s4 + $0x14] sm:$0x3] %vm6137, %v6376
  %v6381 = vsel %vm6109, %v6031, %v6031
  %v6382 = vsel %vm6111, %v6031, %v6381
  %v6383 = vrot.slane %v6080, 7
  %v6384 = vsel %vm6114, %v6383, %v6382
  %v6385 = vsel %vm6116, %v6383, %v6384
  %v6386 = vsel %vm6118, %v6383, %v6385
  %v6387 = vsel %vm6120, %v6383, %v6386
  %6389 = vst.msk [vmem:[%s4 + $0x16] sm:$0x3] %vm6123, %v6387
  %v6392 = vsel %vm6109, %v6032, %v6032
  %v6393 = vsel %vm6111, %v6032, %v6392
  %v6394 = vrot.slane %v6081, 7
  %v6395 = vsel %vm6114, %v6394, %v6393
  %v6396 = vsel %vm6116, %v6394, %v6395
  %v6397 = vsel %vm6118, %v6394, %v6396
  %v6398 = vsel %vm6120, %v6394, %v6397
  %6399 = vrot.lane.b32.xlu0 %v6398, 64
  %v6400 = vpop.permute.xlu0 %6399
  %6402 = vst.msk [vmem:[%s4 + $0x16] sm:$0x3] %vm6137, %v6400
  %v6405 = vsel %vm6109, %v6033, %v6033
  %v6406 = vsel %vm6111, %v6033, %v6405
  %v6407 = vrot.slane %v6082, 7
  %v6408 = vsel %vm6114, %v6407, %v6406
  %v6409 = vsel %vm6116, %v6407, %v6408
  %v6410 = vsel %vm6118, %v6407, %v6409
  %v6411 = vsel %vm6120, %v6407, %v6410
  %6413 = vst.msk [vmem:[%s4 + $0x18] sm:$0x3] %vm6123, %v6411
  %v6416 = vsel %vm6109, %v6034, %v6034
  %v6417 = vsel %vm6111, %v6034, %v6416
  %v6418 = vrot.slane %v6083, 7
  %v6419 = vsel %vm6114, %v6418, %v6417
  %v6420 = vsel %vm6116, %v6418, %v6419
  %v6421 = vsel %vm6118, %v6418, %v6420
  %v6422 = vsel %vm6120, %v6418, %v6421
  %6423 = vrot.lane.b32.xlu0 %v6422, 64
  %v6424 = vpop.permute.xlu0 %6423
  %6426 = vst.msk [vmem:[%s4 + $0x18] sm:$0x3] %vm6137, %v6424
  %v6429 = vsel %vm6109, %v6035, %v6035
  %v6430 = vsel %vm6111, %v6035, %v6429
  %v6431 = vrot.slane %v6084, 7
  %v6432 = vsel %vm6114, %v6431, %v6430
  %v6433 = vsel %vm6116, %v6431, %v6432
  %v6434 = vsel %vm6118, %v6431, %v6433
  %v6435 = vsel %vm6120, %v6431, %v6434
  %6437 = vst.msk [vmem:[%s4 + $0x1a] sm:$0x3] %vm6123, %v6435
  %v6440 = vsel %vm6109, %v6036, %v6036
  %v6441 = vsel %vm6111, %v6036, %v6440
  %v6442 = vrot.slane %v6085, 7
  %v6443 = vsel %vm6114, %v6442, %v6441
  %v6444 = vsel %vm6116, %v6442, %v6443
  %v6445 = vsel %vm6118, %v6442, %v6444
  %v6446 = vsel %vm6120, %v6442, %v6445
  %6447 = vrot.lane.b32.xlu0 %v6446, 64
  %v6448 = vpop.permute.xlu0 %6447
  %6450 = vst.msk [vmem:[%s4 + $0x1a] sm:$0x3] %vm6137, %v6448
  %v6453 = vsel %vm6109, %v6037, %v6037
  %v6454 = vsel %vm6111, %v6037, %v6453
  %v6455 = vrot.slane %v6086, 7
  %v6456 = vsel %vm6114, %v6455, %v6454
  %v6457 = vsel %vm6116, %v6455, %v6456
  %v6458 = vsel %vm6118, %v6455, %v6457
  %v6459 = vsel %vm6120, %v6455, %v6458
  %6461 = vst.msk [vmem:[%s4 + $0x1c] sm:$0x3] %vm6123, %v6459
  %v6464 = vsel %vm6109, %v6038, %v6038
  %v6465 = vsel %vm6111, %v6038, %v6464
  %v6466 = vrot.slane %v6087, 7
  %v6467 = vsel %vm6114, %v6466, %v6465
  %v6468 = vsel %vm6116, %v6466, %v6467
  %v6469 = vsel %vm6118, %v6466, %v6468
  %v6470 = vsel %vm6120, %v6466, %v6469
  %6471 = vrot.lane.b32.xlu0 %v6470, 64
  %v6472 = vpop.permute.xlu0 %6471
  %6474 = vst.msk [vmem:[%s4 + $0x1c] sm:$0x3] %vm6137, %v6472
  %v6477 = vsel %vm6109, %v6039, %v6039
  %v6478 = vsel %vm6111, %v6039, %v6477
  %v6479 = vrot.slane %v6088, 7
  %v6480 = vsel %vm6114, %v6479, %v6478
  %v6481 = vsel %vm6116, %v6479, %v6480
  %v6482 = vsel %vm6118, %v6479, %v6481
  %v6483 = vsel %vm6120, %v6479, %v6482
  %6485 = vst.msk [vmem:[%s4 + $0x1e] sm:$0x3] %vm6123, %v6483
  %v6488 = vsel %vm6109, %v6040, %v6040
  %v6489 = vsel %vm6111, %v6040, %v6488
  %v6490 = vrot.slane %v6089, 7
  %v6491 = vsel %vm6114, %v6490, %v6489
  %v6492 = vsel %vm6116, %v6490, %v6491
  %v6493 = vsel %vm6118, %v6490, %v6492
  %v6494 = vsel %vm6120, %v6490, %v6493
  %6495 = vrot.lane.b32.xlu0 %v6494, 64
  %v6496 = vpop.permute.xlu0 %6495
  %6498 = vst.msk [vmem:[%s4 + $0x1e] sm:$0x3] %vm6137, %v6496
  %v6501 = vsel %vm6109, %v6041, %v6041
  %v6502 = vsel %vm6111, %v6041, %v6501
  %v6503 = vrot.slane %v6090, 7
  %v6504 = vsel %vm6114, %v6503, %v6502
  %v6505 = vsel %vm6116, %v6503, %v6504
  %v6506 = vsel %vm6118, %v6503, %v6505
  %v6507 = vsel %vm6120, %v6503, %v6506
  %6509 = vst.msk [vmem:[%s4 + $0x20] sm:$0x3] %vm6123, %v6507
  %v6512 = vsel %vm6109, %v6042, %v6042
  %v6513 = vsel %vm6111, %v6042, %v6512
  %v6514 = vrot.slane %v6091, 7
  %v6515 = vsel %vm6114, %v6514, %v6513
  %v6516 = vsel %vm6116, %v6514, %v6515
  %v6517 = vsel %vm6118, %v6514, %v6516
  %v6518 = vsel %vm6120, %v6514, %v6517
  %6519 = vrot.lane.b32.xlu0 %v6518, 64
  %v6520 = vpop.permute.xlu0 %6519
  %6522 = vst.msk [vmem:[%s4 + $0x20] sm:$0x3] %vm6137, %v6520
  %v6525 = vsel %vm6109, %v6043, %v6043
  %v6526 = vsel %vm6111, %v6043, %v6525
  %v6527 = vrot.slane %v6092, 7
  %v6528 = vsel %vm6114, %v6527, %v6526
  %v6529 = vsel %vm6116, %v6527, %v6528
  %v6530 = vsel %vm6118, %v6527, %v6529
  %v6531 = vsel %vm6120, %v6527, %v6530
  %6533 = vst.msk [vmem:[%s4 + $0x22] sm:$0x3] %vm6123, %v6531
  %v6536 = vsel %vm6109, %v6044, %v6044
  %v6537 = vsel %vm6111, %v6044, %v6536
  %v6538 = vrot.slane %v6093, 7
  %v6539 = vsel %vm6114, %v6538, %v6537
  %v6540 = vsel %vm6116, %v6538, %v6539
  %v6541 = vsel %vm6118, %v6538, %v6540
  %v6542 = vsel %vm6120, %v6538, %v6541
  %6543 = vrot.lane.b32.xlu0 %v6542, 64
  %v6544 = vpop.permute.xlu0 %6543
  %6546 = vst.msk [vmem:[%s4 + $0x22] sm:$0x3] %vm6137, %v6544
  %v6549 = vsel %vm6109, %v6045, %v6045
  %v6550 = vsel %vm6111, %v6045, %v6549
  %v6551 = vrot.slane %v6094, 7
  %v6552 = vsel %vm6114, %v6551, %v6550
  %v6553 = vsel %vm6116, %v6551, %v6552
  %v6554 = vsel %vm6118, %v6551, %v6553
  %v6555 = vsel %vm6120, %v6551, %v6554
  %6557 = vst.msk [vmem:[%s4 + $0x24] sm:$0x3] %vm6123, %v6555
  %v6560 = vsel %vm6109, %v6046, %v6046
  %v6561 = vsel %vm6111, %v6046, %v6560
  %v6562 = vrot.slane %v6095, 7
  %v6563 = vsel %vm6114, %v6562, %v6561
  %v6564 = vsel %vm6116, %v6562, %v6563
  %v6565 = vsel %vm6118, %v6562, %v6564
  %v6566 = vsel %vm6120, %v6562, %v6565
  %6567 = vrot.lane.b32.xlu0 %v6566, 64
  %v6568 = vpop.permute.xlu0 %6567
  %6570 = vst.msk [vmem:[%s4 + $0x24] sm:$0x3] %vm6137, %v6568
  %v6573 = vsel %vm6109, %v6047, %v6047
  %v6574 = vsel %vm6111, %v6047, %v6573
  %v6575 = vrot.slane %v6096, 7
  %v6576 = vsel %vm6114, %v6575, %v6574
  %v6577 = vsel %vm6116, %v6575, %v6576
  %v6578 = vsel %vm6118, %v6575, %v6577
  %v6579 = vsel %vm6120, %v6575, %v6578
  %6581 = vst.msk [vmem:[%s4 + $0x26] sm:$0x3] %vm6123, %v6579
  %v6584 = vsel %vm6109, %v6048, %v6048
  %v6585 = vsel %vm6111, %v6048, %v6584
  %v6586 = vrot.slane %v6097, 7
  %v6587 = vsel %vm6114, %v6586, %v6585
  %v6588 = vsel %vm6116, %v6586, %v6587
  %v6589 = vsel %vm6118, %v6586, %v6588
  %v6590 = vsel %vm6120, %v6586, %v6589
  %6591 = vrot.lane.b32.xlu0 %v6590, 64
  %v6592 = vpop.permute.xlu0 %6591
  %6594 = vst.msk [vmem:[%s4 + $0x26] sm:$0x3] %vm6137, %v6592
  %v6597 = vsel %vm6109, %v6049, %v6049
  %v6598 = vsel %vm6111, %v6049, %v6597
  %v6599 = vrot.slane %v6098, 7
  %v6600 = vsel %vm6114, %v6599, %v6598
  %v6601 = vsel %vm6116, %v6599, %v6600
  %v6602 = vsel %vm6118, %v6599, %v6601
  %v6603 = vsel %vm6120, %v6599, %v6602
  %6605 = vst.msk [vmem:[%s4 + $0x28] sm:$0x3] %vm6123, %v6603
  %v6608 = vsel %vm6109, %v6050, %v6050
  %v6609 = vsel %vm6111, %v6050, %v6608
  %v6610 = vrot.slane %v6099, 7
  %v6611 = vsel %vm6114, %v6610, %v6609
  %v6612 = vsel %vm6116, %v6610, %v6611
  %v6613 = vsel %vm6118, %v6610, %v6612
  %v6614 = vsel %vm6120, %v6610, %v6613
  %6615 = vrot.lane.b32.xlu0 %v6614, 64
  %v6616 = vpop.permute.xlu0 %6615
  %6618 = vst.msk [vmem:[%s4 + $0x28] sm:$0x3] %vm6137, %v6616
  %v6621 = vsel %vm6109, %v6051, %v6051
  %v6622 = vsel %vm6111, %v6051, %v6621
  %v6623 = vrot.slane %v6100, 7
  %v6624 = vsel %vm6114, %v6623, %v6622
  %v6625 = vsel %vm6116, %v6623, %v6624
  %v6626 = vsel %vm6118, %v6623, %v6625
  %v6627 = vsel %vm6120, %v6623, %v6626
  %6629 = vst.msk [vmem:[%s4 + $0x2a] sm:$0x3] %vm6123, %v6627
  %v6632 = vsel %vm6109, %v6052, %v6052
  %v6633 = vsel %vm6111, %v6052, %v6632
  %v6634 = vrot.slane %v6101, 7
  %v6635 = vsel %vm6114, %v6634, %v6633
  %v6636 = vsel %vm6116, %v6634, %v6635
  %v6637 = vsel %vm6118, %v6634, %v6636
  %v6638 = vsel %vm6120, %v6634, %v6637
  %6639 = vrot.lane.b32.xlu0 %v6638, 64
  %v6640 = vpop.permute.xlu0 %6639
  %6642 = vst.msk [vmem:[%s4 + $0x2a] sm:$0x3] %vm6137, %v6640
  %v6645 = vsel %vm6109, %v6053, %v6053
  %v6646 = vsel %vm6111, %v6053, %v6645
  %v6647 = vrot.slane %v6102, 7
  %v6648 = vsel %vm6114, %v6647, %v6646
  %v6649 = vsel %vm6116, %v6647, %v6648
  %v6650 = vsel %vm6118, %v6647, %v6649
  %v6651 = vsel %vm6120, %v6647, %v6650
  %6653 = vst.msk [vmem:[%s4 + $0x2c] sm:$0x3] %vm6123, %v6651
  %v6656 = vsel %vm6109, %v6054, %v6054
  %v6657 = vsel %vm6111, %v6054, %v6656
  %v6658 = vrot.slane %v6103, 7
  %v6659 = vsel %vm6114, %v6658, %v6657
  %v6660 = vsel %vm6116, %v6658, %v6659
  %v6661 = vsel %vm6118, %v6658, %v6660
  %v6662 = vsel %vm6120, %v6658, %v6661
  %6663 = vrot.lane.b32.xlu0 %v6662, 64
  %v6664 = vpop.permute.xlu0 %6663
  %6666 = vst.msk [vmem:[%s4 + $0x2c] sm:$0x3] %vm6137, %v6664
  %v6669 = vsel %vm6109, %v6055, %v6055
  %v6670 = vsel %vm6111, %v6055, %v6669
  %v6671 = vrot.slane %v6104, 7
  %v6672 = vsel %vm6114, %v6671, %v6670
  %v6673 = vsel %vm6116, %v6671, %v6672
  %v6674 = vsel %vm6118, %v6671, %v6673
  %v6675 = vsel %vm6120, %v6671, %v6674
  %6677 = vst.msk [vmem:[%s4 + $0x2e] sm:$0x3] %vm6123, %v6675
  %v6680 = vsel %vm6109, %v6056, %v6056
  %v6681 = vsel %vm6111, %v6056, %v6680
  %v6682 = vrot.slane %v6105, 7
  %v6683 = vsel %vm6114, %v6682, %v6681
  %v6684 = vsel %vm6116, %v6682, %v6683
  %v6685 = vsel %vm6118, %v6682, %v6684
  %v6686 = vsel %vm6120, %v6682, %v6685
  %6687 = vrot.lane.b32.xlu0 %v6686, 64
  %v6688 = vpop.permute.xlu0 %6687
  %6690 = vst.msk [vmem:[%s4 + $0x2e] sm:$0x3] %vm6137, %v6688
  %v6693 = vsel %vm6109, %v6057, %v6057
  %v6694 = vsel %vm6111, %v6057, %v6693
  %v6695 = vrot.slane %v6106, 7
  %v6696 = vsel %vm6114, %v6695, %v6694
  %v6697 = vsel %vm6116, %v6695, %v6696
  %v6698 = vsel %vm6118, %v6695, %v6697
  %v6699 = vsel %vm6120, %v6695, %v6698
  %6701 = vst.msk [vmem:[%s4 + $0x30] sm:$0x3] %vm6123, %v6699
  // Predicated region
  $region18: #{feature_extractor_pallas.2} parent=0 // pred_check
    _
  $region19: #{feature_extractor_pallas.2} parent=0 // pred_check_branch
    %6703 = sbr.rel (0) target = $region21
  $region20: #{feature_extractor_pallas.2} parent=0 // pred_region
    _
  $region21: #{feature_extractor_pallas.2} parent=0 // pred_fallthru
    _
  // Predicated region
  $region22: #{feature_extractor_pallas.2} parent=0 // pred_check
    _
  $region23: #{feature_extractor_pallas.2} parent=0 // pred_check_branch
    %6705 = sbr.rel (0) target = $region25
  $region24: #{feature_extractor_pallas.2} parent=0 // pred_region
    _
  $region25: #{feature_extractor_pallas.2} parent=0 // pred_fallthru
    _

</llo_original>
